<compile_context>
chip_gen: v7x
topology: tpu7x:2x2x1
jax: 0.10.0
libtpu: 0.0.40
codegen_flags: <defaults>
</compile_context>

<pallas_src>
import jax
import jax.numpy as jnp
from jax.experimental import pallas as pl
from jax.experimental.pallas import tpu as pltpu


# ----------------------------------------------------------------------------
# Dimensions (logical -> padded where needed)
# ----------------------------------------------------------------------------
D_RAW, D_PAD = 78, 128          # num_features_xd
D2_RAW, D2_PAD = 156, 256       # 2 * 78
D3_RAW, D3_PAD = 312, 384       # 4 * 78
G1 = 1024                       # fc_g1 hidden
OUT_DIM = 64                    # branch output_dim (kept unpadded)
XT_RAW, XT_PAD = 1000, 1024     # target features
H1 = 128                        # fc1_xt out / fc1 out
H2_RAW, H2_PAD = 32, 128        # fc2 out
NOUT_RAW, NOUT_PAD = 1, 128     # final output
BP = 8                          # graphs padded to 8 (sublane)

PARAM_ORDER = ("w1", "b1", "w2", "b2", "w3", "b3", "wg1", "bg1", "wg2", "bg2",
               "wxt", "bxt", "wf1a", "wf1b", "wf1c", "bf1",
               "wf2", "bf2", "wo", "bo")


def _round_up(n, m):
    return (n + m - 1) // m * m


# ----------------------------------------------------------------------------
# Fused Pallas kernel (both branches + head, single invocation)
# ----------------------------------------------------------------------------

def _gcnnet_kernel(a_ref, x_ref, m_ref, xt_ref,
                   w1_ref, b1_ref, w2_ref, b2_ref, w3_ref, b3_ref,
                   wg1_ref, bg1_ref, wg2_ref, bg2_ref,
                   wxt_ref, bxt_ref, wf1a_ref, wf1b_ref, wf1c_ref, bf1_ref,
                   wf2_ref, bf2_ref, wo_ref, bo_ref,
                   o_ref):
    f32, bf16 = jnp.float32, jnp.bfloat16

    def gcn(a, h_bf16, w, b):
        # (A @ H) @ W: cheaper than A @ (H @ W) for N << F and only the
        # narrow aggregate gets cast to bf16.  Associativity-exact reorder.
        agg = jnp.dot(a, h_bf16, preferred_element_type=f32)
        z = jnp.dot(agg.astype(bf16), w, preferred_element_type=f32) + b
        return jnp.maximum(z, 0.0)

    def branch(i):
        a = a_ref[i]                                           # (N, N)   bf16
        h0 = x_ref[i]                                          # (N, 128) bf16
        m = m_ref[i]                                           # (N, BP)  f32
        h1 = gcn(a, h0, w1_ref[i], b1_ref[i])                  # (N, 128)
        h2 = gcn(a, h1.astype(bf16), w2_ref[i], b2_ref[i])     # (N, 256)
        h3 = gcn(a, h2.astype(bf16), w3_ref[i], b3_ref[i])     # (N, 384)

        # Global max pool.  INVARIANT: h3 is post-ReLU (>= 0), so a 0.0 fill
        # equals -inf here and keeps padded/empty graph rows finite.
        # 2-D masked max per graph -> no (N, BP, F) broadcast.
        rows = []
        for g in range(BP):
            sel = m[:, g:g + 1] > 0.5                          # (N, 1)
            rows.append(jnp.max(jnp.where(sel, h3, 0.0),
                                axis=0, keepdims=True))        # (1, 384)
        pooled = jnp.concatenate(rows, axis=0)                 # (BP, 384)

        g1 = jnp.maximum(
            jnp.dot(pooled.astype(bf16), wg1_ref[i],
                    preferred_element_type=f32) + bg1_ref[i], 0.0)   # (BP, 1024)
        # dropout(p=0.2) == identity at inference
        g2 = (jnp.dot(g1.astype(bf16), wg2_ref[i],
                      preferred_element_type=f32) + bg2_ref[i])      # (BP, 64)
        return g2

    xd1 = branch(0)                                            # (BP, 64)
    xd2 = branch(1)                                            # (BP, 64)

    # fc1_xt (no ReLU, matching the reference forward)
    xt = (jnp.dot(xt_ref[...], wxt_ref[...], preferred_element_type=f32)
          + bxt_ref[...])                                      # (BP, 128)

    # fc1 over concat(xd1, xd2, xt) expressed as a sum of three matmuls
    # (weight rows split by input block) -> no in-kernel concatenation.
    h = (jnp.dot(xd1.astype(bf16), wf1a_ref[...], preferred_element_type=f32)
         + jnp.dot(xd2.astype(bf16), wf1b_ref[...], preferred_element_type=f32)
         + jnp.dot(xt.astype(bf16), wf1c_ref[...], preferred_element_type=f32)
         + bf1_ref[...])
    h = jnp.maximum(h, 0.0)                                    # (BP, 128)

    h = jnp.maximum(
        jnp.dot(h.astype(bf16), wf2_ref[...], preferred_element_type=f32)
        + bf2_ref[...], 0.0)                                   # (BP, 128) padded

    o_ref[...] = (jnp.dot(h.astype(bf16), wo_ref[...], preferred_element_type=f32)
                  + bo_ref[...])                               # (BP, 128); col 0 real


_VMEM = pl.BlockSpec(memory_space=pltpu.MemorySpace.VMEM)


@jax.jit
def gcnnet_forward_padded(params, a_all, x_all, m_all, xt_pad):
    """a_all: (2,N,N) bf16, x_all: (2,N,128) bf16, m_all: (2,N,8) f32,
    xt_pad: (8,1024) bf16  ->  (8, 128) f32 (real result at [:B, :1])."""
    args = [params[k] for k in PARAM_ORDER]
    return pl.pallas_call(
        _gcnnet_kernel,
        out_shape=jax.ShapeDtypeStruct((BP, NOUT_PAD), jnp.float32),
        in_specs=[_VMEM] * (4 + len(PARAM_ORDER)),
        out_specs=_VMEM,
    )(a_all, x_all, m_all, xt_pad, *args)


# ----------------------------------------------------------------------------
# Glue: graph preprocessing, padding, parameter init
# ----------------------------------------------------------------------------

def normalized_adjacency(edge_index, num_nodes):
    """D^-1/2 (A + I) D^-1/2, dense, from a (2, E) edge_index."""
    src, dst = edge_index[0], edge_index[1]
    a = jnp.zeros((num_nodes, num_nodes), jnp.float32)
    a = a.at[src, dst].set(1.0)
    a = jnp.maximum(a, jnp.eye(num_nodes, dtype=jnp.float32))  # self-loops
    deg = a.sum(axis=1)
    dinv = jax.lax.rsqrt(deg)
    return dinv[:, None] * a * dinv[None, :]


def pad2(x, rows, cols, dtype):
    out = jnp.zeros((rows, cols), dtype)
    return out.at[:x.shape[0], :x.shape[1]].set(x.astype(dtype))


def preprocess_graph(x, edge_index, batch, num_nodes, num_graphs, n_pad):
    assert num_graphs <= BP, f"num_graphs={num_graphs} > BP={BP} not supported"
    a = normalized_adjacency(edge_index, num_nodes)
    m = (batch[:, None] == jnp.arange(BP)[None, :]).astype(jnp.float32)
    return (pad2(a, n_pad, n_pad, jnp.bfloat16),
            pad2(x, n_pad, D_PAD, jnp.bfloat16),
            pad2(m, n_pad, BP, jnp.float32))


def init_raw_params(key, scale=0.05):
    keys = iter(jax.random.split(key, 32))

    def dense(fin, fout):
        w = scale * jax.random.normal(next(keys), (fin, fout), jnp.float32)
        b = scale * jax.random.normal(next(keys), (fout,), jnp.float32)
        # Snap weights to the bf16 grid so kernel (bf16) and reference (f32)
        # use identical weight values -> comparison isolates kernel numerics.
        w = w.astype(jnp.bfloat16).astype(jnp.float32)
        return w, b

    def branch():
        return dict(w1=dense(D_RAW, D_RAW), w2=dense(D_RAW, D2_RAW),
                    w3=dense(D2_RAW, D3_RAW), wg1=dense(D3_RAW, G1),
                    wg2=dense(G1, OUT_DIM))

    # Reference model has separate D1_* and D2_* parameter sets -> keep both.
    return dict(d1=branch(), d2=branch(),
                fc1_xt=dense(XT_RAW, H1), fc1=dense(2 * OUT_DIM + H1, H1),
                fc2=dense(H1, H2_RAW), out=dense(H2_RAW, NOUT_RAW))


def pack_params(raw):
    """Pad + cast weights to bf16, stack the two branch parameter sets."""
    def wpad(w, rp, cp):
        return pad2(w, rp, cp, jnp.bfloat16)

    def bpad(b, cp):
        return pad2(b[None, :], 1, cp, jnp.float32)

    def stackp(name, rp, cp):
        return (jnp.stack([wpad(raw[d][name][0], rp, cp) for d in ("d1", "d2")]),
                jnp.stack([bpad(raw[d][name][1], cp) for d in ("d1", "d2")]))

    p = {}
    p["w1"], p["b1"] = stackp("w1", D_PAD, D_PAD)
    p["w2"], p["b2"] = stackp("w2", D_PAD, D2_PAD)
    p["w3"], p["b3"] = stackp("w3", D2_PAD, D3_PAD)
    p["wg1"], p["bg1"] = stackp("wg1", D3_PAD, G1)
    p["wg2"], p["bg2"] = stackp("wg2", G1, OUT_DIM)       # 64 lanes, unpadded

    wxt, bxt = raw["fc1_xt"]
    p["wxt"], p["bxt"] = wpad(wxt, XT_PAD, H1), bpad(bxt, H1)

    wf1, bf1 = raw["fc1"]                                  # (256, 128)
    p["wf1a"] = wpad(wf1[:OUT_DIM], OUT_DIM, H1)           # xd1 rows
    p["wf1b"] = wpad(wf1[OUT_DIM:2 * OUT_DIM], OUT_DIM, H1)  # xd2 rows
    p["wf1c"] = wpad(wf1[2 * OUT_DIM:], H1, H1)            # xt rows
    p["bf1"] = bpad(bf1, H1)

    wf2, bf2 = raw["fc2"]
    p["wf2"], p["bf2"] = wpad(wf2, H1, H2_PAD), bpad(bf2, H2_PAD)
    wo, bo = raw["out"]
    p["wo"], p["bo"] = wpad(wo, H2_PAD, NOUT_PAD), bpad(bo, NOUT_PAD)
    return p


# ----------------------------------------------------------------------------
# Pure-JAX f32 reference (mirrors GCNNet.forward; dropout = identity)
# ----------------------------------------------------------------------------

def reference_forward(raw, x1, ei1, batch1, x2, ei2, batch2, target, num_graphs):
    def branch(x, ei, batch, p):
        a = normalized_adjacency(ei, x.shape[0])
        h = x
        for name in ("w1", "w2", "w3"):
            w, b = p[name]
            h = jnp.maximum(a @ (h @ w) + b, 0.0)
        pooled = jnp.stack([
            jnp.max(jnp.where((batch == g)[:, None], h, -jnp.inf), axis=0)
            for g in range(num_graphs)])
        w, b = p["wg1"]
        g1 = jnp.maximum(pooled @ w + b, 0.0)
        w, b = p["wg2"]
        return g1 @ w + b

    xd1 = branch(x1, ei1, batch1, raw["d1"])
    xd2 = branch(x2, ei2, batch2, raw["d2"])
    w, b = raw["fc1_xt"]
    xt = target @ w + b
    xc = jnp.concatenate([xd1, xd2, xt], axis=1)
    w, b = raw["fc1"]
    h = jnp.maximum(xc @ w + b, 0.0)
    w, b = raw["fc2"]
    h = jnp.maximum(h @ w + b, 0.0)
    w, b = raw["out"]
    return h @ w + b


# ----------------------------------------------------------------------------
# Example inputs + run
# ----------------------------------------------------------------------------

def make_ring_edge_index(nodes_per_graph, num_graphs):
    src, dst = [], []
    for g in range(num_graphs):
        off = g * nodes_per_graph
        for i in range(nodes_per_graph):
            j = (i + 1) % nodes_per_graph
            src += [off + i, off + j]
            dst += [off + j, off + i]
    return jnp.array([src, dst], dtype=jnp.int32)


if __name__ == "__main__":
    key = jax.random.PRNGKey(0)
    k_params, k_x1, k_x2, k_t = jax.random.split(key, 4)

    num_graphs = 2
    nodes_per_graph = 8
    n_nodes = num_graphs * nodes_per_graph          # 16
    n_pad = _round_up(n_nodes, 8)

    raw = init_raw_params(k_params)
    params = pack_params(raw)

    def bf16_snap(x):
        return x.astype(jnp.bfloat16).astype(jnp.float32)

    x1 = bf16_snap(jax.random.normal(k_x1, (n_nodes, D_RAW), jnp.float32))
    x2 = bf16_snap(jax.random.normal(k_x2, (n_nodes, D_RAW), jnp.float32))
    target = bf16_snap(jax.random.normal(k_t, (num_graphs, XT_RAW), jnp.float32))
    edge_index = make_ring_edge_index(nodes_per_graph, num_graphs)
    batch = jnp.repeat(jnp.arange(num_graphs, dtype=jnp.int32), nodes_per_graph)

    a1p, x1p, m1p = preprocess_graph(x1, edge_index, batch, n_nodes, num_graphs, n_pad)
    a2p, x2p, m2p = preprocess_graph(x2, edge_index, batch, n_nodes, num_graphs, n_pad)
    a_all = jnp.stack([a1p, a2p])                   # (2, N, N)   bf16
    x_all = jnp.stack([x1p, x2p])                   # (2, N, 128) bf16
    m_all = jnp.stack([m1p, m2p])                   # (2, N, 8)   f32
    xt_pad = pad2(target, BP, XT_PAD, jnp.bfloat16) # (8, 1024)   bf16

    out_pad = jax.block_until_ready(
        gcnnet_forward_padded(params, a_all, x_all, m_all, xt_pad))
    out = out_pad[:num_graphs, :NOUT_RAW]           # (B, 1)

    ref = reference_forward(raw, x1, edge_index, batch,
                            x2, edge_index, batch, target, num_graphs)

    assert out.shape == (num_graphs, NOUT_RAW), out.shape
    assert bool(jnp.all(jnp.isfinite(out)))
    assert bool(jnp.allclose(out, ref, atol=1e-2, rtol=5e-2)), (out, ref)
    print("KERNEL_OK")
</pallas_src>

<mosaic_0001>
module attributes {stable_mosaic.version = 11 : i64} {
  func.func @_gcnnet_kernel(%arg0: memref<2x16x16xbf16, #tpu.memory_space<vmem>>, %arg1: memref<2x16x128xbf16, #tpu.memory_space<vmem>>, %arg2: memref<2x16x8xf32, #tpu.memory_space<vmem>>, %arg3: memref<8x1024xbf16, #tpu.memory_space<vmem>>, %arg4: memref<2x128x128xbf16, #tpu.memory_space<vmem>>, %arg5: memref<2x1x128xf32, #tpu.memory_space<vmem>>, %arg6: memref<2x128x256xbf16, #tpu.memory_space<vmem>>, %arg7: memref<2x1x256xf32, #tpu.memory_space<vmem>>, %arg8: memref<2x256x384xbf16, #tpu.memory_space<vmem>>, %arg9: memref<2x1x384xf32, #tpu.memory_space<vmem>>, %arg10: memref<2x384x1024xbf16, #tpu.memory_space<vmem>>, %arg11: memref<2x1x1024xf32, #tpu.memory_space<vmem>>, %arg12: memref<2x1024x64xbf16, #tpu.memory_space<vmem>>, %arg13: memref<2x1x64xf32, #tpu.memory_space<vmem>>, %arg14: memref<1024x128xbf16, #tpu.memory_space<vmem>>, %arg15: memref<1x128xf32, #tpu.memory_space<vmem>>, %arg16: memref<64x128xbf16, #tpu.memory_space<vmem>>, %arg17: memref<64x128xbf16, #tpu.memory_space<vmem>>, %arg18: memref<128x128xbf16, #tpu.memory_space<vmem>>, %arg19: memref<1x128xf32, #tpu.memory_space<vmem>>, %arg20: memref<128x128xbf16, #tpu.memory_space<vmem>>, %arg21: memref<1x128xf32, #tpu.memory_space<vmem>>, %arg22: memref<128x128xbf16, #tpu.memory_space<vmem>>, %arg23: memref<1x128xf32, #tpu.memory_space<vmem>>, %arg24: memref<8x128xf32, #tpu.memory_space<vmem>>) attributes {dimension_semantics = [], scalar_prefetch = 0 : i64, scratch_operands = 0 : i64, tpu.core_type = #tpu.core_type<tc>} {
    %c0 = arith.constant 0 : index
    %c0_0 = arith.constant 0 : index
    %c0_1 = arith.constant 0 : index
    %0 = vector.load %arg0[%c0, %c0_0, %c0_1] : memref<2x16x16xbf16, #tpu.memory_space<vmem>>, vector<1x16x16xbf16>
    %1 = vector.shape_cast %0 : vector<1x16x16xbf16> to vector<16x16xbf16>
    %c0_2 = arith.constant 0 : index
    %c0_3 = arith.constant 0 : index
    %c0_4 = arith.constant 0 : index
    %2 = vector.load %arg1[%c0_2, %c0_3, %c0_4] : memref<2x16x128xbf16, #tpu.memory_space<vmem>>, vector<1x16x128xbf16>
    %3 = vector.shape_cast %2 : vector<1x16x128xbf16> to vector<16x128xbf16>
    %c0_5 = arith.constant 0 : index
    %c0_6 = arith.constant 0 : index
    %c0_7 = arith.constant 0 : index
    %4 = vector.load %arg2[%c0_5, %c0_6, %c0_7] : memref<2x16x8xf32, #tpu.memory_space<vmem>>, vector<1x16x8xf32>
    %5 = vector.shape_cast %4 : vector<1x16x8xf32> to vector<16x8xf32>
    %c0_8 = arith.constant 0 : index
    %c0_9 = arith.constant 0 : index
    %c0_10 = arith.constant 0 : index
    %6 = vector.load %arg4[%c0_8, %c0_9, %c0_10] : memref<2x128x128xbf16, #tpu.memory_space<vmem>>, vector<1x128x128xbf16>
    %7 = vector.shape_cast %6 : vector<1x128x128xbf16> to vector<128x128xbf16>
    %c0_11 = arith.constant 0 : index
    %c0_12 = arith.constant 0 : index
    %c0_13 = arith.constant 0 : index
    %8 = vector.load %arg5[%c0_11, %c0_12, %c0_13] : memref<2x1x128xf32, #tpu.memory_space<vmem>>, vector<1x1x128xf32>
    %9 = vector.shape_cast %8 : vector<1x1x128xf32> to vector<1x128xf32>
    %cst = arith.constant dense<0.000000e+00> : vector<16x128xf32>
    %10 = tpu.matmul %1, %3, %cst {dimension_numbers = #tpu.dot_dimension_numbers<[1], [0], [0], [1], [0, 0, 1, 1], [], []>} : vector<16x16xbf16>, vector<16x128xbf16>, vector<16x128xf32> -> vector<16x128xf32>
    %11 = arith.truncf %10 : vector<16x128xf32> to vector<16x128xbf16>
    %cst_14 = arith.constant dense<0.000000e+00> : vector<16x128xf32>
    %12 = tpu.matmul %11, %7, %cst_14 {dimension_numbers = #tpu.dot_dimension_numbers<[1], [0], [0], [1], [0, 0, 1, 1], [], []>} : vector<16x128xbf16>, vector<128x128xbf16>, vector<16x128xf32> -> vector<16x128xf32>
    %13 = vector.broadcast %9 : vector<1x128xf32> to vector<16x128xf32>
    %14 = arith.addf %12, %13 : vector<16x128xf32>
    %cst_15 = arith.constant 0.000000e+00 : f32
    %15 = vector.broadcast %cst_15 : f32 to vector<16x128xf32>
    %16 = arith.maximumf %14, %15 : vector<16x128xf32>
    %17 = arith.truncf %16 : vector<16x128xf32> to vector<16x128xbf16>
    %c0_16 = arith.constant 0 : index
    %c0_17 = arith.constant 0 : index
    %c0_18 = arith.constant 0 : index
    %18 = vector.load %arg6[%c0_16, %c0_17, %c0_18] : memref<2x128x256xbf16, #tpu.memory_space<vmem>>, vector<1x128x256xbf16>
    %19 = vector.shape_cast %18 : vector<1x128x256xbf16> to vector<128x256xbf16>
    %c0_19 = arith.constant 0 : index
    %c0_20 = arith.constant 0 : index
    %c0_21 = arith.constant 0 : index
    %20 = vector.load %arg7[%c0_19, %c0_20, %c0_21] : memref<2x1x256xf32, #tpu.memory_space<vmem>>, vector<1x1x256xf32>
    %21 = vector.shape_cast %20 : vector<1x1x256xf32> to vector<1x256xf32>
    %cst_22 = arith.constant dense<0.000000e+00> : vector<16x128xf32>
    %22 = tpu.matmul %1, %17, %cst_22 {dimension_numbers = #tpu.dot_dimension_numbers<[1], [0], [0], [1], [0, 0, 1, 1], [], []>} : vector<16x16xbf16>, vector<16x128xbf16>, vector<16x128xf32> -> vector<16x128xf32>
    %23 = arith.truncf %22 : vector<16x128xf32> to vector<16x128xbf16>
    %cst_23 = arith.constant dense<0.000000e+00> : vector<16x256xf32>
    %24 = tpu.matmul %23, %19, %cst_23 {dimension_numbers = #tpu.dot_dimension_numbers<[1], [0], [0], [1], [0, 0, 1, 1], [], []>} : vector<16x128xbf16>, vector<128x256xbf16>, vector<16x256xf32> -> vector<16x256xf32>
    %25 = vector.broadcast %21 : vector<1x256xf32> to vector<16x256xf32>
    %26 = arith.addf %24, %25 : vector<16x256xf32>
    %cst_24 = arith.constant 0.000000e+00 : f32
    %27 = vector.broadcast %cst_24 : f32 to vector<16x256xf32>
    %28 = arith.maximumf %26, %27 : vector<16x256xf32>
    %29 = arith.truncf %28 : vector<16x256xf32> to vector<16x256xbf16>
    %c0_25 = arith.constant 0 : index
    %c0_26 = arith.constant 0 : index
    %c0_27 = arith.constant 0 : index
    %30 = vector.load %arg8[%c0_25, %c0_26, %c0_27] : memref<2x256x384xbf16, #tpu.memory_space<vmem>>, vector<1x256x384xbf16>
    %31 = vector.shape_cast %30 : vector<1x256x384xbf16> to vector<256x384xbf16>
    %c0_28 = arith.constant 0 : index
    %c0_29 = arith.constant 0 : index
    %c0_30 = arith.constant 0 : index
    %32 = vector.load %arg9[%c0_28, %c0_29, %c0_30] : memref<2x1x384xf32, #tpu.memory_space<vmem>>, vector<1x1x384xf32>
    %33 = vector.shape_cast %32 : vector<1x1x384xf32> to vector<1x384xf32>
    %cst_31 = arith.constant dense<0.000000e+00> : vector<16x256xf32>
    %34 = tpu.matmul %1, %29, %cst_31 {dimension_numbers = #tpu.dot_dimension_numbers<[1], [0], [0], [1], [0, 0, 1, 1], [], []>} : vector<16x16xbf16>, vector<16x256xbf16>, vector<16x256xf32> -> vector<16x256xf32>
    %35 = arith.truncf %34 : vector<16x256xf32> to vector<16x256xbf16>
    %cst_32 = arith.constant dense<0.000000e+00> : vector<16x384xf32>
    %36 = tpu.matmul %35, %31, %cst_32 {dimension_numbers = #tpu.dot_dimension_numbers<[1], [0], [0], [1], [0, 0, 1, 1], [], []>} : vector<16x256xbf16>, vector<256x384xbf16>, vector<16x384xf32> -> vector<16x384xf32>
    %37 = vector.broadcast %33 : vector<1x384xf32> to vector<16x384xf32>
    %38 = arith.addf %36, %37 : vector<16x384xf32>
    %cst_33 = arith.constant 0.000000e+00 : f32
    %39 = vector.broadcast %cst_33 : f32 to vector<16x384xf32>
    %40 = arith.maximumf %38, %39 : vector<16x384xf32>
    %41 = vector.extract_strided_slice %5 {offsets = [0, 0], sizes = [16, 1], strides = [1, 1]} : vector<16x8xf32> to vector<16x1xf32>
    %cst_34 = arith.constant 5.000000e-01 : f32
    %42 = vector.broadcast %cst_34 : f32 to vector<16x1xf32>
    %43 = arith.cmpf ogt, %41, %42 : vector<16x1xf32>
    %cst_35 = arith.constant 0.000000e+00 : f32
    %44 = vector.shape_cast %43 : vector<16x1xi1> to vector<16x1xi1>
    %45 = vector.broadcast %44 : vector<16x1xi1> to vector<16x384xi1>
    %46 = vector.broadcast %cst_35 : f32 to vector<16x384xf32>
    %47 = arith.select %45, %40, %46 : vector<16x384xi1>, vector<16x384xf32>
    %cst_36 = arith.constant dense<0xFF800000> : vector<384xf32>
    %48 = vector.multi_reduction <maximumf>, %47, %cst_36 [0] : vector<16x384xf32> to vector<384xf32>
    %49 = vector.shape_cast %48 : vector<384xf32> to vector<1x384xf32>
    %50 = vector.extract_strided_slice %5 {offsets = [0, 1], sizes = [16, 1], strides = [1, 1]} : vector<16x8xf32> to vector<16x1xf32>
    %cst_37 = arith.constant 5.000000e-01 : f32
    %51 = vector.broadcast %cst_37 : f32 to vector<16x1xf32>
    %52 = arith.cmpf ogt, %50, %51 : vector<16x1xf32>
    %cst_38 = arith.constant 0.000000e+00 : f32
    %53 = vector.shape_cast %52 : vector<16x1xi1> to vector<16x1xi1>
    %54 = vector.broadcast %53 : vector<16x1xi1> to vector<16x384xi1>
    %55 = vector.broadcast %cst_38 : f32 to vector<16x384xf32>
    %56 = arith.select %54, %40, %55 : vector<16x384xi1>, vector<16x384xf32>
    %cst_39 = arith.constant dense<0xFF800000> : vector<384xf32>
    %57 = vector.multi_reduction <maximumf>, %56, %cst_39 [0] : vector<16x384xf32> to vector<384xf32>
    %58 = vector.shape_cast %57 : vector<384xf32> to vector<1x384xf32>
    %59 = vector.extract_strided_slice %5 {offsets = [0, 2], sizes = [16, 1], strides = [1, 1]} : vector<16x8xf32> to vector<16x1xf32>
    %cst_40 = arith.constant 5.000000e-01 : f32
    %60 = vector.broadcast %cst_40 : f32 to vector<16x1xf32>
    %61 = arith.cmpf ogt, %59, %60 : vector<16x1xf32>
    %cst_41 = arith.constant 0.000000e+00 : f32
    %62 = vector.shape_cast %61 : vector<16x1xi1> to vector<16x1xi1>
    %63 = vector.broadcast %62 : vector<16x1xi1> to vector<16x384xi1>
    %64 = vector.broadcast %cst_41 : f32 to vector<16x384xf32>
    %65 = arith.select %63, %40, %64 : vector<16x384xi1>, vector<16x384xf32>
    %cst_42 = arith.constant dense<0xFF800000> : vector<384xf32>
    %66 = vector.multi_reduction <maximumf>, %65, %cst_42 [0] : vector<16x384xf32> to vector<384xf32>
    %67 = vector.shape_cast %66 : vector<384xf32> to vector<1x384xf32>
    %68 = vector.extract_strided_slice %5 {offsets = [0, 3], sizes = [16, 1], strides = [1, 1]} : vector<16x8xf32> to vector<16x1xf32>
    %cst_43 = arith.constant 5.000000e-01 : f32
    %69 = vector.broadcast %cst_43 : f32 to vector<16x1xf32>
    %70 = arith.cmpf ogt, %68, %69 : vector<16x1xf32>
    %cst_44 = arith.constant 0.000000e+00 : f32
    %71 = vector.shape_cast %70 : vector<16x1xi1> to vector<16x1xi1>
    %72 = vector.broadcast %71 : vector<16x1xi1> to vector<16x384xi1>
    %73 = vector.broadcast %cst_44 : f32 to vector<16x384xf32>
    %74 = arith.select %72, %40, %73 : vector<16x384xi1>, vector<16x384xf32>
    %cst_45 = arith.constant dense<0xFF800000> : vector<384xf32>
    %75 = vector.multi_reduction <maximumf>, %74, %cst_45 [0] : vector<16x384xf32> to vector<384xf32>
    %76 = vector.shape_cast %75 : vector<384xf32> to vector<1x384xf32>
    %77 = vector.extract_strided_slice %5 {offsets = [0, 4], sizes = [16, 1], strides = [1, 1]} : vector<16x8xf32> to vector<16x1xf32>
    %cst_46 = arith.constant 5.000000e-01 : f32
    %78 = vector.broadcast %cst_46 : f32 to vector<16x1xf32>
    %79 = arith.cmpf ogt, %77, %78 : vector<16x1xf32>
    %cst_47 = arith.constant 0.000000e+00 : f32
    %80 = vector.shape_cast %79 : vector<16x1xi1> to vector<16x1xi1>
    %81 = vector.broadcast %80 : vector<16x1xi1> to vector<16x384xi1>
    %82 = vector.broadcast %cst_47 : f32 to vector<16x384xf32>
    %83 = arith.select %81, %40, %82 : vector<16x384xi1>, vector<16x384xf32>
    %cst_48 = arith.constant dense<0xFF800000> : vector<384xf32>
    %84 = vector.multi_reduction <maximumf>, %83, %cst_48 [0] : vector<16x384xf32> to vector<384xf32>
    %85 = vector.shape_cast %84 : vector<384xf32> to vector<1x384xf32>
    %86 = vector.extract_strided_slice %5 {offsets = [0, 5], sizes = [16, 1], strides = [1, 1]} : vector<16x8xf32> to vector<16x1xf32>
    %cst_49 = arith.constant 5.000000e-01 : f32
    %87 = vector.broadcast %cst_49 : f32 to vector<16x1xf32>
    %88 = arith.cmpf ogt, %86, %87 : vector<16x1xf32>
    %cst_50 = arith.constant 0.000000e+00 : f32
    %89 = vector.shape_cast %88 : vector<16x1xi1> to vector<16x1xi1>
    %90 = vector.broadcast %89 : vector<16x1xi1> to vector<16x384xi1>
    %91 = vector.broadcast %cst_50 : f32 to vector<16x384xf32>
    %92 = arith.select %90, %40, %91 : vector<16x384xi1>, vector<16x384xf32>
    %cst_51 = arith.constant dense<0xFF800000> : vector<384xf32>
    %93 = vector.multi_reduction <maximumf>, %92, %cst_51 [0] : vector<16x384xf32> to vector<384xf32>
    %94 = vector.shape_cast %93 : vector<384xf32> to vector<1x384xf32>
    %95 = vector.extract_strided_slice %5 {offsets = [0, 6], sizes = [16, 1], strides = [1, 1]} : vector<16x8xf32> to vector<16x1xf32>
    %cst_52 = arith.constant 5.000000e-01 : f32
    %96 = vector.broadcast %cst_52 : f32 to vector<16x1xf32>
    %97 = arith.cmpf ogt, %95, %96 : vector<16x1xf32>
    %cst_53 = arith.constant 0.000000e+00 : f32
    %98 = vector.shape_cast %97 : vector<16x1xi1> to vector<16x1xi1>
    %99 = vector.broadcast %98 : vector<16x1xi1> to vector<16x384xi1>
    %100 = vector.broadcast %cst_53 : f32 to vector<16x384xf32>
    %101 = arith.select %99, %40, %100 : vector<16x384xi1>, vector<16x384xf32>
    %cst_54 = arith.constant dense<0xFF800000> : vector<384xf32>
    %102 = vector.multi_reduction <maximumf>, %101, %cst_54 [0] : vector<16x384xf32> to vector<384xf32>
    %103 = vector.shape_cast %102 : vector<384xf32> to vector<1x384xf32>
    %104 = vector.extract_strided_slice %5 {offsets = [0, 7], sizes = [16, 1], strides = [1, 1]} : vector<16x8xf32> to vector<16x1xf32>
    %cst_55 = arith.constant 5.000000e-01 : f32
    %105 = vector.broadcast %cst_55 : f32 to vector<16x1xf32>
    %106 = arith.cmpf ogt, %104, %105 : vector<16x1xf32>
    %cst_56 = arith.constant 0.000000e+00 : f32
    %107 = vector.shape_cast %106 : vector<16x1xi1> to vector<16x1xi1>
    %108 = vector.broadcast %107 : vector<16x1xi1> to vector<16x384xi1>
    %109 = vector.broadcast %cst_56 : f32 to vector<16x384xf32>
    %110 = arith.select %108, %40, %109 : vector<16x384xi1>, vector<16x384xf32>
    %cst_57 = arith.constant dense<0xFF800000> : vector<384xf32>
    %111 = vector.multi_reduction <maximumf>, %110, %cst_57 [0] : vector<16x384xf32> to vector<384xf32>
    %112 = vector.shape_cast %111 : vector<384xf32> to vector<1x384xf32>
    %113 = tpu.concatenate %49, %58, %67, %76, %85, %94, %103, %112 in 0 : vector<1x384xf32>, vector<1x384xf32>, vector<1x384xf32>, vector<1x384xf32>, vector<1x384xf32>, vector<1x384xf32>, vector<1x384xf32>, vector<1x384xf32> -> vector<8x384xf32>
    %114 = arith.truncf %113 : vector<8x384xf32> to vector<8x384xbf16>
    %c0_58 = arith.constant 0 : index
    %c0_59 = arith.constant 0 : index
    %c0_60 = arith.constant 0 : index
    %115 = vector.load %arg10[%c0_58, %c0_59, %c0_60] : memref<2x384x1024xbf16, #tpu.memory_space<vmem>>, vector<1x384x1024xbf16>
    %116 = vector.shape_cast %115 : vector<1x384x1024xbf16> to vector<384x1024xbf16>
    %cst_61 = arith.constant dense<0.000000e+00> : vector<8x1024xf32>
    %117 = tpu.matmul %114, %116, %cst_61 {dimension_numbers = #tpu.dot_dimension_numbers<[1], [0], [0], [1], [0, 0, 1, 1], [], []>} : vector<8x384xbf16>, vector<384x1024xbf16>, vector<8x1024xf32> -> vector<8x1024xf32>
    %c0_62 = arith.constant 0 : index
    %c0_63 = arith.constant 0 : index
    %c0_64 = arith.constant 0 : index
    %118 = vector.load %arg11[%c0_62, %c0_63, %c0_64] : memref<2x1x1024xf32, #tpu.memory_space<vmem>>, vector<1x1x1024xf32>
    %119 = vector.shape_cast %118 : vector<1x1x1024xf32> to vector<1x1024xf32>
    %120 = vector.broadcast %119 : vector<1x1024xf32> to vector<8x1024xf32>
    %121 = arith.addf %117, %120 : vector<8x1024xf32>
    %cst_65 = arith.constant 0.000000e+00 : f32
    %122 = vector.broadcast %cst_65 : f32 to vector<8x1024xf32>
    %123 = arith.maximumf %121, %122 : vector<8x1024xf32>
    %124 = arith.truncf %123 : vector<8x1024xf32> to vector<8x1024xbf16>
    %c0_66 = arith.constant 0 : index
    %c0_67 = arith.constant 0 : index
    %c0_68 = arith.constant 0 : index
    %125 = vector.load %arg12[%c0_66, %c0_67, %c0_68] : memref<2x1024x64xbf16, #tpu.memory_space<vmem>>, vector<1x1024x64xbf16>
    %126 = vector.shape_cast %125 : vector<1x1024x64xbf16> to vector<1024x64xbf16>
    %cst_69 = arith.constant dense<0.000000e+00> : vector<8x64xf32>
    %127 = tpu.matmul %124, %126, %cst_69 {dimension_numbers = #tpu.dot_dimension_numbers<[1], [0], [0], [1], [0, 0, 1, 1], [], []>} : vector<8x1024xbf16>, vector<1024x64xbf16>, vector<8x64xf32> -> vector<8x64xf32>
    %c0_70 = arith.constant 0 : index
    %c0_71 = arith.constant 0 : index
    %c0_72 = arith.constant 0 : index
    %128 = vector.load %arg13[%c0_70, %c0_71, %c0_72] : memref<2x1x64xf32, #tpu.memory_space<vmem>>, vector<1x1x64xf32>
    %129 = vector.shape_cast %128 : vector<1x1x64xf32> to vector<1x64xf32>
    %130 = vector.broadcast %129 : vector<1x64xf32> to vector<8x64xf32>
    %131 = arith.addf %127, %130 : vector<8x64xf32>
    %c1 = arith.constant 1 : index
    %c0_73 = arith.constant 0 : index
    %c0_74 = arith.constant 0 : index
    %132 = vector.load %arg0[%c1, %c0_73, %c0_74] : memref<2x16x16xbf16, #tpu.memory_space<vmem>>, vector<1x16x16xbf16>
    %133 = vector.shape_cast %132 : vector<1x16x16xbf16> to vector<16x16xbf16>
    %c1_75 = arith.constant 1 : index
    %c0_76 = arith.constant 0 : index
    %c0_77 = arith.constant 0 : index
    %134 = vector.load %arg1[%c1_75, %c0_76, %c0_77] : memref<2x16x128xbf16, #tpu.memory_space<vmem>>, vector<1x16x128xbf16>
    %135 = vector.shape_cast %134 : vector<1x16x128xbf16> to vector<16x128xbf16>
    %c1_78 = arith.constant 1 : index
    %c0_79 = arith.constant 0 : index
    %c0_80 = arith.constant 0 : index
    %136 = vector.load %arg2[%c1_78, %c0_79, %c0_80] : memref<2x16x8xf32, #tpu.memory_space<vmem>>, vector<1x16x8xf32>
    %137 = vector.shape_cast %136 : vector<1x16x8xf32> to vector<16x8xf32>
    %c1_81 = arith.constant 1 : index
    %c0_82 = arith.constant 0 : index
    %c0_83 = arith.constant 0 : index
    %138 = vector.load %arg4[%c1_81, %c0_82, %c0_83] : memref<2x128x128xbf16, #tpu.memory_space<vmem>>, vector<1x128x128xbf16>
    %139 = vector.shape_cast %138 : vector<1x128x128xbf16> to vector<128x128xbf16>
    %c1_84 = arith.constant 1 : index
    %c0_85 = arith.constant 0 : index
    %c0_86 = arith.constant 0 : index
    %140 = vector.load %arg5[%c1_84, %c0_85, %c0_86] : memref<2x1x128xf32, #tpu.memory_space<vmem>>, vector<1x1x128xf32>
    %141 = vector.shape_cast %140 : vector<1x1x128xf32> to vector<1x128xf32>
    %cst_87 = arith.constant dense<0.000000e+00> : vector<16x128xf32>
    %142 = tpu.matmul %133, %135, %cst_87 {dimension_numbers = #tpu.dot_dimension_numbers<[1], [0], [0], [1], [0, 0, 1, 1], [], []>} : vector<16x16xbf16>, vector<16x128xbf16>, vector<16x128xf32> -> vector<16x128xf32>
    %143 = arith.truncf %142 : vector<16x128xf32> to vector<16x128xbf16>
    %cst_88 = arith.constant dense<0.000000e+00> : vector<16x128xf32>
    %144 = tpu.matmul %143, %139, %cst_88 {dimension_numbers = #tpu.dot_dimension_numbers<[1], [0], [0], [1], [0, 0, 1, 1], [], []>} : vector<16x128xbf16>, vector<128x128xbf16>, vector<16x128xf32> -> vector<16x128xf32>
    %145 = vector.broadcast %141 : vector<1x128xf32> to vector<16x128xf32>
    %146 = arith.addf %144, %145 : vector<16x128xf32>
    %cst_89 = arith.constant 0.000000e+00 : f32
    %147 = vector.broadcast %cst_89 : f32 to vector<16x128xf32>
    %148 = arith.maximumf %146, %147 : vector<16x128xf32>
    %149 = arith.truncf %148 : vector<16x128xf32> to vector<16x128xbf16>
    %c1_90 = arith.constant 1 : index
    %c0_91 = arith.constant 0 : index
    %c0_92 = arith.constant 0 : index
    %150 = vector.load %arg6[%c1_90, %c0_91, %c0_92] : memref<2x128x256xbf16, #tpu.memory_space<vmem>>, vector<1x128x256xbf16>
    %151 = vector.shape_cast %150 : vector<1x128x256xbf16> to vector<128x256xbf16>
    %c1_93 = arith.constant 1 : index
    %c0_94 = arith.constant 0 : index
    %c0_95 = arith.constant 0 : index
    %152 = vector.load %arg7[%c1_93, %c0_94, %c0_95] : memref<2x1x256xf32, #tpu.memory_space<vmem>>, vector<1x1x256xf32>
    %153 = vector.shape_cast %152 : vector<1x1x256xf32> to vector<1x256xf32>
    %cst_96 = arith.constant dense<0.000000e+00> : vector<16x128xf32>
    %154 = tpu.matmul %133, %149, %cst_96 {dimension_numbers = #tpu.dot_dimension_numbers<[1], [0], [0], [1], [0, 0, 1, 1], [], []>} : vector<16x16xbf16>, vector<16x128xbf16>, vector<16x128xf32> -> vector<16x128xf32>
    %155 = arith.truncf %154 : vector<16x128xf32> to vector<16x128xbf16>
    %cst_97 = arith.constant dense<0.000000e+00> : vector<16x256xf32>
    %156 = tpu.matmul %155, %151, %cst_97 {dimension_numbers = #tpu.dot_dimension_numbers<[1], [0], [0], [1], [0, 0, 1, 1], [], []>} : vector<16x128xbf16>, vector<128x256xbf16>, vector<16x256xf32> -> vector<16x256xf32>
    %157 = vector.broadcast %153 : vector<1x256xf32> to vector<16x256xf32>
    %158 = arith.addf %156, %157 : vector<16x256xf32>
    %cst_98 = arith.constant 0.000000e+00 : f32
    %159 = vector.broadcast %cst_98 : f32 to vector<16x256xf32>
    %160 = arith.maximumf %158, %159 : vector<16x256xf32>
    %161 = arith.truncf %160 : vector<16x256xf32> to vector<16x256xbf16>
    %c1_99 = arith.constant 1 : index
    %c0_100 = arith.constant 0 : index
    %c0_101 = arith.constant 0 : index
    %162 = vector.load %arg8[%c1_99, %c0_100, %c0_101] : memref<2x256x384xbf16, #tpu.memory_space<vmem>>, vector<1x256x384xbf16>
    %163 = vector.shape_cast %162 : vector<1x256x384xbf16> to vector<256x384xbf16>
    %c1_102 = arith.constant 1 : index
    %c0_103 = arith.constant 0 : index
    %c0_104 = arith.constant 0 : index
    %164 = vector.load %arg9[%c1_102, %c0_103, %c0_104] : memref<2x1x384xf32, #tpu.memory_space<vmem>>, vector<1x1x384xf32>
    %165 = vector.shape_cast %164 : vector<1x1x384xf32> to vector<1x384xf32>
    %cst_105 = arith.constant dense<0.000000e+00> : vector<16x256xf32>
    %166 = tpu.matmul %133, %161, %cst_105 {dimension_numbers = #tpu.dot_dimension_numbers<[1], [0], [0], [1], [0, 0, 1, 1], [], []>} : vector<16x16xbf16>, vector<16x256xbf16>, vector<16x256xf32> -> vector<16x256xf32>
    %167 = arith.truncf %166 : vector<16x256xf32> to vector<16x256xbf16>
    %cst_106 = arith.constant dense<0.000000e+00> : vector<16x384xf32>
    %168 = tpu.matmul %167, %163, %cst_106 {dimension_numbers = #tpu.dot_dimension_numbers<[1], [0], [0], [1], [0, 0, 1, 1], [], []>} : vector<16x256xbf16>, vector<256x384xbf16>, vector<16x384xf32> -> vector<16x384xf32>
    %169 = vector.broadcast %165 : vector<1x384xf32> to vector<16x384xf32>
    %170 = arith.addf %168, %169 : vector<16x384xf32>
    %cst_107 = arith.constant 0.000000e+00 : f32
    %171 = vector.broadcast %cst_107 : f32 to vector<16x384xf32>
    %172 = arith.maximumf %170, %171 : vector<16x384xf32>
    %173 = vector.extract_strided_slice %137 {offsets = [0, 0], sizes = [16, 1], strides = [1, 1]} : vector<16x8xf32> to vector<16x1xf32>
    %cst_108 = arith.constant 5.000000e-01 : f32
    %174 = vector.broadcast %cst_108 : f32 to vector<16x1xf32>
    %175 = arith.cmpf ogt, %173, %174 : vector<16x1xf32>
    %cst_109 = arith.constant 0.000000e+00 : f32
    %176 = vector.shape_cast %175 : vector<16x1xi1> to vector<16x1xi1>
    %177 = vector.broadcast %176 : vector<16x1xi1> to vector<16x384xi1>
    %178 = vector.broadcast %cst_109 : f32 to vector<16x384xf32>
    %179 = arith.select %177, %172, %178 : vector<16x384xi1>, vector<16x384xf32>
    %cst_110 = arith.constant dense<0xFF800000> : vector<384xf32>
    %180 = vector.multi_reduction <maximumf>, %179, %cst_110 [0] : vector<16x384xf32> to vector<384xf32>
    %181 = vector.shape_cast %180 : vector<384xf32> to vector<1x384xf32>
    %182 = vector.extract_strided_slice %137 {offsets = [0, 1], sizes = [16, 1], strides = [1, 1]} : vector<16x8xf32> to vector<16x1xf32>
    %cst_111 = arith.constant 5.000000e-01 : f32
    %183 = vector.broadcast %cst_111 : f32 to vector<16x1xf32>
    %184 = arith.cmpf ogt, %182, %183 : vector<16x1xf32>
    %cst_112 = arith.constant 0.000000e+00 : f32
    %185 = vector.shape_cast %184 : vector<16x1xi1> to vector<16x1xi1>
    %186 = vector.broadcast %185 : vector<16x1xi1> to vector<16x384xi1>
    %187 = vector.broadcast %cst_112 : f32 to vector<16x384xf32>
    %188 = arith.select %186, %172, %187 : vector<16x384xi1>, vector<16x384xf32>
    %cst_113 = arith.constant dense<0xFF800000> : vector<384xf32>
    %189 = vector.multi_reduction <maximumf>, %188, %cst_113 [0] : vector<16x384xf32> to vector<384xf32>
    %190 = vector.shape_cast %189 : vector<384xf32> to vector<1x384xf32>
    %191 = vector.extract_strided_slice %137 {offsets = [0, 2], sizes = [16, 1], strides = [1, 1]} : vector<16x8xf32> to vector<16x1xf32>
    %cst_114 = arith.constant 5.000000e-01 : f32
    %192 = vector.broadcast %cst_114 : f32 to vector<16x1xf32>
    %193 = arith.cmpf ogt, %191, %192 : vector<16x1xf32>
    %cst_115 = arith.constant 0.000000e+00 : f32
    %194 = vector.shape_cast %193 : vector<16x1xi1> to vector<16x1xi1>
    %195 = vector.broadcast %194 : vector<16x1xi1> to vector<16x384xi1>
    %196 = vector.broadcast %cst_115 : f32 to vector<16x384xf32>
    %197 = arith.select %195, %172, %196 : vector<16x384xi1>, vector<16x384xf32>
    %cst_116 = arith.constant dense<0xFF800000> : vector<384xf32>
    %198 = vector.multi_reduction <maximumf>, %197, %cst_116 [0] : vector<16x384xf32> to vector<384xf32>
    %199 = vector.shape_cast %198 : vector<384xf32> to vector<1x384xf32>
    %200 = vector.extract_strided_slice %137 {offsets = [0, 3], sizes = [16, 1], strides = [1, 1]} : vector<16x8xf32> to vector<16x1xf32>
    %cst_117 = arith.constant 5.000000e-01 : f32
    %201 = vector.broadcast %cst_117 : f32 to vector<16x1xf32>
    %202 = arith.cmpf ogt, %200, %201 : vector<16x1xf32>
    %cst_118 = arith.constant 0.000000e+00 : f32
    %203 = vector.shape_cast %202 : vector<16x1xi1> to vector<16x1xi1>
    %204 = vector.broadcast %203 : vector<16x1xi1> to vector<16x384xi1>
    %205 = vector.broadcast %cst_118 : f32 to vector<16x384xf32>
    %206 = arith.select %204, %172, %205 : vector<16x384xi1>, vector<16x384xf32>
    %cst_119 = arith.constant dense<0xFF800000> : vector<384xf32>
    %207 = vector.multi_reduction <maximumf>, %206, %cst_119 [0] : vector<16x384xf32> to vector<384xf32>
    %208 = vector.shape_cast %207 : vector<384xf32> to vector<1x384xf32>
    %209 = vector.extract_strided_slice %137 {offsets = [0, 4], sizes = [16, 1], strides = [1, 1]} : vector<16x8xf32> to vector<16x1xf32>
    %cst_120 = arith.constant 5.000000e-01 : f32
    %210 = vector.broadcast %cst_120 : f32 to vector<16x1xf32>
    %211 = arith.cmpf ogt, %209, %210 : vector<16x1xf32>
    %cst_121 = arith.constant 0.000000e+00 : f32
    %212 = vector.shape_cast %211 : vector<16x1xi1> to vector<16x1xi1>
    %213 = vector.broadcast %212 : vector<16x1xi1> to vector<16x384xi1>
    %214 = vector.broadcast %cst_121 : f32 to vector<16x384xf32>
    %215 = arith.select %213, %172, %214 : vector<16x384xi1>, vector<16x384xf32>
    %cst_122 = arith.constant dense<0xFF800000> : vector<384xf32>
    %216 = vector.multi_reduction <maximumf>, %215, %cst_122 [0] : vector<16x384xf32> to vector<384xf32>
    %217 = vector.shape_cast %216 : vector<384xf32> to vector<1x384xf32>
    %218 = vector.extract_strided_slice %137 {offsets = [0, 5], sizes = [16, 1], strides = [1, 1]} : vector<16x8xf32> to vector<16x1xf32>
    %cst_123 = arith.constant 5.000000e-01 : f32
    %219 = vector.broadcast %cst_123 : f32 to vector<16x1xf32>
    %220 = arith.cmpf ogt, %218, %219 : vector<16x1xf32>
    %cst_124 = arith.constant 0.000000e+00 : f32
    %221 = vector.shape_cast %220 : vector<16x1xi1> to vector<16x1xi1>
    %222 = vector.broadcast %221 : vector<16x1xi1> to vector<16x384xi1>
    %223 = vector.broadcast %cst_124 : f32 to vector<16x384xf32>
    %224 = arith.select %222, %172, %223 : vector<16x384xi1>, vector<16x384xf32>
    %cst_125 = arith.constant dense<0xFF800000> : vector<384xf32>
    %225 = vector.multi_reduction <maximumf>, %224, %cst_125 [0] : vector<16x384xf32> to vector<384xf32>
    %226 = vector.shape_cast %225 : vector<384xf32> to vector<1x384xf32>
    %227 = vector.extract_strided_slice %137 {offsets = [0, 6], sizes = [16, 1], strides = [1, 1]} : vector<16x8xf32> to vector<16x1xf32>
    %cst_126 = arith.constant 5.000000e-01 : f32
    %228 = vector.broadcast %cst_126 : f32 to vector<16x1xf32>
    %229 = arith.cmpf ogt, %227, %228 : vector<16x1xf32>
    %cst_127 = arith.constant 0.000000e+00 : f32
    %230 = vector.shape_cast %229 : vector<16x1xi1> to vector<16x1xi1>
    %231 = vector.broadcast %230 : vector<16x1xi1> to vector<16x384xi1>
    %232 = vector.broadcast %cst_127 : f32 to vector<16x384xf32>
    %233 = arith.select %231, %172, %232 : vector<16x384xi1>, vector<16x384xf32>
    %cst_128 = arith.constant dense<0xFF800000> : vector<384xf32>
    %234 = vector.multi_reduction <maximumf>, %233, %cst_128 [0] : vector<16x384xf32> to vector<384xf32>
    %235 = vector.shape_cast %234 : vector<384xf32> to vector<1x384xf32>
    %236 = vector.extract_strided_slice %137 {offsets = [0, 7], sizes = [16, 1], strides = [1, 1]} : vector<16x8xf32> to vector<16x1xf32>
    %cst_129 = arith.constant 5.000000e-01 : f32
    %237 = vector.broadcast %cst_129 : f32 to vector<16x1xf32>
    %238 = arith.cmpf ogt, %236, %237 : vector<16x1xf32>
    %cst_130 = arith.constant 0.000000e+00 : f32
    %239 = vector.shape_cast %238 : vector<16x1xi1> to vector<16x1xi1>
    %240 = vector.broadcast %239 : vector<16x1xi1> to vector<16x384xi1>
    %241 = vector.broadcast %cst_130 : f32 to vector<16x384xf32>
    %242 = arith.select %240, %172, %241 : vector<16x384xi1>, vector<16x384xf32>
    %cst_131 = arith.constant dense<0xFF800000> : vector<384xf32>
    %243 = vector.multi_reduction <maximumf>, %242, %cst_131 [0] : vector<16x384xf32> to vector<384xf32>
    %244 = vector.shape_cast %243 : vector<384xf32> to vector<1x384xf32>
    %245 = tpu.concatenate %181, %190, %199, %208, %217, %226, %235, %244 in 0 : vector<1x384xf32>, vector<1x384xf32>, vector<1x384xf32>, vector<1x384xf32>, vector<1x384xf32>, vector<1x384xf32>, vector<1x384xf32>, vector<1x384xf32> -> vector<8x384xf32>
    %246 = arith.truncf %245 : vector<8x384xf32> to vector<8x384xbf16>
    %c1_132 = arith.constant 1 : index
    %c0_133 = arith.constant 0 : index
    %c0_134 = arith.constant 0 : index
    %247 = vector.load %arg10[%c1_132, %c0_133, %c0_134] : memref<2x384x1024xbf16, #tpu.memory_space<vmem>>, vector<1x384x1024xbf16>
    %248 = vector.shape_cast %247 : vector<1x384x1024xbf16> to vector<384x1024xbf16>
    %cst_135 = arith.constant dense<0.000000e+00> : vector<8x1024xf32>
    %249 = tpu.matmul %246, %248, %cst_135 {dimension_numbers = #tpu.dot_dimension_numbers<[1], [0], [0], [1], [0, 0, 1, 1], [], []>} : vector<8x384xbf16>, vector<384x1024xbf16>, vector<8x1024xf32> -> vector<8x1024xf32>
    %c1_136 = arith.constant 1 : index
    %c0_137 = arith.constant 0 : index
    %c0_138 = arith.constant 0 : index
    %250 = vector.load %arg11[%c1_136, %c0_137, %c0_138] : memref<2x1x1024xf32, #tpu.memory_space<vmem>>, vector<1x1x1024xf32>
    %251 = vector.shape_cast %250 : vector<1x1x1024xf32> to vector<1x1024xf32>
    %252 = vector.broadcast %251 : vector<1x1024xf32> to vector<8x1024xf32>
    %253 = arith.addf %249, %252 : vector<8x1024xf32>
    %cst_139 = arith.constant 0.000000e+00 : f32
    %254 = vector.broadcast %cst_139 : f32 to vector<8x1024xf32>
    %255 = arith.maximumf %253, %254 : vector<8x1024xf32>
    %256 = arith.truncf %255 : vector<8x1024xf32> to vector<8x1024xbf16>
    %c1_140 = arith.constant 1 : index
    %c0_141 = arith.constant 0 : index
    %c0_142 = arith.constant 0 : index
    %257 = vector.load %arg12[%c1_140, %c0_141, %c0_142] : memref<2x1024x64xbf16, #tpu.memory_space<vmem>>, vector<1x1024x64xbf16>
    %258 = vector.shape_cast %257 : vector<1x1024x64xbf16> to vector<1024x64xbf16>
    %cst_143 = arith.constant dense<0.000000e+00> : vector<8x64xf32>
    %259 = tpu.matmul %256, %258, %cst_143 {dimension_numbers = #tpu.dot_dimension_numbers<[1], [0], [0], [1], [0, 0, 1, 1], [], []>} : vector<8x1024xbf16>, vector<1024x64xbf16>, vector<8x64xf32> -> vector<8x64xf32>
    %c1_144 = arith.constant 1 : index
    %c0_145 = arith.constant 0 : index
    %c0_146 = arith.constant 0 : index
    %260 = vector.load %arg13[%c1_144, %c0_145, %c0_146] : memref<2x1x64xf32, #tpu.memory_space<vmem>>, vector<1x1x64xf32>
    %261 = vector.shape_cast %260 : vector<1x1x64xf32> to vector<1x64xf32>
    %262 = vector.broadcast %261 : vector<1x64xf32> to vector<8x64xf32>
    %263 = arith.addf %259, %262 : vector<8x64xf32>
    %c0_147 = arith.constant 0 : index
    %c0_148 = arith.constant 0 : index
    %264 = vector.load %arg3[%c0_147, %c0_148] : memref<8x1024xbf16, #tpu.memory_space<vmem>>, vector<8x1024xbf16>
    %c0_149 = arith.constant 0 : index
    %c0_150 = arith.constant 0 : index
    %265 = vector.load %arg14[%c0_149, %c0_150] : memref<1024x128xbf16, #tpu.memory_space<vmem>>, vector<1024x128xbf16>
    %cst_151 = arith.constant dense<0.000000e+00> : vector<8x128xf32>
    %266 = tpu.matmul %264, %265, %cst_151 {dimension_numbers = #tpu.dot_dimension_numbers<[1], [0], [0], [1], [0, 0, 1, 1], [], []>} : vector<8x1024xbf16>, vector<1024x128xbf16>, vector<8x128xf32> -> vector<8x128xf32>
    %c0_152 = arith.constant 0 : index
    %c0_153 = arith.constant 0 : index
    %267 = vector.load %arg15[%c0_152, %c0_153] : memref<1x128xf32, #tpu.memory_space<vmem>>, vector<1x128xf32>
    %268 = vector.broadcast %267 : vector<1x128xf32> to vector<8x128xf32>
    %269 = arith.addf %266, %268 : vector<8x128xf32>
    %270 = arith.truncf %131 : vector<8x64xf32> to vector<8x64xbf16>
    %c0_154 = arith.constant 0 : index
    %c0_155 = arith.constant 0 : index
    %271 = vector.load %arg16[%c0_154, %c0_155] : memref<64x128xbf16, #tpu.memory_space<vmem>>, vector<64x128xbf16>
    %cst_156 = arith.constant dense<0.000000e+00> : vector<8x128xf32>
    %272 = tpu.matmul %270, %271, %cst_156 {dimension_numbers = #tpu.dot_dimension_numbers<[1], [0], [0], [1], [0, 0, 1, 1], [], []>} : vector<8x64xbf16>, vector<64x128xbf16>, vector<8x128xf32> -> vector<8x128xf32>
    %273 = arith.truncf %263 : vector<8x64xf32> to vector<8x64xbf16>
    %c0_157 = arith.constant 0 : index
    %c0_158 = arith.constant 0 : index
    %274 = vector.load %arg17[%c0_157, %c0_158] : memref<64x128xbf16, #tpu.memory_space<vmem>>, vector<64x128xbf16>
    %cst_159 = arith.constant dense<0.000000e+00> : vector<8x128xf32>
    %275 = tpu.matmul %273, %274, %cst_159 {dimension_numbers = #tpu.dot_dimension_numbers<[1], [0], [0], [1], [0, 0, 1, 1], [], []>} : vector<8x64xbf16>, vector<64x128xbf16>, vector<8x128xf32> -> vector<8x128xf32>
    %276 = arith.addf %272, %275 : vector<8x128xf32>
    %277 = arith.truncf %269 : vector<8x128xf32> to vector<8x128xbf16>
    %c0_160 = arith.constant 0 : index
    %c0_161 = arith.constant 0 : index
    %278 = vector.load %arg18[%c0_160, %c0_161] : memref<128x128xbf16, #tpu.memory_space<vmem>>, vector<128x128xbf16>
    %cst_162 = arith.constant dense<0.000000e+00> : vector<8x128xf32>
    %279 = tpu.matmul %277, %278, %cst_162 {dimension_numbers = #tpu.dot_dimension_numbers<[1], [0], [0], [1], [0, 0, 1, 1], [], []>} : vector<8x128xbf16>, vector<128x128xbf16>, vector<8x128xf32> -> vector<8x128xf32>
    %280 = arith.addf %276, %279 : vector<8x128xf32>
    %c0_163 = arith.constant 0 : index
    %c0_164 = arith.constant 0 : index
    %281 = vector.load %arg19[%c0_163, %c0_164] : memref<1x128xf32, #tpu.memory_space<vmem>>, vector<1x128xf32>
    %282 = vector.broadcast %281 : vector<1x128xf32> to vector<8x128xf32>
    %283 = arith.addf %280, %282 : vector<8x128xf32>
    %cst_165 = arith.constant 0.000000e+00 : f32
    %284 = vector.broadcast %cst_165 : f32 to vector<8x128xf32>
    %285 = arith.maximumf %283, %284 : vector<8x128xf32>
    %286 = arith.truncf %285 : vector<8x128xf32> to vector<8x128xbf16>
    %c0_166 = arith.constant 0 : index
    %c0_167 = arith.constant 0 : index
    %287 = vector.load %arg20[%c0_166, %c0_167] : memref<128x128xbf16, #tpu.memory_space<vmem>>, vector<128x128xbf16>
    %cst_168 = arith.constant dense<0.000000e+00> : vector<8x128xf32>
    %288 = tpu.matmul %286, %287, %cst_168 {dimension_numbers = #tpu.dot_dimension_numbers<[1], [0], [0], [1], [0, 0, 1, 1], [], []>} : vector<8x128xbf16>, vector<128x128xbf16>, vector<8x128xf32> -> vector<8x128xf32>
    %c0_169 = arith.constant 0 : index
    %c0_170 = arith.constant 0 : index
    %289 = vector.load %arg21[%c0_169, %c0_170] : memref<1x128xf32, #tpu.memory_space<vmem>>, vector<1x128xf32>
    %290 = vector.broadcast %289 : vector<1x128xf32> to vector<8x128xf32>
    %291 = arith.addf %288, %290 : vector<8x128xf32>
    %cst_171 = arith.constant 0.000000e+00 : f32
    %292 = vector.broadcast %cst_171 : f32 to vector<8x128xf32>
    %293 = arith.maximumf %291, %292 : vector<8x128xf32>
    %294 = arith.truncf %293 : vector<8x128xf32> to vector<8x128xbf16>
    %c0_172 = arith.constant 0 : index
    %c0_173 = arith.constant 0 : index
    %295 = vector.load %arg22[%c0_172, %c0_173] : memref<128x128xbf16, #tpu.memory_space<vmem>>, vector<128x128xbf16>
    %cst_174 = arith.constant dense<0.000000e+00> : vector<8x128xf32>
    %296 = tpu.matmul %294, %295, %cst_174 {dimension_numbers = #tpu.dot_dimension_numbers<[1], [0], [0], [1], [0, 0, 1, 1], [], []>} : vector<8x128xbf16>, vector<128x128xbf16>, vector<8x128xf32> -> vector<8x128xf32>
    %c0_175 = arith.constant 0 : index
    %c0_176 = arith.constant 0 : index
    %297 = vector.load %arg23[%c0_175, %c0_176] : memref<1x128xf32, #tpu.memory_space<vmem>>, vector<1x128xf32>
    %298 = vector.broadcast %297 : vector<1x128xf32> to vector<8x128xf32>
    %299 = arith.addf %296, %298 : vector<8x128xf32>
    %c0_177 = arith.constant 0 : index
    %c0_178 = arith.constant 0 : index
    %300 = vector.load %arg24[%c0_177, %c0_178] : memref<8x128xf32, #tpu.memory_space<vmem>>, vector<8x128xf32>
    tpu.vector_store %arg24[%c0_177, %c0_178], %299 {strides = array<i32>} : memref<8x128xf32, #tpu.memory_space<vmem>>, vector<8x128xf32>,
    return
  }
}

</mosaic_0001>

<llo_original>
// kernel: gcnnet_forward_padded.1
$region0: #{gcnnet_forward_padded.1}
  #allocation0 [shape = 'u32[]', space=smem, size = 0x4, offset = 0x4, fixed_abs, tag = 'smem constant byte address 0x4 - core index']
  #allocation1 [shape = 'u32[144,128]{1,0:T(1,128)}', space=vmem, size = 0x12000, scoped, tag = 'internal scratch']
  %s0 = inlined_call_operand.hbm [shape: bf16[2,16,16], index: 0, kind: input, shape index: {}]
  %s1 = inlined_call_operand.hbm [shape: bf16[2,16,128], index: 1, kind: input, shape index: {}]
  %s2 = inlined_call_operand.vmem [shape: f32[2,16,8], index: 2, kind: input, shape index: {}]
  %s3 = inlined_call_operand.hbm [shape: bf16[8,1024], index: 3, kind: input, shape index: {}]
  %s4 = inlined_call_operand.hbm [shape: bf16[2,128,128], index: 4, kind: input, shape index: {}]
  %s5 = inlined_call_operand.hbm [shape: f32[2,1,128], index: 5, kind: input, shape index: {}]
  %s6 = inlined_call_operand.hbm [shape: bf16[2,128,256], index: 6, kind: input, shape index: {}]
  %s7 = inlined_call_operand.hbm [shape: f32[2,1,256], index: 7, kind: input, shape index: {}]
  %s8 = inlined_call_operand.hbm [shape: bf16[2,256,384], index: 8, kind: input, shape index: {}]
  %s9 = inlined_call_operand.hbm [shape: f32[2,1,384], index: 9, kind: input, shape index: {}]
  %s10 = inlined_call_operand.hbm [shape: bf16[2,384,1024], index: 10, kind: input, shape index: {}]
  %s11 = inlined_call_operand.hbm [shape: f32[2,1,1024], index: 11, kind: input, shape index: {}]
  %s12 = inlined_call_operand.vmem [shape: bf16[2,1024,64], index: 12, kind: input, shape index: {}]
  %s13 = inlined_call_operand.hbm [shape: f32[2,1,64], index: 13, kind: input, shape index: {}]
  %s14 = inlined_call_operand.hbm [shape: bf16[1024,128], index: 14, kind: input, shape index: {}]
  %s15 = inlined_call_operand.hbm [shape: f32[1,128], index: 15, kind: input, shape index: {}]
  %s16 = inlined_call_operand.hbm [shape: bf16[64,128], index: 16, kind: input, shape index: {}]
  %s17 = inlined_call_operand.hbm [shape: bf16[64,128], index: 17, kind: input, shape index: {}]
  %s18 = inlined_call_operand.hbm [shape: bf16[128,128], index: 18, kind: input, shape index: {}]
  %s19 = inlined_call_operand.hbm [shape: f32[1,128], index: 19, kind: input, shape index: {}]
  %s20 = inlined_call_operand.hbm [shape: bf16[128,128], index: 20, kind: input, shape index: {}]
  %s21 = inlined_call_operand.hbm [shape: f32[1,128], index: 21, kind: input, shape index: {}]
  %s22 = inlined_call_operand.hbm [shape: bf16[128,128], index: 22, kind: input, shape index: {}]
  %s23 = inlined_call_operand.hbm [shape: f32[1,128], index: 23, kind: input, shape index: {}]
  %s24 = inlined_call_operand.hbm [shape: f32[8,128], index: 24, kind: output, shape index: {}]
  %s25 = sld [smem:[#allocation0]]
  $region194: #{gcnnet_forward_padded.1} parent=0
    _
  %s27 = ssub.s32 1, %s25
  %s28 = scalar_select 0, %s27, %s25
  $region1: #{gcnnet_forward_padded.1} parent=0
    #allocation2 [shape = 'u8[8192]{0}', space=vmem, size = 0x2000, scoped, tag = 'input window, operand 0, single buffered']
    #allocation3 [shape = 's32[1]{0}', space=sflag, size = 0x4, scoped, tag = 'scoped memory for gcnnet_forward_padded.1']
    #allocation4 [shape = 's32[1]{0}', space=sflag, size = 0x4, scoped, tag = 'scoped memory for gcnnet_forward_padded.1']
    #allocation5 [shape = 'u8[8192]{0}', space=vmem, size = 0x2000, scoped, tag = 'input window, operand 1, single buffered']
    #allocation6 [shape = 's32[1]{0}', space=sflag, size = 0x4, scoped, tag = 'scoped memory for gcnnet_forward_padded.1']
    #allocation7 [shape = 'u8[16384]{0}', space=vmem, size = 0x4000, scoped, tag = 'input window, operand 3, single buffered']
    #allocation8 [shape = 'u8[65536]{0}', space=vmem, size = 0x10000, scoped, tag = 'input window, operand 4, single buffered']
    #allocation9 [shape = 's32[1]{0}', space=sflag, size = 0x4, scoped, tag = 'scoped memory for gcnnet_forward_padded.1']
    #allocation10 [shape = 'u8[1024]{0}', space=vmem, size = 0x400, scoped, tag = 'input window, operand 5, single buffered']
    #allocation11 [shape = 'u8[131072]{0}', space=vmem, size = 0x20000, scoped, tag = 'input window, operand 6, single buffered']
    #allocation12 [shape = 's32[1]{0}', space=sflag, size = 0x4, scoped, tag = 'scoped memory for gcnnet_forward_padded.1']
    #allocation13 [shape = 'u8[2048]{0}', space=vmem, size = 0x800, scoped, tag = 'input window, operand 7, single buffered']
    #allocation14 [shape = 'u8[393216]{0}', space=vmem, size = 0x60000, scoped, tag = 'input window, operand 8, single buffered']
    #allocation15 [shape = 's32[1]{0}', space=sflag, size = 0x4, scoped, tag = 'scoped memory for gcnnet_forward_padded.1']
    #allocation16 [shape = 'u8[3072]{0}', space=vmem, size = 0xc00, scoped, tag = 'input window, operand 9, single buffered']
    #allocation17 [shape = 'u8[1572864]{0}', space=vmem, size = 0x180000, scoped, tag = 'input window, operand 10, single buffered']
    #allocation18 [shape = 's32[1]{0}', space=sflag, size = 0x4, scoped, tag = 'scoped memory for gcnnet_forward_padded.1']
    #allocation19 [shape = 'u8[8192]{0}', space=vmem, size = 0x2000, scoped, tag = 'input window, operand 11, single buffered']
    #allocation20 [shape = 'u8[1024]{0}', space=vmem, size = 0x400, scoped, tag = 'input window, operand 13, single buffered']
    #allocation21 [shape = 's32[1]{0}', space=sflag, size = 0x4, scoped, tag = 'scoped memory for gcnnet_forward_padded.1']
    #allocation22 [shape = 'u8[262144]{0}', space=vmem, size = 0x40000, scoped, tag = 'input window, operand 14, single buffered']
    #allocation23 [shape = 'u8[512]{0}', space=vmem, size = 0x400, scoped, tag = 'input window, operand 15, single buffered']
    #allocation24 [shape = 's32[1]{0}', space=sflag, size = 0x4, scoped, tag = 'scoped memory for gcnnet_forward_padded.1']
    #allocation25 [shape = 'u8[16384]{0}', space=vmem, size = 0x4000, scoped, tag = 'input window, operand 16, single buffered']
    #allocation26 [shape = 'u8[16384]{0}', space=vmem, size = 0x4000, scoped, tag = 'input window, operand 17, single buffered']
    #allocation27 [shape = 's32[1]{0}', space=sflag, size = 0x4, scoped, tag = 'scoped memory for gcnnet_forward_padded.1']
    #allocation28 [shape = 'u8[32768]{0}', space=vmem, size = 0x8000, scoped, tag = 'input window, operand 18, single buffered']
    #allocation29 [shape = 'u8[512]{0}', space=vmem, size = 0x400, scoped, tag = 'input window, operand 19, single buffered']
    #allocation30 [shape = 's32[1]{0}', space=sflag, size = 0x4, scoped, tag = 'scoped memory for gcnnet_forward_padded.1']
    #allocation31 [shape = 'u8[32768]{0}', space=vmem, size = 0x8000, scoped, tag = 'input window, operand 20, single buffered']
    #allocation32 [shape = 'u8[512]{0}', space=vmem, size = 0x400, scoped, tag = 'input window, operand 21, single buffered']
    #allocation33 [shape = 's32[1]{0}', space=sflag, size = 0x4, scoped, tag = 'scoped memory for gcnnet_forward_padded.1']
    #allocation34 [shape = 'u8[32768]{0}', space=vmem, size = 0x8000, scoped, tag = 'input window, operand 22, single buffered']
    #allocation35 [shape = 'u8[512]{0}', space=vmem, size = 0x400, scoped, tag = 'input window, operand 23, single buffered']
    #allocation36 [shape = 's32[1]{0}', space=sflag, size = 0x4, scoped, tag = 'scoped memory for gcnnet_forward_padded.1']
    #allocation37 [shape = 'u8[4096]{0}', space=vmem, size = 0x1000, scoped, tag = 'output window, operand 0, single buffered']
    %29 = vsyncpa [#allocation3], 0
    %30 = vsyncpa [#allocation6], 0
    %31 = vsyncpa [#allocation9], 0
    %32 = vsyncpa [#allocation12], 0
    %33 = vsyncpa [#allocation15], 0
    %34 = vsyncpa [#allocation18], 0
    %35 = vsyncpa [#allocation21], 0
    %36 = vsyncpa [#allocation24], 0
    %37 = vsyncpa [#allocation27], 0
    %38 = vsyncpa [#allocation30], 0
    %39 = vsyncpa [#allocation33], 0
    %40 = vsyncpa [#allocation36], 0
    %41 = vsyncpa [#allocation4], 0
    // Predicated region
    $region2: #{gcnnet_forward_padded.1} parent=1 // pred_check
      _
    $region3: #{gcnnet_forward_padded.1} parent=1 // pred_check_branch
      %43 = sbr.rel (0) target = $region5
    $region4: #{gcnnet_forward_padded.1} parent=1 // pred_region
      %s45 = ssub.s32 256, 256
      %46 = vsyncadd [#allocation3], %s45
      %s47 = sshll.u32 [#allocation2], 4
      %s48 = int_to_ptr.vmem [resolvable:$true] %s47
      %53 = dma.hbm_to_vmem [thread:$0]  %s0, 256, %s48, [#allocation3], 64, 64, 4
    $region5: #{gcnnet_forward_padded.1} parent=1 // pred_fallthru
      _
    // Predicated region
    $region6: #{gcnnet_forward_padded.1} parent=1 // pred_check
      _
    $region7: #{gcnnet_forward_padded.1} parent=1 // pred_check_branch
      %55 = sbr.rel (0) target = $region9
    $region8: #{gcnnet_forward_padded.1} parent=1 // pred_region
      %s57 = ssub.s32 256, 256
      %58 = vsyncadd [#allocation6], %s57
      %s59 = sshll.u32 [#allocation5], 4
      %s60 = int_to_ptr.vmem [resolvable:$true] %s59
      %65 = dma.hbm_to_vmem [thread:$0]  %s1, 256, %s60, [#allocation6], 64, 64, 4
    $region9: #{gcnnet_forward_padded.1} parent=1 // pred_fallthru
      _
    // Predicated region
    $region10: #{gcnnet_forward_padded.1} parent=1 // pred_check
      _
    $region11: #{gcnnet_forward_padded.1} parent=1 // pred_check_branch
      %67 = sbr.rel (0) target = $region13
    $region12: #{gcnnet_forward_padded.1} parent=1 // pred_region
      _
    $region13: #{gcnnet_forward_padded.1} parent=1 // pred_fallthru
      _
    // Predicated region
    $region14: #{gcnnet_forward_padded.1} parent=1 // pred_check
      _
    $region15: #{gcnnet_forward_padded.1} parent=1 // pred_check_branch
      %69 = sbr.rel (0) target = $region17
    $region16: #{gcnnet_forward_padded.1} parent=1 // pred_region
      %s71 = ssub.s32 512, 512
      %72 = vsyncadd [#allocation6], %s71
      %s74 = sshll.u32 [#allocation7], 4
      %s75 = int_to_ptr.vmem [resolvable:$true] %s74
      %77 = dma.hbm_to_vmem [thread:$0]  %s3, 512, %s75, [#allocation6]
    $region17: #{gcnnet_forward_padded.1} parent=1 // pred_fallthru
      _
    // Predicated region
    $region18: #{gcnnet_forward_padded.1} parent=1 // pred_check
      _
    $region19: #{gcnnet_forward_padded.1} parent=1 // pred_check_branch
      %79 = sbr.rel (0) target = $region21
    $region20: #{gcnnet_forward_padded.1} parent=1 // pred_region
      %s81 = ssub.s32 2048, 2048
      %82 = vsyncadd [#allocation9], %s81
      %s83 = sshll.u32 [#allocation8], 4
      %s84 = int_to_ptr.vmem [resolvable:$true] %s83
      %89 = dma.hbm_to_vmem [thread:$0]  %s4, 2048, %s84, [#allocation9], 64, 64, 4
    $region21: #{gcnnet_forward_padded.1} parent=1 // pred_fallthru
      _
    // Predicated region
    $region22: #{gcnnet_forward_padded.1} parent=1 // pred_check
      _
    $region23: #{gcnnet_forward_padded.1} parent=1 // pred_check_branch
      %91 = sbr.rel (0) target = $region25
    $region24: #{gcnnet_forward_padded.1} parent=1 // pred_region
      %s93 = ssub.s32 32, 32
      %94 = vsyncadd [#allocation9], %s93
      %s95 = sshll.u32 [#allocation10], 4
      %s96 = int_to_ptr.vmem [resolvable:$true] %s95
      %101 = dma.hbm_to_vmem [thread:$0]  %s5, 32, %s96, [#allocation9], 16, 16, 1
    $region25: #{gcnnet_forward_padded.1} parent=1 // pred_fallthru
      _
    // Predicated region
    $region26: #{gcnnet_forward_padded.1} parent=1 // pred_check
      _
    $region27: #{gcnnet_forward_padded.1} parent=1 // pred_check_branch
      %103 = sbr.rel (0) target = $region29
    $region28: #{gcnnet_forward_padded.1} parent=1 // pred_region
      %s105 = ssub.s32 4096, 4096
      %106 = vsyncadd [#allocation12], %s105
      %s107 = sshll.u32 [#allocation11], 4
      %s108 = int_to_ptr.vmem [resolvable:$true] %s107
      %113 = dma.hbm_to_vmem [thread:$0]  %s6, 4096, %s108, [#allocation12], 128, 128, 8
    $region29: #{gcnnet_forward_padded.1} parent=1 // pred_fallthru
      _
    // Predicated region
    $region30: #{gcnnet_forward_padded.1} parent=1 // pred_check
      _
    $region31: #{gcnnet_forward_padded.1} parent=1 // pred_check_branch
      %115 = sbr.rel (0) target = $region33
    $region32: #{gcnnet_forward_padded.1} parent=1 // pred_region
      %s117 = ssub.s32 64, 64
      %118 = vsyncadd [#allocation12], %s117
      %s119 = sshll.u32 [#allocation13], 4
      %s120 = int_to_ptr.vmem [resolvable:$true] %s119
      %125 = dma.hbm_to_vmem [thread:$0]  %s7, 64, %s120, [#allocation12], 32, 32, 2
    $region33: #{gcnnet_forward_padded.1} parent=1 // pred_fallthru
      _
    // Predicated region
    $region34: #{gcnnet_forward_padded.1} parent=1 // pred_check
      _
    $region35: #{gcnnet_forward_padded.1} parent=1 // pred_check_branch
      %127 = sbr.rel (0) target = $region37
    $region36: #{gcnnet_forward_padded.1} parent=1 // pred_region
      %s129 = ssub.s32 12288, 12288
      %130 = vsyncadd [#allocation15], %s129
      %s131 = sshll.u32 [#allocation14], 4
      %s132 = int_to_ptr.vmem [resolvable:$true] %s131
      %137 = dma.hbm_to_vmem [thread:$0]  %s8, 12288, %s132, [#allocation15], 192, 192, 12
    $region37: #{gcnnet_forward_padded.1} parent=1 // pred_fallthru
      _
    // Predicated region
    $region38: #{gcnnet_forward_padded.1} parent=1 // pred_check
      _
    $region39: #{gcnnet_forward_padded.1} parent=1 // pred_check_branch
      %139 = sbr.rel (0) target = $region41
    $region40: #{gcnnet_forward_padded.1} parent=1 // pred_region
      %s141 = ssub.s32 96, 96
      %142 = vsyncadd [#allocation15], %s141
      %s143 = sshll.u32 [#allocation16], 4
      %s144 = int_to_ptr.vmem [resolvable:$true] %s143
      %149 = dma.hbm_to_vmem [thread:$0]  %s9, 96, %s144, [#allocation15], 48, 48, 3
    $region41: #{gcnnet_forward_padded.1} parent=1 // pred_fallthru
      _
    // Predicated region
    $region42: #{gcnnet_forward_padded.1} parent=1 // pred_check
      _
    $region43: #{gcnnet_forward_padded.1} parent=1 // pred_check_branch
      %151 = sbr.rel (0) target = $region45
    $region44: #{gcnnet_forward_padded.1} parent=1 // pred_region
      %s153 = ssub.s32 49152, 49152
      %154 = vsyncadd [#allocation18], %s153
      %s155 = sshll.u32 [#allocation17], 4
      %s156 = int_to_ptr.vmem [resolvable:$true] %s155
      %161 = dma.hbm_to_vmem [thread:$0]  %s10, 49152, %s156, [#allocation18], 512, 512, 32
    $region45: #{gcnnet_forward_padded.1} parent=1 // pred_fallthru
      _
    // Predicated region
    $region46: #{gcnnet_forward_padded.1} parent=1 // pred_check
      _
    $region47: #{gcnnet_forward_padded.1} parent=1 // pred_check_branch
      %163 = sbr.rel (0) target = $region49
    $region48: #{gcnnet_forward_padded.1} parent=1 // pred_region
      %s165 = ssub.s32 256, 256
      %166 = vsyncadd [#allocation18], %s165
      %s167 = sshll.u32 [#allocation19], 4
      %s168 = int_to_ptr.vmem [resolvable:$true] %s167
      %173 = dma.hbm_to_vmem [thread:$0]  %s11, 256, %s168, [#allocation18], 128, 128, 8
    $region49: #{gcnnet_forward_padded.1} parent=1 // pred_fallthru
      _
    // Predicated region
    $region50: #{gcnnet_forward_padded.1} parent=1 // pred_check
      _
    $region51: #{gcnnet_forward_padded.1} parent=1 // pred_check_branch
      %175 = sbr.rel (0) target = $region53
    $region52: #{gcnnet_forward_padded.1} parent=1 // pred_region
      _
    $region53: #{gcnnet_forward_padded.1} parent=1 // pred_fallthru
      _
    // Predicated region
    $region54: #{gcnnet_forward_padded.1} parent=1 // pred_check
      _
    $region55: #{gcnnet_forward_padded.1} parent=1 // pred_check_branch
      %177 = sbr.rel (0) target = $region57
    $region56: #{gcnnet_forward_padded.1} parent=1 // pred_region
      %s179 = ssub.s32 32, 32
      %180 = vsyncadd [#allocation21], %s179
      %s181 = sshll.u32 [#allocation20], 4
      %s182 = int_to_ptr.vmem [resolvable:$true] %s181
      %187 = dma.hbm_to_vmem [thread:$0]  %s13, 32, %s182, [#allocation21], 16, 16, 1
    $region57: #{gcnnet_forward_padded.1} parent=1 // pred_fallthru
      _
    // Predicated region
    $region58: #{gcnnet_forward_padded.1} parent=1 // pred_check
      _
    $region59: #{gcnnet_forward_padded.1} parent=1 // pred_check_branch
      %189 = sbr.rel (0) target = $region61
    $region60: #{gcnnet_forward_padded.1} parent=1 // pred_region
      %s191 = ssub.s32 8192, 8192
      %192 = vsyncadd [#allocation21], %s191
      %s193 = sshll.u32 [#allocation22], 4
      %s194 = int_to_ptr.vmem [resolvable:$true] %s193
      %199 = dma.hbm_to_vmem [thread:$0]  %s14, 8192, %s194, [#allocation21], 64, 64, 4
    $region61: #{gcnnet_forward_padded.1} parent=1 // pred_fallthru
      _
    // Predicated region
    $region62: #{gcnnet_forward_padded.1} parent=1 // pred_check
      _
    $region63: #{gcnnet_forward_padded.1} parent=1 // pred_check_branch
      %201 = sbr.rel (0) target = $region65
    $region64: #{gcnnet_forward_padded.1} parent=1 // pred_region
      %s203 = ssub.s32 16, 16
      %204 = vsyncadd [#allocation24], %s203
      %s206 = sshll.u32 [#allocation23], 4
      %s207 = int_to_ptr.vmem [resolvable:$true] %s206
      %209 = dma.hbm_to_vmem [thread:$0]  %s15, 16, %s207, [#allocation24]
    $region65: #{gcnnet_forward_padded.1} parent=1 // pred_fallthru
      _
    // Predicated region
    $region66: #{gcnnet_forward_padded.1} parent=1 // pred_check
      _
    $region67: #{gcnnet_forward_padded.1} parent=1 // pred_check_branch
      %211 = sbr.rel (0) target = $region69
    $region68: #{gcnnet_forward_padded.1} parent=1 // pred_region
      %s213 = ssub.s32 512, 512
      %214 = vsyncadd [#allocation24], %s213
      %s215 = sshll.u32 [#allocation25], 4
      %s216 = int_to_ptr.vmem [resolvable:$true] %s215
      %221 = dma.hbm_to_vmem [thread:$0]  %s16, 512, %s216, [#allocation24], 64, 64, 4
    $region69: #{gcnnet_forward_padded.1} parent=1 // pred_fallthru
      _
    // Predicated region
    $region70: #{gcnnet_forward_padded.1} parent=1 // pred_check
      _
    $region71: #{gcnnet_forward_padded.1} parent=1 // pred_check_branch
      %223 = sbr.rel (0) target = $region73
    $region72: #{gcnnet_forward_padded.1} parent=1 // pred_region
      %s225 = ssub.s32 512, 512
      %226 = vsyncadd [#allocation27], %s225
      %s227 = sshll.u32 [#allocation26], 4
      %s228 = int_to_ptr.vmem [resolvable:$true] %s227
      %233 = dma.hbm_to_vmem [thread:$0]  %s17, 512, %s228, [#allocation27], 64, 64, 4
    $region73: #{gcnnet_forward_padded.1} parent=1 // pred_fallthru
      _
    // Predicated region
    $region74: #{gcnnet_forward_padded.1} parent=1 // pred_check
      _
    $region75: #{gcnnet_forward_padded.1} parent=1 // pred_check_branch
      %235 = sbr.rel (0) target = $region77
    $region76: #{gcnnet_forward_padded.1} parent=1 // pred_region
      %s237 = ssub.s32 1024, 1024
      %238 = vsyncadd [#allocation27], %s237
      %s239 = sshll.u32 [#allocation28], 4
      %s240 = int_to_ptr.vmem [resolvable:$true] %s239
      %245 = dma.hbm_to_vmem [thread:$0]  %s18, 1024, %s240, [#allocation27], 64, 64, 4
    $region77: #{gcnnet_forward_padded.1} parent=1 // pred_fallthru
      _
    // Predicated region
    $region78: #{gcnnet_forward_padded.1} parent=1 // pred_check
      _
    $region79: #{gcnnet_forward_padded.1} parent=1 // pred_check_branch
      %247 = sbr.rel (0) target = $region81
    $region80: #{gcnnet_forward_padded.1} parent=1 // pred_region
      %s249 = ssub.s32 16, 16
      %250 = vsyncadd [#allocation30], %s249
      %s252 = sshll.u32 [#allocation29], 4
      %s253 = int_to_ptr.vmem [resolvable:$true] %s252
      %255 = dma.hbm_to_vmem [thread:$0]  %s19, 16, %s253, [#allocation30]
    $region81: #{gcnnet_forward_padded.1} parent=1 // pred_fallthru
      _
    // Predicated region
    $region82: #{gcnnet_forward_padded.1} parent=1 // pred_check
      _
    $region83: #{gcnnet_forward_padded.1} parent=1 // pred_check_branch
      %257 = sbr.rel (0) target = $region85
    $region84: #{gcnnet_forward_padded.1} parent=1 // pred_region
      %s259 = ssub.s32 1024, 1024
      %260 = vsyncadd [#allocation30], %s259
      %s261 = sshll.u32 [#allocation31], 4
      %s262 = int_to_ptr.vmem [resolvable:$true] %s261
      %267 = dma.hbm_to_vmem [thread:$0]  %s20, 1024, %s262, [#allocation30], 64, 64, 4
    $region85: #{gcnnet_forward_padded.1} parent=1 // pred_fallthru
      _
    // Predicated region
    $region86: #{gcnnet_forward_padded.1} parent=1 // pred_check
      _
    $region87: #{gcnnet_forward_padded.1} parent=1 // pred_check_branch
      %269 = sbr.rel (0) target = $region89
    $region88: #{gcnnet_forward_padded.1} parent=1 // pred_region
      %s271 = ssub.s32 16, 16
      %272 = vsyncadd [#allocation33], %s271
      %s274 = sshll.u32 [#allocation32], 4
      %s275 = int_to_ptr.vmem [resolvable:$true] %s274
      %277 = dma.hbm_to_vmem [thread:$0]  %s21, 16, %s275, [#allocation33]
    $region89: #{gcnnet_forward_padded.1} parent=1 // pred_fallthru
      _
    // Predicated region
    $region90: #{gcnnet_forward_padded.1} parent=1 // pred_check
      _
    $region91: #{gcnnet_forward_padded.1} parent=1 // pred_check_branch
      %279 = sbr.rel (0) target = $region93
    $region92: #{gcnnet_forward_padded.1} parent=1 // pred_region
      %s281 = ssub.s32 1024, 1024
      %282 = vsyncadd [#allocation33], %s281
      %s283 = sshll.u32 [#allocation34], 4
      %s284 = int_to_ptr.vmem [resolvable:$true] %s283
      %289 = dma.hbm_to_vmem [thread:$0]  %s22, 1024, %s284, [#allocation33], 64, 64, 4
    $region93: #{gcnnet_forward_padded.1} parent=1 // pred_fallthru
      _
    // Predicated region
    $region94: #{gcnnet_forward_padded.1} parent=1 // pred_check
      _
    $region95: #{gcnnet_forward_padded.1} parent=1 // pred_check_branch
      %291 = sbr.rel (0) target = $region97
    $region96: #{gcnnet_forward_padded.1} parent=1 // pred_region
      %s293 = ssub.s32 16, 16
      %294 = vsyncadd [#allocation36], %s293
      %s296 = sshll.u32 [#allocation35], 4
      %s297 = int_to_ptr.vmem [resolvable:$true] %s296
      %299 = dma.hbm_to_vmem [thread:$0]  %s23, 16, %s297, [#allocation36]
    $region97: #{gcnnet_forward_padded.1} parent=1 // pred_fallthru
      _
    // Predicated region
    $region98: #{gcnnet_forward_padded.1} parent=1 // pred_check
      _
    $region99: #{gcnnet_forward_padded.1} parent=1 // pred_check_branch
      %301 = sbr.rel (0) target = $region101
    $region100: #{gcnnet_forward_padded.1} parent=1 // pred_region
      %302 = dma.done [#allocation3], 256
    $region101: #{gcnnet_forward_padded.1} parent=1 // pred_fallthru
      _
    // Predicated region
    $region102: #{gcnnet_forward_padded.1} parent=1 // pred_check
      _
    $region103: #{gcnnet_forward_padded.1} parent=1 // pred_check_branch
      %304 = sbr.rel (0) target = $region105
    $region104: #{gcnnet_forward_padded.1} parent=1 // pred_region
      %305 = dma.done [#allocation6], 256
    $region105: #{gcnnet_forward_padded.1} parent=1 // pred_fallthru
      _
    // Predicated region
    $region106: #{gcnnet_forward_padded.1} parent=1 // pred_check
      _
    $region107: #{gcnnet_forward_padded.1} parent=1 // pred_check_branch
      %307 = sbr.rel (0) target = $region109
    $region108: #{gcnnet_forward_padded.1} parent=1 // pred_region
      %308 = dma.done [#allocation6], 512
    $region109: #{gcnnet_forward_padded.1} parent=1 // pred_fallthru
      _
    // Predicated region
    $region110: #{gcnnet_forward_padded.1} parent=1 // pred_check
      _
    $region111: #{gcnnet_forward_padded.1} parent=1 // pred_check_branch
      %310 = sbr.rel (0) target = $region113
    $region112: #{gcnnet_forward_padded.1} parent=1 // pred_region
      %311 = dma.done [#allocation9], 2048
    $region113: #{gcnnet_forward_padded.1} parent=1 // pred_fallthru
      _
    // Predicated region
    $region114: #{gcnnet_forward_padded.1} parent=1 // pred_check
      _
    $region115: #{gcnnet_forward_padded.1} parent=1 // pred_check_branch
      %313 = sbr.rel (0) target = $region117
    $region116: #{gcnnet_forward_padded.1} parent=1 // pred_region
      %314 = dma.done [#allocation9], 32
    $region117: #{gcnnet_forward_padded.1} parent=1 // pred_fallthru
      _
    // Predicated region
    $region118: #{gcnnet_forward_padded.1} parent=1 // pred_check
      _
    $region119: #{gcnnet_forward_padded.1} parent=1 // pred_check_branch
      %316 = sbr.rel (0) target = $region121
    $region120: #{gcnnet_forward_padded.1} parent=1 // pred_region
      %317 = dma.done [#allocation12], 4096
    $region121: #{gcnnet_forward_padded.1} parent=1 // pred_fallthru
      _
    // Predicated region
    $region122: #{gcnnet_forward_padded.1} parent=1 // pred_check
      _
    $region123: #{gcnnet_forward_padded.1} parent=1 // pred_check_branch
      %319 = sbr.rel (0) target = $region125
    $region124: #{gcnnet_forward_padded.1} parent=1 // pred_region
      %320 = dma.done [#allocation12], 64
    $region125: #{gcnnet_forward_padded.1} parent=1 // pred_fallthru
      _
    // Predicated region
    $region126: #{gcnnet_forward_padded.1} parent=1 // pred_check
      _
    $region127: #{gcnnet_forward_padded.1} parent=1 // pred_check_branch
      %322 = sbr.rel (0) target = $region129
    $region128: #{gcnnet_forward_padded.1} parent=1 // pred_region
      %323 = dma.done [#allocation15], 12288
    $region129: #{gcnnet_forward_padded.1} parent=1 // pred_fallthru
      _
    // Predicated region
    $region130: #{gcnnet_forward_padded.1} parent=1 // pred_check
      _
    $region131: #{gcnnet_forward_padded.1} parent=1 // pred_check_branch
      %325 = sbr.rel (0) target = $region133
    $region132: #{gcnnet_forward_padded.1} parent=1 // pred_region
      %326 = dma.done [#allocation15], 96
    $region133: #{gcnnet_forward_padded.1} parent=1 // pred_fallthru
      _
    // Predicated region
    $region134: #{gcnnet_forward_padded.1} parent=1 // pred_check
      _
    $region135: #{gcnnet_forward_padded.1} parent=1 // pred_check_branch
      %328 = sbr.rel (0) target = $region137
    $region136: #{gcnnet_forward_padded.1} parent=1 // pred_region
      %329 = dma.done [#allocation18], 49152
    $region137: #{gcnnet_forward_padded.1} parent=1 // pred_fallthru
      _
    // Predicated region
    $region138: #{gcnnet_forward_padded.1} parent=1 // pred_check
      _
    $region139: #{gcnnet_forward_padded.1} parent=1 // pred_check_branch
      %331 = sbr.rel (0) target = $region141
    $region140: #{gcnnet_forward_padded.1} parent=1 // pred_region
      %332 = dma.done [#allocation18], 256
    $region141: #{gcnnet_forward_padded.1} parent=1 // pred_fallthru
      _
    // Predicated region
    $region142: #{gcnnet_forward_padded.1} parent=1 // pred_check
      _
    $region143: #{gcnnet_forward_padded.1} parent=1 // pred_check_branch
      %334 = sbr.rel (0) target = $region145
    $region144: #{gcnnet_forward_padded.1} parent=1 // pred_region
      %335 = dma.done [#allocation21], 32
    $region145: #{gcnnet_forward_padded.1} parent=1 // pred_fallthru
      _
    // Predicated region
    $region146: #{gcnnet_forward_padded.1} parent=1 // pred_check
      _
    $region147: #{gcnnet_forward_padded.1} parent=1 // pred_check_branch
      %337 = sbr.rel (0) target = $region149
    $region148: #{gcnnet_forward_padded.1} parent=1 // pred_region
      %338 = dma.done [#allocation21], 8192
    $region149: #{gcnnet_forward_padded.1} parent=1 // pred_fallthru
      _
    // Predicated region
    $region150: #{gcnnet_forward_padded.1} parent=1 // pred_check
      _
    $region151: #{gcnnet_forward_padded.1} parent=1 // pred_check_branch
      %340 = sbr.rel (0) target = $region153
    $region152: #{gcnnet_forward_padded.1} parent=1 // pred_region
      %341 = dma.done [#allocation24], 16
    $region153: #{gcnnet_forward_padded.1} parent=1 // pred_fallthru
      _
    // Predicated region
    $region154: #{gcnnet_forward_padded.1} parent=1 // pred_check
      _
    $region155: #{gcnnet_forward_padded.1} parent=1 // pred_check_branch
      %343 = sbr.rel (0) target = $region157
    $region156: #{gcnnet_forward_padded.1} parent=1 // pred_region
      %344 = dma.done [#allocation24], 512
    $region157: #{gcnnet_forward_padded.1} parent=1 // pred_fallthru
      _
    // Predicated region
    $region158: #{gcnnet_forward_padded.1} parent=1 // pred_check
      _
    $region159: #{gcnnet_forward_padded.1} parent=1 // pred_check_branch
      %346 = sbr.rel (0) target = $region161
    $region160: #{gcnnet_forward_padded.1} parent=1 // pred_region
      %347 = dma.done [#allocation27], 512
    $region161: #{gcnnet_forward_padded.1} parent=1 // pred_fallthru
      _
    // Predicated region
    $region162: #{gcnnet_forward_padded.1} parent=1 // pred_check
      _
    $region163: #{gcnnet_forward_padded.1} parent=1 // pred_check_branch
      %349 = sbr.rel (0) target = $region165
    $region164: #{gcnnet_forward_padded.1} parent=1 // pred_region
      %350 = dma.done [#allocation27], 1024
    $region165: #{gcnnet_forward_padded.1} parent=1 // pred_fallthru
      _
    // Predicated region
    $region166: #{gcnnet_forward_padded.1} parent=1 // pred_check
      _
    $region167: #{gcnnet_forward_padded.1} parent=1 // pred_check_branch
      %352 = sbr.rel (0) target = $region169
    $region168: #{gcnnet_forward_padded.1} parent=1 // pred_region
      %353 = dma.done [#allocation30], 16
    $region169: #{gcnnet_forward_padded.1} parent=1 // pred_fallthru
      _
    // Predicated region
    $region170: #{gcnnet_forward_padded.1} parent=1 // pred_check
      _
    $region171: #{gcnnet_forward_padded.1} parent=1 // pred_check_branch
      %355 = sbr.rel (0) target = $region173
    $region172: #{gcnnet_forward_padded.1} parent=1 // pred_region
      %356 = dma.done [#allocation30], 1024
    $region173: #{gcnnet_forward_padded.1} parent=1 // pred_fallthru
      _
    // Predicated region
    $region174: #{gcnnet_forward_padded.1} parent=1 // pred_check
      _
    $region175: #{gcnnet_forward_padded.1} parent=1 // pred_check_branch
      %358 = sbr.rel (0) target = $region177
    $region176: #{gcnnet_forward_padded.1} parent=1 // pred_region
      %359 = dma.done [#allocation33], 16
    $region177: #{gcnnet_forward_padded.1} parent=1 // pred_fallthru
      _
    // Predicated region
    $region178: #{gcnnet_forward_padded.1} parent=1 // pred_check
      _
    $region179: #{gcnnet_forward_padded.1} parent=1 // pred_check_branch
      %361 = sbr.rel (0) target = $region181
    $region180: #{gcnnet_forward_padded.1} parent=1 // pred_region
      %362 = dma.done [#allocation33], 1024
    $region181: #{gcnnet_forward_padded.1} parent=1 // pred_fallthru
      _
    // Predicated region
    $region182: #{gcnnet_forward_padded.1} parent=1 // pred_check
      _
    $region183: #{gcnnet_forward_padded.1} parent=1 // pred_check_branch
      %364 = sbr.rel (0) target = $region185
    $region184: #{gcnnet_forward_padded.1} parent=1 // pred_region
      %365 = dma.done [#allocation36], 16
    $region185: #{gcnnet_forward_padded.1} parent=1 // pred_fallthru
      _
    %v367 = vld [vmem:[#allocation2] sm:$0xf]
    %v368 = vld [vmem:[#allocation2 + $0x4] sm:$0xf]
    %v369 = vld [vmem:[#allocation5] sm:$0xf]
    %v370 = vld [vmem:[#allocation5 + $0x4] sm:$0xf]
    %v371 = vld [vmem:[%s2] sm:$0xff]
    %v372 = vld [vmem:[%s2 + $0x8] sm:$0xff]
    %v373 = vld [vmem:[#allocation8] sm:$0xf]
    %v374 = vld [vmem:[#allocation8 + $0x4] sm:$0xf]
    %v375 = vld [vmem:[#allocation8 + $0x8] sm:$0xf]
    %v376 = vld [vmem:[#allocation8 + $0xc] sm:$0xf]
    %v377 = vld [vmem:[#allocation8 + $0x10] sm:$0xf]
    %v378 = vld [vmem:[#allocation8 + $0x14] sm:$0xf]
    %v379 = vld [vmem:[#allocation8 + $0x18] sm:$0xf]
    %v380 = vld [vmem:[#allocation8 + $0x1c] sm:$0xf]
    %v381 = vld [vmem:[#allocation8 + $0x20] sm:$0xf]
    %v382 = vld [vmem:[#allocation8 + $0x24] sm:$0xf]
    %v383 = vld [vmem:[#allocation8 + $0x28] sm:$0xf]
    %v384 = vld [vmem:[#allocation8 + $0x2c] sm:$0xf]
    %v385 = vld [vmem:[#allocation8 + $0x30] sm:$0xf]
    %v386 = vld [vmem:[#allocation8 + $0x34] sm:$0xf]
    %v387 = vld [vmem:[#allocation8 + $0x38] sm:$0xf]
    %v388 = vld [vmem:[#allocation8 + $0x3c] sm:$0xf]
    %v389 = vld [vmem:[#allocation10] sm:$0x1]
    %v392 = vunpack.c.l.b16 %v367
    %v393 = vunpack.c.l.b16 %v368
    %v394 = vpack.c.b16 %v393, %v392
    %v397 = vunpack.c.l.b16 %v369
    %v398 = vunpack.c.l.b16 %v370
    %v399 = vpack.c.b16 %v398, %v397
    %vm401 = vcmask 130048
    %v403 = vsel %vm401, %v394, 0
    %405 = vmatprep.subr.bf16.mxu0 0
    %406 = vmatpush1.bf16.msra.mxu0 %v399
    %407 = vmatprep.subr.bf16.mxu0 0
    %408 = vmatpush1.bf16.msra.mxu0 0
    %409 = vmatprep.subr.bf16.mxu0 0
    %410 = vmatpush1.bf16.msra.mxu0 0
    %411 = vmatprep.subr.bf16.mxu0 0
    %412 = vmatpush1.bf16.msra.mxu0 0
    %413 = vmatprep.subr.bf16.mxu0 0
    %414 = vmatpush1.bf16.msra.mxu0 0
    %415 = vmatprep.subr.bf16.mxu0 0
    %416 = vmatpush1.bf16.msra.mxu0 0
    %417 = vmatprep.subr.bf16.mxu0 0
    %418 = vmatpush1.bf16.msra.mxu0 0
    %419 = vmatprep.subr.bf16.mxu0 0
    %420 = vmatpush1.bf16.msra.mxu0 0
    %421 = vmatprep.subr.bf16.mxu0 0
    %422 = vmatpush1.bf16.msra.mxu0 0
    %423 = vmatprep.subr.bf16.mxu0 0
    %424 = vmatpush1.bf16.msra.mxu0 0
    %425 = vmatprep.subr.bf16.mxu0 0
    %426 = vmatpush1.bf16.msra.mxu0 0
    %427 = vmatprep.subr.bf16.mxu0 0
    %428 = vmatpush1.bf16.msra.mxu0 0
    %429 = vmatprep.subr.bf16.mxu0 0
    %430 = vmatpush1.bf16.msra.mxu0 0
    %431 = vmatprep.subr.bf16.mxu0 0
    %432 = vmatpush1.bf16.msra.mxu0 0
    %433 = vmatprep.subr.bf16.mxu0 0
    %434 = vmatpush1.bf16.msra.mxu0 0
    %435 = vmatprep.subr.bf16.mxu0 0
    %436 = vmatpush1.bf16.msra.mxu0 0
    %437 = vmatprep.mubr.bf16.mxu0 0
    %438 = vmatmul.mubr.bf16.gmra.mrb[0].mxu0 %v403
    %v439 = vpop.f32.mrb[0].mxu0
    %v440 = vadd.f32 0.0, %v439
    %v441 = vpop.f32.mrb[0].mxu0
    %v442 = vpop.f32.mrb[0].mxu0
    %v443 = vadd.f32 0.0, %v442
    %v444 = vpop.f32.mrb[0].mxu0
    %445 = vdwg.mxu0
    %v446 = vpack.c.bf16 %v443, %v440
    %v448 = vlaneseq
    %v449 = vshrl.u32 %v448, 7
    %v450 = vsub.s32 0, %v449
    %v451 = vrot.slane %v389, %v450
    %v469 = vunpack.c.l.b16 %v373
    %v470 = vunpack.c.l.b16 %v374
    %v471 = vunpack.c.l.b16 %v375
    %v472 = vunpack.c.l.b16 %v376
    %v473 = vunpack.c.l.b16 %v377
    %v474 = vunpack.c.l.b16 %v378
    %v475 = vunpack.c.l.b16 %v379
    %v476 = vunpack.c.l.b16 %v380
    %v477 = vunpack.c.l.b16 %v381
    %v478 = vunpack.c.l.b16 %v382
    %v479 = vunpack.c.l.b16 %v383
    %v480 = vunpack.c.l.b16 %v384
    %v481 = vunpack.c.l.b16 %v385
    %v482 = vunpack.c.l.b16 %v386
    %v483 = vunpack.c.l.b16 %v387
    %v484 = vunpack.c.l.b16 %v388
    %v485 = vpack.c.b16 %v470, %v469
    %v486 = vpack.c.b16 %v472, %v471
    %v487 = vpack.c.b16 %v474, %v473
    %v488 = vpack.c.b16 %v476, %v475
    %v489 = vpack.c.b16 %v478, %v477
    %v490 = vpack.c.b16 %v480, %v479
    %v491 = vpack.c.b16 %v482, %v481
    %v492 = vpack.c.b16 %v484, %v483
    %501 = vmatprep.subr.bf16.mxu0 0
    %502 = vmatpush1.bf16.msra.mxu0 %v485
    %503 = vmatprep.subr.bf16.mxu0 0
    %504 = vmatpush1.bf16.msra.mxu0 %v486
    %505 = vmatprep.subr.bf16.mxu0 0
    %506 = vmatpush1.bf16.msra.mxu0 %v487
    %507 = vmatprep.subr.bf16.mxu0 0
    %508 = vmatpush1.bf16.msra.mxu0 %v488
    %509 = vmatprep.subr.bf16.mxu0 0
    %510 = vmatpush1.bf16.msra.mxu0 %v489
    %511 = vmatprep.subr.bf16.mxu0 0
    %512 = vmatpush1.bf16.msra.mxu0 %v490
    %513 = vmatprep.subr.bf16.mxu0 0
    %514 = vmatpush1.bf16.msra.mxu0 %v491
    %515 = vmatprep.subr.bf16.mxu0 0
    %516 = vmatpush1.bf16.msra.mxu0 %v492
    %517 = vmatprep.subr.bf16.mxu0 0
    %518 = vmatpush1.bf16.msra.mxu0 0
    %519 = vmatprep.subr.bf16.mxu0 0
    %520 = vmatpush1.bf16.msra.mxu0 0
    %521 = vmatprep.subr.bf16.mxu0 0
    %522 = vmatpush1.bf16.msra.mxu0 0
    %523 = vmatprep.subr.bf16.mxu0 0
    %524 = vmatpush1.bf16.msra.mxu0 0
    %525 = vmatprep.subr.bf16.mxu0 0
    %526 = vmatpush1.bf16.msra.mxu0 0
    %527 = vmatprep.subr.bf16.mxu0 0
    %528 = vmatpush1.bf16.msra.mxu0 0
    %529 = vmatprep.subr.bf16.mxu0 0
    %530 = vmatpush1.bf16.msra.mxu0 0
    %531 = vmatprep.subr.bf16.mxu0 0
    %532 = vmatpush1.bf16.msra.mxu0 0
    %533 = vmatprep.mubr.bf16.mxu0 0
    %534 = vmatmul.mubr.bf16.gmra.mrb[0].mxu0 %v446
    %v535 = vpop.f32.mrb[0].mxu0
    %v536 = vadd.f32 %v451, %v535
    %v537 = vpop.f32.mrb[0].mxu0
    %v538 = vpop.f32.mrb[0].mxu0
    %v539 = vadd.f32 %v451, %v538
    %v540 = vpop.f32.mrb[0].mxu0
    %541 = vdwg.mxu0
    %v542 = vmax.f32 %v536, 0.0
    %v543 = vmax.f32 %v539, 0.0
    %v544 = vpack.c.bf16 %v543, %v542
    %v545 = vld [vmem:[#allocation11] sm:$0xff]
    %v546 = vld [vmem:[#allocation11 + $0x8] sm:$0xff]
    %v547 = vld [vmem:[#allocation11 + $0x10] sm:$0xff]
    %v548 = vld [vmem:[#allocation11 + $0x18] sm:$0xff]
    %v549 = vld [vmem:[#allocation11 + $0x20] sm:$0xff]
    %v550 = vld [vmem:[#allocation11 + $0x28] sm:$0xff]
    %v551 = vld [vmem:[#allocation11 + $0x30] sm:$0xff]
    %v552 = vld [vmem:[#allocation11 + $0x38] sm:$0xff]
    %v553 = vld [vmem:[#allocation11 + $0x40] sm:$0xff]
    %v554 = vld [vmem:[#allocation11 + $0x48] sm:$0xff]
    %v555 = vld [vmem:[#allocation11 + $0x50] sm:$0xff]
    %v556 = vld [vmem:[#allocation11 + $0x58] sm:$0xff]
    %v557 = vld [vmem:[#allocation11 + $0x60] sm:$0xff]
    %v558 = vld [vmem:[#allocation11 + $0x68] sm:$0xff]
    %v559 = vld [vmem:[#allocation11 + $0x70] sm:$0xff]
    %v560 = vld [vmem:[#allocation11 + $0x78] sm:$0xff]
    %v561 = vld [vmem:[#allocation13] sm:$0x3]
    %562 = vmatprep.subr.bf16.mxu0 0
    %563 = vmatpush1.bf16.msra.mxu0 %v544
    %564 = vmatprep.subr.bf16.mxu0 0
    %565 = vmatpush1.bf16.msra.mxu0 0
    %566 = vmatprep.subr.bf16.mxu0 0
    %567 = vmatpush1.bf16.msra.mxu0 0
    %568 = vmatprep.subr.bf16.mxu0 0
    %569 = vmatpush1.bf16.msra.mxu0 0
    %570 = vmatprep.subr.bf16.mxu0 0
    %571 = vmatpush1.bf16.msra.mxu0 0
    %572 = vmatprep.subr.bf16.mxu0 0
    %573 = vmatpush1.bf16.msra.mxu0 0
    %574 = vmatprep.subr.bf16.mxu0 0
    %575 = vmatpush1.bf16.msra.mxu0 0
    %576 = vmatprep.subr.bf16.mxu0 0
    %577 = vmatpush1.bf16.msra.mxu0 0
    %578 = vmatprep.subr.bf16.mxu0 0
    %579 = vmatpush1.bf16.msra.mxu0 0
    %580 = vmatprep.subr.bf16.mxu0 0
    %581 = vmatpush1.bf16.msra.mxu0 0
    %582 = vmatprep.subr.bf16.mxu0 0
    %583 = vmatpush1.bf16.msra.mxu0 0
    %584 = vmatprep.subr.bf16.mxu0 0
    %585 = vmatpush1.bf16.msra.mxu0 0
    %586 = vmatprep.subr.bf16.mxu0 0
    %587 = vmatpush1.bf16.msra.mxu0 0
    %588 = vmatprep.subr.bf16.mxu0 0
    %589 = vmatpush1.bf16.msra.mxu0 0
    %590 = vmatprep.subr.bf16.mxu0 0
    %591 = vmatpush1.bf16.msra.mxu0 0
    %592 = vmatprep.subr.bf16.mxu0 0
    %593 = vmatpush1.bf16.msra.mxu0 0
    %594 = vmatprep.mubr.bf16.mxu0 0
    %595 = vmatmul.mubr.bf16.gmra.mrb[0].mxu0 %v403
    %v596 = vpop.f32.mrb[0].mxu0
    %v597 = vadd.f32 0.0, %v596
    %v598 = vpop.f32.mrb[0].mxu0
    %v599 = vpop.f32.mrb[0].mxu0
    %v600 = vadd.f32 0.0, %v599
    %v601 = vpop.f32.mrb[0].mxu0
    %602 = vdwg.mxu0
    %v603 = vpack.c.bf16 %v600, %v597
    %v605 = vlaneseq
    %v606 = vshrl.u32 %v605, 7
    %v607 = vsub.s32 0, %v606
    %v608 = vrot.slane %v561, %v607
    %v609 = vlaneseq
    %v610 = vshrl.u32 %v609, 7
    %v611 = vsub.s32 1, %v610
    %v612 = vrot.slane %v561, %v611
    %v631 = vunpack.c.l.b16 %v545
    %v632 = vunpack.c.h.b16 %v545
    %v633 = vunpack.c.l.b16 %v546
    %v634 = vunpack.c.h.b16 %v546
    %v635 = vunpack.c.l.b16 %v547
    %v636 = vunpack.c.h.b16 %v547
    %v637 = vunpack.c.l.b16 %v548
    %v638 = vunpack.c.h.b16 %v548
    %v639 = vunpack.c.l.b16 %v549
    %v640 = vunpack.c.h.b16 %v549
    %v641 = vunpack.c.l.b16 %v550
    %v642 = vunpack.c.h.b16 %v550
    %v643 = vunpack.c.l.b16 %v551
    %v644 = vunpack.c.h.b16 %v551
    %v645 = vunpack.c.l.b16 %v552
    %v646 = vunpack.c.h.b16 %v552
    %v647 = vunpack.c.l.b16 %v553
    %v648 = vunpack.c.h.b16 %v553
    %v649 = vunpack.c.l.b16 %v554
    %v650 = vunpack.c.h.b16 %v554
    %v651 = vunpack.c.l.b16 %v555
    %v652 = vunpack.c.h.b16 %v555
    %v653 = vunpack.c.l.b16 %v556
    %v654 = vunpack.c.h.b16 %v556
    %v655 = vunpack.c.l.b16 %v557
    %v656 = vunpack.c.h.b16 %v557
    %v657 = vunpack.c.l.b16 %v558
    %v658 = vunpack.c.h.b16 %v558
    %v659 = vunpack.c.l.b16 %v559
    %v660 = vunpack.c.h.b16 %v559
    %v661 = vunpack.c.l.b16 %v560
    %v662 = vunpack.c.h.b16 %v560
    %v663 = vpack.c.b16 %v633, %v631
    %v664 = vpack.c.b16 %v634, %v632
    %v665 = vpack.c.b16 %v637, %v635
    %v666 = vpack.c.b16 %v638, %v636
    %v667 = vpack.c.b16 %v641, %v639
    %v668 = vpack.c.b16 %v642, %v640
    %v669 = vpack.c.b16 %v645, %v643
    %v670 = vpack.c.b16 %v646, %v644
    %v671 = vpack.c.b16 %v649, %v647
    %v672 = vpack.c.b16 %v650, %v648
    %v673 = vpack.c.b16 %v653, %v651
    %v674 = vpack.c.b16 %v654, %v652
    %v675 = vpack.c.b16 %v657, %v655
    %v676 = vpack.c.b16 %v658, %v656
    %v677 = vpack.c.b16 %v661, %v659
    %v678 = vpack.c.b16 %v662, %v660
    %695 = vmatprep.subr.bf16.mxu0 %v664
    %696 = vmatpush1.bf16.msra.mxu0 %v663
    %697 = vmatprep.subr.bf16.mxu0 %v666
    %698 = vmatpush1.bf16.msra.mxu0 %v665
    %699 = vmatprep.subr.bf16.mxu0 %v668
    %700 = vmatpush1.bf16.msra.mxu0 %v667
    %701 = vmatprep.subr.bf16.mxu0 %v670
    %702 = vmatpush1.bf16.msra.mxu0 %v669
    %703 = vmatprep.subr.bf16.mxu0 %v672
    %704 = vmatpush1.bf16.msra.mxu0 %v671
    %705 = vmatprep.subr.bf16.mxu0 %v674
    %706 = vmatpush1.bf16.msra.mxu0 %v673
    %707 = vmatprep.subr.bf16.mxu0 %v676
    %708 = vmatpush1.bf16.msra.mxu0 %v675
    %709 = vmatprep.subr.bf16.mxu0 %v678
    %710 = vmatpush1.bf16.msra.mxu0 %v677
    %711 = vmatprep.subr.bf16.mxu0 0
    %712 = vmatpush1.bf16.msra.mxu0 0
    %713 = vmatprep.subr.bf16.mxu0 0
    %714 = vmatpush1.bf16.msra.mxu0 0
    %715 = vmatprep.subr.bf16.mxu0 0
    %716 = vmatpush1.bf16.msra.mxu0 0
    %717 = vmatprep.subr.bf16.mxu0 0
    %718 = vmatpush1.bf16.msra.mxu0 0
    %719 = vmatprep.subr.bf16.mxu0 0
    %720 = vmatpush1.bf16.msra.mxu0 0
    %721 = vmatprep.subr.bf16.mxu0 0
    %722 = vmatpush1.bf16.msra.mxu0 0
    %723 = vmatprep.subr.bf16.mxu0 0
    %724 = vmatpush1.bf16.msra.mxu0 0
    %725 = vmatprep.subr.bf16.mxu0 0
    %726 = vmatpush1.bf16.msra.mxu0 0
    %727 = vmatprep.mubr.bf16.mxu0 0
    %728 = vmatmul.mubr.bf16.gmra.mrb[0].mxu0 %v603
    %v729 = vpop.f32.mrb[0].mxu0
    %v730 = vadd.f32 %v608, %v729
    %v731 = vpop.f32.mrb[0].mxu0
    %v732 = vadd.f32 %v612, %v731
    %v733 = vpop.f32.mrb[0].mxu0
    %v734 = vadd.f32 %v608, %v733
    %v735 = vpop.f32.mrb[0].mxu0
    %v736 = vadd.f32 %v612, %v735
    %737 = vdwg.mxu0
    %v738 = vmax.f32 %v730, 0.0
    %v739 = vmax.f32 %v732, 0.0
    %v740 = vmax.f32 %v734, 0.0
    %v741 = vmax.f32 %v736, 0.0
    %v742 = vpack.c.bf16 %v740, %v738
    %v743 = vpack.c.bf16 %v741, %v739
    %v744 = vld [vmem:[#allocation14] sm:$0xff]
    %v745 = vld [vmem:[#allocation14 + $0x8] sm:$0xf]
    %v746 = vld [vmem:[#allocation14 + $0xc] sm:$0xff]
    %v747 = vld [vmem:[#allocation14 + $0x14] sm:$0xf]
    %v748 = vld [vmem:[#allocation14 + $0x18] sm:$0xff]
    %v749 = vld [vmem:[#allocation14 + $0x20] sm:$0xf]
    %v750 = vld [vmem:[#allocation14 + $0x24] sm:$0xff]
    %v751 = vld [vmem:[#allocation14 + $0x2c] sm:$0xf]
    %v752 = vld [vmem:[#allocation14 + $0x30] sm:$0xff]
    %v753 = vld [vmem:[#allocation14 + $0x38] sm:$0xf]
    %v754 = vld [vmem:[#allocation14 + $0x3c] sm:$0xff]
    %v755 = vld [vmem:[#allocation14 + $0x44] sm:$0xf]
    %v756 = vld [vmem:[#allocation14 + $0x48] sm:$0xff]
    %v757 = vld [vmem:[#allocation14 + $0x50] sm:$0xf]
    %v758 = vld [vmem:[#allocation14 + $0x54] sm:$0xff]
    %v759 = vld [vmem:[#allocation14 + $0x5c] sm:$0xf]
    %v760 = vld [vmem:[#allocation14 + $0x60] sm:$0xff]
    %v761 = vld [vmem:[#allocation14 + $0x68] sm:$0xf]
    %v762 = vld [vmem:[#allocation14 + $0x6c] sm:$0xff]
    %v763 = vld [vmem:[#allocation14 + $0x74] sm:$0xf]
    %v764 = vld [vmem:[#allocation14 + $0x78] sm:$0xff]
    %v765 = vld [vmem:[#allocation14 + $0x80] sm:$0xf]
    %v766 = vld [vmem:[#allocation14 + $0x84] sm:$0xff]
    %v767 = vld [vmem:[#allocation14 + $0x8c] sm:$0xf]
    %v768 = vld [vmem:[#allocation14 + $0x90] sm:$0xff]
    %v769 = vld [vmem:[#allocation14 + $0x98] sm:$0xf]
    %v770 = vld [vmem:[#allocation14 + $0x9c] sm:$0xff]
    %v771 = vld [vmem:[#allocation14 + $0xa4] sm:$0xf]
    %v772 = vld [vmem:[#allocation14 + $0xa8] sm:$0xff]
    %v773 = vld [vmem:[#allocation14 + $0xb0] sm:$0xf]
    %v774 = vld [vmem:[#allocation14 + $0xb4] sm:$0xff]
    %v775 = vld [vmem:[#allocation14 + $0xbc] sm:$0xf]
    %v776 = vld [vmem:[#allocation14 + $0xc0] sm:$0xff]
    %v777 = vld [vmem:[#allocation14 + $0xc8] sm:$0xf]
    %v778 = vld [vmem:[#allocation14 + $0xcc] sm:$0xff]
    %v779 = vld [vmem:[#allocation14 + $0xd4] sm:$0xf]
    %v780 = vld [vmem:[#allocation14 + $0xd8] sm:$0xff]
    %v781 = vld [vmem:[#allocation14 + $0xe0] sm:$0xf]
    %v782 = vld [vmem:[#allocation14 + $0xe4] sm:$0xff]
    %v783 = vld [vmem:[#allocation14 + $0xec] sm:$0xf]
    %v784 = vld [vmem:[#allocation14 + $0xf0] sm:$0xff]
    %v785 = vld [vmem:[#allocation14 + $0xf8] sm:$0xf]
    %v786 = vld [vmem:[#allocation14 + $0xfc] sm:$0xff]
    %v787 = vld [vmem:[#allocation14 + $0x104] sm:$0xf]
    %v788 = vld [vmem:[#allocation14 + $0x108] sm:$0xff]
    %v789 = vld [vmem:[#allocation14 + $0x110] sm:$0xf]
    %v790 = vld [vmem:[#allocation14 + $0x114] sm:$0xff]
    %v791 = vld [vmem:[#allocation14 + $0x11c] sm:$0xf]
    %v792 = vld [vmem:[#allocation14 + $0x120] sm:$0xff]
    %v793 = vld [vmem:[#allocation14 + $0x128] sm:$0xf]
    %v794 = vld [vmem:[#allocation14 + $0x12c] sm:$0xff]
    %v795 = vld [vmem:[#allocation14 + $0x134] sm:$0xf]
    %v796 = vld [vmem:[#allocation14 + $0x138] sm:$0xff]
    %v797 = vld [vmem:[#allocation14 + $0x140] sm:$0xf]
    %v798 = vld [vmem:[#allocation14 + $0x144] sm:$0xff]
    %v799 = vld [vmem:[#allocation14 + $0x14c] sm:$0xf]
    %v800 = vld [vmem:[#allocation14 + $0x150] sm:$0xff]
    %v801 = vld [vmem:[#allocation14 + $0x158] sm:$0xf]
    %v802 = vld [vmem:[#allocation14 + $0x15c] sm:$0xff]
    %v803 = vld [vmem:[#allocation14 + $0x164] sm:$0xf]
    %v804 = vld [vmem:[#allocation14 + $0x168] sm:$0xff]
    %v805 = vld [vmem:[#allocation14 + $0x170] sm:$0xf]
    %v806 = vld [vmem:[#allocation14 + $0x174] sm:$0xff]
    %v807 = vld [vmem:[#allocation14 + $0x17c] sm:$0xf]
    %v808 = vld [vmem:[#allocation16] sm:$0x7]
    %809 = vmatprep.subr.bf16.mxu0 %v743
    %810 = vmatpush1.bf16.msra.mxu0 %v742
    %811 = vmatprep.subr.bf16.mxu0 0
    %812 = vmatpush1.bf16.msra.mxu0 0
    %813 = vmatprep.subr.bf16.mxu0 0
    %814 = vmatpush1.bf16.msra.mxu0 0
    %815 = vmatprep.subr.bf16.mxu0 0
    %816 = vmatpush1.bf16.msra.mxu0 0
    %817 = vmatprep.subr.bf16.mxu0 0
    %818 = vmatpush1.bf16.msra.mxu0 0
    %819 = vmatprep.subr.bf16.mxu0 0
    %820 = vmatpush1.bf16.msra.mxu0 0
    %821 = vmatprep.subr.bf16.mxu0 0
    %822 = vmatpush1.bf16.msra.mxu0 0
    %823 = vmatprep.subr.bf16.mxu0 0
    %824 = vmatpush1.bf16.msra.mxu0 0
    %825 = vmatprep.subr.bf16.mxu0 0
    %826 = vmatpush1.bf16.msra.mxu0 0
    %827 = vmatprep.subr.bf16.mxu0 0
    %828 = vmatpush1.bf16.msra.mxu0 0
    %829 = vmatprep.subr.bf16.mxu0 0
    %830 = vmatpush1.bf16.msra.mxu0 0
    %831 = vmatprep.subr.bf16.mxu0 0
    %832 = vmatpush1.bf16.msra.mxu0 0
    %833 = vmatprep.subr.bf16.mxu0 0
    %834 = vmatpush1.bf16.msra.mxu0 0
    %835 = vmatprep.subr.bf16.mxu0 0
    %836 = vmatpush1.bf16.msra.mxu0 0
    %837 = vmatprep.subr.bf16.mxu0 0
    %838 = vmatpush1.bf16.msra.mxu0 0
    %839 = vmatprep.subr.bf16.mxu0 0
    %840 = vmatpush1.bf16.msra.mxu0 0
    %841 = vmatprep.mubr.bf16.mxu0 0
    %842 = vmatmul.mubr.bf16.gmra.mrb[0].mxu0 %v403
    %v843 = vpop.f32.mrb[0].mxu0
    %v844 = vadd.f32 0.0, %v843
    %v845 = vpop.f32.mrb[0].mxu0
    %v846 = vadd.f32 0.0, %v845
    %v847 = vpop.f32.mrb[0].mxu0
    %v848 = vadd.f32 0.0, %v847
    %v849 = vpop.f32.mrb[0].mxu0
    %v850 = vadd.f32 0.0, %v849
    %851 = vdwg.mxu0
    %v852 = vpack.c.bf16 %v848, %v844
    %v853 = vpack.c.bf16 %v850, %v846
    %v855 = vlaneseq
    %v856 = vshrl.u32 %v855, 7
    %v857 = vsub.s32 0, %v856
    %v858 = vrot.slane %v808, %v857
    %v859 = vlaneseq
    %v860 = vshrl.u32 %v859, 7
    %v861 = vsub.s32 1, %v860
    %v862 = vrot.slane %v808, %v861
    %v863 = vlaneseq
    %v864 = vshrl.u32 %v863, 7
    %v865 = vsub.s32 2, %v864
    %v866 = vrot.slane %v808, %v865
    %v934 = vunpack.c.l.b16 %v744
    %v935 = vunpack.c.h.b16 %v744
    %v936 = vunpack.c.l.b16 %v745
    %v937 = vunpack.c.l.b16 %v746
    %v938 = vunpack.c.h.b16 %v746
    %v939 = vunpack.c.l.b16 %v747
    %v940 = vunpack.c.l.b16 %v748
    %v941 = vunpack.c.h.b16 %v748
    %v942 = vunpack.c.l.b16 %v749
    %v943 = vunpack.c.l.b16 %v750
    %v944 = vunpack.c.h.b16 %v750
    %v945 = vunpack.c.l.b16 %v751
    %v946 = vunpack.c.l.b16 %v752
    %v947 = vunpack.c.h.b16 %v752
    %v948 = vunpack.c.l.b16 %v753
    %v949 = vunpack.c.l.b16 %v754
    %v950 = vunpack.c.h.b16 %v754
    %v951 = vunpack.c.l.b16 %v755
    %v952 = vunpack.c.l.b16 %v756
    %v953 = vunpack.c.h.b16 %v756
    %v954 = vunpack.c.l.b16 %v757
    %v955 = vunpack.c.l.b16 %v758
    %v956 = vunpack.c.h.b16 %v758
    %v957 = vunpack.c.l.b16 %v759
    %v958 = vunpack.c.l.b16 %v760
    %v959 = vunpack.c.h.b16 %v760
    %v960 = vunpack.c.l.b16 %v761
    %v961 = vunpack.c.l.b16 %v762
    %v962 = vunpack.c.h.b16 %v762
    %v963 = vunpack.c.l.b16 %v763
    %v964 = vunpack.c.l.b16 %v764
    %v965 = vunpack.c.h.b16 %v764
    %v966 = vunpack.c.l.b16 %v765
    %v967 = vunpack.c.l.b16 %v766
    %v968 = vunpack.c.h.b16 %v766
    %v969 = vunpack.c.l.b16 %v767
    %v970 = vunpack.c.l.b16 %v768
    %v971 = vunpack.c.h.b16 %v768
    %v972 = vunpack.c.l.b16 %v769
    %v973 = vunpack.c.l.b16 %v770
    %v974 = vunpack.c.h.b16 %v770
    %v975 = vunpack.c.l.b16 %v771
    %v976 = vunpack.c.l.b16 %v772
    %v977 = vunpack.c.h.b16 %v772
    %v978 = vunpack.c.l.b16 %v773
    %v979 = vunpack.c.l.b16 %v774
    %v980 = vunpack.c.h.b16 %v774
    %v981 = vunpack.c.l.b16 %v775
    %v982 = vunpack.c.l.b16 %v776
    %v983 = vunpack.c.h.b16 %v776
    %v984 = vunpack.c.l.b16 %v777
    %v985 = vunpack.c.l.b16 %v778
    %v986 = vunpack.c.h.b16 %v778
    %v987 = vunpack.c.l.b16 %v779
    %v988 = vunpack.c.l.b16 %v780
    %v989 = vunpack.c.h.b16 %v780
    %v990 = vunpack.c.l.b16 %v781
    %v991 = vunpack.c.l.b16 %v782
    %v992 = vunpack.c.h.b16 %v782
    %v993 = vunpack.c.l.b16 %v783
    %v994 = vunpack.c.l.b16 %v784
    %v995 = vunpack.c.h.b16 %v784
    %v996 = vunpack.c.l.b16 %v785
    %v997 = vunpack.c.l.b16 %v786
    %v998 = vunpack.c.h.b16 %v786
    %v999 = vunpack.c.l.b16 %v787
    %v1000 = vunpack.c.l.b16 %v788
    %v1001 = vunpack.c.h.b16 %v788
    %v1002 = vunpack.c.l.b16 %v789
    %v1003 = vunpack.c.l.b16 %v790
    %v1004 = vunpack.c.h.b16 %v790
    %v1005 = vunpack.c.l.b16 %v791
    %v1006 = vunpack.c.l.b16 %v792
    %v1007 = vunpack.c.h.b16 %v792
    %v1008 = vunpack.c.l.b16 %v793
    %v1009 = vunpack.c.l.b16 %v794
    %v1010 = vunpack.c.h.b16 %v794
    %v1011 = vunpack.c.l.b16 %v795
    %v1012 = vunpack.c.l.b16 %v796
    %v1013 = vunpack.c.h.b16 %v796
    %v1014 = vunpack.c.l.b16 %v797
    %v1015 = vunpack.c.l.b16 %v798
    %v1016 = vunpack.c.h.b16 %v798
    %v1017 = vunpack.c.l.b16 %v799
    %v1018 = vunpack.c.l.b16 %v800
    %v1019 = vunpack.c.h.b16 %v800
    %v1020 = vunpack.c.l.b16 %v801
    %v1021 = vunpack.c.l.b16 %v802
    %v1022 = vunpack.c.h.b16 %v802
    %v1023 = vunpack.c.l.b16 %v803
    %v1024 = vunpack.c.l.b16 %v804
    %v1025 = vunpack.c.h.b16 %v804
    %v1026 = vunpack.c.l.b16 %v805
    %v1027 = vunpack.c.l.b16 %v806
    %v1028 = vunpack.c.h.b16 %v806
    %v1029 = vunpack.c.l.b16 %v807
    %v1030 = vpack.c.b16 %v937, %v934
    %v1031 = vpack.c.b16 %v938, %v935
    %v1032 = vpack.c.b16 %v939, %v936
    %v1033 = vpack.c.b16 %v943, %v940
    %v1034 = vpack.c.b16 %v944, %v941
    %v1035 = vpack.c.b16 %v945, %v942
    %v1036 = vpack.c.b16 %v949, %v946
    %v1037 = vpack.c.b16 %v950, %v947
    %v1038 = vpack.c.b16 %v951, %v948
    %v1039 = vpack.c.b16 %v955, %v952
    %v1040 = vpack.c.b16 %v956, %v953
    %v1041 = vpack.c.b16 %v957, %v954
    %v1042 = vpack.c.b16 %v961, %v958
    %v1043 = vpack.c.b16 %v962, %v959
    %v1044 = vpack.c.b16 %v963, %v960
    %v1045 = vpack.c.b16 %v967, %v964
    %v1046 = vpack.c.b16 %v968, %v965
    %v1047 = vpack.c.b16 %v969, %v966
    %v1048 = vpack.c.b16 %v973, %v970
    %v1049 = vpack.c.b16 %v974, %v971
    %v1050 = vpack.c.b16 %v975, %v972
    %v1051 = vpack.c.b16 %v979, %v976
    %v1052 = vpack.c.b16 %v980, %v977
    %v1053 = vpack.c.b16 %v981, %v978
    %v1054 = vpack.c.b16 %v985, %v982
    %v1055 = vpack.c.b16 %v986, %v983
    %v1056 = vpack.c.b16 %v987, %v984
    %v1057 = vpack.c.b16 %v991, %v988
    %v1058 = vpack.c.b16 %v992, %v989
    %v1059 = vpack.c.b16 %v993, %v990
    %v1060 = vpack.c.b16 %v997, %v994
    %v1061 = vpack.c.b16 %v998, %v995
    %v1062 = vpack.c.b16 %v999, %v996
    %v1063 = vpack.c.b16 %v1003, %v1000
    %v1064 = vpack.c.b16 %v1004, %v1001
    %v1065 = vpack.c.b16 %v1005, %v1002
    %v1066 = vpack.c.b16 %v1009, %v1006
    %v1067 = vpack.c.b16 %v1010, %v1007
    %v1068 = vpack.c.b16 %v1011, %v1008
    %v1069 = vpack.c.b16 %v1015, %v1012
    %v1070 = vpack.c.b16 %v1016, %v1013
    %v1071 = vpack.c.b16 %v1017, %v1014
    %v1072 = vpack.c.b16 %v1021, %v1018
    %v1073 = vpack.c.b16 %v1022, %v1019
    %v1074 = vpack.c.b16 %v1023, %v1020
    %v1075 = vpack.c.b16 %v1027, %v1024
    %v1076 = vpack.c.b16 %v1028, %v1025
    %v1077 = vpack.c.b16 %v1029, %v1026
    %1126 = vmatprep.subr.bf16.mxu0 %v1031
    %1127 = vmatpush1.bf16.msra.mxu0 %v1030
    %1128 = vmatprep.subr.bf16.mxu0 %v1034
    %1129 = vmatpush1.bf16.msra.mxu0 %v1033
    %1130 = vmatprep.subr.bf16.mxu0 %v1037
    %1131 = vmatpush1.bf16.msra.mxu0 %v1036
    %1132 = vmatprep.subr.bf16.mxu0 %v1040
    %1133 = vmatpush1.bf16.msra.mxu0 %v1039
    %1134 = vmatprep.subr.bf16.mxu0 %v1043
    %1135 = vmatpush1.bf16.msra.mxu0 %v1042
    %1136 = vmatprep.subr.bf16.mxu0 %v1046
    %1137 = vmatpush1.bf16.msra.mxu0 %v1045
    %1138 = vmatprep.subr.bf16.mxu0 %v1049
    %1139 = vmatpush1.bf16.msra.mxu0 %v1048
    %1140 = vmatprep.subr.bf16.mxu0 %v1052
    %1141 = vmatpush1.bf16.msra.mxu0 %v1051
    %1142 = vmatprep.subr.bf16.mxu0 %v1055
    %1143 = vmatpush1.bf16.msra.mxu0 %v1054
    %1144 = vmatprep.subr.bf16.mxu0 %v1058
    %1145 = vmatpush1.bf16.msra.mxu0 %v1057
    %1146 = vmatprep.subr.bf16.mxu0 %v1061
    %1147 = vmatpush1.bf16.msra.mxu0 %v1060
    %1148 = vmatprep.subr.bf16.mxu0 %v1064
    %1149 = vmatpush1.bf16.msra.mxu0 %v1063
    %1150 = vmatprep.subr.bf16.mxu0 %v1067
    %1151 = vmatpush1.bf16.msra.mxu0 %v1066
    %1152 = vmatprep.subr.bf16.mxu0 %v1070
    %1153 = vmatpush1.bf16.msra.mxu0 %v1069
    %1154 = vmatprep.subr.bf16.mxu0 %v1073
    %1155 = vmatpush1.bf16.msra.mxu0 %v1072
    %1156 = vmatprep.subr.bf16.mxu0 %v1076
    %1157 = vmatpush1.bf16.msra.mxu0 %v1075
    %1158 = vmatprep.mubr.bf16.mxu0 %v853
    %1159 = vmatmul.mubr.bf16.gmra.mrb[0].mxu0 %v852
    %v1160 = vpop.f32.mrb[0].mxu0
    %v1161 = vadd.f32 %v858, %v1160
    %v1162 = vpop.f32.mrb[0].mxu0
    %v1163 = vadd.f32 %v862, %v1162
    %v1164 = vpop.f32.mrb[0].mxu0
    %v1165 = vadd.f32 %v858, %v1164
    %v1166 = vpop.f32.mrb[0].mxu0
    %v1167 = vadd.f32 %v862, %v1166
    %1168 = vdwg.mxu0
    %1169 = vmatprep.subr.bf16.mxu0 0
    %1170 = vmatpush1.bf16.msra.mxu0 %v1032
    %1171 = vmatprep.subr.bf16.mxu0 0
    %1172 = vmatpush1.bf16.msra.mxu0 %v1035
    %1173 = vmatprep.subr.bf16.mxu0 0
    %1174 = vmatpush1.bf16.msra.mxu0 %v1038
    %1175 = vmatprep.subr.bf16.mxu0 0
    %1176 = vmatpush1.bf16.msra.mxu0 %v1041
    %1177 = vmatprep.subr.bf16.mxu0 0
    %1178 = vmatpush1.bf16.msra.mxu0 %v1044
    %1179 = vmatprep.subr.bf16.mxu0 0
    %1180 = vmatpush1.bf16.msra.mxu0 %v1047
    %1181 = vmatprep.subr.bf16.mxu0 0
    %1182 = vmatpush1.bf16.msra.mxu0 %v1050
    %1183 = vmatprep.subr.bf16.mxu0 0
    %1184 = vmatpush1.bf16.msra.mxu0 %v1053
    %1185 = vmatprep.subr.bf16.mxu0 0
    %1186 = vmatpush1.bf16.msra.mxu0 %v1056
    %1187 = vmatprep.subr.bf16.mxu0 0
    %1188 = vmatpush1.bf16.msra.mxu0 %v1059
    %1189 = vmatprep.subr.bf16.mxu0 0
    %1190 = vmatpush1.bf16.msra.mxu0 %v1062
    %1191 = vmatprep.subr.bf16.mxu0 0
    %1192 = vmatpush1.bf16.msra.mxu0 %v1065
    %1193 = vmatprep.subr.bf16.mxu0 0
    %1194 = vmatpush1.bf16.msra.mxu0 %v1068
    %1195 = vmatprep.subr.bf16.mxu0 0
    %1196 = vmatpush1.bf16.msra.mxu0 %v1071
    %1197 = vmatprep.subr.bf16.mxu0 0
    %1198 = vmatpush1.bf16.msra.mxu0 %v1074
    %1199 = vmatprep.subr.bf16.mxu0 0
    %1200 = vmatpush1.bf16.msra.mxu0 %v1077
    %1201 = vmatprep.mubr.bf16.mxu0 %v853
    %1202 = vmatmul.mubr.bf16.gmra.mrb[0].mxu0 %v852
    %v1203 = vpop.f32.mrb[0].mxu0
    %v1204 = vadd.f32 %v866, %v1203
    %v1205 = vpop.f32.mrb[0].mxu0
    %v1206 = vpop.f32.mrb[0].mxu0
    %v1207 = vadd.f32 %v866, %v1206
    %v1208 = vpop.f32.mrb[0].mxu0
    %1209 = vdwg.mxu0
    %v1210 = vmax.f32 %v1161, 0.0
    %v1211 = vmax.f32 %v1163, 0.0
    %v1212 = vmax.f32 %v1204, 0.0
    %v1213 = vmax.f32 %v1165, 0.0
    %v1214 = vmax.f32 %v1167, 0.0
    %v1215 = vmax.f32 %v1207, 0.0
    %vm1216 = vcmp.gt.f32.partialorder %v371, 0.5
    %vm1217 = vcmp.gt.f32.partialorder %v372, 0.5
    %v1218 = vsel %vm1216, 1, 0
    %v1219 = vsel %vm1217, 1, 0
    %1220 = vset.pattern.permute.xlu0 0
    %1221 = vperm.xlu0 %1220, %v1218
    %v1222 = vpop.permute.xlu0 %1221
    %1223 = vset.pattern.permute.xlu0 0
    %1224 = vperm.xlu0 %1223, %v1219
    %v1225 = vpop.permute.xlu0 %1224
    %vm1226 = vcmp.eq.s32.totalorder %v1222, 1
    %vm1227 = vcmp.eq.s32.totalorder %v1225, 1
    %v1228 = vsel %vm1226, %v1210, 0.0
    %v1229 = vsel %vm1226, %v1211, 0.0
    %v1230 = vsel %vm1226, %v1212, 0.0
    %v1231 = vsel %vm1227, %v1213, 0.0
    %v1232 = vsel %vm1227, %v1214, 0.0
    %v1233 = vsel %vm1227, %v1215, 0.0
    %v1234 = vmax.f32 %v1228, %v1231
    %v1235 = vrot.slane %v1234, 4
    %v1236 = vmax.f32 %v1234, %v1235
    %v1237 = vrot.slane %v1236, 2
    %v1238 = vmax.f32 %v1236, %v1237
    %v1239 = vrot.slane %v1238, 1
    %v1240 = vmax.f32 %v1238, %v1239
    %v1241 = vmax.f32 %v1229, %v1232
    %v1242 = vrot.slane %v1241, 4
    %v1243 = vmax.f32 %v1241, %v1242
    %v1244 = vrot.slane %v1243, 2
    %v1245 = vmax.f32 %v1243, %v1244
    %v1246 = vrot.slane %v1245, 1
    %v1247 = vmax.f32 %v1245, %v1246
    %v1248 = vmax.f32 %v1230, %v1233
    %v1249 = vrot.slane %v1248, 4
    %v1250 = vmax.f32 %v1248, %v1249
    %v1251 = vrot.slane %v1250, 2
    %v1252 = vmax.f32 %v1250, %v1251
    %v1253 = vrot.slane %v1252, 1
    %v1254 = vmax.f32 %v1252, %v1253
    %1255 = vset.pattern.permute.xlu0 1
    %1256 = vperm.xlu0 %1255, %v1218
    %v1257 = vpop.permute.xlu0 %1256
    %1258 = vset.pattern.permute.xlu0 1
    %1259 = vperm.xlu0 %1258, %v1219
    %v1260 = vpop.permute.xlu0 %1259
    %vm1261 = vcmp.eq.s32.totalorder %v1257, 1
    %vm1262 = vcmp.eq.s32.totalorder %v1260, 1
    %v1263 = vsel %vm1261, %v1210, 0.0
    %v1264 = vsel %vm1261, %v1211, 0.0
    %v1265 = vsel %vm1261, %v1212, 0.0
    %v1266 = vsel %vm1262, %v1213, 0.0
    %v1267 = vsel %vm1262, %v1214, 0.0
    %v1268 = vsel %vm1262, %v1215, 0.0
    %v1269 = vmax.f32 %v1263, %v1266
    %v1270 = vrot.slane %v1269, 4
    %v1271 = vmax.f32 %v1269, %v1270
    %v1272 = vrot.slane %v1271, 2
    %v1273 = vmax.f32 %v1271, %v1272
    %v1274 = vrot.slane %v1273, 1
    %v1275 = vmax.f32 %v1273, %v1274
    %v1276 = vmax.f32 %v1264, %v1267
    %v1277 = vrot.slane %v1276, 4
    %v1278 = vmax.f32 %v1276, %v1277
    %v1279 = vrot.slane %v1278, 2
    %v1280 = vmax.f32 %v1278, %v1279
    %v1281 = vrot.slane %v1280, 1
    %v1282 = vmax.f32 %v1280, %v1281
    %v1283 = vmax.f32 %v1265, %v1268
    %v1284 = vrot.slane %v1283, 4
    %v1285 = vmax.f32 %v1283, %v1284
    %v1286 = vrot.slane %v1285, 2
    %v1287 = vmax.f32 %v1285, %v1286
    %v1288 = vrot.slane %v1287, 1
    %v1289 = vmax.f32 %v1287, %v1288
    %1290 = vset.pattern.permute.xlu0 2
    %1291 = vperm.xlu0 %1290, %v1218
    %v1292 = vpop.permute.xlu0 %1291
    %1293 = vset.pattern.permute.xlu0 2
    %1294 = vperm.xlu0 %1293, %v1219
    %v1295 = vpop.permute.xlu0 %1294
    %vm1296 = vcmp.eq.s32.totalorder %v1292, 1
    %vm1297 = vcmp.eq.s32.totalorder %v1295, 1
    %v1298 = vsel %vm1296, %v1210, 0.0
    %v1299 = vsel %vm1296, %v1211, 0.0
    %v1300 = vsel %vm1296, %v1212, 0.0
    %v1301 = vsel %vm1297, %v1213, 0.0
    %v1302 = vsel %vm1297, %v1214, 0.0
    %v1303 = vsel %vm1297, %v1215, 0.0
    %v1304 = vmax.f32 %v1298, %v1301
    %v1305 = vrot.slane %v1304, 4
    %v1306 = vmax.f32 %v1304, %v1305
    %v1307 = vrot.slane %v1306, 2
    %v1308 = vmax.f32 %v1306, %v1307
    %v1309 = vrot.slane %v1308, 1
    %v1310 = vmax.f32 %v1308, %v1309
    %v1311 = vmax.f32 %v1299, %v1302
    %v1312 = vrot.slane %v1311, 4
    %v1313 = vmax.f32 %v1311, %v1312
    %v1314 = vrot.slane %v1313, 2
    %v1315 = vmax.f32 %v1313, %v1314
    %v1316 = vrot.slane %v1315, 1
    %v1317 = vmax.f32 %v1315, %v1316
    %v1318 = vmax.f32 %v1300, %v1303
    %v1319 = vrot.slane %v1318, 4
    %v1320 = vmax.f32 %v1318, %v1319
    %v1321 = vrot.slane %v1320, 2
    %v1322 = vmax.f32 %v1320, %v1321
    %v1323 = vrot.slane %v1322, 1
    %v1324 = vmax.f32 %v1322, %v1323
    %1325 = vset.pattern.permute.xlu0 3
    %1326 = vperm.xlu0 %1325, %v1218
    %v1327 = vpop.permute.xlu0 %1326
    %1328 = vset.pattern.permute.xlu0 3
    %1329 = vperm.xlu0 %1328, %v1219
    %v1330 = vpop.permute.xlu0 %1329
    %vm1331 = vcmp.eq.s32.totalorder %v1327, 1
    %vm1332 = vcmp.eq.s32.totalorder %v1330, 1
    %v1333 = vsel %vm1331, %v1210, 0.0
    %v1334 = vsel %vm1331, %v1211, 0.0
    %v1335 = vsel %vm1331, %v1212, 0.0
    %v1336 = vsel %vm1332, %v1213, 0.0
    %v1337 = vsel %vm1332, %v1214, 0.0
    %v1338 = vsel %vm1332, %v1215, 0.0
    %v1339 = vmax.f32 %v1333, %v1336
    %v1340 = vrot.slane %v1339, 4
    %v1341 = vmax.f32 %v1339, %v1340
    %v1342 = vrot.slane %v1341, 2
    %v1343 = vmax.f32 %v1341, %v1342
    %v1344 = vrot.slane %v1343, 1
    %v1345 = vmax.f32 %v1343, %v1344
    %v1346 = vmax.f32 %v1334, %v1337
    %v1347 = vrot.slane %v1346, 4
    %v1348 = vmax.f32 %v1346, %v1347
    %v1349 = vrot.slane %v1348, 2
    %v1350 = vmax.f32 %v1348, %v1349
    %v1351 = vrot.slane %v1350, 1
    %v1352 = vmax.f32 %v1350, %v1351
    %v1353 = vmax.f32 %v1335, %v1338
    %v1354 = vrot.slane %v1353, 4
    %v1355 = vmax.f32 %v1353, %v1354
    %v1356 = vrot.slane %v1355, 2
    %v1357 = vmax.f32 %v1355, %v1356
    %v1358 = vrot.slane %v1357, 1
    %v1359 = vmax.f32 %v1357, %v1358
    %1360 = vset.pattern.permute.xlu0 4
    %1361 = vperm.xlu0 %1360, %v1218
    %v1362 = vpop.permute.xlu0 %1361
    %1363 = vset.pattern.permute.xlu0 4
    %1364 = vperm.xlu0 %1363, %v1219
    %v1365 = vpop.permute.xlu0 %1364
    %vm1366 = vcmp.eq.s32.totalorder %v1362, 1
    %vm1367 = vcmp.eq.s32.totalorder %v1365, 1
    %v1368 = vsel %vm1366, %v1210, 0.0
    %v1369 = vsel %vm1366, %v1211, 0.0
    %v1370 = vsel %vm1366, %v1212, 0.0
    %v1371 = vsel %vm1367, %v1213, 0.0
    %v1372 = vsel %vm1367, %v1214, 0.0
    %v1373 = vsel %vm1367, %v1215, 0.0
    %v1374 = vmax.f32 %v1368, %v1371
    %v1375 = vrot.slane %v1374, 4
    %v1376 = vmax.f32 %v1374, %v1375
    %v1377 = vrot.slane %v1376, 2
    %v1378 = vmax.f32 %v1376, %v1377
    %v1379 = vrot.slane %v1378, 1
    %v1380 = vmax.f32 %v1378, %v1379
    %v1381 = vmax.f32 %v1369, %v1372
    %v1382 = vrot.slane %v1381, 4
    %v1383 = vmax.f32 %v1381, %v1382
    %v1384 = vrot.slane %v1383, 2
    %v1385 = vmax.f32 %v1383, %v1384
    %v1386 = vrot.slane %v1385, 1
    %v1387 = vmax.f32 %v1385, %v1386
    %v1388 = vmax.f32 %v1370, %v1373
    %v1389 = vrot.slane %v1388, 4
    %v1390 = vmax.f32 %v1388, %v1389
    %v1391 = vrot.slane %v1390, 2
    %v1392 = vmax.f32 %v1390, %v1391
    %v1393 = vrot.slane %v1392, 1
    %v1394 = vmax.f32 %v1392, %v1393
    %1395 = vset.pattern.permute.xlu0 5
    %1396 = vperm.xlu0 %1395, %v1218
    %v1397 = vpop.permute.xlu0 %1396
    %1398 = vset.pattern.permute.xlu0 5
    %1399 = vperm.xlu0 %1398, %v1219
    %v1400 = vpop.permute.xlu0 %1399
    %vm1401 = vcmp.eq.s32.totalorder %v1397, 1
    %vm1402 = vcmp.eq.s32.totalorder %v1400, 1
    %v1403 = vsel %vm1401, %v1210, 0.0
    %v1404 = vsel %vm1401, %v1211, 0.0
    %v1405 = vsel %vm1401, %v1212, 0.0
    %v1406 = vsel %vm1402, %v1213, 0.0
    %v1407 = vsel %vm1402, %v1214, 0.0
    %v1408 = vsel %vm1402, %v1215, 0.0
    %v1409 = vmax.f32 %v1403, %v1406
    %v1410 = vrot.slane %v1409, 4
    %v1411 = vmax.f32 %v1409, %v1410
    %v1412 = vrot.slane %v1411, 2
    %v1413 = vmax.f32 %v1411, %v1412
    %v1414 = vrot.slane %v1413, 1
    %v1415 = vmax.f32 %v1413, %v1414
    %v1416 = vmax.f32 %v1404, %v1407
    %v1417 = vrot.slane %v1416, 4
    %v1418 = vmax.f32 %v1416, %v1417
    %v1419 = vrot.slane %v1418, 2
    %v1420 = vmax.f32 %v1418, %v1419
    %v1421 = vrot.slane %v1420, 1
    %v1422 = vmax.f32 %v1420, %v1421
    %v1423 = vmax.f32 %v1405, %v1408
    %v1424 = vrot.slane %v1423, 4
    %v1425 = vmax.f32 %v1423, %v1424
    %v1426 = vrot.slane %v1425, 2
    %v1427 = vmax.f32 %v1425, %v1426
    %v1428 = vrot.slane %v1427, 1
    %v1429 = vmax.f32 %v1427, %v1428
    %1430 = vset.pattern.permute.xlu0 6
    %1431 = vperm.xlu0 %1430, %v1218
    %v1432 = vpop.permute.xlu0 %1431
    %1433 = vset.pattern.permute.xlu0 6
    %1434 = vperm.xlu0 %1433, %v1219
    %v1435 = vpop.permute.xlu0 %1434
    %vm1436 = vcmp.eq.s32.totalorder %v1432, 1
    %vm1437 = vcmp.eq.s32.totalorder %v1435, 1
    %v1438 = vsel %vm1436, %v1210, 0.0
    %v1439 = vsel %vm1436, %v1211, 0.0
    %v1440 = vsel %vm1436, %v1212, 0.0
    %v1441 = vsel %vm1437, %v1213, 0.0
    %v1442 = vsel %vm1437, %v1214, 0.0
    %v1443 = vsel %vm1437, %v1215, 0.0
    %v1444 = vmax.f32 %v1438, %v1441
    %v1445 = vrot.slane %v1444, 4
    %v1446 = vmax.f32 %v1444, %v1445
    %v1447 = vrot.slane %v1446, 2
    %v1448 = vmax.f32 %v1446, %v1447
    %v1449 = vrot.slane %v1448, 1
    %v1450 = vmax.f32 %v1448, %v1449
    %v1451 = vmax.f32 %v1439, %v1442
    %v1452 = vrot.slane %v1451, 4
    %v1453 = vmax.f32 %v1451, %v1452
    %v1454 = vrot.slane %v1453, 2
    %v1455 = vmax.f32 %v1453, %v1454
    %v1456 = vrot.slane %v1455, 1
    %v1457 = vmax.f32 %v1455, %v1456
    %v1458 = vmax.f32 %v1440, %v1443
    %v1459 = vrot.slane %v1458, 4
    %v1460 = vmax.f32 %v1458, %v1459
    %v1461 = vrot.slane %v1460, 2
    %v1462 = vmax.f32 %v1460, %v1461
    %v1463 = vrot.slane %v1462, 1
    %v1464 = vmax.f32 %v1462, %v1463
    %1465 = vset.pattern.permute.xlu0 7
    %1466 = vperm.xlu0 %1465, %v1218
    %v1467 = vpop.permute.xlu0 %1466
    %1468 = vset.pattern.permute.xlu0 7
    %1469 = vperm.xlu0 %1468, %v1219
    %v1470 = vpop.permute.xlu0 %1469
    %vm1471 = vcmp.eq.s32.totalorder %v1467, 1
    %vm1472 = vcmp.eq.s32.totalorder %v1470, 1
    %v1473 = vsel %vm1471, %v1210, 0.0
    %v1474 = vsel %vm1471, %v1211, 0.0
    %v1475 = vsel %vm1471, %v1212, 0.0
    %v1476 = vsel %vm1472, %v1213, 0.0
    %v1477 = vsel %vm1472, %v1214, 0.0
    %v1478 = vsel %vm1472, %v1215, 0.0
    %v1479 = vmax.f32 %v1473, %v1476
    %v1480 = vrot.slane %v1479, 4
    %v1481 = vmax.f32 %v1479, %v1480
    %v1482 = vrot.slane %v1481, 2
    %v1483 = vmax.f32 %v1481, %v1482
    %v1484 = vrot.slane %v1483, 1
    %v1485 = vmax.f32 %v1483, %v1484
    %v1486 = vmax.f32 %v1474, %v1477
    %v1487 = vrot.slane %v1486, 4
    %v1488 = vmax.f32 %v1486, %v1487
    %v1489 = vrot.slane %v1488, 2
    %v1490 = vmax.f32 %v1488, %v1489
    %v1491 = vrot.slane %v1490, 1
    %v1492 = vmax.f32 %v1490, %v1491
    %v1493 = vmax.f32 %v1475, %v1478
    %v1494 = vrot.slane %v1493, 4
    %v1495 = vmax.f32 %v1493, %v1494
    %v1496 = vrot.slane %v1495, 2
    %v1497 = vmax.f32 %v1495, %v1496
    %v1498 = vrot.slane %v1497, 1
    %v1499 = vmax.f32 %v1497, %v1498
    %vm1500 = vcmask 1040384
    %v1501 = vsel %vm1500, %v1240, %v1275
    %v1502 = vsel %vm1500, %v1247, %v1282
    %v1503 = vsel %vm1500, %v1254, %v1289
    %vm1504 = vcmask 1041408
    %v1505 = vsel %vm1504, %v1501, %v1310
    %v1506 = vsel %vm1504, %v1502, %v1317
    %v1507 = vsel %vm1504, %v1503, %v1324
    %vm1508 = vcmask 1042432
    %v1509 = vsel %vm1508, %v1505, %v1345
    %v1510 = vsel %vm1508, %v1506, %v1352
    %v1511 = vsel %vm1508, %v1507, %v1359
    %vm1512 = vcmask 1043456
    %v1513 = vsel %vm1512, %v1509, %v1380
    %v1514 = vsel %vm1512, %v1510, %v1387
    %v1515 = vsel %vm1512, %v1511, %v1394
    %vm1516 = vcmask 1044480
    %v1517 = vsel %vm1516, %v1513, %v1415
    %v1518 = vsel %vm1516, %v1514, %v1422
    %v1519 = vsel %vm1516, %v1515, %v1429
    %vm1520 = vcmask 1045504
    %v1521 = vsel %vm1520, %v1517, %v1450
    %v1522 = vsel %vm1520, %v1518, %v1457
    %v1523 = vsel %vm1520, %v1519, %v1464
    %vm1524 = vcmask 1046528
    %v1525 = vsel %vm1524, %v1521, %v1485
    %v1526 = vsel %vm1524, %v1522, %v1492
    %v1527 = vsel %vm1524, %v1523, %v1499
    %v1528 = vpack.c.bf16 %v1525, %v1525
    %v1529 = vpack.c.bf16 %v1526, %v1526
    %v1530 = vpack.c.bf16 %v1527, %v1527
    %v1531 = vld [vmem:[#allocation17] sm:$0xff]
    %v1532 = vld [vmem:[#allocation17 + $0x8] sm:$0xff]
    %v1533 = vld [vmem:[#allocation17 + $0x10] sm:$0xff]
    %v1534 = vld [vmem:[#allocation17 + $0x18] sm:$0xff]
    %v1535 = vld [vmem:[#allocation17 + $0x20] sm:$0xff]
    %v1536 = vld [vmem:[#allocation17 + $0x28] sm:$0xff]
    %v1537 = vld [vmem:[#allocation17 + $0x30] sm:$0xff]
    %v1538 = vld [vmem:[#allocation17 + $0x38] sm:$0xff]
    %v1539 = vld [vmem:[#allocation17 + $0x40] sm:$0xff]
    %v1540 = vld [vmem:[#allocation17 + $0x48] sm:$0xff]
    %v1541 = vld [vmem:[#allocation17 + $0x50] sm:$0xff]
    %v1542 = vld [vmem:[#allocation17 + $0x58] sm:$0xff]
    %v1543 = vld [vmem:[#allocation17 + $0x60] sm:$0xff]
    %v1544 = vld [vmem:[#allocation17 + $0x68] sm:$0xff]
    %v1545 = vld [vmem:[#allocation17 + $0x70] sm:$0xff]
    %v1546 = vld [vmem:[#allocation17 + $0x78] sm:$0xff]
    %v1547 = vld [vmem:[#allocation17 + $0x80] sm:$0xff]
    %v1548 = vld [vmem:[#allocation17 + $0x88] sm:$0xff]
    %v1549 = vld [vmem:[#allocation17 + $0x90] sm:$0xff]
    %v1550 = vld [vmem:[#allocation17 + $0x98] sm:$0xff]
    %v1551 = vld [vmem:[#allocation17 + $0xa0] sm:$0xff]
    %v1552 = vld [vmem:[#allocation17 + $0xa8] sm:$0xff]
    %v1553 = vld [vmem:[#allocation17 + $0xb0] sm:$0xff]
    %v1554 = vld [vmem:[#allocation17 + $0xb8] sm:$0xff]
    %v1555 = vld [vmem:[#allocation17 + $0xc0] sm:$0xff]
    %v1556 = vld [vmem:[#allocation17 + $0xc8] sm:$0xff]
    %v1557 = vld [vmem:[#allocation17 + $0xd0] sm:$0xff]
    %v1558 = vld [vmem:[#allocation17 + $0xd8] sm:$0xff]
    %v1559 = vld [vmem:[#allocation17 + $0xe0] sm:$0xff]
    %v1560 = vld [vmem:[#allocation17 + $0xe8] sm:$0xff]
    %v1561 = vld [vmem:[#allocation17 + $0xf0] sm:$0xff]
    %v1562 = vld [vmem:[#allocation17 + $0xf8] sm:$0xff]
    %v1563 = vld [vmem:[#allocation17 + $0x100] sm:$0xff]
    %v1564 = vld [vmem:[#allocation17 + $0x108] sm:$0xff]
    %v1565 = vld [vmem:[#allocation17 + $0x110] sm:$0xff]
    %v1566 = vld [vmem:[#allocation17 + $0x118] sm:$0xff]
    %v1567 = vld [vmem:[#allocation17 + $0x120] sm:$0xff]
    %v1568 = vld [vmem:[#allocation17 + $0x128] sm:$0xff]
    %v1569 = vld [vmem:[#allocation17 + $0x130] sm:$0xff]
    %v1570 = vld [vmem:[#allocation17 + $0x138] sm:$0xff]
    %v1571 = vld [vmem:[#allocation17 + $0x140] sm:$0xff]
    %v1572 = vld [vmem:[#allocation17 + $0x148] sm:$0xff]
    %v1573 = vld [vmem:[#allocation17 + $0x150] sm:$0xff]
    %v1574 = vld [vmem:[#allocation17 + $0x158] sm:$0xff]
    %v1575 = vld [vmem:[#allocation17 + $0x160] sm:$0xff]
    %v1576 = vld [vmem:[#allocation17 + $0x168] sm:$0xff]
    %v1577 = vld [vmem:[#allocation17 + $0x170] sm:$0xff]
    %v1578 = vld [vmem:[#allocation17 + $0x178] sm:$0xff]
    %v1579 = vld [vmem:[#allocation17 + $0x180] sm:$0xff]
    %v1580 = vld [vmem:[#allocation17 + $0x188] sm:$0xff]
    %v1581 = vld [vmem:[#allocation17 + $0x190] sm:$0xff]
    %v1582 = vld [vmem:[#allocation17 + $0x198] sm:$0xff]
    %v1583 = vld [vmem:[#allocation17 + $0x1a0] sm:$0xff]
    %v1584 = vld [vmem:[#allocation17 + $0x1a8] sm:$0xff]
    %v1585 = vld [vmem:[#allocation17 + $0x1b0] sm:$0xff]
    %v1586 = vld [vmem:[#allocation17 + $0x1b8] sm:$0xff]
    %v1587 = vld [vmem:[#allocation17 + $0x1c0] sm:$0xff]
    %v1588 = vld [vmem:[#allocation17 + $0x1c8] sm:$0xff]
    %v1589 = vld [vmem:[#allocation17 + $0x1d0] sm:$0xff]
    %v1590 = vld [vmem:[#allocation17 + $0x1d8] sm:$0xff]
    %v1591 = vld [vmem:[#allocation17 + $0x1e0] sm:$0xff]
    %v1592 = vld [vmem:[#allocation17 + $0x1e8] sm:$0xff]
    %v1593 = vld [vmem:[#allocation17 + $0x1f0] sm:$0xff]
    %v1594 = vld [vmem:[#allocation17 + $0x1f8] sm:$0xff]
    %v1595 = vld [vmem:[#allocation17 + $0x200] sm:$0xff]
    %v1596 = vld [vmem:[#allocation17 + $0x208] sm:$0xff]
    %v1597 = vld [vmem:[#allocation17 + $0x210] sm:$0xff]
    %v1598 = vld [vmem:[#allocation17 + $0x218] sm:$0xff]
    %v1599 = vld [vmem:[#allocation17 + $0x220] sm:$0xff]
    %v1600 = vld [vmem:[#allocation17 + $0x228] sm:$0xff]
    %v1601 = vld [vmem:[#allocation17 + $0x230] sm:$0xff]
    %v1602 = vld [vmem:[#allocation17 + $0x238] sm:$0xff]
    %v1603 = vld [vmem:[#allocation17 + $0x240] sm:$0xff]
    %v1604 = vld [vmem:[#allocation17 + $0x248] sm:$0xff]
    %v1605 = vld [vmem:[#allocation17 + $0x250] sm:$0xff]
    %v1606 = vld [vmem:[#allocation17 + $0x258] sm:$0xff]
    %v1607 = vld [vmem:[#allocation17 + $0x260] sm:$0xff]
    %v1608 = vld [vmem:[#allocation17 + $0x268] sm:$0xff]
    %v1609 = vld [vmem:[#allocation17 + $0x270] sm:$0xff]
    %v1610 = vld [vmem:[#allocation17 + $0x278] sm:$0xff]
    %v1611 = vld [vmem:[#allocation17 + $0x280] sm:$0xff]
    %v1612 = vld [vmem:[#allocation17 + $0x288] sm:$0xff]
    %v1613 = vld [vmem:[#allocation17 + $0x290] sm:$0xff]
    %v1614 = vld [vmem:[#allocation17 + $0x298] sm:$0xff]
    %v1615 = vld [vmem:[#allocation17 + $0x2a0] sm:$0xff]
    %v1616 = vld [vmem:[#allocation17 + $0x2a8] sm:$0xff]
    %v1617 = vld [vmem:[#allocation17 + $0x2b0] sm:$0xff]
    %v1618 = vld [vmem:[#allocation17 + $0x2b8] sm:$0xff]
    %v1619 = vld [vmem:[#allocation17 + $0x2c0] sm:$0xff]
    %v1620 = vld [vmem:[#allocation17 + $0x2c8] sm:$0xff]
    %v1621 = vld [vmem:[#allocation17 + $0x2d0] sm:$0xff]
    %v1622 = vld [vmem:[#allocation17 + $0x2d8] sm:$0xff]
    %v1623 = vld [vmem:[#allocation17 + $0x2e0] sm:$0xff]
    %v1624 = vld [vmem:[#allocation17 + $0x2e8] sm:$0xff]
    %v1625 = vld [vmem:[#allocation17 + $0x2f0] sm:$0xff]
    %v1626 = vld [vmem:[#allocation17 + $0x2f8] sm:$0xff]
    %v1627 = vld [vmem:[#allocation17 + $0x300] sm:$0xff]
    %v1628 = vld [vmem:[#allocation17 + $0x308] sm:$0xff]
    %v1629 = vld [vmem:[#allocation17 + $0x310] sm:$0xff]
    %v1630 = vld [vmem:[#allocation17 + $0x318] sm:$0xff]
    %v1631 = vld [vmem:[#allocation17 + $0x320] sm:$0xff]
    %v1632 = vld [vmem:[#allocation17 + $0x328] sm:$0xff]
    %v1633 = vld [vmem:[#allocation17 + $0x330] sm:$0xff]
    %v1634 = vld [vmem:[#allocation17 + $0x338] sm:$0xff]
    %v1635 = vld [vmem:[#allocation17 + $0x340] sm:$0xff]
    %v1636 = vld [vmem:[#allocation17 + $0x348] sm:$0xff]
    %v1637 = vld [vmem:[#allocation17 + $0x350] sm:$0xff]
    %v1638 = vld [vmem:[#allocation17 + $0x358] sm:$0xff]
    %v1639 = vld [vmem:[#allocation17 + $0x360] sm:$0xff]
    %v1640 = vld [vmem:[#allocation17 + $0x368] sm:$0xff]
    %v1641 = vld [vmem:[#allocation17 + $0x370] sm:$0xff]
    %v1642 = vld [vmem:[#allocation17 + $0x378] sm:$0xff]
    %v1643 = vld [vmem:[#allocation17 + $0x380] sm:$0xff]
    %v1644 = vld [vmem:[#allocation17 + $0x388] sm:$0xff]
    %v1645 = vld [vmem:[#allocation17 + $0x390] sm:$0xff]
    %v1646 = vld [vmem:[#allocation17 + $0x398] sm:$0xff]
    %v1647 = vld [vmem:[#allocation17 + $0x3a0] sm:$0xff]
    %v1648 = vld [vmem:[#allocation17 + $0x3a8] sm:$0xff]
    %v1649 = vld [vmem:[#allocation17 + $0x3b0] sm:$0xff]
    %v1650 = vld [vmem:[#allocation17 + $0x3b8] sm:$0xff]
    %v1651 = vld [vmem:[#allocation17 + $0x3c0] sm:$0xff]
    %v1652 = vld [vmem:[#allocation17 + $0x3c8] sm:$0xff]
    %v1653 = vld [vmem:[#allocation17 + $0x3d0] sm:$0xff]
    %v1654 = vld [vmem:[#allocation17 + $0x3d8] sm:$0xff]
    %v1655 = vld [vmem:[#allocation17 + $0x3e0] sm:$0xff]
    %v1656 = vld [vmem:[#allocation17 + $0x3e8] sm:$0xff]
    %v1657 = vld [vmem:[#allocation17 + $0x3f0] sm:$0xff]
    %v1658 = vld [vmem:[#allocation17 + $0x3f8] sm:$0xff]
    %v1659 = vld [vmem:[#allocation17 + $0x400] sm:$0xff]
    %v1660 = vld [vmem:[#allocation17 + $0x408] sm:$0xff]
    %v1661 = vld [vmem:[#allocation17 + $0x410] sm:$0xff]
    %v1662 = vld [vmem:[#allocation17 + $0x418] sm:$0xff]
    %v1663 = vld [vmem:[#allocation17 + $0x420] sm:$0xff]
    %v1664 = vld [vmem:[#allocation17 + $0x428] sm:$0xff]
    %v1665 = vld [vmem:[#allocation17 + $0x430] sm:$0xff]
    %v1666 = vld [vmem:[#allocation17 + $0x438] sm:$0xff]
    %v1667 = vld [vmem:[#allocation17 + $0x440] sm:$0xff]
    %v1668 = vld [vmem:[#allocation17 + $0x448] sm:$0xff]
    %v1669 = vld [vmem:[#allocation17 + $0x450] sm:$0xff]
    %v1670 = vld [vmem:[#allocation17 + $0x458] sm:$0xff]
    %v1671 = vld [vmem:[#allocation17 + $0x460] sm:$0xff]
    %v1672 = vld [vmem:[#allocation17 + $0x468] sm:$0xff]
    %v1673 = vld [vmem:[#allocation17 + $0x470] sm:$0xff]
    %v1674 = vld [vmem:[#allocation17 + $0x478] sm:$0xff]
    %v1675 = vld [vmem:[#allocation17 + $0x480] sm:$0xff]
    %v1676 = vld [vmem:[#allocation17 + $0x488] sm:$0xff]
    %v1677 = vld [vmem:[#allocation17 + $0x490] sm:$0xff]
    %v1678 = vld [vmem:[#allocation17 + $0x498] sm:$0xff]
    %v1679 = vld [vmem:[#allocation17 + $0x4a0] sm:$0xff]
    %v1680 = vld [vmem:[#allocation17 + $0x4a8] sm:$0xff]
    %v1681 = vld [vmem:[#allocation17 + $0x4b0] sm:$0xff]
    %v1682 = vld [vmem:[#allocation17 + $0x4b8] sm:$0xff]
    %v1683 = vld [vmem:[#allocation17 + $0x4c0] sm:$0xff]
    %v1684 = vld [vmem:[#allocation17 + $0x4c8] sm:$0xff]
    %v1685 = vld [vmem:[#allocation17 + $0x4d0] sm:$0xff]
    %v1686 = vld [vmem:[#allocation17 + $0x4d8] sm:$0xff]
    %v1687 = vld [vmem:[#allocation17 + $0x4e0] sm:$0xff]
    %v1688 = vld [vmem:[#allocation17 + $0x4e8] sm:$0xff]
    %v1689 = vld [vmem:[#allocation17 + $0x4f0] sm:$0xff]
    %v1690 = vld [vmem:[#allocation17 + $0x4f8] sm:$0xff]
    %v1691 = vld [vmem:[#allocation17 + $0x500] sm:$0xff]
    %v1692 = vld [vmem:[#allocation17 + $0x508] sm:$0xff]
    %v1693 = vld [vmem:[#allocation17 + $0x510] sm:$0xff]
    %v1694 = vld [vmem:[#allocation17 + $0x518] sm:$0xff]
    %v1695 = vld [vmem:[#allocation17 + $0x520] sm:$0xff]
    %v1696 = vld [vmem:[#allocation17 + $0x528] sm:$0xff]
    %v1697 = vld [vmem:[#allocation17 + $0x530] sm:$0xff]
    %v1698 = vld [vmem:[#allocation17 + $0x538] sm:$0xff]
    %v1699 = vld [vmem:[#allocation17 + $0x540] sm:$0xff]
    %v1700 = vld [vmem:[#allocation17 + $0x548] sm:$0xff]
    %v1701 = vld [vmem:[#allocation17 + $0x550] sm:$0xff]
    %v1702 = vld [vmem:[#allocation17 + $0x558] sm:$0xff]
    %v1703 = vld [vmem:[#allocation17 + $0x560] sm:$0xff]
    %v1704 = vld [vmem:[#allocation17 + $0x568] sm:$0xff]
    %v1705 = vld [vmem:[#allocation17 + $0x570] sm:$0xff]
    %v1706 = vld [vmem:[#allocation17 + $0x578] sm:$0xff]
    %v1707 = vld [vmem:[#allocation17 + $0x580] sm:$0xff]
    %v1708 = vld [vmem:[#allocation17 + $0x588] sm:$0xff]
    %v1709 = vld [vmem:[#allocation17 + $0x590] sm:$0xff]
    %v1710 = vld [vmem:[#allocation17 + $0x598] sm:$0xff]
    %v1711 = vld [vmem:[#allocation17 + $0x5a0] sm:$0xff]
    %v1712 = vld [vmem:[#allocation17 + $0x5a8] sm:$0xff]
    %v1713 = vld [vmem:[#allocation17 + $0x5b0] sm:$0xff]
    %v1714 = vld [vmem:[#allocation17 + $0x5b8] sm:$0xff]
    %v1715 = vld [vmem:[#allocation17 + $0x5c0] sm:$0xff]
    %v1716 = vld [vmem:[#allocation17 + $0x5c8] sm:$0xff]
    %v1717 = vld [vmem:[#allocation17 + $0x5d0] sm:$0xff]
    %v1718 = vld [vmem:[#allocation17 + $0x5d8] sm:$0xff]
    %v1719 = vld [vmem:[#allocation17 + $0x5e0] sm:$0xff]
    %v1720 = vld [vmem:[#allocation17 + $0x5e8] sm:$0xff]
    %v1721 = vld [vmem:[#allocation17 + $0x5f0] sm:$0xff]
    %v1722 = vld [vmem:[#allocation17 + $0x5f8] sm:$0xff]
    %v1723 = vld [vmem:[#allocation19] sm:$0xff]
    %v1725 = vlaneseq
    %v1726 = vshrl.u32 %v1725, 7
    %v1727 = vsub.s32 0, %v1726
    %v1728 = vrot.slane %v1723, %v1727
    %v1729 = vlaneseq
    %v1730 = vshrl.u32 %v1729, 7
    %v1731 = vsub.s32 1, %v1730
    %v1732 = vrot.slane %v1723, %v1731
    %v1733 = vlaneseq
    %v1734 = vshrl.u32 %v1733, 7
    %v1735 = vsub.s32 2, %v1734
    %v1736 = vrot.slane %v1723, %v1735
    %v1737 = vlaneseq
    %v1738 = vshrl.u32 %v1737, 7
    %v1739 = vsub.s32 3, %v1738
    %v1740 = vrot.slane %v1723, %v1739
    %v1741 = vlaneseq
    %v1742 = vshrl.u32 %v1741, 7
    %v1743 = vsub.s32 4, %v1742
    %v1744 = vrot.slane %v1723, %v1743
    %v1745 = vlaneseq
    %v1746 = vshrl.u32 %v1745, 7
    %v1747 = vsub.s32 5, %v1746
    %v1748 = vrot.slane %v1723, %v1747
    %v1749 = vlaneseq
    %v1750 = vshrl.u32 %v1749, 7
    %v1751 = vsub.s32 6, %v1750
    %v1752 = vrot.slane %v1723, %v1751
    %v1753 = vlaneseq
    %v1754 = vshrl.u32 %v1753, 7
    %v1755 = vsub.s32 7, %v1754
    %v1756 = vrot.slane %v1723, %v1755
    %v1957 = vunpack.c.l.b16 %v1531
    %v1958 = vunpack.c.h.b16 %v1531
    %v1959 = vunpack.c.l.b16 %v1532
    %v1960 = vunpack.c.h.b16 %v1532
    %v1961 = vunpack.c.l.b16 %v1533
    %v1962 = vunpack.c.h.b16 %v1533
    %v1963 = vunpack.c.l.b16 %v1534
    %v1964 = vunpack.c.h.b16 %v1534
    %v1965 = vunpack.c.l.b16 %v1535
    %v1966 = vunpack.c.h.b16 %v1535
    %v1967 = vunpack.c.l.b16 %v1536
    %v1968 = vunpack.c.h.b16 %v1536
    %v1969 = vunpack.c.l.b16 %v1537
    %v1970 = vunpack.c.h.b16 %v1537
    %v1971 = vunpack.c.l.b16 %v1538
    %v1972 = vunpack.c.h.b16 %v1538
    %v1973 = vunpack.c.l.b16 %v1539
    %v1974 = vunpack.c.h.b16 %v1539
    %v1975 = vunpack.c.l.b16 %v1540
    %v1976 = vunpack.c.h.b16 %v1540
    %v1977 = vunpack.c.l.b16 %v1541
    %v1978 = vunpack.c.h.b16 %v1541
    %v1979 = vunpack.c.l.b16 %v1542
    %v1980 = vunpack.c.h.b16 %v1542
    %v1981 = vunpack.c.l.b16 %v1543
    %v1982 = vunpack.c.h.b16 %v1543
    %v1983 = vunpack.c.l.b16 %v1544
    %v1984 = vunpack.c.h.b16 %v1544
    %v1985 = vunpack.c.l.b16 %v1545
    %v1986 = vunpack.c.h.b16 %v1545
    %v1987 = vunpack.c.l.b16 %v1546
    %v1988 = vunpack.c.h.b16 %v1546
    %v1989 = vunpack.c.l.b16 %v1547
    %v1990 = vunpack.c.h.b16 %v1547
    %v1991 = vunpack.c.l.b16 %v1548
    %v1992 = vunpack.c.h.b16 %v1548
    %v1993 = vunpack.c.l.b16 %v1549
    %v1994 = vunpack.c.h.b16 %v1549
    %v1995 = vunpack.c.l.b16 %v1550
    %v1996 = vunpack.c.h.b16 %v1550
    %v1997 = vunpack.c.l.b16 %v1551
    %v1998 = vunpack.c.h.b16 %v1551
    %v1999 = vunpack.c.l.b16 %v1552
    %v2000 = vunpack.c.h.b16 %v1552
    %v2001 = vunpack.c.l.b16 %v1553
    %v2002 = vunpack.c.h.b16 %v1553
    %v2003 = vunpack.c.l.b16 %v1554
    %v2004 = vunpack.c.h.b16 %v1554
    %v2005 = vunpack.c.l.b16 %v1555
    %v2006 = vunpack.c.h.b16 %v1555
    %v2007 = vunpack.c.l.b16 %v1556
    %v2008 = vunpack.c.h.b16 %v1556
    %v2009 = vunpack.c.l.b16 %v1557
    %v2010 = vunpack.c.h.b16 %v1557
    %v2011 = vunpack.c.l.b16 %v1558
    %v2012 = vunpack.c.h.b16 %v1558
    %v2013 = vunpack.c.l.b16 %v1559
    %v2014 = vunpack.c.h.b16 %v1559
    %v2015 = vunpack.c.l.b16 %v1560
    %v2016 = vunpack.c.h.b16 %v1560
    %v2017 = vunpack.c.l.b16 %v1561
    %v2018 = vunpack.c.h.b16 %v1561
    %v2019 = vunpack.c.l.b16 %v1562
    %v2020 = vunpack.c.h.b16 %v1562
    %v2021 = vunpack.c.l.b16 %v1563
    %v2022 = vunpack.c.h.b16 %v1563
    %v2023 = vunpack.c.l.b16 %v1564
    %v2024 = vunpack.c.h.b16 %v1564
    %v2025 = vunpack.c.l.b16 %v1565
    %v2026 = vunpack.c.h.b16 %v1565
    %v2027 = vunpack.c.l.b16 %v1566
    %v2028 = vunpack.c.h.b16 %v1566
    %v2029 = vunpack.c.l.b16 %v1567
    %v2030 = vunpack.c.h.b16 %v1567
    %v2031 = vunpack.c.l.b16 %v1568
    %v2032 = vunpack.c.h.b16 %v1568
    %v2033 = vunpack.c.l.b16 %v1569
    %v2034 = vunpack.c.h.b16 %v1569
    %v2035 = vunpack.c.l.b16 %v1570
    %v2036 = vunpack.c.h.b16 %v1570
    %v2037 = vunpack.c.l.b16 %v1571
    %v2038 = vunpack.c.h.b16 %v1571
    %v2039 = vunpack.c.l.b16 %v1572
    %v2040 = vunpack.c.h.b16 %v1572
    %v2041 = vunpack.c.l.b16 %v1573
    %v2042 = vunpack.c.h.b16 %v1573
    %v2043 = vunpack.c.l.b16 %v1574
    %v2044 = vunpack.c.h.b16 %v1574
    %v2045 = vunpack.c.l.b16 %v1575
    %v2046 = vunpack.c.h.b16 %v1575
    %v2047 = vunpack.c.l.b16 %v1576
    %v2048 = vunpack.c.h.b16 %v1576
    %v2049 = vunpack.c.l.b16 %v1577
    %v2050 = vunpack.c.h.b16 %v1577
    %v2051 = vunpack.c.l.b16 %v1578
    %v2052 = vunpack.c.h.b16 %v1578
    %v2053 = vunpack.c.l.b16 %v1579
    %v2054 = vunpack.c.h.b16 %v1579
    %v2055 = vunpack.c.l.b16 %v1580
    %v2056 = vunpack.c.h.b16 %v1580
    %v2057 = vunpack.c.l.b16 %v1581
    %v2058 = vunpack.c.h.b16 %v1581
    %v2059 = vunpack.c.l.b16 %v1582
    %v2060 = vunpack.c.h.b16 %v1582
    %v2061 = vunpack.c.l.b16 %v1583
    %v2062 = vunpack.c.h.b16 %v1583
    %v2063 = vunpack.c.l.b16 %v1584
    %v2064 = vunpack.c.h.b16 %v1584
    %v2065 = vunpack.c.l.b16 %v1585
    %v2066 = vunpack.c.h.b16 %v1585
    %v2067 = vunpack.c.l.b16 %v1586
    %v2068 = vunpack.c.h.b16 %v1586
    %v2069 = vunpack.c.l.b16 %v1587
    %v2070 = vunpack.c.h.b16 %v1587
    %v2071 = vunpack.c.l.b16 %v1588
    %v2072 = vunpack.c.h.b16 %v1588
    %v2073 = vunpack.c.l.b16 %v1589
    %v2074 = vunpack.c.h.b16 %v1589
    %v2075 = vunpack.c.l.b16 %v1590
    %v2076 = vunpack.c.h.b16 %v1590
    %v2077 = vunpack.c.l.b16 %v1591
    %v2078 = vunpack.c.h.b16 %v1591
    %v2079 = vunpack.c.l.b16 %v1592
    %v2080 = vunpack.c.h.b16 %v1592
    %v2081 = vunpack.c.l.b16 %v1593
    %v2082 = vunpack.c.h.b16 %v1593
    %v2083 = vunpack.c.l.b16 %v1594
    %v2084 = vunpack.c.h.b16 %v1594
    %v2085 = vunpack.c.l.b16 %v1595
    %v2086 = vunpack.c.h.b16 %v1595
    %v2087 = vunpack.c.l.b16 %v1596
    %v2088 = vunpack.c.h.b16 %v1596
    %v2089 = vunpack.c.l.b16 %v1597
    %v2090 = vunpack.c.h.b16 %v1597
    %v2091 = vunpack.c.l.b16 %v1598
    %v2092 = vunpack.c.h.b16 %v1598
    %v2093 = vunpack.c.l.b16 %v1599
    %v2094 = vunpack.c.h.b16 %v1599
    %v2095 = vunpack.c.l.b16 %v1600
    %v2096 = vunpack.c.h.b16 %v1600
    %v2097 = vunpack.c.l.b16 %v1601
    %v2098 = vunpack.c.h.b16 %v1601
    %v2099 = vunpack.c.l.b16 %v1602
    %v2100 = vunpack.c.h.b16 %v1602
    %v2101 = vunpack.c.l.b16 %v1603
    %v2102 = vunpack.c.h.b16 %v1603
    %v2103 = vunpack.c.l.b16 %v1604
    %v2104 = vunpack.c.h.b16 %v1604
    %v2105 = vunpack.c.l.b16 %v1605
    %v2106 = vunpack.c.h.b16 %v1605
    %v2107 = vunpack.c.l.b16 %v1606
    %v2108 = vunpack.c.h.b16 %v1606
    %v2109 = vunpack.c.l.b16 %v1607
    %v2110 = vunpack.c.h.b16 %v1607
    %v2111 = vunpack.c.l.b16 %v1608
    %v2112 = vunpack.c.h.b16 %v1608
    %v2113 = vunpack.c.l.b16 %v1609
    %v2114 = vunpack.c.h.b16 %v1609
    %v2115 = vunpack.c.l.b16 %v1610
    %v2116 = vunpack.c.h.b16 %v1610
    %v2117 = vunpack.c.l.b16 %v1611
    %v2118 = vunpack.c.h.b16 %v1611
    %v2119 = vunpack.c.l.b16 %v1612
    %v2120 = vunpack.c.h.b16 %v1612
    %v2121 = vunpack.c.l.b16 %v1613
    %v2122 = vunpack.c.h.b16 %v1613
    %v2123 = vunpack.c.l.b16 %v1614
    %v2124 = vunpack.c.h.b16 %v1614
    %v2125 = vunpack.c.l.b16 %v1615
    %v2126 = vunpack.c.h.b16 %v1615
    %v2127 = vunpack.c.l.b16 %v1616
    %v2128 = vunpack.c.h.b16 %v1616
    %v2129 = vunpack.c.l.b16 %v1617
    %v2130 = vunpack.c.h.b16 %v1617
    %v2131 = vunpack.c.l.b16 %v1618
    %v2132 = vunpack.c.h.b16 %v1618
    %v2133 = vunpack.c.l.b16 %v1619
    %v2134 = vunpack.c.h.b16 %v1619
    %v2135 = vunpack.c.l.b16 %v1620
    %v2136 = vunpack.c.h.b16 %v1620
    %v2137 = vunpack.c.l.b16 %v1621
    %v2138 = vunpack.c.h.b16 %v1621
    %v2139 = vunpack.c.l.b16 %v1622
    %v2140 = vunpack.c.h.b16 %v1622
    %v2141 = vunpack.c.l.b16 %v1623
    %v2142 = vunpack.c.h.b16 %v1623
    %v2143 = vunpack.c.l.b16 %v1624
    %v2144 = vunpack.c.h.b16 %v1624
    %v2145 = vunpack.c.l.b16 %v1625
    %v2146 = vunpack.c.h.b16 %v1625
    %v2147 = vunpack.c.l.b16 %v1626
    %v2148 = vunpack.c.h.b16 %v1626
    %v2149 = vunpack.c.l.b16 %v1627
    %v2150 = vunpack.c.h.b16 %v1627
    %v2151 = vunpack.c.l.b16 %v1628
    %v2152 = vunpack.c.h.b16 %v1628
    %v2153 = vunpack.c.l.b16 %v1629
    %v2154 = vunpack.c.h.b16 %v1629
    %v2155 = vunpack.c.l.b16 %v1630
    %v2156 = vunpack.c.h.b16 %v1630
    %v2157 = vunpack.c.l.b16 %v1631
    %v2158 = vunpack.c.h.b16 %v1631
    %v2159 = vunpack.c.l.b16 %v1632
    %v2160 = vunpack.c.h.b16 %v1632
    %v2161 = vunpack.c.l.b16 %v1633
    %v2162 = vunpack.c.h.b16 %v1633
    %v2163 = vunpack.c.l.b16 %v1634
    %v2164 = vunpack.c.h.b16 %v1634
    %v2165 = vunpack.c.l.b16 %v1635
    %v2166 = vunpack.c.h.b16 %v1635
    %v2167 = vunpack.c.l.b16 %v1636
    %v2168 = vunpack.c.h.b16 %v1636
    %v2169 = vunpack.c.l.b16 %v1637
    %v2170 = vunpack.c.h.b16 %v1637
    %v2171 = vunpack.c.l.b16 %v1638
    %v2172 = vunpack.c.h.b16 %v1638
    %v2173 = vunpack.c.l.b16 %v1639
    %v2174 = vunpack.c.h.b16 %v1639
    %v2175 = vunpack.c.l.b16 %v1640
    %v2176 = vunpack.c.h.b16 %v1640
    %v2177 = vunpack.c.l.b16 %v1641
    %v2178 = vunpack.c.h.b16 %v1641
    %v2179 = vunpack.c.l.b16 %v1642
    %v2180 = vunpack.c.h.b16 %v1642
    %v2181 = vunpack.c.l.b16 %v1643
    %v2182 = vunpack.c.h.b16 %v1643
    %v2183 = vunpack.c.l.b16 %v1644
    %v2184 = vunpack.c.h.b16 %v1644
    %v2185 = vunpack.c.l.b16 %v1645
    %v2186 = vunpack.c.h.b16 %v1645
    %v2187 = vunpack.c.l.b16 %v1646
    %v2188 = vunpack.c.h.b16 %v1646
    %v2189 = vunpack.c.l.b16 %v1647
    %v2190 = vunpack.c.h.b16 %v1647
    %v2191 = vunpack.c.l.b16 %v1648
    %v2192 = vunpack.c.h.b16 %v1648
    %v2193 = vunpack.c.l.b16 %v1649
    %v2194 = vunpack.c.h.b16 %v1649
    %v2195 = vunpack.c.l.b16 %v1650
    %v2196 = vunpack.c.h.b16 %v1650
    %v2197 = vunpack.c.l.b16 %v1651
    %v2198 = vunpack.c.h.b16 %v1651
    %v2199 = vunpack.c.l.b16 %v1652
    %v2200 = vunpack.c.h.b16 %v1652
    %v2201 = vunpack.c.l.b16 %v1653
    %v2202 = vunpack.c.h.b16 %v1653
    %v2203 = vunpack.c.l.b16 %v1654
    %v2204 = vunpack.c.h.b16 %v1654
    %v2205 = vunpack.c.l.b16 %v1655
    %v2206 = vunpack.c.h.b16 %v1655
    %v2207 = vunpack.c.l.b16 %v1656
    %v2208 = vunpack.c.h.b16 %v1656
    %v2209 = vunpack.c.l.b16 %v1657
    %v2210 = vunpack.c.h.b16 %v1657
    %v2211 = vunpack.c.l.b16 %v1658
    %v2212 = vunpack.c.h.b16 %v1658
    %v2213 = vunpack.c.l.b16 %v1659
    %v2214 = vunpack.c.h.b16 %v1659
    %v2215 = vunpack.c.l.b16 %v1660
    %v2216 = vunpack.c.h.b16 %v1660
    %v2217 = vunpack.c.l.b16 %v1661
    %v2218 = vunpack.c.h.b16 %v1661
    %v2219 = vunpack.c.l.b16 %v1662
    %v2220 = vunpack.c.h.b16 %v1662
    %v2221 = vunpack.c.l.b16 %v1663
    %v2222 = vunpack.c.h.b16 %v1663
    %v2223 = vunpack.c.l.b16 %v1664
    %v2224 = vunpack.c.h.b16 %v1664
    %v2225 = vunpack.c.l.b16 %v1665
    %v2226 = vunpack.c.h.b16 %v1665
    %v2227 = vunpack.c.l.b16 %v1666
    %v2228 = vunpack.c.h.b16 %v1666
    %v2229 = vunpack.c.l.b16 %v1667
    %v2230 = vunpack.c.h.b16 %v1667
    %v2231 = vunpack.c.l.b16 %v1668
    %v2232 = vunpack.c.h.b16 %v1668
    %v2233 = vunpack.c.l.b16 %v1669
    %v2234 = vunpack.c.h.b16 %v1669
    %v2235 = vunpack.c.l.b16 %v1670
    %v2236 = vunpack.c.h.b16 %v1670
    %v2237 = vunpack.c.l.b16 %v1671
    %v2238 = vunpack.c.h.b16 %v1671
    %v2239 = vunpack.c.l.b16 %v1672
    %v2240 = vunpack.c.h.b16 %v1672
    %v2241 = vunpack.c.l.b16 %v1673
    %v2242 = vunpack.c.h.b16 %v1673
    %v2243 = vunpack.c.l.b16 %v1674
    %v2244 = vunpack.c.h.b16 %v1674
    %v2245 = vunpack.c.l.b16 %v1675
    %v2246 = vunpack.c.h.b16 %v1675
    %v2247 = vunpack.c.l.b16 %v1676
    %v2248 = vunpack.c.h.b16 %v1676
    %v2249 = vunpack.c.l.b16 %v1677
    %v2250 = vunpack.c.h.b16 %v1677
    %v2251 = vunpack.c.l.b16 %v1678
    %v2252 = vunpack.c.h.b16 %v1678
    %v2253 = vunpack.c.l.b16 %v1679
    %v2254 = vunpack.c.h.b16 %v1679
    %v2255 = vunpack.c.l.b16 %v1680
    %v2256 = vunpack.c.h.b16 %v1680
    %v2257 = vunpack.c.l.b16 %v1681
    %v2258 = vunpack.c.h.b16 %v1681
    %v2259 = vunpack.c.l.b16 %v1682
    %v2260 = vunpack.c.h.b16 %v1682
    %v2261 = vunpack.c.l.b16 %v1683
    %v2262 = vunpack.c.h.b16 %v1683
    %v2263 = vunpack.c.l.b16 %v1684
    %v2264 = vunpack.c.h.b16 %v1684
    %v2265 = vunpack.c.l.b16 %v1685
    %v2266 = vunpack.c.h.b16 %v1685
    %v2267 = vunpack.c.l.b16 %v1686
    %v2268 = vunpack.c.h.b16 %v1686
    %v2269 = vunpack.c.l.b16 %v1687
    %v2270 = vunpack.c.h.b16 %v1687
    %v2271 = vunpack.c.l.b16 %v1688
    %v2272 = vunpack.c.h.b16 %v1688
    %v2273 = vunpack.c.l.b16 %v1689
    %v2274 = vunpack.c.h.b16 %v1689
    %v2275 = vunpack.c.l.b16 %v1690
    %v2276 = vunpack.c.h.b16 %v1690
    %v2277 = vunpack.c.l.b16 %v1691
    %v2278 = vunpack.c.h.b16 %v1691
    %v2279 = vunpack.c.l.b16 %v1692
    %v2280 = vunpack.c.h.b16 %v1692
    %v2281 = vunpack.c.l.b16 %v1693
    %v2282 = vunpack.c.h.b16 %v1693
    %v2283 = vunpack.c.l.b16 %v1694
    %v2284 = vunpack.c.h.b16 %v1694
    %v2285 = vunpack.c.l.b16 %v1695
    %v2286 = vunpack.c.h.b16 %v1695
    %v2287 = vunpack.c.l.b16 %v1696
    %v2288 = vunpack.c.h.b16 %v1696
    %v2289 = vunpack.c.l.b16 %v1697
    %v2290 = vunpack.c.h.b16 %v1697
    %v2291 = vunpack.c.l.b16 %v1698
    %v2292 = vunpack.c.h.b16 %v1698
    %v2293 = vunpack.c.l.b16 %v1699
    %v2294 = vunpack.c.h.b16 %v1699
    %v2295 = vunpack.c.l.b16 %v1700
    %v2296 = vunpack.c.h.b16 %v1700
    %v2297 = vunpack.c.l.b16 %v1701
    %v2298 = vunpack.c.h.b16 %v1701
    %v2299 = vunpack.c.l.b16 %v1702
    %v2300 = vunpack.c.h.b16 %v1702
    %v2301 = vunpack.c.l.b16 %v1703
    %v2302 = vunpack.c.h.b16 %v1703
    %v2303 = vunpack.c.l.b16 %v1704
    %v2304 = vunpack.c.h.b16 %v1704
    %v2305 = vunpack.c.l.b16 %v1705
    %v2306 = vunpack.c.h.b16 %v1705
    %v2307 = vunpack.c.l.b16 %v1706
    %v2308 = vunpack.c.h.b16 %v1706
    %v2309 = vunpack.c.l.b16 %v1707
    %v2310 = vunpack.c.h.b16 %v1707
    %v2311 = vunpack.c.l.b16 %v1708
    %v2312 = vunpack.c.h.b16 %v1708
    %v2313 = vunpack.c.l.b16 %v1709
    %v2314 = vunpack.c.h.b16 %v1709
    %v2315 = vunpack.c.l.b16 %v1710
    %v2316 = vunpack.c.h.b16 %v1710
    %v2317 = vunpack.c.l.b16 %v1711
    %v2318 = vunpack.c.h.b16 %v1711
    %v2319 = vunpack.c.l.b16 %v1712
    %v2320 = vunpack.c.h.b16 %v1712
    %v2321 = vunpack.c.l.b16 %v1713
    %v2322 = vunpack.c.h.b16 %v1713
    %v2323 = vunpack.c.l.b16 %v1714
    %v2324 = vunpack.c.h.b16 %v1714
    %v2325 = vunpack.c.l.b16 %v1715
    %v2326 = vunpack.c.h.b16 %v1715
    %v2327 = vunpack.c.l.b16 %v1716
    %v2328 = vunpack.c.h.b16 %v1716
    %v2329 = vunpack.c.l.b16 %v1717
    %v2330 = vunpack.c.h.b16 %v1717
    %v2331 = vunpack.c.l.b16 %v1718
    %v2332 = vunpack.c.h.b16 %v1718
    %v2333 = vunpack.c.l.b16 %v1719
    %v2334 = vunpack.c.h.b16 %v1719
    %v2335 = vunpack.c.l.b16 %v1720
    %v2336 = vunpack.c.h.b16 %v1720
    %v2337 = vunpack.c.l.b16 %v1721
    %v2338 = vunpack.c.h.b16 %v1721
    %v2339 = vunpack.c.l.b16 %v1722
    %v2340 = vunpack.c.h.b16 %v1722
    %v2341 = vpack.c.b16 %v1965, %v1957
    %v2342 = vpack.c.b16 %v1966, %v1958
    %v2343 = vpack.c.b16 %v1967, %v1959
    %v2344 = vpack.c.b16 %v1968, %v1960
    %v2345 = vpack.c.b16 %v1969, %v1961
    %v2346 = vpack.c.b16 %v1970, %v1962
    %v2347 = vpack.c.b16 %v1971, %v1963
    %v2348 = vpack.c.b16 %v1972, %v1964
    %v2349 = vpack.c.b16 %v1981, %v1973
    %v2350 = vpack.c.b16 %v1982, %v1974
    %v2351 = vpack.c.b16 %v1983, %v1975
    %v2352 = vpack.c.b16 %v1984, %v1976
    %v2353 = vpack.c.b16 %v1985, %v1977
    %v2354 = vpack.c.b16 %v1986, %v1978
    %v2355 = vpack.c.b16 %v1987, %v1979
    %v2356 = vpack.c.b16 %v1988, %v1980
    %v2357 = vpack.c.b16 %v1997, %v1989
    %v2358 = vpack.c.b16 %v1998, %v1990
    %v2359 = vpack.c.b16 %v1999, %v1991
    %v2360 = vpack.c.b16 %v2000, %v1992
    %v2361 = vpack.c.b16 %v2001, %v1993
    %v2362 = vpack.c.b16 %v2002, %v1994
    %v2363 = vpack.c.b16 %v2003, %v1995
    %v2364 = vpack.c.b16 %v2004, %v1996
    %v2365 = vpack.c.b16 %v2013, %v2005
    %v2366 = vpack.c.b16 %v2014, %v2006
    %v2367 = vpack.c.b16 %v2015, %v2007
    %v2368 = vpack.c.b16 %v2016, %v2008
    %v2369 = vpack.c.b16 %v2017, %v2009
    %v2370 = vpack.c.b16 %v2018, %v2010
    %v2371 = vpack.c.b16 %v2019, %v2011
    %v2372 = vpack.c.b16 %v2020, %v2012
    %v2373 = vpack.c.b16 %v2029, %v2021
    %v2374 = vpack.c.b16 %v2030, %v2022
    %v2375 = vpack.c.b16 %v2031, %v2023
    %v2376 = vpack.c.b16 %v2032, %v2024
    %v2377 = vpack.c.b16 %v2033, %v2025
    %v2378 = vpack.c.b16 %v2034, %v2026
    %v2379 = vpack.c.b16 %v2035, %v2027
    %v2380 = vpack.c.b16 %v2036, %v2028
    %v2381 = vpack.c.b16 %v2045, %v2037
    %v2382 = vpack.c.b16 %v2046, %v2038
    %v2383 = vpack.c.b16 %v2047, %v2039
    %v2384 = vpack.c.b16 %v2048, %v2040
    %v2385 = vpack.c.b16 %v2049, %v2041
    %v2386 = vpack.c.b16 %v2050, %v2042
    %v2387 = vpack.c.b16 %v2051, %v2043
    %v2388 = vpack.c.b16 %v2052, %v2044
    %v2389 = vpack.c.b16 %v2061, %v2053
    %v2390 = vpack.c.b16 %v2062, %v2054
    %v2391 = vpack.c.b16 %v2063, %v2055
    %v2392 = vpack.c.b16 %v2064, %v2056
    %v2393 = vpack.c.b16 %v2065, %v2057
    %v2394 = vpack.c.b16 %v2066, %v2058
    %v2395 = vpack.c.b16 %v2067, %v2059
    %v2396 = vpack.c.b16 %v2068, %v2060
    %v2397 = vpack.c.b16 %v2077, %v2069
    %v2398 = vpack.c.b16 %v2078, %v2070
    %v2399 = vpack.c.b16 %v2079, %v2071
    %v2400 = vpack.c.b16 %v2080, %v2072
    %v2401 = vpack.c.b16 %v2081, %v2073
    %v2402 = vpack.c.b16 %v2082, %v2074
    %v2403 = vpack.c.b16 %v2083, %v2075
    %v2404 = vpack.c.b16 %v2084, %v2076
    %v2405 = vpack.c.b16 %v2093, %v2085
    %v2406 = vpack.c.b16 %v2094, %v2086
    %v2407 = vpack.c.b16 %v2095, %v2087
    %v2408 = vpack.c.b16 %v2096, %v2088
    %v2409 = vpack.c.b16 %v2097, %v2089
    %v2410 = vpack.c.b16 %v2098, %v2090
    %v2411 = vpack.c.b16 %v2099, %v2091
    %v2412 = vpack.c.b16 %v2100, %v2092
    %v2413 = vpack.c.b16 %v2109, %v2101
    %v2414 = vpack.c.b16 %v2110, %v2102
    %v2415 = vpack.c.b16 %v2111, %v2103
    %v2416 = vpack.c.b16 %v2112, %v2104
    %v2417 = vpack.c.b16 %v2113, %v2105
    %v2418 = vpack.c.b16 %v2114, %v2106
    %v2419 = vpack.c.b16 %v2115, %v2107
    %v2420 = vpack.c.b16 %v2116, %v2108
    %v2421 = vpack.c.b16 %v2125, %v2117
    %v2422 = vpack.c.b16 %v2126, %v2118
    %v2423 = vpack.c.b16 %v2127, %v2119
    %v2424 = vpack.c.b16 %v2128, %v2120
    %v2425 = vpack.c.b16 %v2129, %v2121
    %v2426 = vpack.c.b16 %v2130, %v2122
    %v2427 = vpack.c.b16 %v2131, %v2123
    %v2428 = vpack.c.b16 %v2132, %v2124
    %v2429 = vpack.c.b16 %v2141, %v2133
    %v2430 = vpack.c.b16 %v2142, %v2134
    %v2431 = vpack.c.b16 %v2143, %v2135
    %v2432 = vpack.c.b16 %v2144, %v2136
    %v2433 = vpack.c.b16 %v2145, %v2137
    %v2434 = vpack.c.b16 %v2146, %v2138
    %v2435 = vpack.c.b16 %v2147, %v2139
    %v2436 = vpack.c.b16 %v2148, %v2140
    %v2437 = vpack.c.b16 %v2157, %v2149
    %v2438 = vpack.c.b16 %v2158, %v2150
    %v2439 = vpack.c.b16 %v2159, %v2151
    %v2440 = vpack.c.b16 %v2160, %v2152
    %v2441 = vpack.c.b16 %v2161, %v2153
    %v2442 = vpack.c.b16 %v2162, %v2154
    %v2443 = vpack.c.b16 %v2163, %v2155
    %v2444 = vpack.c.b16 %v2164, %v2156
    %v2445 = vpack.c.b16 %v2173, %v2165
    %v2446 = vpack.c.b16 %v2174, %v2166
    %v2447 = vpack.c.b16 %v2175, %v2167
    %v2448 = vpack.c.b16 %v2176, %v2168
    %v2449 = vpack.c.b16 %v2177, %v2169
    %v2450 = vpack.c.b16 %v2178, %v2170
    %v2451 = vpack.c.b16 %v2179, %v2171
    %v2452 = vpack.c.b16 %v2180, %v2172
    %v2453 = vpack.c.b16 %v2189, %v2181
    %v2454 = vpack.c.b16 %v2190, %v2182
    %v2455 = vpack.c.b16 %v2191, %v2183
    %v2456 = vpack.c.b16 %v2192, %v2184
    %v2457 = vpack.c.b16 %v2193, %v2185
    %v2458 = vpack.c.b16 %v2194, %v2186
    %v2459 = vpack.c.b16 %v2195, %v2187
    %v2460 = vpack.c.b16 %v2196, %v2188
    %v2461 = vpack.c.b16 %v2205, %v2197
    %v2462 = vpack.c.b16 %v2206, %v2198
    %v2463 = vpack.c.b16 %v2207, %v2199
    %v2464 = vpack.c.b16 %v2208, %v2200
    %v2465 = vpack.c.b16 %v2209, %v2201
    %v2466 = vpack.c.b16 %v2210, %v2202
    %v2467 = vpack.c.b16 %v2211, %v2203
    %v2468 = vpack.c.b16 %v2212, %v2204
    %v2469 = vpack.c.b16 %v2221, %v2213
    %v2470 = vpack.c.b16 %v2222, %v2214
    %v2471 = vpack.c.b16 %v2223, %v2215
    %v2472 = vpack.c.b16 %v2224, %v2216
    %v2473 = vpack.c.b16 %v2225, %v2217
    %v2474 = vpack.c.b16 %v2226, %v2218
    %v2475 = vpack.c.b16 %v2227, %v2219
    %v2476 = vpack.c.b16 %v2228, %v2220
    %v2477 = vpack.c.b16 %v2237, %v2229
    %v2478 = vpack.c.b16 %v2238, %v2230
    %v2479 = vpack.c.b16 %v2239, %v2231
    %v2480 = vpack.c.b16 %v2240, %v2232
    %v2481 = vpack.c.b16 %v2241, %v2233
    %v2482 = vpack.c.b16 %v2242, %v2234
    %v2483 = vpack.c.b16 %v2243, %v2235
    %v2484 = vpack.c.b16 %v2244, %v2236
    %v2485 = vpack.c.b16 %v2253, %v2245
    %v2486 = vpack.c.b16 %v2254, %v2246
    %v2487 = vpack.c.b16 %v2255, %v2247
    %v2488 = vpack.c.b16 %v2256, %v2248
    %v2489 = vpack.c.b16 %v2257, %v2249
    %v2490 = vpack.c.b16 %v2258, %v2250
    %v2491 = vpack.c.b16 %v2259, %v2251
    %v2492 = vpack.c.b16 %v2260, %v2252
    %v2493 = vpack.c.b16 %v2269, %v2261
    %v2494 = vpack.c.b16 %v2270, %v2262
    %v2495 = vpack.c.b16 %v2271, %v2263
    %v2496 = vpack.c.b16 %v2272, %v2264
    %v2497 = vpack.c.b16 %v2273, %v2265
    %v2498 = vpack.c.b16 %v2274, %v2266
    %v2499 = vpack.c.b16 %v2275, %v2267
    %v2500 = vpack.c.b16 %v2276, %v2268
    %v2501 = vpack.c.b16 %v2285, %v2277
    %v2502 = vpack.c.b16 %v2286, %v2278
    %v2503 = vpack.c.b16 %v2287, %v2279
    %v2504 = vpack.c.b16 %v2288, %v2280
    %v2505 = vpack.c.b16 %v2289, %v2281
    %v2506 = vpack.c.b16 %v2290, %v2282
    %v2507 = vpack.c.b16 %v2291, %v2283
    %v2508 = vpack.c.b16 %v2292, %v2284
    %v2509 = vpack.c.b16 %v2301, %v2293
    %v2510 = vpack.c.b16 %v2302, %v2294
    %v2511 = vpack.c.b16 %v2303, %v2295
    %v2512 = vpack.c.b16 %v2304, %v2296
    %v2513 = vpack.c.b16 %v2305, %v2297
    %v2514 = vpack.c.b16 %v2306, %v2298
    %v2515 = vpack.c.b16 %v2307, %v2299
    %v2516 = vpack.c.b16 %v2308, %v2300
    %v2517 = vpack.c.b16 %v2317, %v2309
    %v2518 = vpack.c.b16 %v2318, %v2310
    %v2519 = vpack.c.b16 %v2319, %v2311
    %v2520 = vpack.c.b16 %v2320, %v2312
    %v2521 = vpack.c.b16 %v2321, %v2313
    %v2522 = vpack.c.b16 %v2322, %v2314
    %v2523 = vpack.c.b16 %v2323, %v2315
    %v2524 = vpack.c.b16 %v2324, %v2316
    %v2525 = vpack.c.b16 %v2333, %v2325
    %v2526 = vpack.c.b16 %v2334, %v2326
    %v2527 = vpack.c.b16 %v2335, %v2327
    %v2528 = vpack.c.b16 %v2336, %v2328
    %v2529 = vpack.c.b16 %v2337, %v2329
    %v2530 = vpack.c.b16 %v2338, %v2330
    %v2531 = vpack.c.b16 %v2339, %v2331
    %v2532 = vpack.c.b16 %v2340, %v2332
    %2725 = vmatprep.subr.bf16.mxu0 %v2342
    %2726 = vmatpush1.bf16.msra.mxu0 %v2341
    %2727 = vmatprep.subr.bf16.mxu0 %v2350
    %2728 = vmatpush1.bf16.msra.mxu0 %v2349
    %2729 = vmatprep.subr.bf16.mxu0 %v2358
    %2730 = vmatpush1.bf16.msra.mxu0 %v2357
    %2731 = vmatprep.subr.bf16.mxu0 %v2366
    %2732 = vmatpush1.bf16.msra.mxu0 %v2365
    %2733 = vmatprep.subr.bf16.mxu0 %v2374
    %2734 = vmatpush1.bf16.msra.mxu0 %v2373
    %2735 = vmatprep.subr.bf16.mxu0 %v2382
    %2736 = vmatpush1.bf16.msra.mxu0 %v2381
    %2737 = vmatprep.subr.bf16.mxu0 %v2390
    %2738 = vmatpush1.bf16.msra.mxu0 %v2389
    %2739 = vmatprep.subr.bf16.mxu0 %v2398
    %2740 = vmatpush1.bf16.msra.mxu0 %v2397
    %2741 = vmatprep.subr.bf16.mxu0 %v2406
    %2742 = vmatpush1.bf16.msra.mxu0 %v2405
    %2743 = vmatprep.subr.bf16.mxu0 %v2414
    %2744 = vmatpush1.bf16.msra.mxu0 %v2413
    %2745 = vmatprep.subr.bf16.mxu0 %v2422
    %2746 = vmatpush1.bf16.msra.mxu0 %v2421
    %2747 = vmatprep.subr.bf16.mxu0 %v2430
    %2748 = vmatpush1.bf16.msra.mxu0 %v2429
    %2749 = vmatprep.subr.bf16.mxu0 %v2438
    %2750 = vmatpush1.bf16.msra.mxu0 %v2437
    %2751 = vmatprep.subr.bf16.mxu0 %v2446
    %2752 = vmatpush1.bf16.msra.mxu0 %v2445
    %2753 = vmatprep.subr.bf16.mxu0 %v2454
    %2754 = vmatpush1.bf16.msra.mxu0 %v2453
    %2755 = vmatprep.subr.bf16.mxu0 %v2462
    %2756 = vmatpush1.bf16.msra.mxu0 %v2461
    %2757 = vmatprep.mubr.bf16.mxu0 %v1529
    %2758 = vmatmul.mubr.bf16.gmra.mrb[0].mxu0 %v1528
    %v2759 = vpop.f32.mrb[0].mxu0
    %v2760 = vadd.f32 %v1728, %v2759
    %v2761 = vpop.f32.mrb[0].mxu0
    %v2762 = vadd.f32 %v1732, %v2761
    %v2763 = vpop.f32.mrb[0].mxu0
    %v2764 = vpop.f32.mrb[0].mxu0
    %2765 = vdwg.mxu0
    %2766 = vmatprep.subr.bf16.mxu0 %v2470
    %2767 = vmatpush1.bf16.msra.mxu0 %v2469
    %2768 = vmatprep.subr.bf16.mxu0 %v2478
    %2769 = vmatpush1.bf16.msra.mxu0 %v2477
    %2770 = vmatprep.subr.bf16.mxu0 %v2486
    %2771 = vmatpush1.bf16.msra.mxu0 %v2485
    %2772 = vmatprep.subr.bf16.mxu0 %v2494
    %2773 = vmatpush1.bf16.msra.mxu0 %v2493
    %2774 = vmatprep.subr.bf16.mxu0 %v2502
    %2775 = vmatpush1.bf16.msra.mxu0 %v2501
    %2776 = vmatprep.subr.bf16.mxu0 %v2510
    %2777 = vmatpush1.bf16.msra.mxu0 %v2509
    %2778 = vmatprep.subr.bf16.mxu0 %v2518
    %2779 = vmatpush1.bf16.msra.mxu0 %v2517
    %2780 = vmatprep.subr.bf16.mxu0 %v2526
    %2781 = vmatpush1.bf16.msra.mxu0 %v2525
    %2782 = vmatprep.subr.bf16.mxu0 0
    %2783 = vmatpush1.bf16.msra.mxu0 0
    %2784 = vmatprep.subr.bf16.mxu0 0
    %2785 = vmatpush1.bf16.msra.mxu0 0
    %2786 = vmatprep.subr.bf16.mxu0 0
    %2787 = vmatpush1.bf16.msra.mxu0 0
    %2788 = vmatprep.subr.bf16.mxu0 0
    %2789 = vmatpush1.bf16.msra.mxu0 0
    %2790 = vmatprep.subr.bf16.mxu0 0
    %2791 = vmatpush1.bf16.msra.mxu0 0
    %2792 = vmatprep.subr.bf16.mxu0 0
    %2793 = vmatpush1.bf16.msra.mxu0 0
    %2794 = vmatprep.subr.bf16.mxu0 0
    %2795 = vmatpush1.bf16.msra.mxu0 0
    %2796 = vmatprep.subr.bf16.mxu0 0
    %2797 = vmatpush1.bf16.msra.mxu0 0
    %2798 = vmatprep.mubr.bf16.mxu0 0
    %2799 = vmatmul.mubr.bf16.gmra.mrb[0].mxu0 %v1530
    %v2800 = vpop.f32.mrb[0].mxu0
    %v2801 = vadd.f32 %v2760, %v2800
    %v2802 = vpop.f32.mrb[0].mxu0
    %v2803 = vadd.f32 %v2762, %v2802
    %v2804 = vpop.f32.mrb[0].mxu0
    %v2805 = vpop.f32.mrb[0].mxu0
    %2806 = vdwg.mxu0
    %2807 = vmatprep.subr.bf16.mxu0 %v2344
    %2808 = vmatpush1.bf16.msra.mxu0 %v2343
    %2809 = vmatprep.subr.bf16.mxu0 %v2352
    %2810 = vmatpush1.bf16.msra.mxu0 %v2351
    %2811 = vmatprep.subr.bf16.mxu0 %v2360
    %2812 = vmatpush1.bf16.msra.mxu0 %v2359
    %2813 = vmatprep.subr.bf16.mxu0 %v2368
    %2814 = vmatpush1.bf16.msra.mxu0 %v2367
    %2815 = vmatprep.subr.bf16.mxu0 %v2376
    %2816 = vmatpush1.bf16.msra.mxu0 %v2375
    %2817 = vmatprep.subr.bf16.mxu0 %v2384
    %2818 = vmatpush1.bf16.msra.mxu0 %v2383
    %2819 = vmatprep.subr.bf16.mxu0 %v2392
    %2820 = vmatpush1.bf16.msra.mxu0 %v2391
    %2821 = vmatprep.subr.bf16.mxu0 %v2400
    %2822 = vmatpush1.bf16.msra.mxu0 %v2399
    %2823 = vmatprep.subr.bf16.mxu0 %v2408
    %2824 = vmatpush1.bf16.msra.mxu0 %v2407
    %2825 = vmatprep.subr.bf16.mxu0 %v2416
    %2826 = vmatpush1.bf16.msra.mxu0 %v2415
    %2827 = vmatprep.subr.bf16.mxu0 %v2424
    %2828 = vmatpush1.bf16.msra.mxu0 %v2423
    %2829 = vmatprep.subr.bf16.mxu0 %v2432
    %2830 = vmatpush1.bf16.msra.mxu0 %v2431
    %2831 = vmatprep.subr.bf16.mxu0 %v2440
    %2832 = vmatpush1.bf16.msra.mxu0 %v2439
    %2833 = vmatprep.subr.bf16.mxu0 %v2448
    %2834 = vmatpush1.bf16.msra.mxu0 %v2447
    %2835 = vmatprep.subr.bf16.mxu0 %v2456
    %2836 = vmatpush1.bf16.msra.mxu0 %v2455
    %2837 = vmatprep.subr.bf16.mxu0 %v2464
    %2838 = vmatpush1.bf16.msra.mxu0 %v2463
    %2839 = vmatprep.mubr.bf16.mxu0 %v1529
    %2840 = vmatmul.mubr.bf16.gmra.mrb[0].mxu0 %v1528
    %v2841 = vpop.f32.mrb[0].mxu0
    %v2842 = vadd.f32 %v1736, %v2841
    %v2843 = vpop.f32.mrb[0].mxu0
    %v2844 = vadd.f32 %v1740, %v2843
    %v2845 = vpop.f32.mrb[0].mxu0
    %v2846 = vpop.f32.mrb[0].mxu0
    %2847 = vdwg.mxu0
    %2848 = vmatprep.subr.bf16.mxu0 %v2472
    %2849 = vmatpush1.bf16.msra.mxu0 %v2471
    %2850 = vmatprep.subr.bf16.mxu0 %v2480
    %2851 = vmatpush1.bf16.msra.mxu0 %v2479
    %2852 = vmatprep.subr.bf16.mxu0 %v2488
    %2853 = vmatpush1.bf16.msra.mxu0 %v2487
    %2854 = vmatprep.subr.bf16.mxu0 %v2496
    %2855 = vmatpush1.bf16.msra.mxu0 %v2495
    %2856 = vmatprep.subr.bf16.mxu0 %v2504
    %2857 = vmatpush1.bf16.msra.mxu0 %v2503
    %2858 = vmatprep.subr.bf16.mxu0 %v2512
    %2859 = vmatpush1.bf16.msra.mxu0 %v2511
    %2860 = vmatprep.subr.bf16.mxu0 %v2520
    %2861 = vmatpush1.bf16.msra.mxu0 %v2519
    %2862 = vmatprep.subr.bf16.mxu0 %v2528
    %2863 = vmatpush1.bf16.msra.mxu0 %v2527
    %2864 = vmatprep.subr.bf16.mxu0 0
    %2865 = vmatpush1.bf16.msra.mxu0 0
    %2866 = vmatprep.subr.bf16.mxu0 0
    %2867 = vmatpush1.bf16.msra.mxu0 0
    %2868 = vmatprep.subr.bf16.mxu0 0
    %2869 = vmatpush1.bf16.msra.mxu0 0
    %2870 = vmatprep.subr.bf16.mxu0 0
    %2871 = vmatpush1.bf16.msra.mxu0 0
    %2872 = vmatprep.subr.bf16.mxu0 0
    %2873 = vmatpush1.bf16.msra.mxu0 0
    %2874 = vmatprep.subr.bf16.mxu0 0
    %2875 = vmatpush1.bf16.msra.mxu0 0
    %2876 = vmatprep.subr.bf16.mxu0 0
    %2877 = vmatpush1.bf16.msra.mxu0 0
    %2878 = vmatprep.subr.bf16.mxu0 0
    %2879 = vmatpush1.bf16.msra.mxu0 0
    %2880 = vmatprep.mubr.bf16.mxu0 0
    %2881 = vmatmul.mubr.bf16.gmra.mrb[0].mxu0 %v1530
    %v2882 = vpop.f32.mrb[0].mxu0
    %v2883 = vadd.f32 %v2842, %v2882
    %v2884 = vpop.f32.mrb[0].mxu0
    %v2885 = vadd.f32 %v2844, %v2884
    %v2886 = vpop.f32.mrb[0].mxu0
    %v2887 = vpop.f32.mrb[0].mxu0
    %2888 = vdwg.mxu0
    %2889 = vmatprep.subr.bf16.mxu0 %v2346
    %2890 = vmatpush1.bf16.msra.mxu0 %v2345
    %2891 = vmatprep.subr.bf16.mxu0 %v2354
    %2892 = vmatpush1.bf16.msra.mxu0 %v2353
    %2893 = vmatprep.subr.bf16.mxu0 %v2362
    %2894 = vmatpush1.bf16.msra.mxu0 %v2361
    %2895 = vmatprep.subr.bf16.mxu0 %v2370
    %2896 = vmatpush1.bf16.msra.mxu0 %v2369
    %2897 = vmatprep.subr.bf16.mxu0 %v2378
    %2898 = vmatpush1.bf16.msra.mxu0 %v2377
    %2899 = vmatprep.subr.bf16.mxu0 %v2386
    %2900 = vmatpush1.bf16.msra.mxu0 %v2385
    %2901 = vmatprep.subr.bf16.mxu0 %v2394
    %2902 = vmatpush1.bf16.msra.mxu0 %v2393
    %2903 = vmatprep.subr.bf16.mxu0 %v2402
    %2904 = vmatpush1.bf16.msra.mxu0 %v2401
    %2905 = vmatprep.subr.bf16.mxu0 %v2410
    %2906 = vmatpush1.bf16.msra.mxu0 %v2409
    %2907 = vmatprep.subr.bf16.mxu0 %v2418
    %2908 = vmatpush1.bf16.msra.mxu0 %v2417
    %2909 = vmatprep.subr.bf16.mxu0 %v2426
    %2910 = vmatpush1.bf16.msra.mxu0 %v2425
    %2911 = vmatprep.subr.bf16.mxu0 %v2434
    %2912 = vmatpush1.bf16.msra.mxu0 %v2433
    %2913 = vmatprep.subr.bf16.mxu0 %v2442
    %2914 = vmatpush1.bf16.msra.mxu0 %v2441
    %2915 = vmatprep.subr.bf16.mxu0 %v2450
    %2916 = vmatpush1.bf16.msra.mxu0 %v2449
    %2917 = vmatprep.subr.bf16.mxu0 %v2458
    %2918 = vmatpush1.bf16.msra.mxu0 %v2457
    %2919 = vmatprep.subr.bf16.mxu0 %v2466
    %2920 = vmatpush1.bf16.msra.mxu0 %v2465
    %2921 = vmatprep.mubr.bf16.mxu0 %v1529
    %2922 = vmatmul.mubr.bf16.gmra.mrb[0].mxu0 %v1528
    %v2923 = vpop.f32.mrb[0].mxu0
    %v2924 = vadd.f32 %v1744, %v2923
    %v2925 = vpop.f32.mrb[0].mxu0
    %v2926 = vadd.f32 %v1748, %v2925
    %v2927 = vpop.f32.mrb[0].mxu0
    %v2928 = vpop.f32.mrb[0].mxu0
    %2929 = vdwg.mxu0
    %2930 = vmatprep.subr.bf16.mxu0 %v2474
    %2931 = vmatpush1.bf16.msra.mxu0 %v2473
    %2932 = vmatprep.subr.bf16.mxu0 %v2482
    %2933 = vmatpush1.bf16.msra.mxu0 %v2481
    %2934 = vmatprep.subr.bf16.mxu0 %v2490
    %2935 = vmatpush1.bf16.msra.mxu0 %v2489
    %2936 = vmatprep.subr.bf16.mxu0 %v2498
    %2937 = vmatpush1.bf16.msra.mxu0 %v2497
    %2938 = vmatprep.subr.bf16.mxu0 %v2506
    %2939 = vmatpush1.bf16.msra.mxu0 %v2505
    %2940 = vmatprep.subr.bf16.mxu0 %v2514
    %2941 = vmatpush1.bf16.msra.mxu0 %v2513
    %2942 = vmatprep.subr.bf16.mxu0 %v2522
    %2943 = vmatpush1.bf16.msra.mxu0 %v2521
    %2944 = vmatprep.subr.bf16.mxu0 %v2530
    %2945 = vmatpush1.bf16.msra.mxu0 %v2529
    %2946 = vmatprep.subr.bf16.mxu0 0
    %2947 = vmatpush1.bf16.msra.mxu0 0
    %2948 = vmatprep.subr.bf16.mxu0 0
    %2949 = vmatpush1.bf16.msra.mxu0 0
    %2950 = vmatprep.subr.bf16.mxu0 0
    %2951 = vmatpush1.bf16.msra.mxu0 0
    %2952 = vmatprep.subr.bf16.mxu0 0
    %2953 = vmatpush1.bf16.msra.mxu0 0
    %2954 = vmatprep.subr.bf16.mxu0 0
    %2955 = vmatpush1.bf16.msra.mxu0 0
    %2956 = vmatprep.subr.bf16.mxu0 0
    %2957 = vmatpush1.bf16.msra.mxu0 0
    %2958 = vmatprep.subr.bf16.mxu0 0
    %2959 = vmatpush1.bf16.msra.mxu0 0
    %2960 = vmatprep.subr.bf16.mxu0 0
    %2961 = vmatpush1.bf16.msra.mxu0 0
    %2962 = vmatprep.mubr.bf16.mxu0 0
    %2963 = vmatmul.mubr.bf16.gmra.mrb[0].mxu0 %v1530
    %v2964 = vpop.f32.mrb[0].mxu0
    %v2965 = vadd.f32 %v2924, %v2964
    %v2966 = vpop.f32.mrb[0].mxu0
    %v2967 = vadd.f32 %v2926, %v2966
    %v2968 = vpop.f32.mrb[0].mxu0
    %v2969 = vpop.f32.mrb[0].mxu0
    %2970 = vdwg.mxu0
    %2971 = vmatprep.subr.bf16.mxu0 %v2348
    %2972 = vmatpush1.bf16.msra.mxu0 %v2347
    %2973 = vmatprep.subr.bf16.mxu0 %v2356
    %2974 = vmatpush1.bf16.msra.mxu0 %v2355
    %2975 = vmatprep.subr.bf16.mxu0 %v2364
    %2976 = vmatpush1.bf16.msra.mxu0 %v2363
    %2977 = vmatprep.subr.bf16.mxu0 %v2372
    %2978 = vmatpush1.bf16.msra.mxu0 %v2371
    %2979 = vmatprep.subr.bf16.mxu0 %v2380
    %2980 = vmatpush1.bf16.msra.mxu0 %v2379
    %2981 = vmatprep.subr.bf16.mxu0 %v2388
    %2982 = vmatpush1.bf16.msra.mxu0 %v2387
    %2983 = vmatprep.subr.bf16.mxu0 %v2396
    %2984 = vmatpush1.bf16.msra.mxu0 %v2395
    %2985 = vmatprep.subr.bf16.mxu0 %v2404
    %2986 = vmatpush1.bf16.msra.mxu0 %v2403
    %2987 = vmatprep.subr.bf16.mxu0 %v2412
    %2988 = vmatpush1.bf16.msra.mxu0 %v2411
    %2989 = vmatprep.subr.bf16.mxu0 %v2420
    %2990 = vmatpush1.bf16.msra.mxu0 %v2419
    %2991 = vmatprep.subr.bf16.mxu0 %v2428
    %2992 = vmatpush1.bf16.msra.mxu0 %v2427
    %2993 = vmatprep.subr.bf16.mxu0 %v2436
    %2994 = vmatpush1.bf16.msra.mxu0 %v2435
    %2995 = vmatprep.subr.bf16.mxu0 %v2444
    %2996 = vmatpush1.bf16.msra.mxu0 %v2443
    %2997 = vmatprep.subr.bf16.mxu0 %v2452
    %2998 = vmatpush1.bf16.msra.mxu0 %v2451
    %2999 = vmatprep.subr.bf16.mxu0 %v2460
    %3000 = vmatpush1.bf16.msra.mxu0 %v2459
    %3001 = vmatprep.subr.bf16.mxu0 %v2468
    %3002 = vmatpush1.bf16.msra.mxu0 %v2467
    %3003 = vmatprep.mubr.bf16.mxu0 %v1529
    %3004 = vmatmul.mubr.bf16.gmra.mrb[0].mxu0 %v1528
    %v3005 = vpop.f32.mrb[0].mxu0
    %v3006 = vadd.f32 %v1752, %v3005
    %v3007 = vpop.f32.mrb[0].mxu0
    %v3008 = vadd.f32 %v1756, %v3007
    %v3009 = vpop.f32.mrb[0].mxu0
    %v3010 = vpop.f32.mrb[0].mxu0
    %3011 = vdwg.mxu0
    %3012 = vmatprep.subr.bf16.mxu0 %v2476
    %3013 = vmatpush1.bf16.msra.mxu0 %v2475
    %3014 = vmatprep.subr.bf16.mxu0 %v2484
    %3015 = vmatpush1.bf16.msra.mxu0 %v2483
    %3016 = vmatprep.subr.bf16.mxu0 %v2492
    %3017 = vmatpush1.bf16.msra.mxu0 %v2491
    %3018 = vmatprep.subr.bf16.mxu0 %v2500
    %3019 = vmatpush1.bf16.msra.mxu0 %v2499
    %3020 = vmatprep.subr.bf16.mxu0 %v2508
    %3021 = vmatpush1.bf16.msra.mxu0 %v2507
    %3022 = vmatprep.subr.bf16.mxu0 %v2516
    %3023 = vmatpush1.bf16.msra.mxu0 %v2515
    %3024 = vmatprep.subr.bf16.mxu0 %v2524
    %3025 = vmatpush1.bf16.msra.mxu0 %v2523
    %3026 = vmatprep.subr.bf16.mxu0 %v2532
    %3027 = vmatpush1.bf16.msra.mxu0 %v2531
    %3028 = vmatprep.subr.bf16.mxu0 0
    %3029 = vmatpush1.bf16.msra.mxu0 0
    %3030 = vmatprep.subr.bf16.mxu0 0
    %3031 = vmatpush1.bf16.msra.mxu0 0
    %3032 = vmatprep.subr.bf16.mxu0 0
    %3033 = vmatpush1.bf16.msra.mxu0 0
    %3034 = vmatprep.subr.bf16.mxu0 0
    %3035 = vmatpush1.bf16.msra.mxu0 0
    %3036 = vmatprep.subr.bf16.mxu0 0
    %3037 = vmatpush1.bf16.msra.mxu0 0
    %3038 = vmatprep.subr.bf16.mxu0 0
    %3039 = vmatpush1.bf16.msra.mxu0 0
    %3040 = vmatprep.subr.bf16.mxu0 0
    %3041 = vmatpush1.bf16.msra.mxu0 0
    %3042 = vmatprep.subr.bf16.mxu0 0
    %3043 = vmatpush1.bf16.msra.mxu0 0
    %3044 = vmatprep.mubr.bf16.mxu0 0
    %3045 = vmatmul.mubr.bf16.gmra.mrb[0].mxu0 %v1530
    %v3046 = vpop.f32.mrb[0].mxu0
    %v3047 = vadd.f32 %v3006, %v3046
    %v3048 = vpop.f32.mrb[0].mxu0
    %v3049 = vadd.f32 %v3008, %v3048
    %v3050 = vpop.f32.mrb[0].mxu0
    %v3051 = vpop.f32.mrb[0].mxu0
    %3052 = vdwg.mxu0
    %v3053 = vmax.f32 %v2801, 0.0
    %v3054 = vmax.f32 %v2803, 0.0
    %v3055 = vmax.f32 %v2883, 0.0
    %v3056 = vmax.f32 %v2885, 0.0
    %v3057 = vmax.f32 %v2965, 0.0
    %v3058 = vmax.f32 %v2967, 0.0
    %v3059 = vmax.f32 %v3047, 0.0
    %v3060 = vmax.f32 %v3049, 0.0
    %v3061 = vpack.c.bf16 %v3053, %v3053
    %v3062 = vpack.c.bf16 %v3054, %v3054
    %v3063 = vpack.c.bf16 %v3055, %v3055
    %v3064 = vpack.c.bf16 %v3056, %v3056
    %v3065 = vpack.c.bf16 %v3057, %v3057
    %v3066 = vpack.c.bf16 %v3058, %v3058
    %v3067 = vpack.c.bf16 %v3059, %v3059
    %v3068 = vpack.c.bf16 %v3060, %v3060
    %v3069 = vld [vmem:[%s12] sm:$0xf]
    %v3070 = vld [vmem:[%s12 + $0x4] sm:$0xf]
    %v3071 = vld [vmem:[%s12 + $0x8] sm:$0xf]
    %v3072 = vld [vmem:[%s12 + $0xc] sm:$0xf]
    %v3073 = vld [vmem:[%s12 + $0x10] sm:$0xf]
    %v3074 = vld [vmem:[%s12 + $0x14] sm:$0xf]
    %v3075 = vld [vmem:[%s12 + $0x18] sm:$0xf]
    %v3076 = vld [vmem:[%s12 + $0x1c] sm:$0xf]
    %v3077 = vld [vmem:[%s12 + $0x20] sm:$0xf]
    %v3078 = vld [vmem:[%s12 + $0x24] sm:$0xf]
    %v3079 = vld [vmem:[%s12 + $0x28] sm:$0xf]
    %v3080 = vld [vmem:[%s12 + $0x2c] sm:$0xf]
    %v3081 = vld [vmem:[%s12 + $0x30] sm:$0xf]
    %v3082 = vld [vmem:[%s12 + $0x34] sm:$0xf]
    %v3083 = vld [vmem:[%s12 + $0x38] sm:$0xf]
    %v3084 = vld [vmem:[%s12 + $0x3c] sm:$0xf]
    %v3085 = vld [vmem:[%s12 + $0x40] sm:$0xf]
    %v3086 = vld [vmem:[%s12 + $0x44] sm:$0xf]
    %v3087 = vld [vmem:[%s12 + $0x48] sm:$0xf]
    %v3088 = vld [vmem:[%s12 + $0x4c] sm:$0xf]
    %v3089 = vld [vmem:[%s12 + $0x50] sm:$0xf]
    %v3090 = vld [vmem:[%s12 + $0x54] sm:$0xf]
    %v3091 = vld [vmem:[%s12 + $0x58] sm:$0xf]
    %v3092 = vld [vmem:[%s12 + $0x5c] sm:$0xf]
    %v3093 = vld [vmem:[%s12 + $0x60] sm:$0xf]
    %v3094 = vld [vmem:[%s12 + $0x64] sm:$0xf]
    %v3095 = vld [vmem:[%s12 + $0x68] sm:$0xf]
    %v3096 = vld [vmem:[%s12 + $0x6c] sm:$0xf]
    %v3097 = vld [vmem:[%s12 + $0x70] sm:$0xf]
    %v3098 = vld [vmem:[%s12 + $0x74] sm:$0xf]
    %v3099 = vld [vmem:[%s12 + $0x78] sm:$0xf]
    %v3100 = vld [vmem:[%s12 + $0x7c] sm:$0xf]
    %v3101 = vld [vmem:[%s12 + $0x80] sm:$0xf]
    %v3102 = vld [vmem:[%s12 + $0x84] sm:$0xf]
    %v3103 = vld [vmem:[%s12 + $0x88] sm:$0xf]
    %v3104 = vld [vmem:[%s12 + $0x8c] sm:$0xf]
    %v3105 = vld [vmem:[%s12 + $0x90] sm:$0xf]
    %v3106 = vld [vmem:[%s12 + $0x94] sm:$0xf]
    %v3107 = vld [vmem:[%s12 + $0x98] sm:$0xf]
    %v3108 = vld [vmem:[%s12 + $0x9c] sm:$0xf]
    %v3109 = vld [vmem:[%s12 + $0xa0] sm:$0xf]
    %v3110 = vld [vmem:[%s12 + $0xa4] sm:$0xf]
    %v3111 = vld [vmem:[%s12 + $0xa8] sm:$0xf]
    %v3112 = vld [vmem:[%s12 + $0xac] sm:$0xf]
    %v3113 = vld [vmem:[%s12 + $0xb0] sm:$0xf]
    %v3114 = vld [vmem:[%s12 + $0xb4] sm:$0xf]
    %v3115 = vld [vmem:[%s12 + $0xb8] sm:$0xf]
    %v3116 = vld [vmem:[%s12 + $0xbc] sm:$0xf]
    %v3117 = vld [vmem:[%s12 + $0xc0] sm:$0xf]
    %v3118 = vld [vmem:[%s12 + $0xc4] sm:$0xf]
    %v3119 = vld [vmem:[%s12 + $0xc8] sm:$0xf]
    %v3120 = vld [vmem:[%s12 + $0xcc] sm:$0xf]
    %v3121 = vld [vmem:[%s12 + $0xd0] sm:$0xf]
    %v3122 = vld [vmem:[%s12 + $0xd4] sm:$0xf]
    %v3123 = vld [vmem:[%s12 + $0xd8] sm:$0xf]
    %v3124 = vld [vmem:[%s12 + $0xdc] sm:$0xf]
    %v3125 = vld [vmem:[%s12 + $0xe0] sm:$0xf]
    %v3126 = vld [vmem:[%s12 + $0xe4] sm:$0xf]
    %v3127 = vld [vmem:[%s12 + $0xe8] sm:$0xf]
    %v3128 = vld [vmem:[%s12 + $0xec] sm:$0xf]
    %v3129 = vld [vmem:[%s12 + $0xf0] sm:$0xf]
    %v3130 = vld [vmem:[%s12 + $0xf4] sm:$0xf]
    %v3131 = vld [vmem:[%s12 + $0xf8] sm:$0xf]
    %v3132 = vld [vmem:[%s12 + $0xfc] sm:$0xf]
    %v3133 = vld [vmem:[%s12 + $0x100] sm:$0xf]
    %v3134 = vld [vmem:[%s12 + $0x104] sm:$0xf]
    %v3135 = vld [vmem:[%s12 + $0x108] sm:$0xf]
    %v3136 = vld [vmem:[%s12 + $0x10c] sm:$0xf]
    %v3137 = vld [vmem:[%s12 + $0x110] sm:$0xf]
    %v3138 = vld [vmem:[%s12 + $0x114] sm:$0xf]
    %v3139 = vld [vmem:[%s12 + $0x118] sm:$0xf]
    %v3140 = vld [vmem:[%s12 + $0x11c] sm:$0xf]
    %v3141 = vld [vmem:[%s12 + $0x120] sm:$0xf]
    %v3142 = vld [vmem:[%s12 + $0x124] sm:$0xf]
    %v3143 = vld [vmem:[%s12 + $0x128] sm:$0xf]
    %v3144 = vld [vmem:[%s12 + $0x12c] sm:$0xf]
    %v3145 = vld [vmem:[%s12 + $0x130] sm:$0xf]
    %v3146 = vld [vmem:[%s12 + $0x134] sm:$0xf]
    %v3147 = vld [vmem:[%s12 + $0x138] sm:$0xf]
    %v3148 = vld [vmem:[%s12 + $0x13c] sm:$0xf]
    %v3149 = vld [vmem:[%s12 + $0x140] sm:$0xf]
    %v3150 = vld [vmem:[%s12 + $0x144] sm:$0xf]
    %v3151 = vld [vmem:[%s12 + $0x148] sm:$0xf]
    %v3152 = vld [vmem:[%s12 + $0x14c] sm:$0xf]
    %v3153 = vld [vmem:[%s12 + $0x150] sm:$0xf]
    %v3154 = vld [vmem:[%s12 + $0x154] sm:$0xf]
    %v3155 = vld [vmem:[%s12 + $0x158] sm:$0xf]
    %v3156 = vld [vmem:[%s12 + $0x15c] sm:$0xf]
    %v3157 = vld [vmem:[%s12 + $0x160] sm:$0xf]
    %v3158 = vld [vmem:[%s12 + $0x164] sm:$0xf]
    %v3159 = vld [vmem:[%s12 + $0x168] sm:$0xf]
    %v3160 = vld [vmem:[%s12 + $0x16c] sm:$0xf]
    %v3161 = vld [vmem:[%s12 + $0x170] sm:$0xf]
    %v3162 = vld [vmem:[%s12 + $0x174] sm:$0xf]
    %v3163 = vld [vmem:[%s12 + $0x178] sm:$0xf]
    %v3164 = vld [vmem:[%s12 + $0x17c] sm:$0xf]
    %v3165 = vld [vmem:[%s12 + $0x180] sm:$0xf]
    %v3166 = vld [vmem:[%s12 + $0x184] sm:$0xf]
    %v3167 = vld [vmem:[%s12 + $0x188] sm:$0xf]
    %v3168 = vld [vmem:[%s12 + $0x18c] sm:$0xf]
    %v3169 = vld [vmem:[%s12 + $0x190] sm:$0xf]
    %v3170 = vld [vmem:[%s12 + $0x194] sm:$0xf]
    %v3171 = vld [vmem:[%s12 + $0x198] sm:$0xf]
    %v3172 = vld [vmem:[%s12 + $0x19c] sm:$0xf]
    %v3173 = vld [vmem:[%s12 + $0x1a0] sm:$0xf]
    %v3174 = vld [vmem:[%s12 + $0x1a4] sm:$0xf]
    %v3175 = vld [vmem:[%s12 + $0x1a8] sm:$0xf]
    %v3176 = vld [vmem:[%s12 + $0x1ac] sm:$0xf]
    %v3177 = vld [vmem:[%s12 + $0x1b0] sm:$0xf]
    %v3178 = vld [vmem:[%s12 + $0x1b4] sm:$0xf]
    %v3179 = vld [vmem:[%s12 + $0x1b8] sm:$0xf]
    %v3180 = vld [vmem:[%s12 + $0x1bc] sm:$0xf]
    %v3181 = vld [vmem:[%s12 + $0x1c0] sm:$0xf]
    %v3182 = vld [vmem:[%s12 + $0x1c4] sm:$0xf]
    %v3183 = vld [vmem:[%s12 + $0x1c8] sm:$0xf]
    %v3184 = vld [vmem:[%s12 + $0x1cc] sm:$0xf]
    %v3185 = vld [vmem:[%s12 + $0x1d0] sm:$0xf]
    %v3186 = vld [vmem:[%s12 + $0x1d4] sm:$0xf]
    %v3187 = vld [vmem:[%s12 + $0x1d8] sm:$0xf]
    %v3188 = vld [vmem:[%s12 + $0x1dc] sm:$0xf]
    %v3189 = vld [vmem:[%s12 + $0x1e0] sm:$0xf]
    %v3190 = vld [vmem:[%s12 + $0x1e4] sm:$0xf]
    %v3191 = vld [vmem:[%s12 + $0x1e8] sm:$0xf]
    %v3192 = vld [vmem:[%s12 + $0x1ec] sm:$0xf]
    %v3193 = vld [vmem:[%s12 + $0x1f0] sm:$0xf]
    %v3194 = vld [vmem:[%s12 + $0x1f4] sm:$0xf]
    %v3195 = vld [vmem:[%s12 + $0x1f8] sm:$0xf]
    %v3196 = vld [vmem:[%s12 + $0x1fc] sm:$0xf]
    %v3197 = vld [vmem:[#allocation20] sm:$0x1]
    %v3199 = vlaneseq
    %v3200 = vshrl.u32 %v3199, 7
    %v3201 = vsub.s32 0, %v3200
    %v3202 = vrot.slane %v3197, %v3201
    %v3332 = vunpack.c.l.b16 %v3069
    %v3333 = vunpack.c.l.b16 %v3070
    %v3334 = vunpack.c.l.b16 %v3071
    %v3335 = vunpack.c.l.b16 %v3072
    %v3336 = vunpack.c.l.b16 %v3073
    %v3337 = vunpack.c.l.b16 %v3074
    %v3338 = vunpack.c.l.b16 %v3075
    %v3339 = vunpack.c.l.b16 %v3076
    %v3340 = vunpack.c.l.b16 %v3077
    %v3341 = vunpack.c.l.b16 %v3078
    %v3342 = vunpack.c.l.b16 %v3079
    %v3343 = vunpack.c.l.b16 %v3080
    %v3344 = vunpack.c.l.b16 %v3081
    %v3345 = vunpack.c.l.b16 %v3082
    %v3346 = vunpack.c.l.b16 %v3083
    %v3347 = vunpack.c.l.b16 %v3084
    %v3348 = vunpack.c.l.b16 %v3085
    %v3349 = vunpack.c.l.b16 %v3086
    %v3350 = vunpack.c.l.b16 %v3087
    %v3351 = vunpack.c.l.b16 %v3088
    %v3352 = vunpack.c.l.b16 %v3089
    %v3353 = vunpack.c.l.b16 %v3090
    %v3354 = vunpack.c.l.b16 %v3091
    %v3355 = vunpack.c.l.b16 %v3092
    %v3356 = vunpack.c.l.b16 %v3093
    %v3357 = vunpack.c.l.b16 %v3094
    %v3358 = vunpack.c.l.b16 %v3095
    %v3359 = vunpack.c.l.b16 %v3096
    %v3360 = vunpack.c.l.b16 %v3097
    %v3361 = vunpack.c.l.b16 %v3098
    %v3362 = vunpack.c.l.b16 %v3099
    %v3363 = vunpack.c.l.b16 %v3100
    %v3364 = vunpack.c.l.b16 %v3101
    %v3365 = vunpack.c.l.b16 %v3102
    %v3366 = vunpack.c.l.b16 %v3103
    %v3367 = vunpack.c.l.b16 %v3104
    %v3368 = vunpack.c.l.b16 %v3105
    %v3369 = vunpack.c.l.b16 %v3106
    %v3370 = vunpack.c.l.b16 %v3107
    %v3371 = vunpack.c.l.b16 %v3108
    %v3372 = vunpack.c.l.b16 %v3109
    %v3373 = vunpack.c.l.b16 %v3110
    %v3374 = vunpack.c.l.b16 %v3111
    %v3375 = vunpack.c.l.b16 %v3112
    %v3376 = vunpack.c.l.b16 %v3113
    %v3377 = vunpack.c.l.b16 %v3114
    %v3378 = vunpack.c.l.b16 %v3115
    %v3379 = vunpack.c.l.b16 %v3116
    %v3380 = vunpack.c.l.b16 %v3117
    %v3381 = vunpack.c.l.b16 %v3118
    %v3382 = vunpack.c.l.b16 %v3119
    %v3383 = vunpack.c.l.b16 %v3120
    %v3384 = vunpack.c.l.b16 %v3121
    %v3385 = vunpack.c.l.b16 %v3122
    %v3386 = vunpack.c.l.b16 %v3123
    %v3387 = vunpack.c.l.b16 %v3124
    %v3388 = vunpack.c.l.b16 %v3125
    %v3389 = vunpack.c.l.b16 %v3126
    %v3390 = vunpack.c.l.b16 %v3127
    %v3391 = vunpack.c.l.b16 %v3128
    %v3392 = vunpack.c.l.b16 %v3129
    %v3393 = vunpack.c.l.b16 %v3130
    %v3394 = vunpack.c.l.b16 %v3131
    %v3395 = vunpack.c.l.b16 %v3132
    %v3396 = vunpack.c.l.b16 %v3133
    %v3397 = vunpack.c.l.b16 %v3134
    %v3398 = vunpack.c.l.b16 %v3135
    %v3399 = vunpack.c.l.b16 %v3136
    %v3400 = vunpack.c.l.b16 %v3137
    %v3401 = vunpack.c.l.b16 %v3138
    %v3402 = vunpack.c.l.b16 %v3139
    %v3403 = vunpack.c.l.b16 %v3140
    %v3404 = vunpack.c.l.b16 %v3141
    %v3405 = vunpack.c.l.b16 %v3142
    %v3406 = vunpack.c.l.b16 %v3143
    %v3407 = vunpack.c.l.b16 %v3144
    %v3408 = vunpack.c.l.b16 %v3145
    %v3409 = vunpack.c.l.b16 %v3146
    %v3410 = vunpack.c.l.b16 %v3147
    %v3411 = vunpack.c.l.b16 %v3148
    %v3412 = vunpack.c.l.b16 %v3149
    %v3413 = vunpack.c.l.b16 %v3150
    %v3414 = vunpack.c.l.b16 %v3151
    %v3415 = vunpack.c.l.b16 %v3152
    %v3416 = vunpack.c.l.b16 %v3153
    %v3417 = vunpack.c.l.b16 %v3154
    %v3418 = vunpack.c.l.b16 %v3155
    %v3419 = vunpack.c.l.b16 %v3156
    %v3420 = vunpack.c.l.b16 %v3157
    %v3421 = vunpack.c.l.b16 %v3158
    %v3422 = vunpack.c.l.b16 %v3159
    %v3423 = vunpack.c.l.b16 %v3160
    %v3424 = vunpack.c.l.b16 %v3161
    %v3425 = vunpack.c.l.b16 %v3162
    %v3426 = vunpack.c.l.b16 %v3163
    %v3427 = vunpack.c.l.b16 %v3164
    %v3428 = vunpack.c.l.b16 %v3165
    %v3429 = vunpack.c.l.b16 %v3166
    %v3430 = vunpack.c.l.b16 %v3167
    %v3431 = vunpack.c.l.b16 %v3168
    %v3432 = vunpack.c.l.b16 %v3169
    %v3433 = vunpack.c.l.b16 %v3170
    %v3434 = vunpack.c.l.b16 %v3171
    %v3435 = vunpack.c.l.b16 %v3172
    %v3436 = vunpack.c.l.b16 %v3173
    %v3437 = vunpack.c.l.b16 %v3174
    %v3438 = vunpack.c.l.b16 %v3175
    %v3439 = vunpack.c.l.b16 %v3176
    %v3440 = vunpack.c.l.b16 %v3177
    %v3441 = vunpack.c.l.b16 %v3178
    %v3442 = vunpack.c.l.b16 %v3179
    %v3443 = vunpack.c.l.b16 %v3180
    %v3444 = vunpack.c.l.b16 %v3181
    %v3445 = vunpack.c.l.b16 %v3182
    %v3446 = vunpack.c.l.b16 %v3183
    %v3447 = vunpack.c.l.b16 %v3184
    %v3448 = vunpack.c.l.b16 %v3185
    %v3449 = vunpack.c.l.b16 %v3186
    %v3450 = vunpack.c.l.b16 %v3187
    %v3451 = vunpack.c.l.b16 %v3188
    %v3452 = vunpack.c.l.b16 %v3189
    %v3453 = vunpack.c.l.b16 %v3190
    %v3454 = vunpack.c.l.b16 %v3191
    %v3455 = vunpack.c.l.b16 %v3192
    %v3456 = vunpack.c.l.b16 %v3193
    %v3457 = vunpack.c.l.b16 %v3194
    %v3458 = vunpack.c.l.b16 %v3195
    %v3459 = vunpack.c.l.b16 %v3196
    %v3460 = vpack.c.b16 %v3333, %v3332
    %v3461 = vpack.c.b16 %v3335, %v3334
    %v3462 = vpack.c.b16 %v3337, %v3336
    %v3463 = vpack.c.b16 %v3339, %v3338
    %v3464 = vpack.c.b16 %v3341, %v3340
    %v3465 = vpack.c.b16 %v3343, %v3342
    %v3466 = vpack.c.b16 %v3345, %v3344
    %v3467 = vpack.c.b16 %v3347, %v3346
    %v3468 = vpack.c.b16 %v3349, %v3348
    %v3469 = vpack.c.b16 %v3351, %v3350
    %v3470 = vpack.c.b16 %v3353, %v3352
    %v3471 = vpack.c.b16 %v3355, %v3354
    %v3472 = vpack.c.b16 %v3357, %v3356
    %v3473 = vpack.c.b16 %v3359, %v3358
    %v3474 = vpack.c.b16 %v3361, %v3360
    %v3475 = vpack.c.b16 %v3363, %v3362
    %v3476 = vpack.c.b16 %v3365, %v3364
    %v3477 = vpack.c.b16 %v3367, %v3366
    %v3478 = vpack.c.b16 %v3369, %v3368
    %v3479 = vpack.c.b16 %v3371, %v3370
    %v3480 = vpack.c.b16 %v3373, %v3372
    %v3481 = vpack.c.b16 %v3375, %v3374
    %v3482 = vpack.c.b16 %v3377, %v3376
    %v3483 = vpack.c.b16 %v3379, %v3378
    %v3484 = vpack.c.b16 %v3381, %v3380
    %v3485 = vpack.c.b16 %v3383, %v3382
    %v3486 = vpack.c.b16 %v3385, %v3384
    %v3487 = vpack.c.b16 %v3387, %v3386
    %v3488 = vpack.c.b16 %v3389, %v3388
    %v3489 = vpack.c.b16 %v3391, %v3390
    %v3490 = vpack.c.b16 %v3393, %v3392
    %v3491 = vpack.c.b16 %v3395, %v3394
    %v3492 = vpack.c.b16 %v3397, %v3396
    %v3493 = vpack.c.b16 %v3399, %v3398
    %v3494 = vpack.c.b16 %v3401, %v3400
    %v3495 = vpack.c.b16 %v3403, %v3402
    %v3496 = vpack.c.b16 %v3405, %v3404
    %v3497 = vpack.c.b16 %v3407, %v3406
    %v3498 = vpack.c.b16 %v3409, %v3408
    %v3499 = vpack.c.b16 %v3411, %v3410
    %v3500 = vpack.c.b16 %v3413, %v3412
    %v3501 = vpack.c.b16 %v3415, %v3414
    %v3502 = vpack.c.b16 %v3417, %v3416
    %v3503 = vpack.c.b16 %v3419, %v3418
    %v3504 = vpack.c.b16 %v3421, %v3420
    %v3505 = vpack.c.b16 %v3423, %v3422
    %v3506 = vpack.c.b16 %v3425, %v3424
    %v3507 = vpack.c.b16 %v3427, %v3426
    %v3508 = vpack.c.b16 %v3429, %v3428
    %v3509 = vpack.c.b16 %v3431, %v3430
    %v3510 = vpack.c.b16 %v3433, %v3432
    %v3511 = vpack.c.b16 %v3435, %v3434
    %v3512 = vpack.c.b16 %v3437, %v3436
    %v3513 = vpack.c.b16 %v3439, %v3438
    %v3514 = vpack.c.b16 %v3441, %v3440
    %v3515 = vpack.c.b16 %v3443, %v3442
    %v3516 = vpack.c.b16 %v3445, %v3444
    %v3517 = vpack.c.b16 %v3447, %v3446
    %v3518 = vpack.c.b16 %v3449, %v3448
    %v3519 = vpack.c.b16 %v3451, %v3450
    %v3520 = vpack.c.b16 %v3453, %v3452
    %v3521 = vpack.c.b16 %v3455, %v3454
    %v3522 = vpack.c.b16 %v3457, %v3456
    %v3523 = vpack.c.b16 %v3459, %v3458
    %3588 = vmatprep.subr.bf16.mxu0 0
    %3589 = vmatpush1.bf16.msra.mxu0 %v3460
    %3590 = vmatprep.subr.bf16.mxu0 0
    %3591 = vmatpush1.bf16.msra.mxu0 %v3461
    %3592 = vmatprep.subr.bf16.mxu0 0
    %3593 = vmatpush1.bf16.msra.mxu0 %v3462
    %3594 = vmatprep.subr.bf16.mxu0 0
    %3595 = vmatpush1.bf16.msra.mxu0 %v3463
    %3596 = vmatprep.subr.bf16.mxu0 0
    %3597 = vmatpush1.bf16.msra.mxu0 %v3464
    %3598 = vmatprep.subr.bf16.mxu0 0
    %3599 = vmatpush1.bf16.msra.mxu0 %v3465
    %3600 = vmatprep.subr.bf16.mxu0 0
    %3601 = vmatpush1.bf16.msra.mxu0 %v3466
    %3602 = vmatprep.subr.bf16.mxu0 0
    %3603 = vmatpush1.bf16.msra.mxu0 %v3467
    %3604 = vmatprep.subr.bf16.mxu0 0
    %3605 = vmatpush1.bf16.msra.mxu0 %v3468
    %3606 = vmatprep.subr.bf16.mxu0 0
    %3607 = vmatpush1.bf16.msra.mxu0 %v3469
    %3608 = vmatprep.subr.bf16.mxu0 0
    %3609 = vmatpush1.bf16.msra.mxu0 %v3470
    %3610 = vmatprep.subr.bf16.mxu0 0
    %3611 = vmatpush1.bf16.msra.mxu0 %v3471
    %3612 = vmatprep.subr.bf16.mxu0 0
    %3613 = vmatpush1.bf16.msra.mxu0 %v3472
    %3614 = vmatprep.subr.bf16.mxu0 0
    %3615 = vmatpush1.bf16.msra.mxu0 %v3473
    %3616 = vmatprep.subr.bf16.mxu0 0
    %3617 = vmatpush1.bf16.msra.mxu0 %v3474
    %3618 = vmatprep.subr.bf16.mxu0 0
    %3619 = vmatpush1.bf16.msra.mxu0 %v3475
    %3620 = vmatprep.mubr.bf16.mxu0 %v3062
    %3621 = vmatmul.mubr.bf16.gmra.mrb[0].mxu0 %v3061
    %v3622 = vpop.f32.mrb[0].mxu0
    %v3623 = vadd.f32 %v3202, %v3622
    %v3624 = vpop.f32.mrb[0].mxu0
    %v3625 = vpop.f32.mrb[0].mxu0
    %v3626 = vpop.f32.mrb[0].mxu0
    %3627 = vdwg.mxu0
    %3628 = vmatprep.subr.bf16.mxu0 0
    %3629 = vmatpush1.bf16.msra.mxu0 %v3476
    %3630 = vmatprep.subr.bf16.mxu0 0
    %3631 = vmatpush1.bf16.msra.mxu0 %v3477
    %3632 = vmatprep.subr.bf16.mxu0 0
    %3633 = vmatpush1.bf16.msra.mxu0 %v3478
    %3634 = vmatprep.subr.bf16.mxu0 0
    %3635 = vmatpush1.bf16.msra.mxu0 %v3479
    %3636 = vmatprep.subr.bf16.mxu0 0
    %3637 = vmatpush1.bf16.msra.mxu0 %v3480
    %3638 = vmatprep.subr.bf16.mxu0 0
    %3639 = vmatpush1.bf16.msra.mxu0 %v3481
    %3640 = vmatprep.subr.bf16.mxu0 0
    %3641 = vmatpush1.bf16.msra.mxu0 %v3482
    %3642 = vmatprep.subr.bf16.mxu0 0
    %3643 = vmatpush1.bf16.msra.mxu0 %v3483
    %3644 = vmatprep.subr.bf16.mxu0 0
    %3645 = vmatpush1.bf16.msra.mxu0 %v3484
    %3646 = vmatprep.subr.bf16.mxu0 0
    %3647 = vmatpush1.bf16.msra.mxu0 %v3485
    %3648 = vmatprep.subr.bf16.mxu0 0
    %3649 = vmatpush1.bf16.msra.mxu0 %v3486
    %3650 = vmatprep.subr.bf16.mxu0 0
    %3651 = vmatpush1.bf16.msra.mxu0 %v3487
    %3652 = vmatprep.subr.bf16.mxu0 0
    %3653 = vmatpush1.bf16.msra.mxu0 %v3488
    %3654 = vmatprep.subr.bf16.mxu0 0
    %3655 = vmatpush1.bf16.msra.mxu0 %v3489
    %3656 = vmatprep.subr.bf16.mxu0 0
    %3657 = vmatpush1.bf16.msra.mxu0 %v3490
    %3658 = vmatprep.subr.bf16.mxu0 0
    %3659 = vmatpush1.bf16.msra.mxu0 %v3491
    %3660 = vmatprep.mubr.bf16.mxu0 %v3064
    %3661 = vmatmul.mubr.bf16.gmra.mrb[0].mxu0 %v3063
    %v3662 = vpop.f32.mrb[0].mxu0
    %v3663 = vadd.f32 %v3623, %v3662
    %v3664 = vpop.f32.mrb[0].mxu0
    %v3665 = vpop.f32.mrb[0].mxu0
    %v3666 = vpop.f32.mrb[0].mxu0
    %3667 = vdwg.mxu0
    %3668 = vmatprep.subr.bf16.mxu0 0
    %3669 = vmatpush1.bf16.msra.mxu0 %v3492
    %3670 = vmatprep.subr.bf16.mxu0 0
    %3671 = vmatpush1.bf16.msra.mxu0 %v3493
    %3672 = vmatprep.subr.bf16.mxu0 0
    %3673 = vmatpush1.bf16.msra.mxu0 %v3494
    %3674 = vmatprep.subr.bf16.mxu0 0
    %3675 = vmatpush1.bf16.msra.mxu0 %v3495
    %3676 = vmatprep.subr.bf16.mxu0 0
    %3677 = vmatpush1.bf16.msra.mxu0 %v3496
    %3678 = vmatprep.subr.bf16.mxu0 0
    %3679 = vmatpush1.bf16.msra.mxu0 %v3497
    %3680 = vmatprep.subr.bf16.mxu0 0
    %3681 = vmatpush1.bf16.msra.mxu0 %v3498
    %3682 = vmatprep.subr.bf16.mxu0 0
    %3683 = vmatpush1.bf16.msra.mxu0 %v3499
    %3684 = vmatprep.subr.bf16.mxu0 0
    %3685 = vmatpush1.bf16.msra.mxu0 %v3500
    %3686 = vmatprep.subr.bf16.mxu0 0
    %3687 = vmatpush1.bf16.msra.mxu0 %v3501
    %3688 = vmatprep.subr.bf16.mxu0 0
    %3689 = vmatpush1.bf16.msra.mxu0 %v3502
    %3690 = vmatprep.subr.bf16.mxu0 0
    %3691 = vmatpush1.bf16.msra.mxu0 %v3503
    %3692 = vmatprep.subr.bf16.mxu0 0
    %3693 = vmatpush1.bf16.msra.mxu0 %v3504
    %3694 = vmatprep.subr.bf16.mxu0 0
    %3695 = vmatpush1.bf16.msra.mxu0 %v3505
    %3696 = vmatprep.subr.bf16.mxu0 0
    %3697 = vmatpush1.bf16.msra.mxu0 %v3506
    %3698 = vmatprep.subr.bf16.mxu0 0
    %3699 = vmatpush1.bf16.msra.mxu0 %v3507
    %3700 = vmatprep.mubr.bf16.mxu0 %v3066
    %3701 = vmatmul.mubr.bf16.gmra.mrb[0].mxu0 %v3065
    %v3702 = vpop.f32.mrb[0].mxu0
    %v3703 = vadd.f32 %v3663, %v3702
    %v3704 = vpop.f32.mrb[0].mxu0
    %v3705 = vpop.f32.mrb[0].mxu0
    %v3706 = vpop.f32.mrb[0].mxu0
    %3707 = vdwg.mxu0
    %3708 = vmatprep.subr.bf16.mxu0 0
    %3709 = vmatpush1.bf16.msra.mxu0 %v3508
    %3710 = vmatprep.subr.bf16.mxu0 0
    %3711 = vmatpush1.bf16.msra.mxu0 %v3509
    %3712 = vmatprep.subr.bf16.mxu0 0
    %3713 = vmatpush1.bf16.msra.mxu0 %v3510
    %3714 = vmatprep.subr.bf16.mxu0 0
    %3715 = vmatpush1.bf16.msra.mxu0 %v3511
    %3716 = vmatprep.subr.bf16.mxu0 0
    %3717 = vmatpush1.bf16.msra.mxu0 %v3512
    %3718 = vmatprep.subr.bf16.mxu0 0
    %3719 = vmatpush1.bf16.msra.mxu0 %v3513
    %3720 = vmatprep.subr.bf16.mxu0 0
    %3721 = vmatpush1.bf16.msra.mxu0 %v3514
    %3722 = vmatprep.subr.bf16.mxu0 0
    %3723 = vmatpush1.bf16.msra.mxu0 %v3515
    %3724 = vmatprep.subr.bf16.mxu0 0
    %3725 = vmatpush1.bf16.msra.mxu0 %v3516
    %3726 = vmatprep.subr.bf16.mxu0 0
    %3727 = vmatpush1.bf16.msra.mxu0 %v3517
    %3728 = vmatprep.subr.bf16.mxu0 0
    %3729 = vmatpush1.bf16.msra.mxu0 %v3518
    %3730 = vmatprep.subr.bf16.mxu0 0
    %3731 = vmatpush1.bf16.msra.mxu0 %v3519
    %3732 = vmatprep.subr.bf16.mxu0 0
    %3733 = vmatpush1.bf16.msra.mxu0 %v3520
    %3734 = vmatprep.subr.bf16.mxu0 0
    %3735 = vmatpush1.bf16.msra.mxu0 %v3521
    %3736 = vmatprep.subr.bf16.mxu0 0
    %3737 = vmatpush1.bf16.msra.mxu0 %v3522
    %3738 = vmatprep.subr.bf16.mxu0 0
    %3739 = vmatpush1.bf16.msra.mxu0 %v3523
    %3740 = vmatprep.mubr.bf16.mxu0 %v3068
    %3741 = vmatmul.mubr.bf16.gmra.mrb[0].mxu0 %v3067
    %v3742 = vpop.f32.mrb[0].mxu0
    %v3743 = vadd.f32 %v3703, %v3742
    %v3744 = vpop.f32.mrb[0].mxu0
    %v3745 = vpop.f32.mrb[0].mxu0
    %v3746 = vpop.f32.mrb[0].mxu0
    %3747 = vdwg.mxu0
    %s3748 = scalar_lea.vmem [#allocation2], 8
    %v3749 = vld [vmem:[%s3748] sm:$0xf]
    %v3750 = vld [vmem:[%s3748 + $0x4] sm:$0xf]
    %s3751 = scalar_lea.vmem [#allocation5], 8
    %v3752 = vld [vmem:[%s3751] sm:$0xf]
    %v3753 = vld [vmem:[%s3751 + $0x4] sm:$0xf]
    %s3754 = scalar_lea.vmem %s2, 16
    %v3755 = vld [vmem:[%s3754] sm:$0xff]
    %v3756 = vld [vmem:[%s3754 + $0x8] sm:$0xff]
    %s3757 = scalar_lea.vmem [#allocation8], 64
    %v3758 = vld [vmem:[%s3757] sm:$0xf]
    %v3759 = vld [vmem:[%s3757 + $0x4] sm:$0xf]
    %v3760 = vld [vmem:[%s3757 + $0x8] sm:$0xf]
    %v3761 = vld [vmem:[%s3757 + $0xc] sm:$0xf]
    %v3762 = vld [vmem:[%s3757 + $0x10] sm:$0xf]
    %v3763 = vld [vmem:[%s3757 + $0x14] sm:$0xf]
    %v3764 = vld [vmem:[%s3757 + $0x18] sm:$0xf]
    %v3765 = vld [vmem:[%s3757 + $0x1c] sm:$0xf]
    %v3766 = vld [vmem:[%s3757 + $0x20] sm:$0xf]
    %v3767 = vld [vmem:[%s3757 + $0x24] sm:$0xf]
    %v3768 = vld [vmem:[%s3757 + $0x28] sm:$0xf]
    %v3769 = vld [vmem:[%s3757 + $0x2c] sm:$0xf]
    %v3770 = vld [vmem:[%s3757 + $0x30] sm:$0xf]
    %v3771 = vld [vmem:[%s3757 + $0x34] sm:$0xf]
    %v3772 = vld [vmem:[%s3757 + $0x38] sm:$0xf]
    %v3773 = vld [vmem:[%s3757 + $0x3c] sm:$0xf]
    %s3774 = scalar_lea.vmem [#allocation10], 1
    %v3775 = vld [vmem:[%s3774] sm:$0x1]
    %v3778 = vunpack.c.l.b16 %v3749
    %v3779 = vunpack.c.l.b16 %v3750
    %v3780 = vpack.c.b16 %v3779, %v3778
    %v3783 = vunpack.c.l.b16 %v3752
    %v3784 = vunpack.c.l.b16 %v3753
    %v3785 = vpack.c.b16 %v3784, %v3783
    %v3788 = vsel %vm401, %v3780, 0
    %3790 = vmatprep.subr.bf16.mxu0 0
    %3791 = vmatpush1.bf16.msra.mxu0 %v3785
    %3792 = vmatprep.subr.bf16.mxu0 0
    %3793 = vmatpush1.bf16.msra.mxu0 0
    %3794 = vmatprep.subr.bf16.mxu0 0
    %3795 = vmatpush1.bf16.msra.mxu0 0
    %3796 = vmatprep.subr.bf16.mxu0 0
    %3797 = vmatpush1.bf16.msra.mxu0 0
    %3798 = vmatprep.subr.bf16.mxu0 0
    %3799 = vmatpush1.bf16.msra.mxu0 0
    %3800 = vmatprep.subr.bf16.mxu0 0
    %3801 = vmatpush1.bf16.msra.mxu0 0
    %3802 = vmatprep.subr.bf16.mxu0 0
    %3803 = vmatpush1.bf16.msra.mxu0 0
    %3804 = vmatprep.subr.bf16.mxu0 0
    %3805 = vmatpush1.bf16.msra.mxu0 0
    %3806 = vmatprep.subr.bf16.mxu0 0
    %3807 = vmatpush1.bf16.msra.mxu0 0
    %3808 = vmatprep.subr.bf16.mxu0 0
    %3809 = vmatpush1.bf16.msra.mxu0 0
    %3810 = vmatprep.subr.bf16.mxu0 0
    %3811 = vmatpush1.bf16.msra.mxu0 0
    %3812 = vmatprep.subr.bf16.mxu0 0
    %3813 = vmatpush1.bf16.msra.mxu0 0
    %3814 = vmatprep.subr.bf16.mxu0 0
    %3815 = vmatpush1.bf16.msra.mxu0 0
    %3816 = vmatprep.subr.bf16.mxu0 0
    %3817 = vmatpush1.bf16.msra.mxu0 0
    %3818 = vmatprep.subr.bf16.mxu0 0
    %3819 = vmatpush1.bf16.msra.mxu0 0
    %3820 = vmatprep.subr.bf16.mxu0 0
    %3821 = vmatpush1.bf16.msra.mxu0 0
    %3822 = vmatprep.mubr.bf16.mxu0 0
    %3823 = vmatmul.mubr.bf16.gmra.mrb[0].mxu0 %v3788
    %v3824 = vpop.f32.mrb[0].mxu0
    %v3825 = vadd.f32 0.0, %v3824
    %v3826 = vpop.f32.mrb[0].mxu0
    %v3827 = vpop.f32.mrb[0].mxu0
    %v3828 = vadd.f32 0.0, %v3827
    %v3829 = vpop.f32.mrb[0].mxu0
    %3830 = vdwg.mxu0
    %v3831 = vpack.c.bf16 %v3828, %v3825
    %v3833 = vlaneseq
    %v3834 = vshrl.u32 %v3833, 7
    %v3835 = vsub.s32 0, %v3834
    %v3836 = vrot.slane %v3775, %v3835
    %v3854 = vunpack.c.l.b16 %v3758
    %v3855 = vunpack.c.l.b16 %v3759
    %v3856 = vunpack.c.l.b16 %v3760
    %v3857 = vunpack.c.l.b16 %v3761
    %v3858 = vunpack.c.l.b16 %v3762
    %v3859 = vunpack.c.l.b16 %v3763
    %v3860 = vunpack.c.l.b16 %v3764
    %v3861 = vunpack.c.l.b16 %v3765
    %v3862 = vunpack.c.l.b16 %v3766
    %v3863 = vunpack.c.l.b16 %v3767
    %v3864 = vunpack.c.l.b16 %v3768
    %v3865 = vunpack.c.l.b16 %v3769
    %v3866 = vunpack.c.l.b16 %v3770
    %v3867 = vunpack.c.l.b16 %v3771
    %v3868 = vunpack.c.l.b16 %v3772
    %v3869 = vunpack.c.l.b16 %v3773
    %v3870 = vpack.c.b16 %v3855, %v3854
    %v3871 = vpack.c.b16 %v3857, %v3856
    %v3872 = vpack.c.b16 %v3859, %v3858
    %v3873 = vpack.c.b16 %v3861, %v3860
    %v3874 = vpack.c.b16 %v3863, %v3862
    %v3875 = vpack.c.b16 %v3865, %v3864
    %v3876 = vpack.c.b16 %v3867, %v3866
    %v3877 = vpack.c.b16 %v3869, %v3868
    %3886 = vmatprep.subr.bf16.mxu0 0
    %3887 = vmatpush1.bf16.msra.mxu0 %v3870
    %3888 = vmatprep.subr.bf16.mxu0 0
    %3889 = vmatpush1.bf16.msra.mxu0 %v3871
    %3890 = vmatprep.subr.bf16.mxu0 0
    %3891 = vmatpush1.bf16.msra.mxu0 %v3872
    %3892 = vmatprep.subr.bf16.mxu0 0
    %3893 = vmatpush1.bf16.msra.mxu0 %v3873
    %3894 = vmatprep.subr.bf16.mxu0 0
    %3895 = vmatpush1.bf16.msra.mxu0 %v3874
    %3896 = vmatprep.subr.bf16.mxu0 0
    %3897 = vmatpush1.bf16.msra.mxu0 %v3875
    %3898 = vmatprep.subr.bf16.mxu0 0
    %3899 = vmatpush1.bf16.msra.mxu0 %v3876
    %3900 = vmatprep.subr.bf16.mxu0 0
    %3901 = vmatpush1.bf16.msra.mxu0 %v3877
    %3902 = vmatprep.subr.bf16.mxu0 0
    %3903 = vmatpush1.bf16.msra.mxu0 0
    %3904 = vmatprep.subr.bf16.mxu0 0
    %3905 = vmatpush1.bf16.msra.mxu0 0
    %3906 = vmatprep.subr.bf16.mxu0 0
    %3907 = vmatpush1.bf16.msra.mxu0 0
    %3908 = vmatprep.subr.bf16.mxu0 0
    %3909 = vmatpush1.bf16.msra.mxu0 0
    %3910 = vmatprep.subr.bf16.mxu0 0
    %3911 = vmatpush1.bf16.msra.mxu0 0
    %3912 = vmatprep.subr.bf16.mxu0 0
    %3913 = vmatpush1.bf16.msra.mxu0 0
    %3914 = vmatprep.subr.bf16.mxu0 0
    %3915 = vmatpush1.bf16.msra.mxu0 0
    %3916 = vmatprep.subr.bf16.mxu0 0
    %3917 = vmatpush1.bf16.msra.mxu0 0
    %3918 = vmatprep.mubr.bf16.mxu0 0
    %3919 = vmatmul.mubr.bf16.gmra.mrb[0].mxu0 %v3831
    %v3920 = vpop.f32.mrb[0].mxu0
    %v3921 = vadd.f32 %v3836, %v3920
    %v3922 = vpop.f32.mrb[0].mxu0
    %v3923 = vpop.f32.mrb[0].mxu0
    %v3924 = vadd.f32 %v3836, %v3923
    %v3925 = vpop.f32.mrb[0].mxu0
    %3926 = vdwg.mxu0
    %v3927 = vmax.f32 %v3921, 0.0
    %v3928 = vmax.f32 %v3924, 0.0
    %v3929 = vpack.c.bf16 %v3928, %v3927
    %s3930 = scalar_lea.vmem [#allocation11], 128
    %v3931 = vld [vmem:[%s3930] sm:$0xff]
    %v3932 = vld [vmem:[%s3930 + $0x8] sm:$0xff]
    %v3933 = vld [vmem:[%s3930 + $0x10] sm:$0xff]
    %v3934 = vld [vmem:[%s3930 + $0x18] sm:$0xff]
    %v3935 = vld [vmem:[%s3930 + $0x20] sm:$0xff]
    %v3936 = vld [vmem:[%s3930 + $0x28] sm:$0xff]
    %v3937 = vld [vmem:[%s3930 + $0x30] sm:$0xff]
    %v3938 = vld [vmem:[%s3930 + $0x38] sm:$0xff]
    %v3939 = vld [vmem:[%s3930 + $0x40] sm:$0xff]
    %v3940 = vld [vmem:[%s3930 + $0x48] sm:$0xff]
    %v3941 = vld [vmem:[%s3930 + $0x50] sm:$0xff]
    %v3942 = vld [vmem:[%s3930 + $0x58] sm:$0xff]
    %v3943 = vld [vmem:[%s3930 + $0x60] sm:$0xff]
    %v3944 = vld [vmem:[%s3930 + $0x68] sm:$0xff]
    %v3945 = vld [vmem:[%s3930 + $0x70] sm:$0xff]
    %v3946 = vld [vmem:[%s3930 + $0x78] sm:$0xff]
    %s3947 = scalar_lea.vmem [#allocation13], 2
    %v3948 = vld [vmem:[%s3947] sm:$0x3]
    %3949 = vmatprep.subr.bf16.mxu0 0
    %3950 = vmatpush1.bf16.msra.mxu0 %v3929
    %3951 = vmatprep.subr.bf16.mxu0 0
    %3952 = vmatpush1.bf16.msra.mxu0 0
    %3953 = vmatprep.subr.bf16.mxu0 0
    %3954 = vmatpush1.bf16.msra.mxu0 0
    %3955 = vmatprep.subr.bf16.mxu0 0
    %3956 = vmatpush1.bf16.msra.mxu0 0
    %3957 = vmatprep.subr.bf16.mxu0 0
    %3958 = vmatpush1.bf16.msra.mxu0 0
    %3959 = vmatprep.subr.bf16.mxu0 0
    %3960 = vmatpush1.bf16.msra.mxu0 0
    %3961 = vmatprep.subr.bf16.mxu0 0
    %3962 = vmatpush1.bf16.msra.mxu0 0
    %3963 = vmatprep.subr.bf16.mxu0 0
    %3964 = vmatpush1.bf16.msra.mxu0 0
    %3965 = vmatprep.subr.bf16.mxu0 0
    %3966 = vmatpush1.bf16.msra.mxu0 0
    %3967 = vmatprep.subr.bf16.mxu0 0
    %3968 = vmatpush1.bf16.msra.mxu0 0
    %3969 = vmatprep.subr.bf16.mxu0 0
    %3970 = vmatpush1.bf16.msra.mxu0 0
    %3971 = vmatprep.subr.bf16.mxu0 0
    %3972 = vmatpush1.bf16.msra.mxu0 0
    %3973 = vmatprep.subr.bf16.mxu0 0
    %3974 = vmatpush1.bf16.msra.mxu0 0
    %3975 = vmatprep.subr.bf16.mxu0 0
    %3976 = vmatpush1.bf16.msra.mxu0 0
    %3977 = vmatprep.subr.bf16.mxu0 0
    %3978 = vmatpush1.bf16.msra.mxu0 0
    %3979 = vmatprep.subr.bf16.mxu0 0
    %3980 = vmatpush1.bf16.msra.mxu0 0
    %3981 = vmatprep.mubr.bf16.mxu0 0
    %3982 = vmatmul.mubr.bf16.gmra.mrb[0].mxu0 %v3788
    %v3983 = vpop.f32.mrb[0].mxu0
    %v3984 = vadd.f32 0.0, %v3983
    %v3985 = vpop.f32.mrb[0].mxu0
    %v3986 = vpop.f32.mrb[0].mxu0
    %v3987 = vadd.f32 0.0, %v3986
    %v3988 = vpop.f32.mrb[0].mxu0
    %3989 = vdwg.mxu0
    %v3990 = vpack.c.bf16 %v3987, %v3984
    %v3992 = vlaneseq
    %v3993 = vshrl.u32 %v3992, 7
    %v3994 = vsub.s32 0, %v3993
    %v3995 = vrot.slane %v3948, %v3994
    %v3996 = vlaneseq
    %v3997 = vshrl.u32 %v3996, 7
    %v3998 = vsub.s32 1, %v3997
    %v3999 = vrot.slane %v3948, %v3998
    %v4018 = vunpack.c.l.b16 %v3931
    %v4019 = vunpack.c.h.b16 %v3931
    %v4020 = vunpack.c.l.b16 %v3932
    %v4021 = vunpack.c.h.b16 %v3932
    %v4022 = vunpack.c.l.b16 %v3933
    %v4023 = vunpack.c.h.b16 %v3933
    %v4024 = vunpack.c.l.b16 %v3934
    %v4025 = vunpack.c.h.b16 %v3934
    %v4026 = vunpack.c.l.b16 %v3935
    %v4027 = vunpack.c.h.b16 %v3935
    %v4028 = vunpack.c.l.b16 %v3936
    %v4029 = vunpack.c.h.b16 %v3936
    %v4030 = vunpack.c.l.b16 %v3937
    %v4031 = vunpack.c.h.b16 %v3937
    %v4032 = vunpack.c.l.b16 %v3938
    %v4033 = vunpack.c.h.b16 %v3938
    %v4034 = vunpack.c.l.b16 %v3939
    %v4035 = vunpack.c.h.b16 %v3939
    %v4036 = vunpack.c.l.b16 %v3940
    %v4037 = vunpack.c.h.b16 %v3940
    %v4038 = vunpack.c.l.b16 %v3941
    %v4039 = vunpack.c.h.b16 %v3941
    %v4040 = vunpack.c.l.b16 %v3942
    %v4041 = vunpack.c.h.b16 %v3942
    %v4042 = vunpack.c.l.b16 %v3943
    %v4043 = vunpack.c.h.b16 %v3943
    %v4044 = vunpack.c.l.b16 %v3944
    %v4045 = vunpack.c.h.b16 %v3944
    %v4046 = vunpack.c.l.b16 %v3945
    %v4047 = vunpack.c.h.b16 %v3945
    %v4048 = vunpack.c.l.b16 %v3946
    %v4049 = vunpack.c.h.b16 %v3946
    %v4050 = vpack.c.b16 %v4020, %v4018
    %v4051 = vpack.c.b16 %v4021, %v4019
    %v4052 = vpack.c.b16 %v4024, %v4022
    %v4053 = vpack.c.b16 %v4025, %v4023
    %v4054 = vpack.c.b16 %v4028, %v4026
    %v4055 = vpack.c.b16 %v4029, %v4027
    %v4056 = vpack.c.b16 %v4032, %v4030
    %v4057 = vpack.c.b16 %v4033, %v4031
    %v4058 = vpack.c.b16 %v4036, %v4034
    %v4059 = vpack.c.b16 %v4037, %v4035
    %v4060 = vpack.c.b16 %v4040, %v4038
    %v4061 = vpack.c.b16 %v4041, %v4039
    %v4062 = vpack.c.b16 %v4044, %v4042
    %v4063 = vpack.c.b16 %v4045, %v4043
    %v4064 = vpack.c.b16 %v4048, %v4046
    %v4065 = vpack.c.b16 %v4049, %v4047
    %4082 = vmatprep.subr.bf16.mxu0 %v4051
    %4083 = vmatpush1.bf16.msra.mxu0 %v4050
    %4084 = vmatprep.subr.bf16.mxu0 %v4053
    %4085 = vmatpush1.bf16.msra.mxu0 %v4052
    %4086 = vmatprep.subr.bf16.mxu0 %v4055
    %4087 = vmatpush1.bf16.msra.mxu0 %v4054
    %4088 = vmatprep.subr.bf16.mxu0 %v4057
    %4089 = vmatpush1.bf16.msra.mxu0 %v4056
    %4090 = vmatprep.subr.bf16.mxu0 %v4059
    %4091 = vmatpush1.bf16.msra.mxu0 %v4058
    %4092 = vmatprep.subr.bf16.mxu0 %v4061
    %4093 = vmatpush1.bf16.msra.mxu0 %v4060
    %4094 = vmatprep.subr.bf16.mxu0 %v4063
    %4095 = vmatpush1.bf16.msra.mxu0 %v4062
    %4096 = vmatprep.subr.bf16.mxu0 %v4065
    %4097 = vmatpush1.bf16.msra.mxu0 %v4064
    %4098 = vmatprep.subr.bf16.mxu0 0
    %4099 = vmatpush1.bf16.msra.mxu0 0
    %4100 = vmatprep.subr.bf16.mxu0 0
    %4101 = vmatpush1.bf16.msra.mxu0 0
    %4102 = vmatprep.subr.bf16.mxu0 0
    %4103 = vmatpush1.bf16.msra.mxu0 0
    %4104 = vmatprep.subr.bf16.mxu0 0
    %4105 = vmatpush1.bf16.msra.mxu0 0
    %4106 = vmatprep.subr.bf16.mxu0 0
    %4107 = vmatpush1.bf16.msra.mxu0 0
    %4108 = vmatprep.subr.bf16.mxu0 0
    %4109 = vmatpush1.bf16.msra.mxu0 0
    %4110 = vmatprep.subr.bf16.mxu0 0
    %4111 = vmatpush1.bf16.msra.mxu0 0
    %4112 = vmatprep.subr.bf16.mxu0 0
    %4113 = vmatpush1.bf16.msra.mxu0 0
    %4114 = vmatprep.mubr.bf16.mxu0 0
    %4115 = vmatmul.mubr.bf16.gmra.mrb[0].mxu0 %v3990
    %v4116 = vpop.f32.mrb[0].mxu0
    %v4117 = vadd.f32 %v3995, %v4116
    %v4118 = vpop.f32.mrb[0].mxu0
    %v4119 = vadd.f32 %v3999, %v4118
    %v4120 = vpop.f32.mrb[0].mxu0
    %v4121 = vadd.f32 %v3995, %v4120
    %v4122 = vpop.f32.mrb[0].mxu0
    %v4123 = vadd.f32 %v3999, %v4122
    %4124 = vdwg.mxu0
    %v4125 = vmax.f32 %v4117, 0.0
    %v4126 = vmax.f32 %v4119, 0.0
    %v4127 = vmax.f32 %v4121, 0.0
    %v4128 = vmax.f32 %v4123, 0.0
    %v4129 = vpack.c.bf16 %v4127, %v4125
    %v4130 = vpack.c.bf16 %v4128, %v4126
    %s4131 = scalar_lea.vmem [#allocation14], 384
    %v4132 = vld [vmem:[%s4131] sm:$0xff]
    %v4133 = vld [vmem:[%s4131 + $0x8] sm:$0xf]
    %v4134 = vld [vmem:[%s4131 + $0xc] sm:$0xff]
    %v4135 = vld [vmem:[%s4131 + $0x14] sm:$0xf]
    %v4136 = vld [vmem:[%s4131 + $0x18] sm:$0xff]
    %v4137 = vld [vmem:[%s4131 + $0x20] sm:$0xf]
    %v4138 = vld [vmem:[%s4131 + $0x24] sm:$0xff]
    %v4139 = vld [vmem:[%s4131 + $0x2c] sm:$0xf]
    %v4140 = vld [vmem:[%s4131 + $0x30] sm:$0xff]
    %v4141 = vld [vmem:[%s4131 + $0x38] sm:$0xf]
    %v4142 = vld [vmem:[%s4131 + $0x3c] sm:$0xff]
    %v4143 = vld [vmem:[%s4131 + $0x44] sm:$0xf]
    %v4144 = vld [vmem:[%s4131 + $0x48] sm:$0xff]
    %v4145 = vld [vmem:[%s4131 + $0x50] sm:$0xf]
    %v4146 = vld [vmem:[%s4131 + $0x54] sm:$0xff]
    %v4147 = vld [vmem:[%s4131 + $0x5c] sm:$0xf]
    %v4148 = vld [vmem:[%s4131 + $0x60] sm:$0xff]
    %v4149 = vld [vmem:[%s4131 + $0x68] sm:$0xf]
    %v4150 = vld [vmem:[%s4131 + $0x6c] sm:$0xff]
    %v4151 = vld [vmem:[%s4131 + $0x74] sm:$0xf]
    %v4152 = vld [vmem:[%s4131 + $0x78] sm:$0xff]
    %v4153 = vld [vmem:[%s4131 + $0x80] sm:$0xf]
    %v4154 = vld [vmem:[%s4131 + $0x84] sm:$0xff]
    %v4155 = vld [vmem:[%s4131 + $0x8c] sm:$0xf]
    %v4156 = vld [vmem:[%s4131 + $0x90] sm:$0xff]
    %v4157 = vld [vmem:[%s4131 + $0x98] sm:$0xf]
    %v4158 = vld [vmem:[%s4131 + $0x9c] sm:$0xff]
    %v4159 = vld [vmem:[%s4131 + $0xa4] sm:$0xf]
    %v4160 = vld [vmem:[%s4131 + $0xa8] sm:$0xff]
    %v4161 = vld [vmem:[%s4131 + $0xb0] sm:$0xf]
    %v4162 = vld [vmem:[%s4131 + $0xb4] sm:$0xff]
    %v4163 = vld [vmem:[%s4131 + $0xbc] sm:$0xf]
    %v4164 = vld [vmem:[%s4131 + $0xc0] sm:$0xff]
    %v4165 = vld [vmem:[%s4131 + $0xc8] sm:$0xf]
    %v4166 = vld [vmem:[%s4131 + $0xcc] sm:$0xff]
    %v4167 = vld [vmem:[%s4131 + $0xd4] sm:$0xf]
    %v4168 = vld [vmem:[%s4131 + $0xd8] sm:$0xff]
    %v4169 = vld [vmem:[%s4131 + $0xe0] sm:$0xf]
    %v4170 = vld [vmem:[%s4131 + $0xe4] sm:$0xff]
    %v4171 = vld [vmem:[%s4131 + $0xec] sm:$0xf]
    %v4172 = vld [vmem:[%s4131 + $0xf0] sm:$0xff]
    %v4173 = vld [vmem:[%s4131 + $0xf8] sm:$0xf]
    %v4174 = vld [vmem:[%s4131 + $0xfc] sm:$0xff]
    %v4175 = vld [vmem:[%s4131 + $0x104] sm:$0xf]
    %v4176 = vld [vmem:[%s4131 + $0x108] sm:$0xff]
    %v4177 = vld [vmem:[%s4131 + $0x110] sm:$0xf]
    %v4178 = vld [vmem:[%s4131 + $0x114] sm:$0xff]
    %v4179 = vld [vmem:[%s4131 + $0x11c] sm:$0xf]
    %v4180 = vld [vmem:[%s4131 + $0x120] sm:$0xff]
    %v4181 = vld [vmem:[%s4131 + $0x128] sm:$0xf]
    %v4182 = vld [vmem:[%s4131 + $0x12c] sm:$0xff]
    %v4183 = vld [vmem:[%s4131 + $0x134] sm:$0xf]
    %v4184 = vld [vmem:[%s4131 + $0x138] sm:$0xff]
    %v4185 = vld [vmem:[%s4131 + $0x140] sm:$0xf]
    %v4186 = vld [vmem:[%s4131 + $0x144] sm:$0xff]
    %v4187 = vld [vmem:[%s4131 + $0x14c] sm:$0xf]
    %v4188 = vld [vmem:[%s4131 + $0x150] sm:$0xff]
    %v4189 = vld [vmem:[%s4131 + $0x158] sm:$0xf]
    %v4190 = vld [vmem:[%s4131 + $0x15c] sm:$0xff]
    %v4191 = vld [vmem:[%s4131 + $0x164] sm:$0xf]
    %v4192 = vld [vmem:[%s4131 + $0x168] sm:$0xff]
    %v4193 = vld [vmem:[%s4131 + $0x170] sm:$0xf]
    %v4194 = vld [vmem:[%s4131 + $0x174] sm:$0xff]
    %v4195 = vld [vmem:[%s4131 + $0x17c] sm:$0xf]
    %s4196 = scalar_lea.vmem [#allocation16], 3
    %v4197 = vld [vmem:[%s4196] sm:$0x7]
    %4198 = vmatprep.subr.bf16.mxu0 %v4130
    %4199 = vmatpush1.bf16.msra.mxu0 %v4129
    %4200 = vmatprep.subr.bf16.mxu0 0
    %4201 = vmatpush1.bf16.msra.mxu0 0
    %4202 = vmatprep.subr.bf16.mxu0 0
    %4203 = vmatpush1.bf16.msra.mxu0 0
    %4204 = vmatprep.subr.bf16.mxu0 0
    %4205 = vmatpush1.bf16.msra.mxu0 0
    %4206 = vmatprep.subr.bf16.mxu0 0
    %4207 = vmatpush1.bf16.msra.mxu0 0
    %4208 = vmatprep.subr.bf16.mxu0 0
    %4209 = vmatpush1.bf16.msra.mxu0 0
    %4210 = vmatprep.subr.bf16.mxu0 0
    %4211 = vmatpush1.bf16.msra.mxu0 0
    %4212 = vmatprep.subr.bf16.mxu0 0
    %4213 = vmatpush1.bf16.msra.mxu0 0
    %4214 = vmatprep.subr.bf16.mxu0 0
    %4215 = vmatpush1.bf16.msra.mxu0 0
    %4216 = vmatprep.subr.bf16.mxu0 0
    %4217 = vmatpush1.bf16.msra.mxu0 0
    %4218 = vmatprep.subr.bf16.mxu0 0
    %4219 = vmatpush1.bf16.msra.mxu0 0
    %4220 = vmatprep.subr.bf16.mxu0 0
    %4221 = vmatpush1.bf16.msra.mxu0 0
    %4222 = vmatprep.subr.bf16.mxu0 0
    %4223 = vmatpush1.bf16.msra.mxu0 0
    %4224 = vmatprep.subr.bf16.mxu0 0
    %4225 = vmatpush1.bf16.msra.mxu0 0
    %4226 = vmatprep.subr.bf16.mxu0 0
    %4227 = vmatpush1.bf16.msra.mxu0 0
    %4228 = vmatprep.subr.bf16.mxu0 0
    %4229 = vmatpush1.bf16.msra.mxu0 0
    %4230 = vmatprep.mubr.bf16.mxu0 0
    %4231 = vmatmul.mubr.bf16.gmra.mrb[0].mxu0 %v3788
    %v4232 = vpop.f32.mrb[0].mxu0
    %v4233 = vadd.f32 0.0, %v4232
    %v4234 = vpop.f32.mrb[0].mxu0
    %v4235 = vadd.f32 0.0, %v4234
    %v4236 = vpop.f32.mrb[0].mxu0
    %v4237 = vadd.f32 0.0, %v4236
    %v4238 = vpop.f32.mrb[0].mxu0
    %v4239 = vadd.f32 0.0, %v4238
    %4240 = vdwg.mxu0
    %v4241 = vpack.c.bf16 %v4237, %v4233
    %v4242 = vpack.c.bf16 %v4239, %v4235
    %v4244 = vlaneseq
    %v4245 = vshrl.u32 %v4244, 7
    %v4246 = vsub.s32 0, %v4245
    %v4247 = vrot.slane %v4197, %v4246
    %v4248 = vlaneseq
    %v4249 = vshrl.u32 %v4248, 7
    %v4250 = vsub.s32 1, %v4249
    %v4251 = vrot.slane %v4197, %v4250
    %v4252 = vlaneseq
    %v4253 = vshrl.u32 %v4252, 7
    %v4254 = vsub.s32 2, %v4253
    %v4255 = vrot.slane %v4197, %v4254
    %v4323 = vunpack.c.l.b16 %v4132
    %v4324 = vunpack.c.h.b16 %v4132
    %v4325 = vunpack.c.l.b16 %v4133
    %v4326 = vunpack.c.l.b16 %v4134
    %v4327 = vunpack.c.h.b16 %v4134
    %v4328 = vunpack.c.l.b16 %v4135
    %v4329 = vunpack.c.l.b16 %v4136
    %v4330 = vunpack.c.h.b16 %v4136
    %v4331 = vunpack.c.l.b16 %v4137
    %v4332 = vunpack.c.l.b16 %v4138
    %v4333 = vunpack.c.h.b16 %v4138
    %v4334 = vunpack.c.l.b16 %v4139
    %v4335 = vunpack.c.l.b16 %v4140
    %v4336 = vunpack.c.h.b16 %v4140
    %v4337 = vunpack.c.l.b16 %v4141
    %v4338 = vunpack.c.l.b16 %v4142
    %v4339 = vunpack.c.h.b16 %v4142
    %v4340 = vunpack.c.l.b16 %v4143
    %v4341 = vunpack.c.l.b16 %v4144
    %v4342 = vunpack.c.h.b16 %v4144
    %v4343 = vunpack.c.l.b16 %v4145
    %v4344 = vunpack.c.l.b16 %v4146
    %v4345 = vunpack.c.h.b16 %v4146
    %v4346 = vunpack.c.l.b16 %v4147
    %v4347 = vunpack.c.l.b16 %v4148
    %v4348 = vunpack.c.h.b16 %v4148
    %v4349 = vunpack.c.l.b16 %v4149
    %v4350 = vunpack.c.l.b16 %v4150
    %v4351 = vunpack.c.h.b16 %v4150
    %v4352 = vunpack.c.l.b16 %v4151
    %v4353 = vunpack.c.l.b16 %v4152
    %v4354 = vunpack.c.h.b16 %v4152
    %v4355 = vunpack.c.l.b16 %v4153
    %v4356 = vunpack.c.l.b16 %v4154
    %v4357 = vunpack.c.h.b16 %v4154
    %v4358 = vunpack.c.l.b16 %v4155
    %v4359 = vunpack.c.l.b16 %v4156
    %v4360 = vunpack.c.h.b16 %v4156
    %v4361 = vunpack.c.l.b16 %v4157
    %v4362 = vunpack.c.l.b16 %v4158
    %v4363 = vunpack.c.h.b16 %v4158
    %v4364 = vunpack.c.l.b16 %v4159
    %v4365 = vunpack.c.l.b16 %v4160
    %v4366 = vunpack.c.h.b16 %v4160
    %v4367 = vunpack.c.l.b16 %v4161
    %v4368 = vunpack.c.l.b16 %v4162
    %v4369 = vunpack.c.h.b16 %v4162
    %v4370 = vunpack.c.l.b16 %v4163
    %v4371 = vunpack.c.l.b16 %v4164
    %v4372 = vunpack.c.h.b16 %v4164
    %v4373 = vunpack.c.l.b16 %v4165
    %v4374 = vunpack.c.l.b16 %v4166
    %v4375 = vunpack.c.h.b16 %v4166
    %v4376 = vunpack.c.l.b16 %v4167
    %v4377 = vunpack.c.l.b16 %v4168
    %v4378 = vunpack.c.h.b16 %v4168
    %v4379 = vunpack.c.l.b16 %v4169
    %v4380 = vunpack.c.l.b16 %v4170
    %v4381 = vunpack.c.h.b16 %v4170
    %v4382 = vunpack.c.l.b16 %v4171
    %v4383 = vunpack.c.l.b16 %v4172
    %v4384 = vunpack.c.h.b16 %v4172
    %v4385 = vunpack.c.l.b16 %v4173
    %v4386 = vunpack.c.l.b16 %v4174
    %v4387 = vunpack.c.h.b16 %v4174
    %v4388 = vunpack.c.l.b16 %v4175
    %v4389 = vunpack.c.l.b16 %v4176
    %v4390 = vunpack.c.h.b16 %v4176
    %v4391 = vunpack.c.l.b16 %v4177
    %v4392 = vunpack.c.l.b16 %v4178
    %v4393 = vunpack.c.h.b16 %v4178
    %v4394 = vunpack.c.l.b16 %v4179
    %v4395 = vunpack.c.l.b16 %v4180
    %v4396 = vunpack.c.h.b16 %v4180
    %v4397 = vunpack.c.l.b16 %v4181
    %v4398 = vunpack.c.l.b16 %v4182
    %v4399 = vunpack.c.h.b16 %v4182
    %v4400 = vunpack.c.l.b16 %v4183
    %v4401 = vunpack.c.l.b16 %v4184
    %v4402 = vunpack.c.h.b16 %v4184
    %v4403 = vunpack.c.l.b16 %v4185
    %v4404 = vunpack.c.l.b16 %v4186
    %v4405 = vunpack.c.h.b16 %v4186
    %v4406 = vunpack.c.l.b16 %v4187
    %v4407 = vunpack.c.l.b16 %v4188
    %v4408 = vunpack.c.h.b16 %v4188
    %v4409 = vunpack.c.l.b16 %v4189
    %v4410 = vunpack.c.l.b16 %v4190
    %v4411 = vunpack.c.h.b16 %v4190
    %v4412 = vunpack.c.l.b16 %v4191
    %v4413 = vunpack.c.l.b16 %v4192
    %v4414 = vunpack.c.h.b16 %v4192
    %v4415 = vunpack.c.l.b16 %v4193
    %v4416 = vunpack.c.l.b16 %v4194
    %v4417 = vunpack.c.h.b16 %v4194
    %v4418 = vunpack.c.l.b16 %v4195
    %v4419 = vpack.c.b16 %v4326, %v4323
    %v4420 = vpack.c.b16 %v4327, %v4324
    %v4421 = vpack.c.b16 %v4328, %v4325
    %v4422 = vpack.c.b16 %v4332, %v4329
    %v4423 = vpack.c.b16 %v4333, %v4330
    %v4424 = vpack.c.b16 %v4334, %v4331
    %v4425 = vpack.c.b16 %v4338, %v4335
    %v4426 = vpack.c.b16 %v4339, %v4336
    %v4427 = vpack.c.b16 %v4340, %v4337
    %v4428 = vpack.c.b16 %v4344, %v4341
    %v4429 = vpack.c.b16 %v4345, %v4342
    %v4430 = vpack.c.b16 %v4346, %v4343
    %v4431 = vpack.c.b16 %v4350, %v4347
    %v4432 = vpack.c.b16 %v4351, %v4348
    %v4433 = vpack.c.b16 %v4352, %v4349
    %v4434 = vpack.c.b16 %v4356, %v4353
    %v4435 = vpack.c.b16 %v4357, %v4354
    %v4436 = vpack.c.b16 %v4358, %v4355
    %v4437 = vpack.c.b16 %v4362, %v4359
    %v4438 = vpack.c.b16 %v4363, %v4360
    %v4439 = vpack.c.b16 %v4364, %v4361
    %v4440 = vpack.c.b16 %v4368, %v4365
    %v4441 = vpack.c.b16 %v4369, %v4366
    %v4442 = vpack.c.b16 %v4370, %v4367
    %v4443 = vpack.c.b16 %v4374, %v4371
    %v4444 = vpack.c.b16 %v4375, %v4372
    %v4445 = vpack.c.b16 %v4376, %v4373
    %v4446 = vpack.c.b16 %v4380, %v4377
    %v4447 = vpack.c.b16 %v4381, %v4378
    %v4448 = vpack.c.b16 %v4382, %v4379
    %v4449 = vpack.c.b16 %v4386, %v4383
    %v4450 = vpack.c.b16 %v4387, %v4384
    %v4451 = vpack.c.b16 %v4388, %v4385
    %v4452 = vpack.c.b16 %v4392, %v4389
    %v4453 = vpack.c.b16 %v4393, %v4390
    %v4454 = vpack.c.b16 %v4394, %v4391
    %v4455 = vpack.c.b16 %v4398, %v4395
    %v4456 = vpack.c.b16 %v4399, %v4396
    %v4457 = vpack.c.b16 %v4400, %v4397
    %v4458 = vpack.c.b16 %v4404, %v4401
    %v4459 = vpack.c.b16 %v4405, %v4402
    %v4460 = vpack.c.b16 %v4406, %v4403
    %v4461 = vpack.c.b16 %v4410, %v4407
    %v4462 = vpack.c.b16 %v4411, %v4408
    %v4463 = vpack.c.b16 %v4412, %v4409
    %v4464 = vpack.c.b16 %v4416, %v4413
    %v4465 = vpack.c.b16 %v4417, %v4414
    %v4466 = vpack.c.b16 %v4418, %v4415
    %4515 = vmatprep.subr.bf16.mxu0 %v4420
    %4516 = vmatpush1.bf16.msra.mxu0 %v4419
    %4517 = vmatprep.subr.bf16.mxu0 %v4423
    %4518 = vmatpush1.bf16.msra.mxu0 %v4422
    %4519 = vmatprep.subr.bf16.mxu0 %v4426
    %4520 = vmatpush1.bf16.msra.mxu0 %v4425
    %4521 = vmatprep.subr.bf16.mxu0 %v4429
    %4522 = vmatpush1.bf16.msra.mxu0 %v4428
    %4523 = vmatprep.subr.bf16.mxu0 %v4432
    %4524 = vmatpush1.bf16.msra.mxu0 %v4431
    %4525 = vmatprep.subr.bf16.mxu0 %v4435
    %4526 = vmatpush1.bf16.msra.mxu0 %v4434
    %4527 = vmatprep.subr.bf16.mxu0 %v4438
    %4528 = vmatpush1.bf16.msra.mxu0 %v4437
    %4529 = vmatprep.subr.bf16.mxu0 %v4441
    %4530 = vmatpush1.bf16.msra.mxu0 %v4440
    %4531 = vmatprep.subr.bf16.mxu0 %v4444
    %4532 = vmatpush1.bf16.msra.mxu0 %v4443
    %4533 = vmatprep.subr.bf16.mxu0 %v4447
    %4534 = vmatpush1.bf16.msra.mxu0 %v4446
    %4535 = vmatprep.subr.bf16.mxu0 %v4450
    %4536 = vmatpush1.bf16.msra.mxu0 %v4449
    %4537 = vmatprep.subr.bf16.mxu0 %v4453
    %4538 = vmatpush1.bf16.msra.mxu0 %v4452
    %4539 = vmatprep.subr.bf16.mxu0 %v4456
    %4540 = vmatpush1.bf16.msra.mxu0 %v4455
    %4541 = vmatprep.subr.bf16.mxu0 %v4459
    %4542 = vmatpush1.bf16.msra.mxu0 %v4458
    %4543 = vmatprep.subr.bf16.mxu0 %v4462
    %4544 = vmatpush1.bf16.msra.mxu0 %v4461
    %4545 = vmatprep.subr.bf16.mxu0 %v4465
    %4546 = vmatpush1.bf16.msra.mxu0 %v4464
    %4547 = vmatprep.mubr.bf16.mxu0 %v4242
    %4548 = vmatmul.mubr.bf16.gmra.mrb[0].mxu0 %v4241
    %v4549 = vpop.f32.mrb[0].mxu0
    %v4550 = vadd.f32 %v4247, %v4549
    %v4551 = vpop.f32.mrb[0].mxu0
    %v4552 = vadd.f32 %v4251, %v4551
    %v4553 = vpop.f32.mrb[0].mxu0
    %v4554 = vadd.f32 %v4247, %v4553
    %v4555 = vpop.f32.mrb[0].mxu0
    %v4556 = vadd.f32 %v4251, %v4555
    %4557 = vdwg.mxu0
    %4558 = vmatprep.subr.bf16.mxu0 0
    %4559 = vmatpush1.bf16.msra.mxu0 %v4421
    %4560 = vmatprep.subr.bf16.mxu0 0
    %4561 = vmatpush1.bf16.msra.mxu0 %v4424
    %4562 = vmatprep.subr.bf16.mxu0 0
    %4563 = vmatpush1.bf16.msra.mxu0 %v4427
    %4564 = vmatprep.subr.bf16.mxu0 0
    %4565 = vmatpush1.bf16.msra.mxu0 %v4430
    %4566 = vmatprep.subr.bf16.mxu0 0
    %4567 = vmatpush1.bf16.msra.mxu0 %v4433
    %4568 = vmatprep.subr.bf16.mxu0 0
    %4569 = vmatpush1.bf16.msra.mxu0 %v4436
    %4570 = vmatprep.subr.bf16.mxu0 0
    %4571 = vmatpush1.bf16.msra.mxu0 %v4439
    %4572 = vmatprep.subr.bf16.mxu0 0
    %4573 = vmatpush1.bf16.msra.mxu0 %v4442
    %4574 = vmatprep.subr.bf16.mxu0 0
    %4575 = vmatpush1.bf16.msra.mxu0 %v4445
    %4576 = vmatprep.subr.bf16.mxu0 0
    %4577 = vmatpush1.bf16.msra.mxu0 %v4448
    %4578 = vmatprep.subr.bf16.mxu0 0
    %4579 = vmatpush1.bf16.msra.mxu0 %v4451
    %4580 = vmatprep.subr.bf16.mxu0 0
    %4581 = vmatpush1.bf16.msra.mxu0 %v4454
    %4582 = vmatprep.subr.bf16.mxu0 0
    %4583 = vmatpush1.bf16.msra.mxu0 %v4457
    %4584 = vmatprep.subr.bf16.mxu0 0
    %4585 = vmatpush1.bf16.msra.mxu0 %v4460
    %4586 = vmatprep.subr.bf16.mxu0 0
    %4587 = vmatpush1.bf16.msra.mxu0 %v4463
    %4588 = vmatprep.subr.bf16.mxu0 0
    %4589 = vmatpush1.bf16.msra.mxu0 %v4466
    %4590 = vmatprep.mubr.bf16.mxu0 %v4242
    %4591 = vmatmul.mubr.bf16.gmra.mrb[0].mxu0 %v4241
    %v4592 = vpop.f32.mrb[0].mxu0
    %v4593 = vadd.f32 %v4255, %v4592
    %v4594 = vpop.f32.mrb[0].mxu0
    %v4595 = vpop.f32.mrb[0].mxu0
    %v4596 = vadd.f32 %v4255, %v4595
    %v4597 = vpop.f32.mrb[0].mxu0
    %4598 = vdwg.mxu0
    %v4599 = vmax.f32 %v4550, 0.0
    %v4600 = vmax.f32 %v4552, 0.0
    %v4601 = vmax.f32 %v4593, 0.0
    %v4602 = vmax.f32 %v4554, 0.0
    %v4603 = vmax.f32 %v4556, 0.0
    %v4604 = vmax.f32 %v4596, 0.0
    %vm4605 = vcmp.gt.f32.partialorder %v3755, 0.5
    %vm4606 = vcmp.gt.f32.partialorder %v3756, 0.5
    %v4607 = vsel %vm4605, 1, 0
    %v4608 = vsel %vm4606, 1, 0
    %4609 = vset.pattern.permute.xlu0 0
    %4610 = vperm.xlu0 %4609, %v4607
    %v4611 = vpop.permute.xlu0 %4610
    %4612 = vset.pattern.permute.xlu0 0
    %4613 = vperm.xlu0 %4612, %v4608
    %v4614 = vpop.permute.xlu0 %4613
    %vm4615 = vcmp.eq.s32.totalorder %v4611, 1
    %vm4616 = vcmp.eq.s32.totalorder %v4614, 1
    %v4617 = vsel %vm4615, %v4599, 0.0
    %v4618 = vsel %vm4615, %v4600, 0.0
    %v4619 = vsel %vm4615, %v4601, 0.0
    %v4620 = vsel %vm4616, %v4602, 0.0
    %v4621 = vsel %vm4616, %v4603, 0.0
    %v4622 = vsel %vm4616, %v4604, 0.0
    %v4623 = vmax.f32 %v4617, %v4620
    %v4624 = vrot.slane %v4623, 4
    %v4625 = vmax.f32 %v4623, %v4624
    %v4626 = vrot.slane %v4625, 2
    %v4627 = vmax.f32 %v4625, %v4626
    %v4628 = vrot.slane %v4627, 1
    %v4629 = vmax.f32 %v4627, %v4628
    %v4630 = vmax.f32 %v4618, %v4621
    %v4631 = vrot.slane %v4630, 4
    %v4632 = vmax.f32 %v4630, %v4631
    %v4633 = vrot.slane %v4632, 2
    %v4634 = vmax.f32 %v4632, %v4633
    %v4635 = vrot.slane %v4634, 1
    %v4636 = vmax.f32 %v4634, %v4635
    %v4637 = vmax.f32 %v4619, %v4622
    %v4638 = vrot.slane %v4637, 4
    %v4639 = vmax.f32 %v4637, %v4638
    %v4640 = vrot.slane %v4639, 2
    %v4641 = vmax.f32 %v4639, %v4640
    %v4642 = vrot.slane %v4641, 1
    %v4643 = vmax.f32 %v4641, %v4642
    %4644 = vset.pattern.permute.xlu0 1
    %4645 = vperm.xlu0 %4644, %v4607
    %v4646 = vpop.permute.xlu0 %4645
    %4647 = vset.pattern.permute.xlu0 1
    %4648 = vperm.xlu0 %4647, %v4608
    %v4649 = vpop.permute.xlu0 %4648
    %vm4650 = vcmp.eq.s32.totalorder %v4646, 1
    %vm4651 = vcmp.eq.s32.totalorder %v4649, 1
    %v4652 = vsel %vm4650, %v4599, 0.0
    %v4653 = vsel %vm4650, %v4600, 0.0
    %v4654 = vsel %vm4650, %v4601, 0.0
    %v4655 = vsel %vm4651, %v4602, 0.0
    %v4656 = vsel %vm4651, %v4603, 0.0
    %v4657 = vsel %vm4651, %v4604, 0.0
    %v4658 = vmax.f32 %v4652, %v4655
    %v4659 = vrot.slane %v4658, 4
    %v4660 = vmax.f32 %v4658, %v4659
    %v4661 = vrot.slane %v4660, 2
    %v4662 = vmax.f32 %v4660, %v4661
    %v4663 = vrot.slane %v4662, 1
    %v4664 = vmax.f32 %v4662, %v4663
    %v4665 = vmax.f32 %v4653, %v4656
    %v4666 = vrot.slane %v4665, 4
    %v4667 = vmax.f32 %v4665, %v4666
    %v4668 = vrot.slane %v4667, 2
    %v4669 = vmax.f32 %v4667, %v4668
    %v4670 = vrot.slane %v4669, 1
    %v4671 = vmax.f32 %v4669, %v4670
    %v4672 = vmax.f32 %v4654, %v4657
    %v4673 = vrot.slane %v4672, 4
    %v4674 = vmax.f32 %v4672, %v4673
    %v4675 = vrot.slane %v4674, 2
    %v4676 = vmax.f32 %v4674, %v4675
    %v4677 = vrot.slane %v4676, 1
    %v4678 = vmax.f32 %v4676, %v4677
    %4679 = vset.pattern.permute.xlu0 2
    %4680 = vperm.xlu0 %4679, %v4607
    %v4681 = vpop.permute.xlu0 %4680
    %4682 = vset.pattern.permute.xlu0 2
    %4683 = vperm.xlu0 %4682, %v4608
    %v4684 = vpop.permute.xlu0 %4683
    %vm4685 = vcmp.eq.s32.totalorder %v4681, 1
    %vm4686 = vcmp.eq.s32.totalorder %v4684, 1
    %v4687 = vsel %vm4685, %v4599, 0.0
    %v4688 = vsel %vm4685, %v4600, 0.0
    %v4689 = vsel %vm4685, %v4601, 0.0
    %v4690 = vsel %vm4686, %v4602, 0.0
    %v4691 = vsel %vm4686, %v4603, 0.0
    %v4692 = vsel %vm4686, %v4604, 0.0
    %v4693 = vmax.f32 %v4687, %v4690
    %v4694 = vrot.slane %v4693, 4
    %v4695 = vmax.f32 %v4693, %v4694
    %v4696 = vrot.slane %v4695, 2
    %v4697 = vmax.f32 %v4695, %v4696
    %v4698 = vrot.slane %v4697, 1
    %v4699 = vmax.f32 %v4697, %v4698
    %v4700 = vmax.f32 %v4688, %v4691
    %v4701 = vrot.slane %v4700, 4
    %v4702 = vmax.f32 %v4700, %v4701
    %v4703 = vrot.slane %v4702, 2
    %v4704 = vmax.f32 %v4702, %v4703
    %v4705 = vrot.slane %v4704, 1
    %v4706 = vmax.f32 %v4704, %v4705
    %v4707 = vmax.f32 %v4689, %v4692
    %v4708 = vrot.slane %v4707, 4
    %v4709 = vmax.f32 %v4707, %v4708
    %v4710 = vrot.slane %v4709, 2
    %v4711 = vmax.f32 %v4709, %v4710
    %v4712 = vrot.slane %v4711, 1
    %v4713 = vmax.f32 %v4711, %v4712
    %4714 = vset.pattern.permute.xlu0 3
    %4715 = vperm.xlu0 %4714, %v4607
    %v4716 = vpop.permute.xlu0 %4715
    %4717 = vset.pattern.permute.xlu0 3
    %4718 = vperm.xlu0 %4717, %v4608
    %v4719 = vpop.permute.xlu0 %4718
    %vm4720 = vcmp.eq.s32.totalorder %v4716, 1
    %vm4721 = vcmp.eq.s32.totalorder %v4719, 1
    %v4722 = vsel %vm4720, %v4599, 0.0
    %v4723 = vsel %vm4720, %v4600, 0.0
    %v4724 = vsel %vm4720, %v4601, 0.0
    %v4725 = vsel %vm4721, %v4602, 0.0
    %v4726 = vsel %vm4721, %v4603, 0.0
    %v4727 = vsel %vm4721, %v4604, 0.0
    %v4728 = vmax.f32 %v4722, %v4725
    %v4729 = vrot.slane %v4728, 4
    %v4730 = vmax.f32 %v4728, %v4729
    %v4731 = vrot.slane %v4730, 2
    %v4732 = vmax.f32 %v4730, %v4731
    %v4733 = vrot.slane %v4732, 1
    %v4734 = vmax.f32 %v4732, %v4733
    %v4735 = vmax.f32 %v4723, %v4726
    %v4736 = vrot.slane %v4735, 4
    %v4737 = vmax.f32 %v4735, %v4736
    %v4738 = vrot.slane %v4737, 2
    %v4739 = vmax.f32 %v4737, %v4738
    %v4740 = vrot.slane %v4739, 1
    %v4741 = vmax.f32 %v4739, %v4740
    %v4742 = vmax.f32 %v4724, %v4727
    %v4743 = vrot.slane %v4742, 4
    %v4744 = vmax.f32 %v4742, %v4743
    %v4745 = vrot.slane %v4744, 2
    %v4746 = vmax.f32 %v4744, %v4745
    %v4747 = vrot.slane %v4746, 1
    %v4748 = vmax.f32 %v4746, %v4747
    %4749 = vset.pattern.permute.xlu0 4
    %4750 = vperm.xlu0 %4749, %v4607
    %v4751 = vpop.permute.xlu0 %4750
    %4752 = vset.pattern.permute.xlu0 4
    %4753 = vperm.xlu0 %4752, %v4608
    %v4754 = vpop.permute.xlu0 %4753
    %vm4755 = vcmp.eq.s32.totalorder %v4751, 1
    %vm4756 = vcmp.eq.s32.totalorder %v4754, 1
    %v4757 = vsel %vm4755, %v4599, 0.0
    %v4758 = vsel %vm4755, %v4600, 0.0
    %v4759 = vsel %vm4755, %v4601, 0.0
    %v4760 = vsel %vm4756, %v4602, 0.0
    %v4761 = vsel %vm4756, %v4603, 0.0
    %v4762 = vsel %vm4756, %v4604, 0.0
    %v4763 = vmax.f32 %v4757, %v4760
    %v4764 = vrot.slane %v4763, 4
    %v4765 = vmax.f32 %v4763, %v4764
    %v4766 = vrot.slane %v4765, 2
    %v4767 = vmax.f32 %v4765, %v4766
    %v4768 = vrot.slane %v4767, 1
    %v4769 = vmax.f32 %v4767, %v4768
    %v4770 = vmax.f32 %v4758, %v4761
    %v4771 = vrot.slane %v4770, 4
    %v4772 = vmax.f32 %v4770, %v4771
    %v4773 = vrot.slane %v4772, 2
    %v4774 = vmax.f32 %v4772, %v4773
    %v4775 = vrot.slane %v4774, 1
    %v4776 = vmax.f32 %v4774, %v4775
    %v4777 = vmax.f32 %v4759, %v4762
    %v4778 = vrot.slane %v4777, 4
    %v4779 = vmax.f32 %v4777, %v4778
    %v4780 = vrot.slane %v4779, 2
    %v4781 = vmax.f32 %v4779, %v4780
    %v4782 = vrot.slane %v4781, 1
    %v4783 = vmax.f32 %v4781, %v4782
    %4784 = vset.pattern.permute.xlu0 5
    %4785 = vperm.xlu0 %4784, %v4607
    %v4786 = vpop.permute.xlu0 %4785
    %4787 = vset.pattern.permute.xlu0 5
    %4788 = vperm.xlu0 %4787, %v4608
    %v4789 = vpop.permute.xlu0 %4788
    %vm4790 = vcmp.eq.s32.totalorder %v4786, 1
    %vm4791 = vcmp.eq.s32.totalorder %v4789, 1
    %v4792 = vsel %vm4790, %v4599, 0.0
    %v4793 = vsel %vm4790, %v4600, 0.0
    %v4794 = vsel %vm4790, %v4601, 0.0
    %v4795 = vsel %vm4791, %v4602, 0.0
    %v4796 = vsel %vm4791, %v4603, 0.0
    %v4797 = vsel %vm4791, %v4604, 0.0
    %v4798 = vmax.f32 %v4792, %v4795
    %v4799 = vrot.slane %v4798, 4
    %v4800 = vmax.f32 %v4798, %v4799
    %v4801 = vrot.slane %v4800, 2
    %v4802 = vmax.f32 %v4800, %v4801
    %v4803 = vrot.slane %v4802, 1
    %v4804 = vmax.f32 %v4802, %v4803
    %v4805 = vmax.f32 %v4793, %v4796
    %v4806 = vrot.slane %v4805, 4
    %v4807 = vmax.f32 %v4805, %v4806
    %v4808 = vrot.slane %v4807, 2
    %v4809 = vmax.f32 %v4807, %v4808
    %v4810 = vrot.slane %v4809, 1
    %v4811 = vmax.f32 %v4809, %v4810
    %v4812 = vmax.f32 %v4794, %v4797
    %v4813 = vrot.slane %v4812, 4
    %v4814 = vmax.f32 %v4812, %v4813
    %v4815 = vrot.slane %v4814, 2
    %v4816 = vmax.f32 %v4814, %v4815
    %v4817 = vrot.slane %v4816, 1
    %v4818 = vmax.f32 %v4816, %v4817
    %4819 = vset.pattern.permute.xlu0 6
    %4820 = vperm.xlu0 %4819, %v4607
    %v4821 = vpop.permute.xlu0 %4820
    %4822 = vset.pattern.permute.xlu0 6
    %4823 = vperm.xlu0 %4822, %v4608
    %v4824 = vpop.permute.xlu0 %4823
    %vm4825 = vcmp.eq.s32.totalorder %v4821, 1
    %vm4826 = vcmp.eq.s32.totalorder %v4824, 1
    %v4827 = vsel %vm4825, %v4599, 0.0
    %v4828 = vsel %vm4825, %v4600, 0.0
    %v4829 = vsel %vm4825, %v4601, 0.0
    %v4830 = vsel %vm4826, %v4602, 0.0
    %v4831 = vsel %vm4826, %v4603, 0.0
    %v4832 = vsel %vm4826, %v4604, 0.0
    %v4833 = vmax.f32 %v4827, %v4830
    %v4834 = vrot.slane %v4833, 4
    %v4835 = vmax.f32 %v4833, %v4834
    %v4836 = vrot.slane %v4835, 2
    %v4837 = vmax.f32 %v4835, %v4836
    %v4838 = vrot.slane %v4837, 1
    %v4839 = vmax.f32 %v4837, %v4838
    %v4840 = vmax.f32 %v4828, %v4831
    %v4841 = vrot.slane %v4840, 4
    %v4842 = vmax.f32 %v4840, %v4841
    %v4843 = vrot.slane %v4842, 2
    %v4844 = vmax.f32 %v4842, %v4843
    %v4845 = vrot.slane %v4844, 1
    %v4846 = vmax.f32 %v4844, %v4845
    %v4847 = vmax.f32 %v4829, %v4832
    %v4848 = vrot.slane %v4847, 4
    %v4849 = vmax.f32 %v4847, %v4848
    %v4850 = vrot.slane %v4849, 2
    %v4851 = vmax.f32 %v4849, %v4850
    %v4852 = vrot.slane %v4851, 1
    %v4853 = vmax.f32 %v4851, %v4852
    %4854 = vset.pattern.permute.xlu0 7
    %4855 = vperm.xlu0 %4854, %v4607
    %v4856 = vpop.permute.xlu0 %4855
    %4857 = vset.pattern.permute.xlu0 7
    %4858 = vperm.xlu0 %4857, %v4608
    %v4859 = vpop.permute.xlu0 %4858
    %vm4860 = vcmp.eq.s32.totalorder %v4856, 1
    %vm4861 = vcmp.eq.s32.totalorder %v4859, 1
    %v4862 = vsel %vm4860, %v4599, 0.0
    %v4863 = vsel %vm4860, %v4600, 0.0
    %v4864 = vsel %vm4860, %v4601, 0.0
    %v4865 = vsel %vm4861, %v4602, 0.0
    %v4866 = vsel %vm4861, %v4603, 0.0
    %v4867 = vsel %vm4861, %v4604, 0.0
    %v4868 = vmax.f32 %v4862, %v4865
    %v4869 = vrot.slane %v4868, 4
    %v4870 = vmax.f32 %v4868, %v4869
    %v4871 = vrot.slane %v4870, 2
    %v4872 = vmax.f32 %v4870, %v4871
    %v4873 = vrot.slane %v4872, 1
    %v4874 = vmax.f32 %v4872, %v4873
    %v4875 = vmax.f32 %v4863, %v4866
    %v4876 = vrot.slane %v4875, 4
    %v4877 = vmax.f32 %v4875, %v4876
    %v4878 = vrot.slane %v4877, 2
    %v4879 = vmax.f32 %v4877, %v4878
    %v4880 = vrot.slane %v4879, 1
    %v4881 = vmax.f32 %v4879, %v4880
    %v4882 = vmax.f32 %v4864, %v4867
    %v4883 = vrot.slane %v4882, 4
    %v4884 = vmax.f32 %v4882, %v4883
    %v4885 = vrot.slane %v4884, 2
    %v4886 = vmax.f32 %v4884, %v4885
    %v4887 = vrot.slane %v4886, 1
    %v4888 = vmax.f32 %v4886, %v4887
    %v4889 = vsel %vm1500, %v4629, %v4664
    %v4890 = vsel %vm1500, %v4636, %v4671
    %v4891 = vsel %vm1500, %v4643, %v4678
    %v4892 = vsel %vm1504, %v4889, %v4699
    %v4893 = vsel %vm1504, %v4890, %v4706
    %v4894 = vsel %vm1504, %v4891, %v4713
    %v4895 = vsel %vm1508, %v4892, %v4734
    %v4896 = vsel %vm1508, %v4893, %v4741
    %v4897 = vsel %vm1508, %v4894, %v4748
    %v4898 = vsel %vm1512, %v4895, %v4769
    %v4899 = vsel %vm1512, %v4896, %v4776
    %v4900 = vsel %vm1512, %v4897, %v4783
    %v4901 = vsel %vm1516, %v4898, %v4804
    %v4902 = vsel %vm1516, %v4899, %v4811
    %v4903 = vsel %vm1516, %v4900, %v4818
    %v4904 = vsel %vm1520, %v4901, %v4839
    %v4905 = vsel %vm1520, %v4902, %v4846
    %v4906 = vsel %vm1520, %v4903, %v4853
    %v4907 = vsel %vm1524, %v4904, %v4874
    %v4908 = vsel %vm1524, %v4905, %v4881
    %v4909 = vsel %vm1524, %v4906, %v4888
    %v4910 = vpack.c.bf16 %v4907, %v4907
    %v4911 = vpack.c.bf16 %v4908, %v4908
    %v4912 = vpack.c.bf16 %v4909, %v4909
    %s4913 = scalar_lea.vmem [#allocation17], 1536
    %v4914 = vld [vmem:[%s4913] sm:$0xff]
    %v4915 = vld [vmem:[%s4913 + $0x8] sm:$0xff]
    %v4916 = vld [vmem:[%s4913 + $0x10] sm:$0xff]
    %v4917 = vld [vmem:[%s4913 + $0x18] sm:$0xff]
    %v4918 = vld [vmem:[%s4913 + $0x20] sm:$0xff]
    %v4919 = vld [vmem:[%s4913 + $0x28] sm:$0xff]
    %v4920 = vld [vmem:[%s4913 + $0x30] sm:$0xff]
    %v4921 = vld [vmem:[%s4913 + $0x38] sm:$0xff]
    %v4922 = vld [vmem:[%s4913 + $0x40] sm:$0xff]
    %v4923 = vld [vmem:[%s4913 + $0x48] sm:$0xff]
    %v4924 = vld [vmem:[%s4913 + $0x50] sm:$0xff]
    %v4925 = vld [vmem:[%s4913 + $0x58] sm:$0xff]
    %v4926 = vld [vmem:[%s4913 + $0x60] sm:$0xff]
    %v4927 = vld [vmem:[%s4913 + $0x68] sm:$0xff]
    %v4928 = vld [vmem:[%s4913 + $0x70] sm:$0xff]
    %v4929 = vld [vmem:[%s4913 + $0x78] sm:$0xff]
    %v4930 = vld [vmem:[%s4913 + $0x80] sm:$0xff]
    %v4931 = vld [vmem:[%s4913 + $0x88] sm:$0xff]
    %v4932 = vld [vmem:[%s4913 + $0x90] sm:$0xff]
    %v4933 = vld [vmem:[%s4913 + $0x98] sm:$0xff]
    %v4934 = vld [vmem:[%s4913 + $0xa0] sm:$0xff]
    %v4935 = vld [vmem:[%s4913 + $0xa8] sm:$0xff]
    %v4936 = vld [vmem:[%s4913 + $0xb0] sm:$0xff]
    %v4937 = vld [vmem:[%s4913 + $0xb8] sm:$0xff]
    %v4938 = vld [vmem:[%s4913 + $0xc0] sm:$0xff]
    %v4939 = vld [vmem:[%s4913 + $0xc8] sm:$0xff]
    %v4940 = vld [vmem:[%s4913 + $0xd0] sm:$0xff]
    %v4941 = vld [vmem:[%s4913 + $0xd8] sm:$0xff]
    %v4942 = vld [vmem:[%s4913 + $0xe0] sm:$0xff]
    %v4943 = vld [vmem:[%s4913 + $0xe8] sm:$0xff]
    %v4944 = vld [vmem:[%s4913 + $0xf0] sm:$0xff]
    %v4945 = vld [vmem:[%s4913 + $0xf8] sm:$0xff]
    %v4946 = vld [vmem:[%s4913 + $0x100] sm:$0xff]
    %v4947 = vld [vmem:[%s4913 + $0x108] sm:$0xff]
    %v4948 = vld [vmem:[%s4913 + $0x110] sm:$0xff]
    %v4949 = vld [vmem:[%s4913 + $0x118] sm:$0xff]
    %v4950 = vld [vmem:[%s4913 + $0x120] sm:$0xff]
    %v4951 = vld [vmem:[%s4913 + $0x128] sm:$0xff]
    %v4952 = vld [vmem:[%s4913 + $0x130] sm:$0xff]
    %v4953 = vld [vmem:[%s4913 + $0x138] sm:$0xff]
    %v4954 = vld [vmem:[%s4913 + $0x140] sm:$0xff]
    %v4955 = vld [vmem:[%s4913 + $0x148] sm:$0xff]
    %v4956 = vld [vmem:[%s4913 + $0x150] sm:$0xff]
    %v4957 = vld [vmem:[%s4913 + $0x158] sm:$0xff]
    %v4958 = vld [vmem:[%s4913 + $0x160] sm:$0xff]
    %v4959 = vld [vmem:[%s4913 + $0x168] sm:$0xff]
    %v4960 = vld [vmem:[%s4913 + $0x170] sm:$0xff]
    %v4961 = vld [vmem:[%s4913 + $0x178] sm:$0xff]
    %v4962 = vld [vmem:[%s4913 + $0x180] sm:$0xff]
    %v4963 = vld [vmem:[%s4913 + $0x188] sm:$0xff]
    %v4964 = vld [vmem:[%s4913 + $0x190] sm:$0xff]
    %v4965 = vld [vmem:[%s4913 + $0x198] sm:$0xff]
    %v4966 = vld [vmem:[%s4913 + $0x1a0] sm:$0xff]
    %v4967 = vld [vmem:[%s4913 + $0x1a8] sm:$0xff]
    %v4968 = vld [vmem:[%s4913 + $0x1b0] sm:$0xff]
    %v4969 = vld [vmem:[%s4913 + $0x1b8] sm:$0xff]
    %v4970 = vld [vmem:[%s4913 + $0x1c0] sm:$0xff]
    %v4971 = vld [vmem:[%s4913 + $0x1c8] sm:$0xff]
    %v4972 = vld [vmem:[%s4913 + $0x1d0] sm:$0xff]
    %v4973 = vld [vmem:[%s4913 + $0x1d8] sm:$0xff]
    %v4974 = vld [vmem:[%s4913 + $0x1e0] sm:$0xff]
    %v4975 = vld [vmem:[%s4913 + $0x1e8] sm:$0xff]
    %v4976 = vld [vmem:[%s4913 + $0x1f0] sm:$0xff]
    %v4977 = vld [vmem:[%s4913 + $0x1f8] sm:$0xff]
    %v4978 = vld [vmem:[%s4913 + $0x200] sm:$0xff]
    %v4979 = vld [vmem:[%s4913 + $0x208] sm:$0xff]
    %v4980 = vld [vmem:[%s4913 + $0x210] sm:$0xff]
    %v4981 = vld [vmem:[%s4913 + $0x218] sm:$0xff]
    %v4982 = vld [vmem:[%s4913 + $0x220] sm:$0xff]
    %v4983 = vld [vmem:[%s4913 + $0x228] sm:$0xff]
    %v4984 = vld [vmem:[%s4913 + $0x230] sm:$0xff]
    %v4985 = vld [vmem:[%s4913 + $0x238] sm:$0xff]
    %v4986 = vld [vmem:[%s4913 + $0x240] sm:$0xff]
    %v4987 = vld [vmem:[%s4913 + $0x248] sm:$0xff]
    %v4988 = vld [vmem:[%s4913 + $0x250] sm:$0xff]
    %v4989 = vld [vmem:[%s4913 + $0x258] sm:$0xff]
    %v4990 = vld [vmem:[%s4913 + $0x260] sm:$0xff]
    %v4991 = vld [vmem:[%s4913 + $0x268] sm:$0xff]
    %v4992 = vld [vmem:[%s4913 + $0x270] sm:$0xff]
    %v4993 = vld [vmem:[%s4913 + $0x278] sm:$0xff]
    %v4994 = vld [vmem:[%s4913 + $0x280] sm:$0xff]
    %v4995 = vld [vmem:[%s4913 + $0x288] sm:$0xff]
    %v4996 = vld [vmem:[%s4913 + $0x290] sm:$0xff]
    %v4997 = vld [vmem:[%s4913 + $0x298] sm:$0xff]
    %v4998 = vld [vmem:[%s4913 + $0x2a0] sm:$0xff]
    %v4999 = vld [vmem:[%s4913 + $0x2a8] sm:$0xff]
    %v5000 = vld [vmem:[%s4913 + $0x2b0] sm:$0xff]
    %v5001 = vld [vmem:[%s4913 + $0x2b8] sm:$0xff]
    %v5002 = vld [vmem:[%s4913 + $0x2c0] sm:$0xff]
    %v5003 = vld [vmem:[%s4913 + $0x2c8] sm:$0xff]
    %v5004 = vld [vmem:[%s4913 + $0x2d0] sm:$0xff]
    %v5005 = vld [vmem:[%s4913 + $0x2d8] sm:$0xff]
    %v5006 = vld [vmem:[%s4913 + $0x2e0] sm:$0xff]
    %v5007 = vld [vmem:[%s4913 + $0x2e8] sm:$0xff]
    %v5008 = vld [vmem:[%s4913 + $0x2f0] sm:$0xff]
    %v5009 = vld [vmem:[%s4913 + $0x2f8] sm:$0xff]
    %v5010 = vld [vmem:[%s4913 + $0x300] sm:$0xff]
    %v5011 = vld [vmem:[%s4913 + $0x308] sm:$0xff]
    %v5012 = vld [vmem:[%s4913 + $0x310] sm:$0xff]
    %v5013 = vld [vmem:[%s4913 + $0x318] sm:$0xff]
    %v5014 = vld [vmem:[%s4913 + $0x320] sm:$0xff]
    %v5015 = vld [vmem:[%s4913 + $0x328] sm:$0xff]
    %v5016 = vld [vmem:[%s4913 + $0x330] sm:$0xff]
    %v5017 = vld [vmem:[%s4913 + $0x338] sm:$0xff]
    %v5018 = vld [vmem:[%s4913 + $0x340] sm:$0xff]
    %v5019 = vld [vmem:[%s4913 + $0x348] sm:$0xff]
    %v5020 = vld [vmem:[%s4913 + $0x350] sm:$0xff]
    %v5021 = vld [vmem:[%s4913 + $0x358] sm:$0xff]
    %v5022 = vld [vmem:[%s4913 + $0x360] sm:$0xff]
    %v5023 = vld [vmem:[%s4913 + $0x368] sm:$0xff]
    %v5024 = vld [vmem:[%s4913 + $0x370] sm:$0xff]
    %v5025 = vld [vmem:[%s4913 + $0x378] sm:$0xff]
    %v5026 = vld [vmem:[%s4913 + $0x380] sm:$0xff]
    %v5027 = vld [vmem:[%s4913 + $0x388] sm:$0xff]
    %v5028 = vld [vmem:[%s4913 + $0x390] sm:$0xff]
    %v5029 = vld [vmem:[%s4913 + $0x398] sm:$0xff]
    %v5030 = vld [vmem:[%s4913 + $0x3a0] sm:$0xff]
    %v5031 = vld [vmem:[%s4913 + $0x3a8] sm:$0xff]
    %v5032 = vld [vmem:[%s4913 + $0x3b0] sm:$0xff]
    %v5033 = vld [vmem:[%s4913 + $0x3b8] sm:$0xff]
    %v5034 = vld [vmem:[%s4913 + $0x3c0] sm:$0xff]
    %v5035 = vld [vmem:[%s4913 + $0x3c8] sm:$0xff]
    %v5036 = vld [vmem:[%s4913 + $0x3d0] sm:$0xff]
    %v5037 = vld [vmem:[%s4913 + $0x3d8] sm:$0xff]
    %v5038 = vld [vmem:[%s4913 + $0x3e0] sm:$0xff]
    %v5039 = vld [vmem:[%s4913 + $0x3e8] sm:$0xff]
    %v5040 = vld [vmem:[%s4913 + $0x3f0] sm:$0xff]
    %v5041 = vld [vmem:[%s4913 + $0x3f8] sm:$0xff]
    %v5042 = vld [vmem:[%s4913 + $0x400] sm:$0xff]
    %v5043 = vld [vmem:[%s4913 + $0x408] sm:$0xff]
    %v5044 = vld [vmem:[%s4913 + $0x410] sm:$0xff]
    %v5045 = vld [vmem:[%s4913 + $0x418] sm:$0xff]
    %v5046 = vld [vmem:[%s4913 + $0x420] sm:$0xff]
    %v5047 = vld [vmem:[%s4913 + $0x428] sm:$0xff]
    %v5048 = vld [vmem:[%s4913 + $0x430] sm:$0xff]
    %v5049 = vld [vmem:[%s4913 + $0x438] sm:$0xff]
    %v5050 = vld [vmem:[%s4913 + $0x440] sm:$0xff]
    %v5051 = vld [vmem:[%s4913 + $0x448] sm:$0xff]
    %v5052 = vld [vmem:[%s4913 + $0x450] sm:$0xff]
    %v5053 = vld [vmem:[%s4913 + $0x458] sm:$0xff]
    %v5054 = vld [vmem:[%s4913 + $0x460] sm:$0xff]
    %v5055 = vld [vmem:[%s4913 + $0x468] sm:$0xff]
    %v5056 = vld [vmem:[%s4913 + $0x470] sm:$0xff]
    %v5057 = vld [vmem:[%s4913 + $0x478] sm:$0xff]
    %v5058 = vld [vmem:[%s4913 + $0x480] sm:$0xff]
    %v5059 = vld [vmem:[%s4913 + $0x488] sm:$0xff]
    %v5060 = vld [vmem:[%s4913 + $0x490] sm:$0xff]
    %v5061 = vld [vmem:[%s4913 + $0x498] sm:$0xff]
    %v5062 = vld [vmem:[%s4913 + $0x4a0] sm:$0xff]
    %v5063 = vld [vmem:[%s4913 + $0x4a8] sm:$0xff]
    %v5064 = vld [vmem:[%s4913 + $0x4b0] sm:$0xff]
    %v5065 = vld [vmem:[%s4913 + $0x4b8] sm:$0xff]
    %v5066 = vld [vmem:[%s4913 + $0x4c0] sm:$0xff]
    %v5067 = vld [vmem:[%s4913 + $0x4c8] sm:$0xff]
    %v5068 = vld [vmem:[%s4913 + $0x4d0] sm:$0xff]
    %v5069 = vld [vmem:[%s4913 + $0x4d8] sm:$0xff]
    %v5070 = vld [vmem:[%s4913 + $0x4e0] sm:$0xff]
    %v5071 = vld [vmem:[%s4913 + $0x4e8] sm:$0xff]
    %v5072 = vld [vmem:[%s4913 + $0x4f0] sm:$0xff]
    %v5073 = vld [vmem:[%s4913 + $0x4f8] sm:$0xff]
    %v5074 = vld [vmem:[%s4913 + $0x500] sm:$0xff]
    %v5075 = vld [vmem:[%s4913 + $0x508] sm:$0xff]
    %v5076 = vld [vmem:[%s4913 + $0x510] sm:$0xff]
    %v5077 = vld [vmem:[%s4913 + $0x518] sm:$0xff]
    %v5078 = vld [vmem:[%s4913 + $0x520] sm:$0xff]
    %v5079 = vld [vmem:[%s4913 + $0x528] sm:$0xff]
    %v5080 = vld [vmem:[%s4913 + $0x530] sm:$0xff]
    %v5081 = vld [vmem:[%s4913 + $0x538] sm:$0xff]
    %v5082 = vld [vmem:[%s4913 + $0x540] sm:$0xff]
    %v5083 = vld [vmem:[%s4913 + $0x548] sm:$0xff]
    %v5084 = vld [vmem:[%s4913 + $0x550] sm:$0xff]
    %v5085 = vld [vmem:[%s4913 + $0x558] sm:$0xff]
    %v5086 = vld [vmem:[%s4913 + $0x560] sm:$0xff]
    %v5087 = vld [vmem:[%s4913 + $0x568] sm:$0xff]
    %v5088 = vld [vmem:[%s4913 + $0x570] sm:$0xff]
    %v5089 = vld [vmem:[%s4913 + $0x578] sm:$0xff]
    %v5090 = vld [vmem:[%s4913 + $0x580] sm:$0xff]
    %v5091 = vld [vmem:[%s4913 + $0x588] sm:$0xff]
    %v5092 = vld [vmem:[%s4913 + $0x590] sm:$0xff]
    %v5093 = vld [vmem:[%s4913 + $0x598] sm:$0xff]
    %v5094 = vld [vmem:[%s4913 + $0x5a0] sm:$0xff]
    %v5095 = vld [vmem:[%s4913 + $0x5a8] sm:$0xff]
    %v5096 = vld [vmem:[%s4913 + $0x5b0] sm:$0xff]
    %v5097 = vld [vmem:[%s4913 + $0x5b8] sm:$0xff]
    %v5098 = vld [vmem:[%s4913 + $0x5c0] sm:$0xff]
    %v5099 = vld [vmem:[%s4913 + $0x5c8] sm:$0xff]
    %v5100 = vld [vmem:[%s4913 + $0x5d0] sm:$0xff]
    %v5101 = vld [vmem:[%s4913 + $0x5d8] sm:$0xff]
    %v5102 = vld [vmem:[%s4913 + $0x5e0] sm:$0xff]
    %v5103 = vld [vmem:[%s4913 + $0x5e8] sm:$0xff]
    %v5104 = vld [vmem:[%s4913 + $0x5f0] sm:$0xff]
    %v5105 = vld [vmem:[%s4913 + $0x5f8] sm:$0xff]
    %s5106 = scalar_lea.vmem [#allocation19], 8
    %v5107 = vld [vmem:[%s5106] sm:$0xff]
    %v5109 = vlaneseq
    %v5110 = vshrl.u32 %v5109, 7
    %v5111 = vsub.s32 0, %v5110
    %v5112 = vrot.slane %v5107, %v5111
    %v5113 = vlaneseq
    %v5114 = vshrl.u32 %v5113, 7
    %v5115 = vsub.s32 1, %v5114
    %v5116 = vrot.slane %v5107, %v5115
    %v5117 = vlaneseq
    %v5118 = vshrl.u32 %v5117, 7
    %v5119 = vsub.s32 2, %v5118
    %v5120 = vrot.slane %v5107, %v5119
    %v5121 = vlaneseq
    %v5122 = vshrl.u32 %v5121, 7
    %v5123 = vsub.s32 3, %v5122
    %v5124 = vrot.slane %v5107, %v5123
    %v5125 = vlaneseq
    %v5126 = vshrl.u32 %v5125, 7
    %v5127 = vsub.s32 4, %v5126
    %v5128 = vrot.slane %v5107, %v5127
    %v5129 = vlaneseq
    %v5130 = vshrl.u32 %v5129, 7
    %v5131 = vsub.s32 5, %v5130
    %v5132 = vrot.slane %v5107, %v5131
    %v5133 = vlaneseq
    %v5134 = vshrl.u32 %v5133, 7
    %v5135 = vsub.s32 6, %v5134
    %v5136 = vrot.slane %v5107, %v5135
    %v5137 = vlaneseq
    %v5138 = vshrl.u32 %v5137, 7
    %v5139 = vsub.s32 7, %v5138
    %v5140 = vrot.slane %v5107, %v5139
    %v5341 = vunpack.c.l.b16 %v4914
    %v5342 = vunpack.c.h.b16 %v4914
    %v5343 = vunpack.c.l.b16 %v4915
    %v5344 = vunpack.c.h.b16 %v4915
    %v5345 = vunpack.c.l.b16 %v4916
    %v5346 = vunpack.c.h.b16 %v4916
    %v5347 = vunpack.c.l.b16 %v4917
    %v5348 = vunpack.c.h.b16 %v4917
    %v5349 = vunpack.c.l.b16 %v4918
    %v5350 = vunpack.c.h.b16 %v4918
    %v5351 = vunpack.c.l.b16 %v4919
    %v5352 = vunpack.c.h.b16 %v4919
    %v5353 = vunpack.c.l.b16 %v4920
    %v5354 = vunpack.c.h.b16 %v4920
    %v5355 = vunpack.c.l.b16 %v4921
    %v5356 = vunpack.c.h.b16 %v4921
    %v5357 = vunpack.c.l.b16 %v4922
    %v5358 = vunpack.c.h.b16 %v4922
    %v5359 = vunpack.c.l.b16 %v4923
    %v5360 = vunpack.c.h.b16 %v4923
    %v5361 = vunpack.c.l.b16 %v4924
    %v5362 = vunpack.c.h.b16 %v4924
    %v5363 = vunpack.c.l.b16 %v4925
    %v5364 = vunpack.c.h.b16 %v4925
    %v5365 = vunpack.c.l.b16 %v4926
    %v5366 = vunpack.c.h.b16 %v4926
    %v5367 = vunpack.c.l.b16 %v4927
    %v5368 = vunpack.c.h.b16 %v4927
    %v5369 = vunpack.c.l.b16 %v4928
    %v5370 = vunpack.c.h.b16 %v4928
    %v5371 = vunpack.c.l.b16 %v4929
    %v5372 = vunpack.c.h.b16 %v4929
    %v5373 = vunpack.c.l.b16 %v4930
    %v5374 = vunpack.c.h.b16 %v4930
    %v5375 = vunpack.c.l.b16 %v4931
    %v5376 = vunpack.c.h.b16 %v4931
    %v5377 = vunpack.c.l.b16 %v4932
    %v5378 = vunpack.c.h.b16 %v4932
    %v5379 = vunpack.c.l.b16 %v4933
    %v5380 = vunpack.c.h.b16 %v4933
    %v5381 = vunpack.c.l.b16 %v4934
    %v5382 = vunpack.c.h.b16 %v4934
    %v5383 = vunpack.c.l.b16 %v4935
    %v5384 = vunpack.c.h.b16 %v4935
    %v5385 = vunpack.c.l.b16 %v4936
    %v5386 = vunpack.c.h.b16 %v4936
    %v5387 = vunpack.c.l.b16 %v4937
    %v5388 = vunpack.c.h.b16 %v4937
    %v5389 = vunpack.c.l.b16 %v4938
    %v5390 = vunpack.c.h.b16 %v4938
    %v5391 = vunpack.c.l.b16 %v4939
    %v5392 = vunpack.c.h.b16 %v4939
    %v5393 = vunpack.c.l.b16 %v4940
    %v5394 = vunpack.c.h.b16 %v4940
    %v5395 = vunpack.c.l.b16 %v4941
    %v5396 = vunpack.c.h.b16 %v4941
    %v5397 = vunpack.c.l.b16 %v4942
    %v5398 = vunpack.c.h.b16 %v4942
    %v5399 = vunpack.c.l.b16 %v4943
    %v5400 = vunpack.c.h.b16 %v4943
    %v5401 = vunpack.c.l.b16 %v4944
    %v5402 = vunpack.c.h.b16 %v4944
    %v5403 = vunpack.c.l.b16 %v4945
    %v5404 = vunpack.c.h.b16 %v4945
    %v5405 = vunpack.c.l.b16 %v4946
    %v5406 = vunpack.c.h.b16 %v4946
    %v5407 = vunpack.c.l.b16 %v4947
    %v5408 = vunpack.c.h.b16 %v4947
    %v5409 = vunpack.c.l.b16 %v4948
    %v5410 = vunpack.c.h.b16 %v4948
    %v5411 = vunpack.c.l.b16 %v4949
    %v5412 = vunpack.c.h.b16 %v4949
    %v5413 = vunpack.c.l.b16 %v4950
    %v5414 = vunpack.c.h.b16 %v4950
    %v5415 = vunpack.c.l.b16 %v4951
    %v5416 = vunpack.c.h.b16 %v4951
    %v5417 = vunpack.c.l.b16 %v4952
    %v5418 = vunpack.c.h.b16 %v4952
    %v5419 = vunpack.c.l.b16 %v4953
    %v5420 = vunpack.c.h.b16 %v4953
    %v5421 = vunpack.c.l.b16 %v4954
    %v5422 = vunpack.c.h.b16 %v4954
    %v5423 = vunpack.c.l.b16 %v4955
    %v5424 = vunpack.c.h.b16 %v4955
    %v5425 = vunpack.c.l.b16 %v4956
    %v5426 = vunpack.c.h.b16 %v4956
    %v5427 = vunpack.c.l.b16 %v4957
    %v5428 = vunpack.c.h.b16 %v4957
    %v5429 = vunpack.c.l.b16 %v4958
    %v5430 = vunpack.c.h.b16 %v4958
    %v5431 = vunpack.c.l.b16 %v4959
    %v5432 = vunpack.c.h.b16 %v4959
    %v5433 = vunpack.c.l.b16 %v4960
    %v5434 = vunpack.c.h.b16 %v4960
    %v5435 = vunpack.c.l.b16 %v4961
    %v5436 = vunpack.c.h.b16 %v4961
    %v5437 = vunpack.c.l.b16 %v4962
    %v5438 = vunpack.c.h.b16 %v4962
    %v5439 = vunpack.c.l.b16 %v4963
    %v5440 = vunpack.c.h.b16 %v4963
    %v5441 = vunpack.c.l.b16 %v4964
    %v5442 = vunpack.c.h.b16 %v4964
    %v5443 = vunpack.c.l.b16 %v4965
    %v5444 = vunpack.c.h.b16 %v4965
    %v5445 = vunpack.c.l.b16 %v4966
    %v5446 = vunpack.c.h.b16 %v4966
    %v5447 = vunpack.c.l.b16 %v4967
    %v5448 = vunpack.c.h.b16 %v4967
    %v5449 = vunpack.c.l.b16 %v4968
    %v5450 = vunpack.c.h.b16 %v4968
    %v5451 = vunpack.c.l.b16 %v4969
    %v5452 = vunpack.c.h.b16 %v4969
    %v5453 = vunpack.c.l.b16 %v4970
    %v5454 = vunpack.c.h.b16 %v4970
    %v5455 = vunpack.c.l.b16 %v4971
    %v5456 = vunpack.c.h.b16 %v4971
    %v5457 = vunpack.c.l.b16 %v4972
    %v5458 = vunpack.c.h.b16 %v4972
    %v5459 = vunpack.c.l.b16 %v4973
    %v5460 = vunpack.c.h.b16 %v4973
    %v5461 = vunpack.c.l.b16 %v4974
    %v5462 = vunpack.c.h.b16 %v4974
    %v5463 = vunpack.c.l.b16 %v4975
    %v5464 = vunpack.c.h.b16 %v4975
    %v5465 = vunpack.c.l.b16 %v4976
    %v5466 = vunpack.c.h.b16 %v4976
    %v5467 = vunpack.c.l.b16 %v4977
    %v5468 = vunpack.c.h.b16 %v4977
    %v5469 = vunpack.c.l.b16 %v4978
    %v5470 = vunpack.c.h.b16 %v4978
    %v5471 = vunpack.c.l.b16 %v4979
    %v5472 = vunpack.c.h.b16 %v4979
    %v5473 = vunpack.c.l.b16 %v4980
    %v5474 = vunpack.c.h.b16 %v4980
    %v5475 = vunpack.c.l.b16 %v4981
    %v5476 = vunpack.c.h.b16 %v4981
    %v5477 = vunpack.c.l.b16 %v4982
    %v5478 = vunpack.c.h.b16 %v4982
    %v5479 = vunpack.c.l.b16 %v4983
    %v5480 = vunpack.c.h.b16 %v4983
    %v5481 = vunpack.c.l.b16 %v4984
    %v5482 = vunpack.c.h.b16 %v4984
    %v5483 = vunpack.c.l.b16 %v4985
    %v5484 = vunpack.c.h.b16 %v4985
    %v5485 = vunpack.c.l.b16 %v4986
    %v5486 = vunpack.c.h.b16 %v4986
    %v5487 = vunpack.c.l.b16 %v4987
    %v5488 = vunpack.c.h.b16 %v4987
    %v5489 = vunpack.c.l.b16 %v4988
    %v5490 = vunpack.c.h.b16 %v4988
    %v5491 = vunpack.c.l.b16 %v4989
    %v5492 = vunpack.c.h.b16 %v4989
    %v5493 = vunpack.c.l.b16 %v4990
    %v5494 = vunpack.c.h.b16 %v4990
    %v5495 = vunpack.c.l.b16 %v4991
    %v5496 = vunpack.c.h.b16 %v4991
    %v5497 = vunpack.c.l.b16 %v4992
    %v5498 = vunpack.c.h.b16 %v4992
    %v5499 = vunpack.c.l.b16 %v4993
    %v5500 = vunpack.c.h.b16 %v4993
    %v5501 = vunpack.c.l.b16 %v4994
    %v5502 = vunpack.c.h.b16 %v4994
    %v5503 = vunpack.c.l.b16 %v4995
    %v5504 = vunpack.c.h.b16 %v4995
    %v5505 = vunpack.c.l.b16 %v4996
    %v5506 = vunpack.c.h.b16 %v4996
    %v5507 = vunpack.c.l.b16 %v4997
    %v5508 = vunpack.c.h.b16 %v4997
    %v5509 = vunpack.c.l.b16 %v4998
    %v5510 = vunpack.c.h.b16 %v4998
    %v5511 = vunpack.c.l.b16 %v4999
    %v5512 = vunpack.c.h.b16 %v4999
    %v5513 = vunpack.c.l.b16 %v5000
    %v5514 = vunpack.c.h.b16 %v5000
    %v5515 = vunpack.c.l.b16 %v5001
    %v5516 = vunpack.c.h.b16 %v5001
    %v5517 = vunpack.c.l.b16 %v5002
    %v5518 = vunpack.c.h.b16 %v5002
    %v5519 = vunpack.c.l.b16 %v5003
    %v5520 = vunpack.c.h.b16 %v5003
    %v5521 = vunpack.c.l.b16 %v5004
    %v5522 = vunpack.c.h.b16 %v5004
    %v5523 = vunpack.c.l.b16 %v5005
    %v5524 = vunpack.c.h.b16 %v5005
    %v5525 = vunpack.c.l.b16 %v5006
    %v5526 = vunpack.c.h.b16 %v5006
    %v5527 = vunpack.c.l.b16 %v5007
    %v5528 = vunpack.c.h.b16 %v5007
    %v5529 = vunpack.c.l.b16 %v5008
    %v5530 = vunpack.c.h.b16 %v5008
    %v5531 = vunpack.c.l.b16 %v5009
    %v5532 = vunpack.c.h.b16 %v5009
    %v5533 = vunpack.c.l.b16 %v5010
    %v5534 = vunpack.c.h.b16 %v5010
    %v5535 = vunpack.c.l.b16 %v5011
    %v5536 = vunpack.c.h.b16 %v5011
    %v5537 = vunpack.c.l.b16 %v5012
    %v5538 = vunpack.c.h.b16 %v5012
    %v5539 = vunpack.c.l.b16 %v5013
    %v5540 = vunpack.c.h.b16 %v5013
    %v5541 = vunpack.c.l.b16 %v5014
    %v5542 = vunpack.c.h.b16 %v5014
    %v5543 = vunpack.c.l.b16 %v5015
    %v5544 = vunpack.c.h.b16 %v5015
    %v5545 = vunpack.c.l.b16 %v5016
    %v5546 = vunpack.c.h.b16 %v5016
    %v5547 = vunpack.c.l.b16 %v5017
    %v5548 = vunpack.c.h.b16 %v5017
    %v5549 = vunpack.c.l.b16 %v5018
    %v5550 = vunpack.c.h.b16 %v5018
    %v5551 = vunpack.c.l.b16 %v5019
    %v5552 = vunpack.c.h.b16 %v5019
    %v5553 = vunpack.c.l.b16 %v5020
    %v5554 = vunpack.c.h.b16 %v5020
    %v5555 = vunpack.c.l.b16 %v5021
    %v5556 = vunpack.c.h.b16 %v5021
    %v5557 = vunpack.c.l.b16 %v5022
    %v5558 = vunpack.c.h.b16 %v5022
    %v5559 = vunpack.c.l.b16 %v5023
    %v5560 = vunpack.c.h.b16 %v5023
    %v5561 = vunpack.c.l.b16 %v5024
    %v5562 = vunpack.c.h.b16 %v5024
    %v5563 = vunpack.c.l.b16 %v5025
    %v5564 = vunpack.c.h.b16 %v5025
    %v5565 = vunpack.c.l.b16 %v5026
    %v5566 = vunpack.c.h.b16 %v5026
    %v5567 = vunpack.c.l.b16 %v5027
    %v5568 = vunpack.c.h.b16 %v5027
    %v5569 = vunpack.c.l.b16 %v5028
    %v5570 = vunpack.c.h.b16 %v5028
    %v5571 = vunpack.c.l.b16 %v5029
    %v5572 = vunpack.c.h.b16 %v5029
    %v5573 = vunpack.c.l.b16 %v5030
    %v5574 = vunpack.c.h.b16 %v5030
    %v5575 = vunpack.c.l.b16 %v5031
    %v5576 = vunpack.c.h.b16 %v5031
    %v5577 = vunpack.c.l.b16 %v5032
    %v5578 = vunpack.c.h.b16 %v5032
    %v5579 = vunpack.c.l.b16 %v5033
    %v5580 = vunpack.c.h.b16 %v5033
    %v5581 = vunpack.c.l.b16 %v5034
    %v5582 = vunpack.c.h.b16 %v5034
    %v5583 = vunpack.c.l.b16 %v5035
    %v5584 = vunpack.c.h.b16 %v5035
    %v5585 = vunpack.c.l.b16 %v5036
    %v5586 = vunpack.c.h.b16 %v5036
    %v5587 = vunpack.c.l.b16 %v5037
    %v5588 = vunpack.c.h.b16 %v5037
    %v5589 = vunpack.c.l.b16 %v5038
    %v5590 = vunpack.c.h.b16 %v5038
    %v5591 = vunpack.c.l.b16 %v5039
    %v5592 = vunpack.c.h.b16 %v5039
    %v5593 = vunpack.c.l.b16 %v5040
    %v5594 = vunpack.c.h.b16 %v5040
    %v5595 = vunpack.c.l.b16 %v5041
    %v5596 = vunpack.c.h.b16 %v5041
    %v5597 = vunpack.c.l.b16 %v5042
    %v5598 = vunpack.c.h.b16 %v5042
    %v5599 = vunpack.c.l.b16 %v5043
    %v5600 = vunpack.c.h.b16 %v5043
    %v5601 = vunpack.c.l.b16 %v5044
    %v5602 = vunpack.c.h.b16 %v5044
    %v5603 = vunpack.c.l.b16 %v5045
    %v5604 = vunpack.c.h.b16 %v5045
    %v5605 = vunpack.c.l.b16 %v5046
    %v5606 = vunpack.c.h.b16 %v5046
    %v5607 = vunpack.c.l.b16 %v5047
    %v5608 = vunpack.c.h.b16 %v5047
    %v5609 = vunpack.c.l.b16 %v5048
    %v5610 = vunpack.c.h.b16 %v5048
    %v5611 = vunpack.c.l.b16 %v5049
    %v5612 = vunpack.c.h.b16 %v5049
    %v5613 = vunpack.c.l.b16 %v5050
    %v5614 = vunpack.c.h.b16 %v5050
    %v5615 = vunpack.c.l.b16 %v5051
    %v5616 = vunpack.c.h.b16 %v5051
    %v5617 = vunpack.c.l.b16 %v5052
    %v5618 = vunpack.c.h.b16 %v5052
    %v5619 = vunpack.c.l.b16 %v5053
    %v5620 = vunpack.c.h.b16 %v5053
    %v5621 = vunpack.c.l.b16 %v5054
    %v5622 = vunpack.c.h.b16 %v5054
    %v5623 = vunpack.c.l.b16 %v5055
    %v5624 = vunpack.c.h.b16 %v5055
    %v5625 = vunpack.c.l.b16 %v5056
    %v5626 = vunpack.c.h.b16 %v5056
    %v5627 = vunpack.c.l.b16 %v5057
    %v5628 = vunpack.c.h.b16 %v5057
    %v5629 = vunpack.c.l.b16 %v5058
    %v5630 = vunpack.c.h.b16 %v5058
    %v5631 = vunpack.c.l.b16 %v5059
    %v5632 = vunpack.c.h.b16 %v5059
    %v5633 = vunpack.c.l.b16 %v5060
    %v5634 = vunpack.c.h.b16 %v5060
    %v5635 = vunpack.c.l.b16 %v5061
    %v5636 = vunpack.c.h.b16 %v5061
    %v5637 = vunpack.c.l.b16 %v5062
    %v5638 = vunpack.c.h.b16 %v5062
    %v5639 = vunpack.c.l.b16 %v5063
    %v5640 = vunpack.c.h.b16 %v5063
    %v5641 = vunpack.c.l.b16 %v5064
    %v5642 = vunpack.c.h.b16 %v5064
    %v5643 = vunpack.c.l.b16 %v5065
    %v5644 = vunpack.c.h.b16 %v5065
    %v5645 = vunpack.c.l.b16 %v5066
    %v5646 = vunpack.c.h.b16 %v5066
    %v5647 = vunpack.c.l.b16 %v5067
    %v5648 = vunpack.c.h.b16 %v5067
    %v5649 = vunpack.c.l.b16 %v5068
    %v5650 = vunpack.c.h.b16 %v5068
    %v5651 = vunpack.c.l.b16 %v5069
    %v5652 = vunpack.c.h.b16 %v5069
    %v5653 = vunpack.c.l.b16 %v5070
    %v5654 = vunpack.c.h.b16 %v5070
    %v5655 = vunpack.c.l.b16 %v5071
    %v5656 = vunpack.c.h.b16 %v5071
    %v5657 = vunpack.c.l.b16 %v5072
    %v5658 = vunpack.c.h.b16 %v5072
    %v5659 = vunpack.c.l.b16 %v5073
    %v5660 = vunpack.c.h.b16 %v5073
    %v5661 = vunpack.c.l.b16 %v5074
    %v5662 = vunpack.c.h.b16 %v5074
    %v5663 = vunpack.c.l.b16 %v5075
    %v5664 = vunpack.c.h.b16 %v5075
    %v5665 = vunpack.c.l.b16 %v5076
    %v5666 = vunpack.c.h.b16 %v5076
    %v5667 = vunpack.c.l.b16 %v5077
    %v5668 = vunpack.c.h.b16 %v5077
    %v5669 = vunpack.c.l.b16 %v5078
    %v5670 = vunpack.c.h.b16 %v5078
    %v5671 = vunpack.c.l.b16 %v5079
    %v5672 = vunpack.c.h.b16 %v5079
    %v5673 = vunpack.c.l.b16 %v5080
    %v5674 = vunpack.c.h.b16 %v5080
    %v5675 = vunpack.c.l.b16 %v5081
    %v5676 = vunpack.c.h.b16 %v5081
    %v5677 = vunpack.c.l.b16 %v5082
    %v5678 = vunpack.c.h.b16 %v5082
    %v5679 = vunpack.c.l.b16 %v5083
    %v5680 = vunpack.c.h.b16 %v5083
    %v5681 = vunpack.c.l.b16 %v5084
    %v5682 = vunpack.c.h.b16 %v5084
    %v5683 = vunpack.c.l.b16 %v5085
    %v5684 = vunpack.c.h.b16 %v5085
    %v5685 = vunpack.c.l.b16 %v5086
    %v5686 = vunpack.c.h.b16 %v5086
    %v5687 = vunpack.c.l.b16 %v5087
    %v5688 = vunpack.c.h.b16 %v5087
    %v5689 = vunpack.c.l.b16 %v5088
    %v5690 = vunpack.c.h.b16 %v5088
    %v5691 = vunpack.c.l.b16 %v5089
    %v5692 = vunpack.c.h.b16 %v5089
    %v5693 = vunpack.c.l.b16 %v5090
    %v5694 = vunpack.c.h.b16 %v5090
    %v5695 = vunpack.c.l.b16 %v5091
    %v5696 = vunpack.c.h.b16 %v5091
    %v5697 = vunpack.c.l.b16 %v5092
    %v5698 = vunpack.c.h.b16 %v5092
    %v5699 = vunpack.c.l.b16 %v5093
    %v5700 = vunpack.c.h.b16 %v5093
    %v5701 = vunpack.c.l.b16 %v5094
    %v5702 = vunpack.c.h.b16 %v5094
    %v5703 = vunpack.c.l.b16 %v5095
    %v5704 = vunpack.c.h.b16 %v5095
    %v5705 = vunpack.c.l.b16 %v5096
    %v5706 = vunpack.c.h.b16 %v5096
    %v5707 = vunpack.c.l.b16 %v5097
    %v5708 = vunpack.c.h.b16 %v5097
    %v5709 = vunpack.c.l.b16 %v5098
    %v5710 = vunpack.c.h.b16 %v5098
    %v5711 = vunpack.c.l.b16 %v5099
    %v5712 = vunpack.c.h.b16 %v5099
    %v5713 = vunpack.c.l.b16 %v5100
    %v5714 = vunpack.c.h.b16 %v5100
    %v5715 = vunpack.c.l.b16 %v5101
    %v5716 = vunpack.c.h.b16 %v5101
    %v5717 = vunpack.c.l.b16 %v5102
    %v5718 = vunpack.c.h.b16 %v5102
    %v5719 = vunpack.c.l.b16 %v5103
    %v5720 = vunpack.c.h.b16 %v5103
    %v5721 = vunpack.c.l.b16 %v5104
    %v5722 = vunpack.c.h.b16 %v5104
    %v5723 = vunpack.c.l.b16 %v5105
    %v5724 = vunpack.c.h.b16 %v5105
    %v5725 = vpack.c.b16 %v5349, %v5341
    %v5726 = vpack.c.b16 %v5350, %v5342
    %v5727 = vpack.c.b16 %v5351, %v5343
    %v5728 = vpack.c.b16 %v5352, %v5344
    %v5729 = vpack.c.b16 %v5353, %v5345
    %v5730 = vpack.c.b16 %v5354, %v5346
    %v5731 = vpack.c.b16 %v5355, %v5347
    %v5732 = vpack.c.b16 %v5356, %v5348
    %v5733 = vpack.c.b16 %v5365, %v5357
    %v5734 = vpack.c.b16 %v5366, %v5358
    %v5735 = vpack.c.b16 %v5367, %v5359
    %v5736 = vpack.c.b16 %v5368, %v5360
    %v5737 = vpack.c.b16 %v5369, %v5361
    %v5738 = vpack.c.b16 %v5370, %v5362
    %v5739 = vpack.c.b16 %v5371, %v5363
    %v5740 = vpack.c.b16 %v5372, %v5364
    %v5741 = vpack.c.b16 %v5381, %v5373
    %v5742 = vpack.c.b16 %v5382, %v5374
    %v5743 = vpack.c.b16 %v5383, %v5375
    %v5744 = vpack.c.b16 %v5384, %v5376
    %v5745 = vpack.c.b16 %v5385, %v5377
    %v5746 = vpack.c.b16 %v5386, %v5378
    %v5747 = vpack.c.b16 %v5387, %v5379
    %v5748 = vpack.c.b16 %v5388, %v5380
    %v5749 = vpack.c.b16 %v5397, %v5389
    %v5750 = vpack.c.b16 %v5398, %v5390
    %v5751 = vpack.c.b16 %v5399, %v5391
    %v5752 = vpack.c.b16 %v5400, %v5392
    %v5753 = vpack.c.b16 %v5401, %v5393
    %v5754 = vpack.c.b16 %v5402, %v5394
    %v5755 = vpack.c.b16 %v5403, %v5395
    %v5756 = vpack.c.b16 %v5404, %v5396
    %v5757 = vpack.c.b16 %v5413, %v5405
    %v5758 = vpack.c.b16 %v5414, %v5406
    %v5759 = vpack.c.b16 %v5415, %v5407
    %v5760 = vpack.c.b16 %v5416, %v5408
    %v5761 = vpack.c.b16 %v5417, %v5409
    %v5762 = vpack.c.b16 %v5418, %v5410
    %v5763 = vpack.c.b16 %v5419, %v5411
    %v5764 = vpack.c.b16 %v5420, %v5412
    %v5765 = vpack.c.b16 %v5429, %v5421
    %v5766 = vpack.c.b16 %v5430, %v5422
    %v5767 = vpack.c.b16 %v5431, %v5423
    %v5768 = vpack.c.b16 %v5432, %v5424
    %v5769 = vpack.c.b16 %v5433, %v5425
    %v5770 = vpack.c.b16 %v5434, %v5426
    %v5771 = vpack.c.b16 %v5435, %v5427
    %v5772 = vpack.c.b16 %v5436, %v5428
    %v5773 = vpack.c.b16 %v5445, %v5437
    %v5774 = vpack.c.b16 %v5446, %v5438
    %v5775 = vpack.c.b16 %v5447, %v5439
    %v5776 = vpack.c.b16 %v5448, %v5440
    %v5777 = vpack.c.b16 %v5449, %v5441
    %v5778 = vpack.c.b16 %v5450, %v5442
    %v5779 = vpack.c.b16 %v5451, %v5443
    %v5780 = vpack.c.b16 %v5452, %v5444
    %v5781 = vpack.c.b16 %v5461, %v5453
    %v5782 = vpack.c.b16 %v5462, %v5454
    %v5783 = vpack.c.b16 %v5463, %v5455
    %v5784 = vpack.c.b16 %v5464, %v5456
    %v5785 = vpack.c.b16 %v5465, %v5457
    %v5786 = vpack.c.b16 %v5466, %v5458
    %v5787 = vpack.c.b16 %v5467, %v5459
    %v5788 = vpack.c.b16 %v5468, %v5460
    %v5789 = vpack.c.b16 %v5477, %v5469
    %v5790 = vpack.c.b16 %v5478, %v5470
    %v5791 = vpack.c.b16 %v5479, %v5471
    %v5792 = vpack.c.b16 %v5480, %v5472
    %v5793 = vpack.c.b16 %v5481, %v5473
    %v5794 = vpack.c.b16 %v5482, %v5474
    %v5795 = vpack.c.b16 %v5483, %v5475
    %v5796 = vpack.c.b16 %v5484, %v5476
    %v5797 = vpack.c.b16 %v5493, %v5485
    %v5798 = vpack.c.b16 %v5494, %v5486
    %v5799 = vpack.c.b16 %v5495, %v5487
    %v5800 = vpack.c.b16 %v5496, %v5488
    %v5801 = vpack.c.b16 %v5497, %v5489
    %v5802 = vpack.c.b16 %v5498, %v5490
    %v5803 = vpack.c.b16 %v5499, %v5491
    %v5804 = vpack.c.b16 %v5500, %v5492
    %v5805 = vpack.c.b16 %v5509, %v5501
    %v5806 = vpack.c.b16 %v5510, %v5502
    %v5807 = vpack.c.b16 %v5511, %v5503
    %v5808 = vpack.c.b16 %v5512, %v5504
    %v5809 = vpack.c.b16 %v5513, %v5505
    %v5810 = vpack.c.b16 %v5514, %v5506
    %v5811 = vpack.c.b16 %v5515, %v5507
    %v5812 = vpack.c.b16 %v5516, %v5508
    %v5813 = vpack.c.b16 %v5525, %v5517
    %v5814 = vpack.c.b16 %v5526, %v5518
    %v5815 = vpack.c.b16 %v5527, %v5519
    %v5816 = vpack.c.b16 %v5528, %v5520
    %v5817 = vpack.c.b16 %v5529, %v5521
    %v5818 = vpack.c.b16 %v5530, %v5522
    %v5819 = vpack.c.b16 %v5531, %v5523
    %v5820 = vpack.c.b16 %v5532, %v5524
    %v5821 = vpack.c.b16 %v5541, %v5533
    %v5822 = vpack.c.b16 %v5542, %v5534
    %v5823 = vpack.c.b16 %v5543, %v5535
    %v5824 = vpack.c.b16 %v5544, %v5536
    %v5825 = vpack.c.b16 %v5545, %v5537
    %v5826 = vpack.c.b16 %v5546, %v5538
    %v5827 = vpack.c.b16 %v5547, %v5539
    %v5828 = vpack.c.b16 %v5548, %v5540
    %v5829 = vpack.c.b16 %v5557, %v5549
    %v5830 = vpack.c.b16 %v5558, %v5550
    %v5831 = vpack.c.b16 %v5559, %v5551
    %v5832 = vpack.c.b16 %v5560, %v5552
    %v5833 = vpack.c.b16 %v5561, %v5553
    %v5834 = vpack.c.b16 %v5562, %v5554
    %v5835 = vpack.c.b16 %v5563, %v5555
    %v5836 = vpack.c.b16 %v5564, %v5556
    %v5837 = vpack.c.b16 %v5573, %v5565
    %v5838 = vpack.c.b16 %v5574, %v5566
    %v5839 = vpack.c.b16 %v5575, %v5567
    %v5840 = vpack.c.b16 %v5576, %v5568
    %v5841 = vpack.c.b16 %v5577, %v5569
    %v5842 = vpack.c.b16 %v5578, %v5570
    %v5843 = vpack.c.b16 %v5579, %v5571
    %v5844 = vpack.c.b16 %v5580, %v5572
    %v5845 = vpack.c.b16 %v5589, %v5581
    %v5846 = vpack.c.b16 %v5590, %v5582
    %v5847 = vpack.c.b16 %v5591, %v5583
    %v5848 = vpack.c.b16 %v5592, %v5584
    %v5849 = vpack.c.b16 %v5593, %v5585
    %v5850 = vpack.c.b16 %v5594, %v5586
    %v5851 = vpack.c.b16 %v5595, %v5587
    %v5852 = vpack.c.b16 %v5596, %v5588
    %v5853 = vpack.c.b16 %v5605, %v5597
    %v5854 = vpack.c.b16 %v5606, %v5598
    %v5855 = vpack.c.b16 %v5607, %v5599
    %v5856 = vpack.c.b16 %v5608, %v5600
    %v5857 = vpack.c.b16 %v5609, %v5601
    %v5858 = vpack.c.b16 %v5610, %v5602
    %v5859 = vpack.c.b16 %v5611, %v5603
    %v5860 = vpack.c.b16 %v5612, %v5604
    %v5861 = vpack.c.b16 %v5621, %v5613
    %v5862 = vpack.c.b16 %v5622, %v5614
    %v5863 = vpack.c.b16 %v5623, %v5615
    %v5864 = vpack.c.b16 %v5624, %v5616
    %v5865 = vpack.c.b16 %v5625, %v5617
    %v5866 = vpack.c.b16 %v5626, %v5618
    %v5867 = vpack.c.b16 %v5627, %v5619
    %v5868 = vpack.c.b16 %v5628, %v5620
    %v5869 = vpack.c.b16 %v5637, %v5629
    %v5870 = vpack.c.b16 %v5638, %v5630
    %v5871 = vpack.c.b16 %v5639, %v5631
    %v5872 = vpack.c.b16 %v5640, %v5632
    %v5873 = vpack.c.b16 %v5641, %v5633
    %v5874 = vpack.c.b16 %v5642, %v5634
    %v5875 = vpack.c.b16 %v5643, %v5635
    %v5876 = vpack.c.b16 %v5644, %v5636
    %v5877 = vpack.c.b16 %v5653, %v5645
    %v5878 = vpack.c.b16 %v5654, %v5646
    %v5879 = vpack.c.b16 %v5655, %v5647
    %v5880 = vpack.c.b16 %v5656, %v5648
    %v5881 = vpack.c.b16 %v5657, %v5649
    %v5882 = vpack.c.b16 %v5658, %v5650
    %v5883 = vpack.c.b16 %v5659, %v5651
    %v5884 = vpack.c.b16 %v5660, %v5652
    %v5885 = vpack.c.b16 %v5669, %v5661
    %v5886 = vpack.c.b16 %v5670, %v5662
    %v5887 = vpack.c.b16 %v5671, %v5663
    %v5888 = vpack.c.b16 %v5672, %v5664
    %v5889 = vpack.c.b16 %v5673, %v5665
    %v5890 = vpack.c.b16 %v5674, %v5666
    %v5891 = vpack.c.b16 %v5675, %v5667
    %v5892 = vpack.c.b16 %v5676, %v5668
    %v5893 = vpack.c.b16 %v5685, %v5677
    %v5894 = vpack.c.b16 %v5686, %v5678
    %v5895 = vpack.c.b16 %v5687, %v5679
    %v5896 = vpack.c.b16 %v5688, %v5680
    %v5897 = vpack.c.b16 %v5689, %v5681
    %v5898 = vpack.c.b16 %v5690, %v5682
    %v5899 = vpack.c.b16 %v5691, %v5683
    %v5900 = vpack.c.b16 %v5692, %v5684
    %v5901 = vpack.c.b16 %v5701, %v5693
    %v5902 = vpack.c.b16 %v5702, %v5694
    %v5903 = vpack.c.b16 %v5703, %v5695
    %v5904 = vpack.c.b16 %v5704, %v5696
    %v5905 = vpack.c.b16 %v5705, %v5697
    %v5906 = vpack.c.b16 %v5706, %v5698
    %v5907 = vpack.c.b16 %v5707, %v5699
    %v5908 = vpack.c.b16 %v5708, %v5700
    %v5909 = vpack.c.b16 %v5717, %v5709
    %v5910 = vpack.c.b16 %v5718, %v5710
    %v5911 = vpack.c.b16 %v5719, %v5711
    %v5912 = vpack.c.b16 %v5720, %v5712
    %v5913 = vpack.c.b16 %v5721, %v5713
    %v5914 = vpack.c.b16 %v5722, %v5714
    %v5915 = vpack.c.b16 %v5723, %v5715
    %v5916 = vpack.c.b16 %v5724, %v5716
    %6109 = vmatprep.subr.bf16.mxu0 %v5726
    %6110 = vmatpush1.bf16.msra.mxu0 %v5725
    %6111 = vmatprep.subr.bf16.mxu0 %v5734
    %6112 = vmatpush1.bf16.msra.mxu0 %v5733
    %6113 = vmatprep.subr.bf16.mxu0 %v5742
    %6114 = vmatpush1.bf16.msra.mxu0 %v5741
    %6115 = vmatprep.subr.bf16.mxu0 %v5750
    %6116 = vmatpush1.bf16.msra.mxu0 %v5749
    %6117 = vmatprep.subr.bf16.mxu0 %v5758
    %6118 = vmatpush1.bf16.msra.mxu0 %v5757
    %6119 = vmatprep.subr.bf16.mxu0 %v5766
    %6120 = vmatpush1.bf16.msra.mxu0 %v5765
    %6121 = vmatprep.subr.bf16.mxu0 %v5774
    %6122 = vmatpush1.bf16.msra.mxu0 %v5773
    %6123 = vmatprep.subr.bf16.mxu0 %v5782
    %6124 = vmatpush1.bf16.msra.mxu0 %v5781
    %6125 = vmatprep.subr.bf16.mxu0 %v5790
    %6126 = vmatpush1.bf16.msra.mxu0 %v5789
    %6127 = vmatprep.subr.bf16.mxu0 %v5798
    %6128 = vmatpush1.bf16.msra.mxu0 %v5797
    %6129 = vmatprep.subr.bf16.mxu0 %v5806
    %6130 = vmatpush1.bf16.msra.mxu0 %v5805
    %6131 = vmatprep.subr.bf16.mxu0 %v5814
    %6132 = vmatpush1.bf16.msra.mxu0 %v5813
    %6133 = vmatprep.subr.bf16.mxu0 %v5822
    %6134 = vmatpush1.bf16.msra.mxu0 %v5821
    %6135 = vmatprep.subr.bf16.mxu0 %v5830
    %6136 = vmatpush1.bf16.msra.mxu0 %v5829
    %6137 = vmatprep.subr.bf16.mxu0 %v5838
    %6138 = vmatpush1.bf16.msra.mxu0 %v5837
    %6139 = vmatprep.subr.bf16.mxu0 %v5846
    %6140 = vmatpush1.bf16.msra.mxu0 %v5845
    %6141 = vmatprep.mubr.bf16.mxu0 %v4911
    %6142 = vmatmul.mubr.bf16.gmra.mrb[0].mxu0 %v4910
    %v6143 = vpop.f32.mrb[0].mxu0
    %v6144 = vadd.f32 %v5112, %v6143
    %v6145 = vpop.f32.mrb[0].mxu0
    %v6146 = vadd.f32 %v5116, %v6145
    %v6147 = vpop.f32.mrb[0].mxu0
    %v6148 = vpop.f32.mrb[0].mxu0
    %6149 = vdwg.mxu0
    %6150 = vmatprep.subr.bf16.mxu0 %v5854
    %6151 = vmatpush1.bf16.msra.mxu0 %v5853
    %6152 = vmatprep.subr.bf16.mxu0 %v5862
    %6153 = vmatpush1.bf16.msra.mxu0 %v5861
    %6154 = vmatprep.subr.bf16.mxu0 %v5870
    %6155 = vmatpush1.bf16.msra.mxu0 %v5869
    %6156 = vmatprep.subr.bf16.mxu0 %v5878
    %6157 = vmatpush1.bf16.msra.mxu0 %v5877
    %6158 = vmatprep.subr.bf16.mxu0 %v5886
    %6159 = vmatpush1.bf16.msra.mxu0 %v5885
    %6160 = vmatprep.subr.bf16.mxu0 %v5894
    %6161 = vmatpush1.bf16.msra.mxu0 %v5893
    %6162 = vmatprep.subr.bf16.mxu0 %v5902
    %6163 = vmatpush1.bf16.msra.mxu0 %v5901
    %6164 = vmatprep.subr.bf16.mxu0 %v5910
    %6165 = vmatpush1.bf16.msra.mxu0 %v5909
    %6166 = vmatprep.subr.bf16.mxu0 0
    %6167 = vmatpush1.bf16.msra.mxu0 0
    %6168 = vmatprep.subr.bf16.mxu0 0
    %6169 = vmatpush1.bf16.msra.mxu0 0
    %6170 = vmatprep.subr.bf16.mxu0 0
    %6171 = vmatpush1.bf16.msra.mxu0 0
    %6172 = vmatprep.subr.bf16.mxu0 0
    %6173 = vmatpush1.bf16.msra.mxu0 0
    %6174 = vmatprep.subr.bf16.mxu0 0
    %6175 = vmatpush1.bf16.msra.mxu0 0
    %6176 = vmatprep.subr.bf16.mxu0 0
    %6177 = vmatpush1.bf16.msra.mxu0 0
    %6178 = vmatprep.subr.bf16.mxu0 0
    %6179 = vmatpush1.bf16.msra.mxu0 0
    %6180 = vmatprep.subr.bf16.mxu0 0
    %6181 = vmatpush1.bf16.msra.mxu0 0
    %6182 = vmatprep.mubr.bf16.mxu0 0
    %6183 = vmatmul.mubr.bf16.gmra.mrb[0].mxu0 %v4912
    %v6184 = vpop.f32.mrb[0].mxu0
    %v6185 = vadd.f32 %v6144, %v6184
    %v6186 = vpop.f32.mrb[0].mxu0
    %v6187 = vadd.f32 %v6146, %v6186
    %v6188 = vpop.f32.mrb[0].mxu0
    %v6189 = vpop.f32.mrb[0].mxu0
    %6190 = vdwg.mxu0
    %6191 = vmatprep.subr.bf16.mxu0 %v5728
    %6192 = vmatpush1.bf16.msra.mxu0 %v5727
    %6193 = vmatprep.subr.bf16.mxu0 %v5736
    %6194 = vmatpush1.bf16.msra.mxu0 %v5735
    %6195 = vmatprep.subr.bf16.mxu0 %v5744
    %6196 = vmatpush1.bf16.msra.mxu0 %v5743
    %6197 = vmatprep.subr.bf16.mxu0 %v5752
    %6198 = vmatpush1.bf16.msra.mxu0 %v5751
    %6199 = vmatprep.subr.bf16.mxu0 %v5760
    %6200 = vmatpush1.bf16.msra.mxu0 %v5759
    %6201 = vmatprep.subr.bf16.mxu0 %v5768
    %6202 = vmatpush1.bf16.msra.mxu0 %v5767
    %6203 = vmatprep.subr.bf16.mxu0 %v5776
    %6204 = vmatpush1.bf16.msra.mxu0 %v5775
    %6205 = vmatprep.subr.bf16.mxu0 %v5784
    %6206 = vmatpush1.bf16.msra.mxu0 %v5783
    %6207 = vmatprep.subr.bf16.mxu0 %v5792
    %6208 = vmatpush1.bf16.msra.mxu0 %v5791
    %6209 = vmatprep.subr.bf16.mxu0 %v5800
    %6210 = vmatpush1.bf16.msra.mxu0 %v5799
    %6211 = vmatprep.subr.bf16.mxu0 %v5808
    %6212 = vmatpush1.bf16.msra.mxu0 %v5807
    %6213 = vmatprep.subr.bf16.mxu0 %v5816
    %6214 = vmatpush1.bf16.msra.mxu0 %v5815
    %6215 = vmatprep.subr.bf16.mxu0 %v5824
    %6216 = vmatpush1.bf16.msra.mxu0 %v5823
    %6217 = vmatprep.subr.bf16.mxu0 %v5832
    %6218 = vmatpush1.bf16.msra.mxu0 %v5831
    %6219 = vmatprep.subr.bf16.mxu0 %v5840
    %6220 = vmatpush1.bf16.msra.mxu0 %v5839
    %6221 = vmatprep.subr.bf16.mxu0 %v5848
    %6222 = vmatpush1.bf16.msra.mxu0 %v5847
    %6223 = vmatprep.mubr.bf16.mxu0 %v4911
    %6224 = vmatmul.mubr.bf16.gmra.mrb[0].mxu0 %v4910
    %v6225 = vpop.f32.mrb[0].mxu0
    %v6226 = vadd.f32 %v5120, %v6225
    %v6227 = vpop.f32.mrb[0].mxu0
    %v6228 = vadd.f32 %v5124, %v6227
    %v6229 = vpop.f32.mrb[0].mxu0
    %v6230 = vpop.f32.mrb[0].mxu0
    %6231 = vdwg.mxu0
    %6232 = vmatprep.subr.bf16.mxu0 %v5856
    %6233 = vmatpush1.bf16.msra.mxu0 %v5855
    %6234 = vmatprep.subr.bf16.mxu0 %v5864
    %6235 = vmatpush1.bf16.msra.mxu0 %v5863
    %6236 = vmatprep.subr.bf16.mxu0 %v5872
    %6237 = vmatpush1.bf16.msra.mxu0 %v5871
    %6238 = vmatprep.subr.bf16.mxu0 %v5880
    %6239 = vmatpush1.bf16.msra.mxu0 %v5879
    %6240 = vmatprep.subr.bf16.mxu0 %v5888
    %6241 = vmatpush1.bf16.msra.mxu0 %v5887
    %6242 = vmatprep.subr.bf16.mxu0 %v5896
    %6243 = vmatpush1.bf16.msra.mxu0 %v5895
    %6244 = vmatprep.subr.bf16.mxu0 %v5904
    %6245 = vmatpush1.bf16.msra.mxu0 %v5903
    %6246 = vmatprep.subr.bf16.mxu0 %v5912
    %6247 = vmatpush1.bf16.msra.mxu0 %v5911
    %6248 = vmatprep.subr.bf16.mxu0 0
    %6249 = vmatpush1.bf16.msra.mxu0 0
    %6250 = vmatprep.subr.bf16.mxu0 0
    %6251 = vmatpush1.bf16.msra.mxu0 0
    %6252 = vmatprep.subr.bf16.mxu0 0
    %6253 = vmatpush1.bf16.msra.mxu0 0
    %6254 = vmatprep.subr.bf16.mxu0 0
    %6255 = vmatpush1.bf16.msra.mxu0 0
    %6256 = vmatprep.subr.bf16.mxu0 0
    %6257 = vmatpush1.bf16.msra.mxu0 0
    %6258 = vmatprep.subr.bf16.mxu0 0
    %6259 = vmatpush1.bf16.msra.mxu0 0
    %6260 = vmatprep.subr.bf16.mxu0 0
    %6261 = vmatpush1.bf16.msra.mxu0 0
    %6262 = vmatprep.subr.bf16.mxu0 0
    %6263 = vmatpush1.bf16.msra.mxu0 0
    %6264 = vmatprep.mubr.bf16.mxu0 0
    %6265 = vmatmul.mubr.bf16.gmra.mrb[0].mxu0 %v4912
    %v6266 = vpop.f32.mrb[0].mxu0
    %v6267 = vadd.f32 %v6226, %v6266
    %v6268 = vpop.f32.mrb[0].mxu0
    %v6269 = vadd.f32 %v6228, %v6268
    %v6270 = vpop.f32.mrb[0].mxu0
    %v6271 = vpop.f32.mrb[0].mxu0
    %6272 = vdwg.mxu0
    %6273 = vmatprep.subr.bf16.mxu0 %v5730
    %6274 = vmatpush1.bf16.msra.mxu0 %v5729
    %6275 = vmatprep.subr.bf16.mxu0 %v5738
    %6276 = vmatpush1.bf16.msra.mxu0 %v5737
    %6277 = vmatprep.subr.bf16.mxu0 %v5746
    %6278 = vmatpush1.bf16.msra.mxu0 %v5745
    %6279 = vmatprep.subr.bf16.mxu0 %v5754
    %6280 = vmatpush1.bf16.msra.mxu0 %v5753
    %6281 = vmatprep.subr.bf16.mxu0 %v5762
    %6282 = vmatpush1.bf16.msra.mxu0 %v5761
    %6283 = vmatprep.subr.bf16.mxu0 %v5770
    %6284 = vmatpush1.bf16.msra.mxu0 %v5769
    %6285 = vmatprep.subr.bf16.mxu0 %v5778
    %6286 = vmatpush1.bf16.msra.mxu0 %v5777
    %6287 = vmatprep.subr.bf16.mxu0 %v5786
    %6288 = vmatpush1.bf16.msra.mxu0 %v5785
    %6289 = vmatprep.subr.bf16.mxu0 %v5794
    %6290 = vmatpush1.bf16.msra.mxu0 %v5793
    %6291 = vmatprep.subr.bf16.mxu0 %v5802
    %6292 = vmatpush1.bf16.msra.mxu0 %v5801
    %6293 = vmatprep.subr.bf16.mxu0 %v5810
    %6294 = vmatpush1.bf16.msra.mxu0 %v5809
    %6295 = vmatprep.subr.bf16.mxu0 %v5818
    %6296 = vmatpush1.bf16.msra.mxu0 %v5817
    %6297 = vmatprep.subr.bf16.mxu0 %v5826
    %6298 = vmatpush1.bf16.msra.mxu0 %v5825
    %6299 = vmatprep.subr.bf16.mxu0 %v5834
    %6300 = vmatpush1.bf16.msra.mxu0 %v5833
    %6301 = vmatprep.subr.bf16.mxu0 %v5842
    %6302 = vmatpush1.bf16.msra.mxu0 %v5841
    %6303 = vmatprep.subr.bf16.mxu0 %v5850
    %6304 = vmatpush1.bf16.msra.mxu0 %v5849
    %6305 = vmatprep.mubr.bf16.mxu0 %v4911
    %6306 = vmatmul.mubr.bf16.gmra.mrb[0].mxu0 %v4910
    %v6307 = vpop.f32.mrb[0].mxu0
    %v6308 = vadd.f32 %v5128, %v6307
    %v6309 = vpop.f32.mrb[0].mxu0
    %v6310 = vadd.f32 %v5132, %v6309
    %v6311 = vpop.f32.mrb[0].mxu0
    %v6312 = vpop.f32.mrb[0].mxu0
    %6313 = vdwg.mxu0
    %6314 = vmatprep.subr.bf16.mxu0 %v5858
    %6315 = vmatpush1.bf16.msra.mxu0 %v5857
    %6316 = vmatprep.subr.bf16.mxu0 %v5866
    %6317 = vmatpush1.bf16.msra.mxu0 %v5865
    %6318 = vmatprep.subr.bf16.mxu0 %v5874
    %6319 = vmatpush1.bf16.msra.mxu0 %v5873
    %6320 = vmatprep.subr.bf16.mxu0 %v5882
    %6321 = vmatpush1.bf16.msra.mxu0 %v5881
    %6322 = vmatprep.subr.bf16.mxu0 %v5890
    %6323 = vmatpush1.bf16.msra.mxu0 %v5889
    %6324 = vmatprep.subr.bf16.mxu0 %v5898
    %6325 = vmatpush1.bf16.msra.mxu0 %v5897
    %6326 = vmatprep.subr.bf16.mxu0 %v5906
    %6327 = vmatpush1.bf16.msra.mxu0 %v5905
    %6328 = vmatprep.subr.bf16.mxu0 %v5914
    %6329 = vmatpush1.bf16.msra.mxu0 %v5913
    %6330 = vmatprep.subr.bf16.mxu0 0
    %6331 = vmatpush1.bf16.msra.mxu0 0
    %6332 = vmatprep.subr.bf16.mxu0 0
    %6333 = vmatpush1.bf16.msra.mxu0 0
    %6334 = vmatprep.subr.bf16.mxu0 0
    %6335 = vmatpush1.bf16.msra.mxu0 0
    %6336 = vmatprep.subr.bf16.mxu0 0
    %6337 = vmatpush1.bf16.msra.mxu0 0
    %6338 = vmatprep.subr.bf16.mxu0 0
    %6339 = vmatpush1.bf16.msra.mxu0 0
    %6340 = vmatprep.subr.bf16.mxu0 0
    %6341 = vmatpush1.bf16.msra.mxu0 0
    %6342 = vmatprep.subr.bf16.mxu0 0
    %6343 = vmatpush1.bf16.msra.mxu0 0
    %6344 = vmatprep.subr.bf16.mxu0 0
    %6345 = vmatpush1.bf16.msra.mxu0 0
    %6346 = vmatprep.mubr.bf16.mxu0 0
    %6347 = vmatmul.mubr.bf16.gmra.mrb[0].mxu0 %v4912
    %v6348 = vpop.f32.mrb[0].mxu0
    %v6349 = vadd.f32 %v6308, %v6348
    %v6350 = vpop.f32.mrb[0].mxu0
    %v6351 = vadd.f32 %v6310, %v6350
    %v6352 = vpop.f32.mrb[0].mxu0
    %v6353 = vpop.f32.mrb[0].mxu0
    %6354 = vdwg.mxu0
    %6355 = vmatprep.subr.bf16.mxu0 %v5732
    %6356 = vmatpush1.bf16.msra.mxu0 %v5731
    %6357 = vmatprep.subr.bf16.mxu0 %v5740
    %6358 = vmatpush1.bf16.msra.mxu0 %v5739
    %6359 = vmatprep.subr.bf16.mxu0 %v5748
    %6360 = vmatpush1.bf16.msra.mxu0 %v5747
    %6361 = vmatprep.subr.bf16.mxu0 %v5756
    %6362 = vmatpush1.bf16.msra.mxu0 %v5755
    %6363 = vmatprep.subr.bf16.mxu0 %v5764
    %6364 = vmatpush1.bf16.msra.mxu0 %v5763
    %6365 = vmatprep.subr.bf16.mxu0 %v5772
    %6366 = vmatpush1.bf16.msra.mxu0 %v5771
    %6367 = vmatprep.subr.bf16.mxu0 %v5780
    %6368 = vmatpush1.bf16.msra.mxu0 %v5779
    %6369 = vmatprep.subr.bf16.mxu0 %v5788
    %6370 = vmatpush1.bf16.msra.mxu0 %v5787
    %6371 = vmatprep.subr.bf16.mxu0 %v5796
    %6372 = vmatpush1.bf16.msra.mxu0 %v5795
    %6373 = vmatprep.subr.bf16.mxu0 %v5804
    %6374 = vmatpush1.bf16.msra.mxu0 %v5803
    %6375 = vmatprep.subr.bf16.mxu0 %v5812
    %6376 = vmatpush1.bf16.msra.mxu0 %v5811
    %6377 = vmatprep.subr.bf16.mxu0 %v5820
    %6378 = vmatpush1.bf16.msra.mxu0 %v5819
    %6379 = vmatprep.subr.bf16.mxu0 %v5828
    %6380 = vmatpush1.bf16.msra.mxu0 %v5827
    %6381 = vmatprep.subr.bf16.mxu0 %v5836
    %6382 = vmatpush1.bf16.msra.mxu0 %v5835
    %6383 = vmatprep.subr.bf16.mxu0 %v5844
    %6384 = vmatpush1.bf16.msra.mxu0 %v5843
    %6385 = vmatprep.subr.bf16.mxu0 %v5852
    %6386 = vmatpush1.bf16.msra.mxu0 %v5851
    %6387 = vmatprep.mubr.bf16.mxu0 %v4911
    %6388 = vmatmul.mubr.bf16.gmra.mrb[0].mxu0 %v4910
    %v6389 = vpop.f32.mrb[0].mxu0
    %v6390 = vadd.f32 %v5136, %v6389
    %v6391 = vpop.f32.mrb[0].mxu0
    %v6392 = vadd.f32 %v5140, %v6391
    %v6393 = vpop.f32.mrb[0].mxu0
    %v6394 = vpop.f32.mrb[0].mxu0
    %6395 = vdwg.mxu0
    %6396 = vmatprep.subr.bf16.mxu0 %v5860
    %6397 = vmatpush1.bf16.msra.mxu0 %v5859
    %6398 = vmatprep.subr.bf16.mxu0 %v5868
    %6399 = vmatpush1.bf16.msra.mxu0 %v5867
    %6400 = vmatprep.subr.bf16.mxu0 %v5876
    %6401 = vmatpush1.bf16.msra.mxu0 %v5875
    %6402 = vmatprep.subr.bf16.mxu0 %v5884
    %6403 = vmatpush1.bf16.msra.mxu0 %v5883
    %6404 = vmatprep.subr.bf16.mxu0 %v5892
    %6405 = vmatpush1.bf16.msra.mxu0 %v5891
    %6406 = vmatprep.subr.bf16.mxu0 %v5900
    %6407 = vmatpush1.bf16.msra.mxu0 %v5899
    %6408 = vmatprep.subr.bf16.mxu0 %v5908
    %6409 = vmatpush1.bf16.msra.mxu0 %v5907
    %6410 = vmatprep.subr.bf16.mxu0 %v5916
    %6411 = vmatpush1.bf16.msra.mxu0 %v5915
    %6412 = vmatprep.subr.bf16.mxu0 0
    %6413 = vmatpush1.bf16.msra.mxu0 0
    %6414 = vmatprep.subr.bf16.mxu0 0
    %6415 = vmatpush1.bf16.msra.mxu0 0
    %6416 = vmatprep.subr.bf16.mxu0 0
    %6417 = vmatpush1.bf16.msra.mxu0 0
    %6418 = vmatprep.subr.bf16.mxu0 0
    %6419 = vmatpush1.bf16.msra.mxu0 0
    %6420 = vmatprep.subr.bf16.mxu0 0
    %6421 = vmatpush1.bf16.msra.mxu0 0
    %6422 = vmatprep.subr.bf16.mxu0 0
    %6423 = vmatpush1.bf16.msra.mxu0 0
    %6424 = vmatprep.subr.bf16.mxu0 0
    %6425 = vmatpush1.bf16.msra.mxu0 0
    %6426 = vmatprep.subr.bf16.mxu0 0
    %6427 = vmatpush1.bf16.msra.mxu0 0
    %6428 = vmatprep.mubr.bf16.mxu0 0
    %6429 = vmatmul.mubr.bf16.gmra.mrb[0].mxu0 %v4912
    %v6430 = vpop.f32.mrb[0].mxu0
    %v6431 = vadd.f32 %v6390, %v6430
    %v6432 = vpop.f32.mrb[0].mxu0
    %v6433 = vadd.f32 %v6392, %v6432
    %v6434 = vpop.f32.mrb[0].mxu0
    %v6435 = vpop.f32.mrb[0].mxu0
    %6436 = vdwg.mxu0
    %v6437 = vmax.f32 %v6185, 0.0
    %v6438 = vmax.f32 %v6187, 0.0
    %v6439 = vmax.f32 %v6267, 0.0
    %v6440 = vmax.f32 %v6269, 0.0
    %v6441 = vmax.f32 %v6349, 0.0
    %v6442 = vmax.f32 %v6351, 0.0
    %v6443 = vmax.f32 %v6431, 0.0
    %v6444 = vmax.f32 %v6433, 0.0
    %v6445 = vpack.c.bf16 %v6437, %v6437
    %v6446 = vpack.c.bf16 %v6438, %v6438
    %v6447 = vpack.c.bf16 %v6439, %v6439
    %v6448 = vpack.c.bf16 %v6440, %v6440
    %v6449 = vpack.c.bf16 %v6441, %v6441
    %v6450 = vpack.c.bf16 %v6442, %v6442
    %v6451 = vpack.c.bf16 %v6443, %v6443
    %v6452 = vpack.c.bf16 %v6444, %v6444
    %s6453 = scalar_lea.vmem %s12, 512
    %v6454 = vld [vmem:[%s6453] sm:$0xf]
    %v6455 = vld [vmem:[%s6453 + $0x4] sm:$0xf]
    %v6456 = vld [vmem:[%s6453 + $0x8] sm:$0xf]
    %v6457 = vld [vmem:[%s6453 + $0xc] sm:$0xf]
    %v6458 = vld [vmem:[%s6453 + $0x10] sm:$0xf]
    %v6459 = vld [vmem:[%s6453 + $0x14] sm:$0xf]
    %v6460 = vld [vmem:[%s6453 + $0x18] sm:$0xf]
    %v6461 = vld [vmem:[%s6453 + $0x1c] sm:$0xf]
    %v6462 = vld [vmem:[%s6453 + $0x20] sm:$0xf]
    %v6463 = vld [vmem:[%s6453 + $0x24] sm:$0xf]
    %v6464 = vld [vmem:[%s6453 + $0x28] sm:$0xf]
    %v6465 = vld [vmem:[%s6453 + $0x2c] sm:$0xf]
    %v6466 = vld [vmem:[%s6453 + $0x30] sm:$0xf]
    %v6467 = vld [vmem:[%s6453 + $0x34] sm:$0xf]
    %v6468 = vld [vmem:[%s6453 + $0x38] sm:$0xf]
    %v6469 = vld [vmem:[%s6453 + $0x3c] sm:$0xf]
    %v6470 = vld [vmem:[%s6453 + $0x40] sm:$0xf]
    %v6471 = vld [vmem:[%s6453 + $0x44] sm:$0xf]
    %v6472 = vld [vmem:[%s6453 + $0x48] sm:$0xf]
    %v6473 = vld [vmem:[%s6453 + $0x4c] sm:$0xf]
    %v6474 = vld [vmem:[%s6453 + $0x50] sm:$0xf]
    %v6475 = vld [vmem:[%s6453 + $0x54] sm:$0xf]
    %v6476 = vld [vmem:[%s6453 + $0x58] sm:$0xf]
    %v6477 = vld [vmem:[%s6453 + $0x5c] sm:$0xf]
    %v6478 = vld [vmem:[%s6453 + $0x60] sm:$0xf]
    %v6479 = vld [vmem:[%s6453 + $0x64] sm:$0xf]
    %v6480 = vld [vmem:[%s6453 + $0x68] sm:$0xf]
    %v6481 = vld [vmem:[%s6453 + $0x6c] sm:$0xf]
    %v6482 = vld [vmem:[%s6453 + $0x70] sm:$0xf]
    %v6483 = vld [vmem:[%s6453 + $0x74] sm:$0xf]
    %v6484 = vld [vmem:[%s6453 + $0x78] sm:$0xf]
    %v6485 = vld [vmem:[%s6453 + $0x7c] sm:$0xf]
    %v6486 = vld [vmem:[%s6453 + $0x80] sm:$0xf]
    %v6487 = vld [vmem:[%s6453 + $0x84] sm:$0xf]
    %v6488 = vld [vmem:[%s6453 + $0x88] sm:$0xf]
    %v6489 = vld [vmem:[%s6453 + $0x8c] sm:$0xf]
    %v6490 = vld [vmem:[%s6453 + $0x90] sm:$0xf]
    %v6491 = vld [vmem:[%s6453 + $0x94] sm:$0xf]
    %v6492 = vld [vmem:[%s6453 + $0x98] sm:$0xf]
    %v6493 = vld [vmem:[%s6453 + $0x9c] sm:$0xf]
    %v6494 = vld [vmem:[%s6453 + $0xa0] sm:$0xf]
    %v6495 = vld [vmem:[%s6453 + $0xa4] sm:$0xf]
    %v6496 = vld [vmem:[%s6453 + $0xa8] sm:$0xf]
    %v6497 = vld [vmem:[%s6453 + $0xac] sm:$0xf]
    %v6498 = vld [vmem:[%s6453 + $0xb0] sm:$0xf]
    %v6499 = vld [vmem:[%s6453 + $0xb4] sm:$0xf]
    %v6500 = vld [vmem:[%s6453 + $0xb8] sm:$0xf]
    %v6501 = vld [vmem:[%s6453 + $0xbc] sm:$0xf]
    %v6502 = vld [vmem:[%s6453 + $0xc0] sm:$0xf]
    %v6503 = vld [vmem:[%s6453 + $0xc4] sm:$0xf]
    %v6504 = vld [vmem:[%s6453 + $0xc8] sm:$0xf]
    %v6505 = vld [vmem:[%s6453 + $0xcc] sm:$0xf]
    %v6506 = vld [vmem:[%s6453 + $0xd0] sm:$0xf]
    %v6507 = vld [vmem:[%s6453 + $0xd4] sm:$0xf]
    %v6508 = vld [vmem:[%s6453 + $0xd8] sm:$0xf]
    %v6509 = vld [vmem:[%s6453 + $0xdc] sm:$0xf]
    %v6510 = vld [vmem:[%s6453 + $0xe0] sm:$0xf]
    %v6511 = vld [vmem:[%s6453 + $0xe4] sm:$0xf]
    %v6512 = vld [vmem:[%s6453 + $0xe8] sm:$0xf]
    %v6513 = vld [vmem:[%s6453 + $0xec] sm:$0xf]
    %v6514 = vld [vmem:[%s6453 + $0xf0] sm:$0xf]
    %v6515 = vld [vmem:[%s6453 + $0xf4] sm:$0xf]
    %v6516 = vld [vmem:[%s6453 + $0xf8] sm:$0xf]
    %v6517 = vld [vmem:[%s6453 + $0xfc] sm:$0xf]
    %v6518 = vld [vmem:[%s6453 + $0x100] sm:$0xf]
    %v6519 = vld [vmem:[%s6453 + $0x104] sm:$0xf]
    %v6520 = vld [vmem:[%s6453 + $0x108] sm:$0xf]
    %v6521 = vld [vmem:[%s6453 + $0x10c] sm:$0xf]
    %v6522 = vld [vmem:[%s6453 + $0x110] sm:$0xf]
    %v6523 = vld [vmem:[%s6453 + $0x114] sm:$0xf]
    %v6524 = vld [vmem:[%s6453 + $0x118] sm:$0xf]
    %v6525 = vld [vmem:[%s6453 + $0x11c] sm:$0xf]
    %v6526 = vld [vmem:[%s6453 + $0x120] sm:$0xf]
    %v6527 = vld [vmem:[%s6453 + $0x124] sm:$0xf]
    %v6528 = vld [vmem:[%s6453 + $0x128] sm:$0xf]
    %v6529 = vld [vmem:[%s6453 + $0x12c] sm:$0xf]
    %v6530 = vld [vmem:[%s6453 + $0x130] sm:$0xf]
    %v6531 = vld [vmem:[%s6453 + $0x134] sm:$0xf]
    %v6532 = vld [vmem:[%s6453 + $0x138] sm:$0xf]
    %v6533 = vld [vmem:[%s6453 + $0x13c] sm:$0xf]
    %v6534 = vld [vmem:[%s6453 + $0x140] sm:$0xf]
    %v6535 = vld [vmem:[%s6453 + $0x144] sm:$0xf]
    %v6536 = vld [vmem:[%s6453 + $0x148] sm:$0xf]
    %v6537 = vld [vmem:[%s6453 + $0x14c] sm:$0xf]
    %v6538 = vld [vmem:[%s6453 + $0x150] sm:$0xf]
    %v6539 = vld [vmem:[%s6453 + $0x154] sm:$0xf]
    %v6540 = vld [vmem:[%s6453 + $0x158] sm:$0xf]
    %v6541 = vld [vmem:[%s6453 + $0x15c] sm:$0xf]
    %v6542 = vld [vmem:[%s6453 + $0x160] sm:$0xf]
    %v6543 = vld [vmem:[%s6453 + $0x164] sm:$0xf]
    %v6544 = vld [vmem:[%s6453 + $0x168] sm:$0xf]
    %v6545 = vld [vmem:[%s6453 + $0x16c] sm:$0xf]
    %v6546 = vld [vmem:[%s6453 + $0x170] sm:$0xf]
    %v6547 = vld [vmem:[%s6453 + $0x174] sm:$0xf]
    %v6548 = vld [vmem:[%s6453 + $0x178] sm:$0xf]
    %v6549 = vld [vmem:[%s6453 + $0x17c] sm:$0xf]
    %v6550 = vld [vmem:[%s6453 + $0x180] sm:$0xf]
    %v6551 = vld [vmem:[%s6453 + $0x184] sm:$0xf]
    %v6552 = vld [vmem:[%s6453 + $0x188] sm:$0xf]
    %v6553 = vld [vmem:[%s6453 + $0x18c] sm:$0xf]
    %v6554 = vld [vmem:[%s6453 + $0x190] sm:$0xf]
    %v6555 = vld [vmem:[%s6453 + $0x194] sm:$0xf]
    %v6556 = vld [vmem:[%s6453 + $0x198] sm:$0xf]
    %v6557 = vld [vmem:[%s6453 + $0x19c] sm:$0xf]
    %v6558 = vld [vmem:[%s6453 + $0x1a0] sm:$0xf]
    %v6559 = vld [vmem:[%s6453 + $0x1a4] sm:$0xf]
    %v6560 = vld [vmem:[%s6453 + $0x1a8] sm:$0xf]
    %v6561 = vld [vmem:[%s6453 + $0x1ac] sm:$0xf]
    %v6562 = vld [vmem:[%s6453 + $0x1b0] sm:$0xf]
    %v6563 = vld [vmem:[%s6453 + $0x1b4] sm:$0xf]
    %v6564 = vld [vmem:[%s6453 + $0x1b8] sm:$0xf]
    %v6565 = vld [vmem:[%s6453 + $0x1bc] sm:$0xf]
    %v6566 = vld [vmem:[%s6453 + $0x1c0] sm:$0xf]
    %v6567 = vld [vmem:[%s6453 + $0x1c4] sm:$0xf]
    %v6568 = vld [vmem:[%s6453 + $0x1c8] sm:$0xf]
    %v6569 = vld [vmem:[%s6453 + $0x1cc] sm:$0xf]
    %v6570 = vld [vmem:[%s6453 + $0x1d0] sm:$0xf]
    %v6571 = vld [vmem:[%s6453 + $0x1d4] sm:$0xf]
    %v6572 = vld [vmem:[%s6453 + $0x1d8] sm:$0xf]
    %v6573 = vld [vmem:[%s6453 + $0x1dc] sm:$0xf]
    %v6574 = vld [vmem:[%s6453 + $0x1e0] sm:$0xf]
    %v6575 = vld [vmem:[%s6453 + $0x1e4] sm:$0xf]
    %v6576 = vld [vmem:[%s6453 + $0x1e8] sm:$0xf]
    %v6577 = vld [vmem:[%s6453 + $0x1ec] sm:$0xf]
    %v6578 = vld [vmem:[%s6453 + $0x1f0] sm:$0xf]
    %v6579 = vld [vmem:[%s6453 + $0x1f4] sm:$0xf]
    %v6580 = vld [vmem:[%s6453 + $0x1f8] sm:$0xf]
    %v6581 = vld [vmem:[%s6453 + $0x1fc] sm:$0xf]
    %s6582 = scalar_lea.vmem [#allocation20], 1
    %v6583 = vld [vmem:[%s6582] sm:$0x1]
    %v6585 = vlaneseq
    %v6586 = vshrl.u32 %v6585, 7
    %v6587 = vsub.s32 0, %v6586
    %v6588 = vrot.slane %v6583, %v6587
    %v6718 = vunpack.c.l.b16 %v6454
    %v6719 = vunpack.c.l.b16 %v6455
    %v6720 = vunpack.c.l.b16 %v6456
    %v6721 = vunpack.c.l.b16 %v6457
    %v6722 = vunpack.c.l.b16 %v6458
    %v6723 = vunpack.c.l.b16 %v6459
    %v6724 = vunpack.c.l.b16 %v6460
    %v6725 = vunpack.c.l.b16 %v6461
    %v6726 = vunpack.c.l.b16 %v6462
    %v6727 = vunpack.c.l.b16 %v6463
    %v6728 = vunpack.c.l.b16 %v6464
    %v6729 = vunpack.c.l.b16 %v6465
    %v6730 = vunpack.c.l.b16 %v6466
    %v6731 = vunpack.c.l.b16 %v6467
    %v6732 = vunpack.c.l.b16 %v6468
    %v6733 = vunpack.c.l.b16 %v6469
    %v6734 = vunpack.c.l.b16 %v6470
    %v6735 = vunpack.c.l.b16 %v6471
    %v6736 = vunpack.c.l.b16 %v6472
    %v6737 = vunpack.c.l.b16 %v6473
    %v6738 = vunpack.c.l.b16 %v6474
    %v6739 = vunpack.c.l.b16 %v6475
    %v6740 = vunpack.c.l.b16 %v6476
    %v6741 = vunpack.c.l.b16 %v6477
    %v6742 = vunpack.c.l.b16 %v6478
    %v6743 = vunpack.c.l.b16 %v6479
    %v6744 = vunpack.c.l.b16 %v6480
    %v6745 = vunpack.c.l.b16 %v6481
    %v6746 = vunpack.c.l.b16 %v6482
    %v6747 = vunpack.c.l.b16 %v6483
    %v6748 = vunpack.c.l.b16 %v6484
    %v6749 = vunpack.c.l.b16 %v6485
    %v6750 = vunpack.c.l.b16 %v6486
    %v6751 = vunpack.c.l.b16 %v6487
    %v6752 = vunpack.c.l.b16 %v6488
    %v6753 = vunpack.c.l.b16 %v6489
    %v6754 = vunpack.c.l.b16 %v6490
    %v6755 = vunpack.c.l.b16 %v6491
    %v6756 = vunpack.c.l.b16 %v6492
    %v6757 = vunpack.c.l.b16 %v6493
    %v6758 = vunpack.c.l.b16 %v6494
    %v6759 = vunpack.c.l.b16 %v6495
    %v6760 = vunpack.c.l.b16 %v6496
    %v6761 = vunpack.c.l.b16 %v6497
    %v6762 = vunpack.c.l.b16 %v6498
    %v6763 = vunpack.c.l.b16 %v6499
    %v6764 = vunpack.c.l.b16 %v6500
    %v6765 = vunpack.c.l.b16 %v6501
    %v6766 = vunpack.c.l.b16 %v6502
    %v6767 = vunpack.c.l.b16 %v6503
    %v6768 = vunpack.c.l.b16 %v6504
    %v6769 = vunpack.c.l.b16 %v6505
    %v6770 = vunpack.c.l.b16 %v6506
    %v6771 = vunpack.c.l.b16 %v6507
    %v6772 = vunpack.c.l.b16 %v6508
    %v6773 = vunpack.c.l.b16 %v6509
    %v6774 = vunpack.c.l.b16 %v6510
    %v6775 = vunpack.c.l.b16 %v6511
    %v6776 = vunpack.c.l.b16 %v6512
    %v6777 = vunpack.c.l.b16 %v6513
    %v6778 = vunpack.c.l.b16 %v6514
    %v6779 = vunpack.c.l.b16 %v6515
    %v6780 = vunpack.c.l.b16 %v6516
    %v6781 = vunpack.c.l.b16 %v6517
    %v6782 = vunpack.c.l.b16 %v6518
    %v6783 = vunpack.c.l.b16 %v6519
    %v6784 = vunpack.c.l.b16 %v6520
    %v6785 = vunpack.c.l.b16 %v6521
    %v6786 = vunpack.c.l.b16 %v6522
    %v6787 = vunpack.c.l.b16 %v6523
    %v6788 = vunpack.c.l.b16 %v6524
    %v6789 = vunpack.c.l.b16 %v6525
    %v6790 = vunpack.c.l.b16 %v6526
    %v6791 = vunpack.c.l.b16 %v6527
    %v6792 = vunpack.c.l.b16 %v6528
    %v6793 = vunpack.c.l.b16 %v6529
    %v6794 = vunpack.c.l.b16 %v6530
    %v6795 = vunpack.c.l.b16 %v6531
    %v6796 = vunpack.c.l.b16 %v6532
    %v6797 = vunpack.c.l.b16 %v6533
    %v6798 = vunpack.c.l.b16 %v6534
    %v6799 = vunpack.c.l.b16 %v6535
    %v6800 = vunpack.c.l.b16 %v6536
    %v6801 = vunpack.c.l.b16 %v6537
    %v6802 = vunpack.c.l.b16 %v6538
    %v6803 = vunpack.c.l.b16 %v6539
    %v6804 = vunpack.c.l.b16 %v6540
    %v6805 = vunpack.c.l.b16 %v6541
    %v6806 = vunpack.c.l.b16 %v6542
    %v6807 = vunpack.c.l.b16 %v6543
    %v6808 = vunpack.c.l.b16 %v6544
    %v6809 = vunpack.c.l.b16 %v6545
    %v6810 = vunpack.c.l.b16 %v6546
    %v6811 = vunpack.c.l.b16 %v6547
    %v6812 = vunpack.c.l.b16 %v6548
    %v6813 = vunpack.c.l.b16 %v6549
    %v6814 = vunpack.c.l.b16 %v6550
    %v6815 = vunpack.c.l.b16 %v6551
    %v6816 = vunpack.c.l.b16 %v6552
    %v6817 = vunpack.c.l.b16 %v6553
    %v6818 = vunpack.c.l.b16 %v6554
    %v6819 = vunpack.c.l.b16 %v6555
    %v6820 = vunpack.c.l.b16 %v6556
    %v6821 = vunpack.c.l.b16 %v6557
    %v6822 = vunpack.c.l.b16 %v6558
    %v6823 = vunpack.c.l.b16 %v6559
    %v6824 = vunpack.c.l.b16 %v6560
    %v6825 = vunpack.c.l.b16 %v6561
    %v6826 = vunpack.c.l.b16 %v6562
    %v6827 = vunpack.c.l.b16 %v6563
    %v6828 = vunpack.c.l.b16 %v6564
    %v6829 = vunpack.c.l.b16 %v6565
    %v6830 = vunpack.c.l.b16 %v6566
    %v6831 = vunpack.c.l.b16 %v6567
    %v6832 = vunpack.c.l.b16 %v6568
    %v6833 = vunpack.c.l.b16 %v6569
    %v6834 = vunpack.c.l.b16 %v6570
    %v6835 = vunpack.c.l.b16 %v6571
    %v6836 = vunpack.c.l.b16 %v6572
    %v6837 = vunpack.c.l.b16 %v6573
    %v6838 = vunpack.c.l.b16 %v6574
    %v6839 = vunpack.c.l.b16 %v6575
    %v6840 = vunpack.c.l.b16 %v6576
    %v6841 = vunpack.c.l.b16 %v6577
    %v6842 = vunpack.c.l.b16 %v6578
    %v6843 = vunpack.c.l.b16 %v6579
    %v6844 = vunpack.c.l.b16 %v6580
    %v6845 = vunpack.c.l.b16 %v6581
    %v6846 = vpack.c.b16 %v6719, %v6718
    %v6847 = vpack.c.b16 %v6721, %v6720
    %v6848 = vpack.c.b16 %v6723, %v6722
    %v6849 = vpack.c.b16 %v6725, %v6724
    %v6850 = vpack.c.b16 %v6727, %v6726
    %v6851 = vpack.c.b16 %v6729, %v6728
    %v6852 = vpack.c.b16 %v6731, %v6730
    %v6853 = vpack.c.b16 %v6733, %v6732
    %v6854 = vpack.c.b16 %v6735, %v6734
    %v6855 = vpack.c.b16 %v6737, %v6736
    %v6856 = vpack.c.b16 %v6739, %v6738
    %v6857 = vpack.c.b16 %v6741, %v6740
    %v6858 = vpack.c.b16 %v6743, %v6742
    %v6859 = vpack.c.b16 %v6745, %v6744
    %v6860 = vpack.c.b16 %v6747, %v6746
    %v6861 = vpack.c.b16 %v6749, %v6748
    %v6862 = vpack.c.b16 %v6751, %v6750
    %v6863 = vpack.c.b16 %v6753, %v6752
    %v6864 = vpack.c.b16 %v6755, %v6754
    %v6865 = vpack.c.b16 %v6757, %v6756
    %v6866 = vpack.c.b16 %v6759, %v6758
    %v6867 = vpack.c.b16 %v6761, %v6760
    %v6868 = vpack.c.b16 %v6763, %v6762
    %v6869 = vpack.c.b16 %v6765, %v6764
    %v6870 = vpack.c.b16 %v6767, %v6766
    %v6871 = vpack.c.b16 %v6769, %v6768
    %v6872 = vpack.c.b16 %v6771, %v6770
    %v6873 = vpack.c.b16 %v6773, %v6772
    %v6874 = vpack.c.b16 %v6775, %v6774
    %v6875 = vpack.c.b16 %v6777, %v6776
    %v6876 = vpack.c.b16 %v6779, %v6778
    %v6877 = vpack.c.b16 %v6781, %v6780
    %v6878 = vpack.c.b16 %v6783, %v6782
    %v6879 = vpack.c.b16 %v6785, %v6784
    %v6880 = vpack.c.b16 %v6787, %v6786
    %v6881 = vpack.c.b16 %v6789, %v6788
    %v6882 = vpack.c.b16 %v6791, %v6790
    %v6883 = vpack.c.b16 %v6793, %v6792
    %v6884 = vpack.c.b16 %v6795, %v6794
    %v6885 = vpack.c.b16 %v6797, %v6796
    %v6886 = vpack.c.b16 %v6799, %v6798
    %v6887 = vpack.c.b16 %v6801, %v6800
    %v6888 = vpack.c.b16 %v6803, %v6802
    %v6889 = vpack.c.b16 %v6805, %v6804
    %v6890 = vpack.c.b16 %v6807, %v6806
    %v6891 = vpack.c.b16 %v6809, %v6808
    %v6892 = vpack.c.b16 %v6811, %v6810
    %v6893 = vpack.c.b16 %v6813, %v6812
    %v6894 = vpack.c.b16 %v6815, %v6814
    %v6895 = vpack.c.b16 %v6817, %v6816
    %v6896 = vpack.c.b16 %v6819, %v6818
    %v6897 = vpack.c.b16 %v6821, %v6820
    %v6898 = vpack.c.b16 %v6823, %v6822
    %v6899 = vpack.c.b16 %v6825, %v6824
    %v6900 = vpack.c.b16 %v6827, %v6826
    %v6901 = vpack.c.b16 %v6829, %v6828
    %v6902 = vpack.c.b16 %v6831, %v6830
    %v6903 = vpack.c.b16 %v6833, %v6832
    %v6904 = vpack.c.b16 %v6835, %v6834
    %v6905 = vpack.c.b16 %v6837, %v6836
    %v6906 = vpack.c.b16 %v6839, %v6838
    %v6907 = vpack.c.b16 %v6841, %v6840
    %v6908 = vpack.c.b16 %v6843, %v6842
    %v6909 = vpack.c.b16 %v6845, %v6844
    %6974 = vmatprep.subr.bf16.mxu0 0
    %6975 = vmatpush1.bf16.msra.mxu0 %v6846
    %6976 = vmatprep.subr.bf16.mxu0 0
    %6977 = vmatpush1.bf16.msra.mxu0 %v6847
    %6978 = vmatprep.subr.bf16.mxu0 0
    %6979 = vmatpush1.bf16.msra.mxu0 %v6848
    %6980 = vmatprep.subr.bf16.mxu0 0
    %6981 = vmatpush1.bf16.msra.mxu0 %v6849
    %6982 = vmatprep.subr.bf16.mxu0 0
    %6983 = vmatpush1.bf16.msra.mxu0 %v6850
    %6984 = vmatprep.subr.bf16.mxu0 0
    %6985 = vmatpush1.bf16.msra.mxu0 %v6851
    %6986 = vmatprep.subr.bf16.mxu0 0
    %6987 = vmatpush1.bf16.msra.mxu0 %v6852
    %6988 = vmatprep.subr.bf16.mxu0 0
    %6989 = vmatpush1.bf16.msra.mxu0 %v6853
    %6990 = vmatprep.subr.bf16.mxu0 0
    %6991 = vmatpush1.bf16.msra.mxu0 %v6854
    %6992 = vmatprep.subr.bf16.mxu0 0
    %6993 = vmatpush1.bf16.msra.mxu0 %v6855
    %6994 = vmatprep.subr.bf16.mxu0 0
    %6995 = vmatpush1.bf16.msra.mxu0 %v6856
    %6996 = vmatprep.subr.bf16.mxu0 0
    %6997 = vmatpush1.bf16.msra.mxu0 %v6857
    %6998 = vmatprep.subr.bf16.mxu0 0
    %6999 = vmatpush1.bf16.msra.mxu0 %v6858
    %7000 = vmatprep.subr.bf16.mxu0 0
    %7001 = vmatpush1.bf16.msra.mxu0 %v6859
    %7002 = vmatprep.subr.bf16.mxu0 0
    %7003 = vmatpush1.bf16.msra.mxu0 %v6860
    %7004 = vmatprep.subr.bf16.mxu0 0
    %7005 = vmatpush1.bf16.msra.mxu0 %v6861
    %7006 = vmatprep.mubr.bf16.mxu0 %v6446
    %7007 = vmatmul.mubr.bf16.gmra.mrb[0].mxu0 %v6445
    %v7008 = vpop.f32.mrb[0].mxu0
    %v7009 = vadd.f32 %v6588, %v7008
    %v7010 = vpop.f32.mrb[0].mxu0
    %v7011 = vpop.f32.mrb[0].mxu0
    %v7012 = vpop.f32.mrb[0].mxu0
    %7013 = vdwg.mxu0
    %7014 = vmatprep.subr.bf16.mxu0 0
    %7015 = vmatpush1.bf16.msra.mxu0 %v6862
    %7016 = vmatprep.subr.bf16.mxu0 0
    %7017 = vmatpush1.bf16.msra.mxu0 %v6863
    %7018 = vmatprep.subr.bf16.mxu0 0
    %7019 = vmatpush1.bf16.msra.mxu0 %v6864
    %7020 = vmatprep.subr.bf16.mxu0 0
    %7021 = vmatpush1.bf16.msra.mxu0 %v6865
    %7022 = vmatprep.subr.bf16.mxu0 0
    %7023 = vmatpush1.bf16.msra.mxu0 %v6866
    %7024 = vmatprep.subr.bf16.mxu0 0
    %7025 = vmatpush1.bf16.msra.mxu0 %v6867
    %7026 = vmatprep.subr.bf16.mxu0 0
    %7027 = vmatpush1.bf16.msra.mxu0 %v6868
    %7028 = vmatprep.subr.bf16.mxu0 0
    %7029 = vmatpush1.bf16.msra.mxu0 %v6869
    %7030 = vmatprep.subr.bf16.mxu0 0
    %7031 = vmatpush1.bf16.msra.mxu0 %v6870
    %7032 = vmatprep.subr.bf16.mxu0 0
    %7033 = vmatpush1.bf16.msra.mxu0 %v6871
    %7034 = vmatprep.subr.bf16.mxu0 0
    %7035 = vmatpush1.bf16.msra.mxu0 %v6872
    %7036 = vmatprep.subr.bf16.mxu0 0
    %7037 = vmatpush1.bf16.msra.mxu0 %v6873
    %7038 = vmatprep.subr.bf16.mxu0 0
    %7039 = vmatpush1.bf16.msra.mxu0 %v6874
    %7040 = vmatprep.subr.bf16.mxu0 0
    %7041 = vmatpush1.bf16.msra.mxu0 %v6875
    %7042 = vmatprep.subr.bf16.mxu0 0
    %7043 = vmatpush1.bf16.msra.mxu0 %v6876
    %7044 = vmatprep.subr.bf16.mxu0 0
    %7045 = vmatpush1.bf16.msra.mxu0 %v6877
    %7046 = vmatprep.mubr.bf16.mxu0 %v6448
    %7047 = vmatmul.mubr.bf16.gmra.mrb[0].mxu0 %v6447
    %v7048 = vpop.f32.mrb[0].mxu0
    %v7049 = vadd.f32 %v7009, %v7048
    %v7050 = vpop.f32.mrb[0].mxu0
    %v7051 = vpop.f32.mrb[0].mxu0
    %v7052 = vpop.f32.mrb[0].mxu0
    %7053 = vdwg.mxu0
    %7054 = vmatprep.subr.bf16.mxu0 0
    %7055 = vmatpush1.bf16.msra.mxu0 %v6878
    %7056 = vmatprep.subr.bf16.mxu0 0
    %7057 = vmatpush1.bf16.msra.mxu0 %v6879
    %7058 = vmatprep.subr.bf16.mxu0 0
    %7059 = vmatpush1.bf16.msra.mxu0 %v6880
    %7060 = vmatprep.subr.bf16.mxu0 0
    %7061 = vmatpush1.bf16.msra.mxu0 %v6881
    %7062 = vmatprep.subr.bf16.mxu0 0
    %7063 = vmatpush1.bf16.msra.mxu0 %v6882
    %7064 = vmatprep.subr.bf16.mxu0 0
    %7065 = vmatpush1.bf16.msra.mxu0 %v6883
    %7066 = vmatprep.subr.bf16.mxu0 0
    %7067 = vmatpush1.bf16.msra.mxu0 %v6884
    %7068 = vmatprep.subr.bf16.mxu0 0
    %7069 = vmatpush1.bf16.msra.mxu0 %v6885
    %7070 = vmatprep.subr.bf16.mxu0 0
    %7071 = vmatpush1.bf16.msra.mxu0 %v6886
    %7072 = vmatprep.subr.bf16.mxu0 0
    %7073 = vmatpush1.bf16.msra.mxu0 %v6887
    %7074 = vmatprep.subr.bf16.mxu0 0
    %7075 = vmatpush1.bf16.msra.mxu0 %v6888
    %7076 = vmatprep.subr.bf16.mxu0 0
    %7077 = vmatpush1.bf16.msra.mxu0 %v6889
    %7078 = vmatprep.subr.bf16.mxu0 0
    %7079 = vmatpush1.bf16.msra.mxu0 %v6890
    %7080 = vmatprep.subr.bf16.mxu0 0
    %7081 = vmatpush1.bf16.msra.mxu0 %v6891
    %7082 = vmatprep.subr.bf16.mxu0 0
    %7083 = vmatpush1.bf16.msra.mxu0 %v6892
    %7084 = vmatprep.subr.bf16.mxu0 0
    %7085 = vmatpush1.bf16.msra.mxu0 %v6893
    %7086 = vmatprep.mubr.bf16.mxu0 %v6450
    %7087 = vmatmul.mubr.bf16.gmra.mrb[0].mxu0 %v6449
    %v7088 = vpop.f32.mrb[0].mxu0
    %v7089 = vadd.f32 %v7049, %v7088
    %v7090 = vpop.f32.mrb[0].mxu0
    %v7091 = vpop.f32.mrb[0].mxu0
    %v7092 = vpop.f32.mrb[0].mxu0
    %7093 = vdwg.mxu0
    %7094 = vmatprep.subr.bf16.mxu0 0
    %7095 = vmatpush1.bf16.msra.mxu0 %v6894
    %7096 = vmatprep.subr.bf16.mxu0 0
    %7097 = vmatpush1.bf16.msra.mxu0 %v6895
    %7098 = vmatprep.subr.bf16.mxu0 0
    %7099 = vmatpush1.bf16.msra.mxu0 %v6896
    %7100 = vmatprep.subr.bf16.mxu0 0
    %7101 = vmatpush1.bf16.msra.mxu0 %v6897
    %7102 = vmatprep.subr.bf16.mxu0 0
    %7103 = vmatpush1.bf16.msra.mxu0 %v6898
    %7104 = vmatprep.subr.bf16.mxu0 0
    %7105 = vmatpush1.bf16.msra.mxu0 %v6899
    %7106 = vmatprep.subr.bf16.mxu0 0
    %7107 = vmatpush1.bf16.msra.mxu0 %v6900
    %7108 = vmatprep.subr.bf16.mxu0 0
    %7109 = vmatpush1.bf16.msra.mxu0 %v6901
    %7110 = vmatprep.subr.bf16.mxu0 0
    %7111 = vmatpush1.bf16.msra.mxu0 %v6902
    %7112 = vmatprep.subr.bf16.mxu0 0
    %7113 = vmatpush1.bf16.msra.mxu0 %v6903
    %7114 = vmatprep.subr.bf16.mxu0 0
    %7115 = vmatpush1.bf16.msra.mxu0 %v6904
    %7116 = vmatprep.subr.bf16.mxu0 0
    %7117 = vmatpush1.bf16.msra.mxu0 %v6905
    %7118 = vmatprep.subr.bf16.mxu0 0
    %7119 = vmatpush1.bf16.msra.mxu0 %v6906
    %7120 = vmatprep.subr.bf16.mxu0 0
    %7121 = vmatpush1.bf16.msra.mxu0 %v6907
    %7122 = vmatprep.subr.bf16.mxu0 0
    %7123 = vmatpush1.bf16.msra.mxu0 %v6908
    %7124 = vmatprep.subr.bf16.mxu0 0
    %7125 = vmatpush1.bf16.msra.mxu0 %v6909
    %7126 = vmatprep.mubr.bf16.mxu0 %v6452
    %7127 = vmatmul.mubr.bf16.gmra.mrb[0].mxu0 %v6451
    %v7128 = vpop.f32.mrb[0].mxu0
    %v7129 = vadd.f32 %v7089, %v7128
    %v7130 = vpop.f32.mrb[0].mxu0
    %v7131 = vpop.f32.mrb[0].mxu0
    %v7132 = vpop.f32.mrb[0].mxu0
    %7133 = vdwg.mxu0
    %v7134 = vld [vmem:[#allocation7] sm:$0xff]
    %v7135 = vld [vmem:[#allocation7 + $0x8] sm:$0xff]
    %v7136 = vld [vmem:[#allocation7 + $0x10] sm:$0xff]
    %v7137 = vld [vmem:[#allocation7 + $0x18] sm:$0xff]
    %v7138 = vld [vmem:[#allocation22] sm:$0xf]
    %v7139 = vld [vmem:[#allocation22 + $0x4] sm:$0xf]
    %v7140 = vld [vmem:[#allocation22 + $0x8] sm:$0xf]
    %v7141 = vld [vmem:[#allocation22 + $0xc] sm:$0xf]
    %v7142 = vld [vmem:[#allocation22 + $0x10] sm:$0xf]
    %v7143 = vld [vmem:[#allocation22 + $0x14] sm:$0xf]
    %v7144 = vld [vmem:[#allocation22 + $0x18] sm:$0xf]
    %v7145 = vld [vmem:[#allocation22 + $0x1c] sm:$0xf]
    %v7146 = vld [vmem:[#allocation22 + $0x20] sm:$0xf]
    %v7147 = vld [vmem:[#allocation22 + $0x24] sm:$0xf]
    %v7148 = vld [vmem:[#allocation22 + $0x28] sm:$0xf]
    %v7149 = vld [vmem:[#allocation22 + $0x2c] sm:$0xf]
    %v7150 = vld [vmem:[#allocation22 + $0x30] sm:$0xf]
    %v7151 = vld [vmem:[#allocation22 + $0x34] sm:$0xf]
    %v7152 = vld [vmem:[#allocation22 + $0x38] sm:$0xf]
    %v7153 = vld [vmem:[#allocation22 + $0x3c] sm:$0xf]
    %v7154 = vld [vmem:[#allocation22 + $0x40] sm:$0xf]
    %v7155 = vld [vmem:[#allocation22 + $0x44] sm:$0xf]
    %v7156 = vld [vmem:[#allocation22 + $0x48] sm:$0xf]
    %v7157 = vld [vmem:[#allocation22 + $0x4c] sm:$0xf]
    %v7158 = vld [vmem:[#allocation22 + $0x50] sm:$0xf]
    %v7159 = vld [vmem:[#allocation22 + $0x54] sm:$0xf]
    %v7160 = vld [vmem:[#allocation22 + $0x58] sm:$0xf]
    %v7161 = vld [vmem:[#allocation22 + $0x5c] sm:$0xf]
    %v7162 = vld [vmem:[#allocation22 + $0x60] sm:$0xf]
    %v7163 = vld [vmem:[#allocation22 + $0x64] sm:$0xf]
    %v7164 = vld [vmem:[#allocation22 + $0x68] sm:$0xf]
    %v7165 = vld [vmem:[#allocation22 + $0x6c] sm:$0xf]
    %v7166 = vld [vmem:[#allocation22 + $0x70] sm:$0xf]
    %v7167 = vld [vmem:[#allocation22 + $0x74] sm:$0xf]
    %v7168 = vld [vmem:[#allocation22 + $0x78] sm:$0xf]
    %v7169 = vld [vmem:[#allocation22 + $0x7c] sm:$0xf]
    %v7170 = vld [vmem:[#allocation22 + $0x80] sm:$0xf]
    %v7171 = vld [vmem:[#allocation22 + $0x84] sm:$0xf]
    %v7172 = vld [vmem:[#allocation22 + $0x88] sm:$0xf]
    %v7173 = vld [vmem:[#allocation22 + $0x8c] sm:$0xf]
    %v7174 = vld [vmem:[#allocation22 + $0x90] sm:$0xf]
    %v7175 = vld [vmem:[#allocation22 + $0x94] sm:$0xf]
    %v7176 = vld [vmem:[#allocation22 + $0x98] sm:$0xf]
    %v7177 = vld [vmem:[#allocation22 + $0x9c] sm:$0xf]
    %v7178 = vld [vmem:[#allocation22 + $0xa0] sm:$0xf]
    %v7179 = vld [vmem:[#allocation22 + $0xa4] sm:$0xf]
    %v7180 = vld [vmem:[#allocation22 + $0xa8] sm:$0xf]
    %v7181 = vld [vmem:[#allocation22 + $0xac] sm:$0xf]
    %v7182 = vld [vmem:[#allocation22 + $0xb0] sm:$0xf]
    %v7183 = vld [vmem:[#allocation22 + $0xb4] sm:$0xf]
    %v7184 = vld [vmem:[#allocation22 + $0xb8] sm:$0xf]
    %v7185 = vld [vmem:[#allocation22 + $0xbc] sm:$0xf]
    %v7186 = vld [vmem:[#allocation22 + $0xc0] sm:$0xf]
    %v7187 = vld [vmem:[#allocation22 + $0xc4] sm:$0xf]
    %v7188 = vld [vmem:[#allocation22 + $0xc8] sm:$0xf]
    %v7189 = vld [vmem:[#allocation22 + $0xcc] sm:$0xf]
    %v7190 = vld [vmem:[#allocation22 + $0xd0] sm:$0xf]
    %v7191 = vld [vmem:[#allocation22 + $0xd4] sm:$0xf]
    %v7192 = vld [vmem:[#allocation22 + $0xd8] sm:$0xf]
    %v7193 = vld [vmem:[#allocation22 + $0xdc] sm:$0xf]
    %v7194 = vld [vmem:[#allocation22 + $0xe0] sm:$0xf]
    %v7195 = vld [vmem:[#allocation22 + $0xe4] sm:$0xf]
    %v7196 = vld [vmem:[#allocation22 + $0xe8] sm:$0xf]
    %v7197 = vld [vmem:[#allocation22 + $0xec] sm:$0xf]
    %v7198 = vld [vmem:[#allocation22 + $0xf0] sm:$0xf]
    %v7199 = vld [vmem:[#allocation22 + $0xf4] sm:$0xf]
    %v7200 = vld [vmem:[#allocation22 + $0xf8] sm:$0xf]
    %v7201 = vld [vmem:[#allocation22 + $0xfc] sm:$0xf]
    %v7202 = vld [vmem:[#allocation22 + $0x100] sm:$0xf]
    %v7203 = vld [vmem:[#allocation22 + $0x104] sm:$0xf]
    %v7204 = vld [vmem:[#allocation22 + $0x108] sm:$0xf]
    %v7205 = vld [vmem:[#allocation22 + $0x10c] sm:$0xf]
    %v7206 = vld [vmem:[#allocation22 + $0x110] sm:$0xf]
    %v7207 = vld [vmem:[#allocation22 + $0x114] sm:$0xf]
    %v7208 = vld [vmem:[#allocation22 + $0x118] sm:$0xf]
    %v7209 = vld [vmem:[#allocation22 + $0x11c] sm:$0xf]
    %v7210 = vld [vmem:[#allocation22 + $0x120] sm:$0xf]
    %v7211 = vld [vmem:[#allocation22 + $0x124] sm:$0xf]
    %v7212 = vld [vmem:[#allocation22 + $0x128] sm:$0xf]
    %v7213 = vld [vmem:[#allocation22 + $0x12c] sm:$0xf]
    %v7214 = vld [vmem:[#allocation22 + $0x130] sm:$0xf]
    %v7215 = vld [vmem:[#allocation22 + $0x134] sm:$0xf]
    %v7216 = vld [vmem:[#allocation22 + $0x138] sm:$0xf]
    %v7217 = vld [vmem:[#allocation22 + $0x13c] sm:$0xf]
    %v7218 = vld [vmem:[#allocation22 + $0x140] sm:$0xf]
    %v7219 = vld [vmem:[#allocation22 + $0x144] sm:$0xf]
    %v7220 = vld [vmem:[#allocation22 + $0x148] sm:$0xf]
    %v7221 = vld [vmem:[#allocation22 + $0x14c] sm:$0xf]
    %v7222 = vld [vmem:[#allocation22 + $0x150] sm:$0xf]
    %v7223 = vld [vmem:[#allocation22 + $0x154] sm:$0xf]
    %v7224 = vld [vmem:[#allocation22 + $0x158] sm:$0xf]
    %v7225 = vld [vmem:[#allocation22 + $0x15c] sm:$0xf]
    %v7226 = vld [vmem:[#allocation22 + $0x160] sm:$0xf]
    %v7227 = vld [vmem:[#allocation22 + $0x164] sm:$0xf]
    %v7228 = vld [vmem:[#allocation22 + $0x168] sm:$0xf]
    %v7229 = vld [vmem:[#allocation22 + $0x16c] sm:$0xf]
    %v7230 = vld [vmem:[#allocation22 + $0x170] sm:$0xf]
    %v7231 = vld [vmem:[#allocation22 + $0x174] sm:$0xf]
    %v7232 = vld [vmem:[#allocation22 + $0x178] sm:$0xf]
    %v7233 = vld [vmem:[#allocation22 + $0x17c] sm:$0xf]
    %v7234 = vld [vmem:[#allocation22 + $0x180] sm:$0xf]
    %v7235 = vld [vmem:[#allocation22 + $0x184] sm:$0xf]
    %v7236 = vld [vmem:[#allocation22 + $0x188] sm:$0xf]
    %v7237 = vld [vmem:[#allocation22 + $0x18c] sm:$0xf]
    %v7238 = vld [vmem:[#allocation22 + $0x190] sm:$0xf]
    %v7239 = vld [vmem:[#allocation22 + $0x194] sm:$0xf]
    %v7240 = vld [vmem:[#allocation22 + $0x198] sm:$0xf]
    %v7241 = vld [vmem:[#allocation22 + $0x19c] sm:$0xf]
    %v7242 = vld [vmem:[#allocation22 + $0x1a0] sm:$0xf]
    %v7243 = vld [vmem:[#allocation22 + $0x1a4] sm:$0xf]
    %v7244 = vld [vmem:[#allocation22 + $0x1a8] sm:$0xf]
    %v7245 = vld [vmem:[#allocation22 + $0x1ac] sm:$0xf]
    %v7246 = vld [vmem:[#allocation22 + $0x1b0] sm:$0xf]
    %v7247 = vld [vmem:[#allocation22 + $0x1b4] sm:$0xf]
    %v7248 = vld [vmem:[#allocation22 + $0x1b8] sm:$0xf]
    %v7249 = vld [vmem:[#allocation22 + $0x1bc] sm:$0xf]
    %v7250 = vld [vmem:[#allocation22 + $0x1c0] sm:$0xf]
    %v7251 = vld [vmem:[#allocation22 + $0x1c4] sm:$0xf]
    %v7252 = vld [vmem:[#allocation22 + $0x1c8] sm:$0xf]
    %v7253 = vld [vmem:[#allocation22 + $0x1cc] sm:$0xf]
    %v7254 = vld [vmem:[#allocation22 + $0x1d0] sm:$0xf]
    %v7255 = vld [vmem:[#allocation22 + $0x1d4] sm:$0xf]
    %v7256 = vld [vmem:[#allocation22 + $0x1d8] sm:$0xf]
    %v7257 = vld [vmem:[#allocation22 + $0x1dc] sm:$0xf]
    %v7258 = vld [vmem:[#allocation22 + $0x1e0] sm:$0xf]
    %v7259 = vld [vmem:[#allocation22 + $0x1e4] sm:$0xf]
    %v7260 = vld [vmem:[#allocation22 + $0x1e8] sm:$0xf]
    %v7261 = vld [vmem:[#allocation22 + $0x1ec] sm:$0xf]
    %v7262 = vld [vmem:[#allocation22 + $0x1f0] sm:$0xf]
    %v7263 = vld [vmem:[#allocation22 + $0x1f4] sm:$0xf]
    %v7264 = vld [vmem:[#allocation22 + $0x1f8] sm:$0xf]
    %v7265 = vld [vmem:[#allocation22 + $0x1fc] sm:$0xf]
    %v7266 = vld [vmem:[#allocation23] sm:$0x1]
    %v7268 = vlaneseq
    %v7269 = vshrl.u32 %v7268, 7
    %v7270 = vsub.s32 0, %v7269
    %v7271 = vrot.slane %v7266, %v7270
    %v7277 = vunpack.c.l.b16 %v7134
    %v7278 = vunpack.c.h.b16 %v7134
    %v7279 = vunpack.c.l.b16 %v7135
    %v7280 = vunpack.c.h.b16 %v7135
    %v7281 = vunpack.c.l.b16 %v7136
    %v7282 = vunpack.c.h.b16 %v7136
    %v7283 = vunpack.c.l.b16 %v7137
    %v7284 = vunpack.c.h.b16 %v7137
    %v7285 = vpack.c.b16 %v7277, %v7277
    %v7286 = vpack.c.b16 %v7278, %v7278
    %v7287 = vpack.c.b16 %v7279, %v7279
    %v7288 = vpack.c.b16 %v7280, %v7280
    %v7289 = vpack.c.b16 %v7281, %v7281
    %v7290 = vpack.c.b16 %v7282, %v7282
    %v7291 = vpack.c.b16 %v7283, %v7283
    %v7292 = vpack.c.b16 %v7284, %v7284
    %v7429 = vunpack.c.l.b16 %v7138
    %v7430 = vunpack.c.l.b16 %v7139
    %v7431 = vunpack.c.l.b16 %v7140
    %v7432 = vunpack.c.l.b16 %v7141
    %v7433 = vunpack.c.l.b16 %v7142
    %v7434 = vunpack.c.l.b16 %v7143
    %v7435 = vunpack.c.l.b16 %v7144
    %v7436 = vunpack.c.l.b16 %v7145
    %v7437 = vunpack.c.l.b16 %v7146
    %v7438 = vunpack.c.l.b16 %v7147
    %v7439 = vunpack.c.l.b16 %v7148
    %v7440 = vunpack.c.l.b16 %v7149
    %v7441 = vunpack.c.l.b16 %v7150
    %v7442 = vunpack.c.l.b16 %v7151
    %v7443 = vunpack.c.l.b16 %v7152
    %v7444 = vunpack.c.l.b16 %v7153
    %v7445 = vunpack.c.l.b16 %v7154
    %v7446 = vunpack.c.l.b16 %v7155
    %v7447 = vunpack.c.l.b16 %v7156
    %v7448 = vunpack.c.l.b16 %v7157
    %v7449 = vunpack.c.l.b16 %v7158
    %v7450 = vunpack.c.l.b16 %v7159
    %v7451 = vunpack.c.l.b16 %v7160
    %v7452 = vunpack.c.l.b16 %v7161
    %v7453 = vunpack.c.l.b16 %v7162
    %v7454 = vunpack.c.l.b16 %v7163
    %v7455 = vunpack.c.l.b16 %v7164
    %v7456 = vunpack.c.l.b16 %v7165
    %v7457 = vunpack.c.l.b16 %v7166
    %v7458 = vunpack.c.l.b16 %v7167
    %v7459 = vunpack.c.l.b16 %v7168
    %v7460 = vunpack.c.l.b16 %v7169
    %v7461 = vunpack.c.l.b16 %v7170
    %v7462 = vunpack.c.l.b16 %v7171
    %v7463 = vunpack.c.l.b16 %v7172
    %v7464 = vunpack.c.l.b16 %v7173
    %v7465 = vunpack.c.l.b16 %v7174
    %v7466 = vunpack.c.l.b16 %v7175
    %v7467 = vunpack.c.l.b16 %v7176
    %v7468 = vunpack.c.l.b16 %v7177
    %v7469 = vunpack.c.l.b16 %v7178
    %v7470 = vunpack.c.l.b16 %v7179
    %v7471 = vunpack.c.l.b16 %v7180
    %v7472 = vunpack.c.l.b16 %v7181
    %v7473 = vunpack.c.l.b16 %v7182
    %v7474 = vunpack.c.l.b16 %v7183
    %v7475 = vunpack.c.l.b16 %v7184
    %v7476 = vunpack.c.l.b16 %v7185
    %v7477 = vunpack.c.l.b16 %v7186
    %v7478 = vunpack.c.l.b16 %v7187
    %v7479 = vunpack.c.l.b16 %v7188
    %v7480 = vunpack.c.l.b16 %v7189
    %v7481 = vunpack.c.l.b16 %v7190
    %v7482 = vunpack.c.l.b16 %v7191
    %v7483 = vunpack.c.l.b16 %v7192
    %v7484 = vunpack.c.l.b16 %v7193
    %v7485 = vunpack.c.l.b16 %v7194
    %v7486 = vunpack.c.l.b16 %v7195
    %v7487 = vunpack.c.l.b16 %v7196
    %v7488 = vunpack.c.l.b16 %v7197
    %v7489 = vunpack.c.l.b16 %v7198
    %v7490 = vunpack.c.l.b16 %v7199
    %v7491 = vunpack.c.l.b16 %v7200
    %v7492 = vunpack.c.l.b16 %v7201
    %v7493 = vunpack.c.l.b16 %v7202
    %v7494 = vunpack.c.l.b16 %v7203
    %v7495 = vunpack.c.l.b16 %v7204
    %v7496 = vunpack.c.l.b16 %v7205
    %v7497 = vunpack.c.l.b16 %v7206
    %v7498 = vunpack.c.l.b16 %v7207
    %v7499 = vunpack.c.l.b16 %v7208
    %v7500 = vunpack.c.l.b16 %v7209
    %v7501 = vunpack.c.l.b16 %v7210
    %v7502 = vunpack.c.l.b16 %v7211
    %v7503 = vunpack.c.l.b16 %v7212
    %v7504 = vunpack.c.l.b16 %v7213
    %v7505 = vunpack.c.l.b16 %v7214
    %v7506 = vunpack.c.l.b16 %v7215
    %v7507 = vunpack.c.l.b16 %v7216
    %v7508 = vunpack.c.l.b16 %v7217
    %v7509 = vunpack.c.l.b16 %v7218
    %v7510 = vunpack.c.l.b16 %v7219
    %v7511 = vunpack.c.l.b16 %v7220
    %v7512 = vunpack.c.l.b16 %v7221
    %v7513 = vunpack.c.l.b16 %v7222
    %v7514 = vunpack.c.l.b16 %v7223
    %v7515 = vunpack.c.l.b16 %v7224
    %v7516 = vunpack.c.l.b16 %v7225
    %v7517 = vunpack.c.l.b16 %v7226
    %v7518 = vunpack.c.l.b16 %v7227
    %v7519 = vunpack.c.l.b16 %v7228
    %v7520 = vunpack.c.l.b16 %v7229
    %v7521 = vunpack.c.l.b16 %v7230
    %v7522 = vunpack.c.l.b16 %v7231
    %v7523 = vunpack.c.l.b16 %v7232
    %v7524 = vunpack.c.l.b16 %v7233
    %v7525 = vunpack.c.l.b16 %v7234
    %v7526 = vunpack.c.l.b16 %v7235
    %v7527 = vunpack.c.l.b16 %v7236
    %v7528 = vunpack.c.l.b16 %v7237
    %v7529 = vunpack.c.l.b16 %v7238
    %v7530 = vunpack.c.l.b16 %v7239
    %v7531 = vunpack.c.l.b16 %v7240
    %v7532 = vunpack.c.l.b16 %v7241
    %v7533 = vunpack.c.l.b16 %v7242
    %v7534 = vunpack.c.l.b16 %v7243
    %v7535 = vunpack.c.l.b16 %v7244
    %v7536 = vunpack.c.l.b16 %v7245
    %v7537 = vunpack.c.l.b16 %v7246
    %v7538 = vunpack.c.l.b16 %v7247
    %v7539 = vunpack.c.l.b16 %v7248
    %v7540 = vunpack.c.l.b16 %v7249
    %v7541 = vunpack.c.l.b16 %v7250
    %v7542 = vunpack.c.l.b16 %v7251
    %v7543 = vunpack.c.l.b16 %v7252
    %v7544 = vunpack.c.l.b16 %v7253
    %v7545 = vunpack.c.l.b16 %v7254
    %v7546 = vunpack.c.l.b16 %v7255
    %v7547 = vunpack.c.l.b16 %v7256
    %v7548 = vunpack.c.l.b16 %v7257
    %v7549 = vunpack.c.l.b16 %v7258
    %v7550 = vunpack.c.l.b16 %v7259
    %v7551 = vunpack.c.l.b16 %v7260
    %v7552 = vunpack.c.l.b16 %v7261
    %v7553 = vunpack.c.l.b16 %v7262
    %v7554 = vunpack.c.l.b16 %v7263
    %v7555 = vunpack.c.l.b16 %v7264
    %v7556 = vunpack.c.l.b16 %v7265
    %v7557 = vpack.c.b16 %v7430, %v7429
    %v7558 = vpack.c.b16 %v7432, %v7431
    %v7559 = vpack.c.b16 %v7434, %v7433
    %v7560 = vpack.c.b16 %v7436, %v7435
    %v7561 = vpack.c.b16 %v7438, %v7437
    %v7562 = vpack.c.b16 %v7440, %v7439
    %v7563 = vpack.c.b16 %v7442, %v7441
    %v7564 = vpack.c.b16 %v7444, %v7443
    %v7565 = vpack.c.b16 %v7446, %v7445
    %v7566 = vpack.c.b16 %v7448, %v7447
    %v7567 = vpack.c.b16 %v7450, %v7449
    %v7568 = vpack.c.b16 %v7452, %v7451
    %v7569 = vpack.c.b16 %v7454, %v7453
    %v7570 = vpack.c.b16 %v7456, %v7455
    %v7571 = vpack.c.b16 %v7458, %v7457
    %v7572 = vpack.c.b16 %v7460, %v7459
    %v7573 = vpack.c.b16 %v7462, %v7461
    %v7574 = vpack.c.b16 %v7464, %v7463
    %v7575 = vpack.c.b16 %v7466, %v7465
    %v7576 = vpack.c.b16 %v7468, %v7467
    %v7577 = vpack.c.b16 %v7470, %v7469
    %v7578 = vpack.c.b16 %v7472, %v7471
    %v7579 = vpack.c.b16 %v7474, %v7473
    %v7580 = vpack.c.b16 %v7476, %v7475
    %v7581 = vpack.c.b16 %v7478, %v7477
    %v7582 = vpack.c.b16 %v7480, %v7479
    %v7583 = vpack.c.b16 %v7482, %v7481
    %v7584 = vpack.c.b16 %v7484, %v7483
    %v7585 = vpack.c.b16 %v7486, %v7485
    %v7586 = vpack.c.b16 %v7488, %v7487
    %v7587 = vpack.c.b16 %v7490, %v7489
    %v7588 = vpack.c.b16 %v7492, %v7491
    %v7589 = vpack.c.b16 %v7494, %v7493
    %v7590 = vpack.c.b16 %v7496, %v7495
    %v7591 = vpack.c.b16 %v7498, %v7497
    %v7592 = vpack.c.b16 %v7500, %v7499
    %v7593 = vpack.c.b16 %v7502, %v7501
    %v7594 = vpack.c.b16 %v7504, %v7503
    %v7595 = vpack.c.b16 %v7506, %v7505
    %v7596 = vpack.c.b16 %v7508, %v7507
    %v7597 = vpack.c.b16 %v7510, %v7509
    %v7598 = vpack.c.b16 %v7512, %v7511
    %v7599 = vpack.c.b16 %v7514, %v7513
    %v7600 = vpack.c.b16 %v7516, %v7515
    %v7601 = vpack.c.b16 %v7518, %v7517
    %v7602 = vpack.c.b16 %v7520, %v7519
    %v7603 = vpack.c.b16 %v7522, %v7521
    %v7604 = vpack.c.b16 %v7524, %v7523
    %v7605 = vpack.c.b16 %v7526, %v7525
    %v7606 = vpack.c.b16 %v7528, %v7527
    %v7607 = vpack.c.b16 %v7530, %v7529
    %v7608 = vpack.c.b16 %v7532, %v7531
    %v7609 = vpack.c.b16 %v7534, %v7533
    %v7610 = vpack.c.b16 %v7536, %v7535
    %v7611 = vpack.c.b16 %v7538, %v7537
    %v7612 = vpack.c.b16 %v7540, %v7539
    %v7613 = vpack.c.b16 %v7542, %v7541
    %v7614 = vpack.c.b16 %v7544, %v7543
    %v7615 = vpack.c.b16 %v7546, %v7545
    %v7616 = vpack.c.b16 %v7548, %v7547
    %v7617 = vpack.c.b16 %v7550, %v7549
    %v7618 = vpack.c.b16 %v7552, %v7551
    %v7619 = vpack.c.b16 %v7554, %v7553
    %v7620 = vpack.c.b16 %v7556, %v7555
    %7685 = vmatprep.subr.bf16.mxu0 0
    %7686 = vmatpush1.bf16.msra.mxu0 %v7557
    %7687 = vmatprep.subr.bf16.mxu0 0
    %7688 = vmatpush1.bf16.msra.mxu0 %v7558
    %7689 = vmatprep.subr.bf16.mxu0 0
    %7690 = vmatpush1.bf16.msra.mxu0 %v7559
    %7691 = vmatprep.subr.bf16.mxu0 0
    %7692 = vmatpush1.bf16.msra.mxu0 %v7560
    %7693 = vmatprep.subr.bf16.mxu0 0
    %7694 = vmatpush1.bf16.msra.mxu0 %v7561
    %7695 = vmatprep.subr.bf16.mxu0 0
    %7696 = vmatpush1.bf16.msra.mxu0 %v7562
    %7697 = vmatprep.subr.bf16.mxu0 0
    %7698 = vmatpush1.bf16.msra.mxu0 %v7563
    %7699 = vmatprep.subr.bf16.mxu0 0
    %7700 = vmatpush1.bf16.msra.mxu0 %v7564
    %7701 = vmatprep.subr.bf16.mxu0 0
    %7702 = vmatpush1.bf16.msra.mxu0 %v7565
    %7703 = vmatprep.subr.bf16.mxu0 0
    %7704 = vmatpush1.bf16.msra.mxu0 %v7566
    %7705 = vmatprep.subr.bf16.mxu0 0
    %7706 = vmatpush1.bf16.msra.mxu0 %v7567
    %7707 = vmatprep.subr.bf16.mxu0 0
    %7708 = vmatpush1.bf16.msra.mxu0 %v7568
    %7709 = vmatprep.subr.bf16.mxu0 0
    %7710 = vmatpush1.bf16.msra.mxu0 %v7569
    %7711 = vmatprep.subr.bf16.mxu0 0
    %7712 = vmatpush1.bf16.msra.mxu0 %v7570
    %7713 = vmatprep.subr.bf16.mxu0 0
    %7714 = vmatpush1.bf16.msra.mxu0 %v7571
    %7715 = vmatprep.subr.bf16.mxu0 0
    %7716 = vmatpush1.bf16.msra.mxu0 %v7572
    %7717 = vmatprep.mubr.bf16.mxu0 %v7286
    %7718 = vmatmul.mubr.bf16.gmra.mrb[0].mxu0 %v7285
    %v7719 = vpop.f32.mrb[0].mxu0
    %v7720 = vadd.f32 %v7271, %v7719
    %v7721 = vpop.f32.mrb[0].mxu0
    %v7722 = vpop.f32.mrb[0].mxu0
    %v7723 = vpop.f32.mrb[0].mxu0
    %7724 = vdwg.mxu0
    %7725 = vmatprep.subr.bf16.mxu0 0
    %7726 = vmatpush1.bf16.msra.mxu0 %v7573
    %7727 = vmatprep.subr.bf16.mxu0 0
    %7728 = vmatpush1.bf16.msra.mxu0 %v7574
    %7729 = vmatprep.subr.bf16.mxu0 0
    %7730 = vmatpush1.bf16.msra.mxu0 %v7575
    %7731 = vmatprep.subr.bf16.mxu0 0
    %7732 = vmatpush1.bf16.msra.mxu0 %v7576
    %7733 = vmatprep.subr.bf16.mxu0 0
    %7734 = vmatpush1.bf16.msra.mxu0 %v7577
    %7735 = vmatprep.subr.bf16.mxu0 0
    %7736 = vmatpush1.bf16.msra.mxu0 %v7578
    %7737 = vmatprep.subr.bf16.mxu0 0
    %7738 = vmatpush1.bf16.msra.mxu0 %v7579
    %7739 = vmatprep.subr.bf16.mxu0 0
    %7740 = vmatpush1.bf16.msra.mxu0 %v7580
    %7741 = vmatprep.subr.bf16.mxu0 0
    %7742 = vmatpush1.bf16.msra.mxu0 %v7581
    %7743 = vmatprep.subr.bf16.mxu0 0
    %7744 = vmatpush1.bf16.msra.mxu0 %v7582
    %7745 = vmatprep.subr.bf16.mxu0 0
    %7746 = vmatpush1.bf16.msra.mxu0 %v7583
    %7747 = vmatprep.subr.bf16.mxu0 0
    %7748 = vmatpush1.bf16.msra.mxu0 %v7584
    %7749 = vmatprep.subr.bf16.mxu0 0
    %7750 = vmatpush1.bf16.msra.mxu0 %v7585
    %7751 = vmatprep.subr.bf16.mxu0 0
    %7752 = vmatpush1.bf16.msra.mxu0 %v7586
    %7753 = vmatprep.subr.bf16.mxu0 0
    %7754 = vmatpush1.bf16.msra.mxu0 %v7587
    %7755 = vmatprep.subr.bf16.mxu0 0
    %7756 = vmatpush1.bf16.msra.mxu0 %v7588
    %7757 = vmatprep.mubr.bf16.mxu0 %v7288
    %7758 = vmatmul.mubr.bf16.gmra.mrb[0].mxu0 %v7287
    %v7759 = vpop.f32.mrb[0].mxu0
    %v7760 = vadd.f32 %v7720, %v7759
    %v7761 = vpop.f32.mrb[0].mxu0
    %v7762 = vpop.f32.mrb[0].mxu0
    %v7763 = vpop.f32.mrb[0].mxu0
    %7764 = vdwg.mxu0
    %7765 = vmatprep.subr.bf16.mxu0 0
    %7766 = vmatpush1.bf16.msra.mxu0 %v7589
    %7767 = vmatprep.subr.bf16.mxu0 0
    %7768 = vmatpush1.bf16.msra.mxu0 %v7590
    %7769 = vmatprep.subr.bf16.mxu0 0
    %7770 = vmatpush1.bf16.msra.mxu0 %v7591
    %7771 = vmatprep.subr.bf16.mxu0 0
    %7772 = vmatpush1.bf16.msra.mxu0 %v7592
    %7773 = vmatprep.subr.bf16.mxu0 0
    %7774 = vmatpush1.bf16.msra.mxu0 %v7593
    %7775 = vmatprep.subr.bf16.mxu0 0
    %7776 = vmatpush1.bf16.msra.mxu0 %v7594
    %7777 = vmatprep.subr.bf16.mxu0 0
    %7778 = vmatpush1.bf16.msra.mxu0 %v7595
    %7779 = vmatprep.subr.bf16.mxu0 0
    %7780 = vmatpush1.bf16.msra.mxu0 %v7596
    %7781 = vmatprep.subr.bf16.mxu0 0
    %7782 = vmatpush1.bf16.msra.mxu0 %v7597
    %7783 = vmatprep.subr.bf16.mxu0 0
    %7784 = vmatpush1.bf16.msra.mxu0 %v7598
    %7785 = vmatprep.subr.bf16.mxu0 0
    %7786 = vmatpush1.bf16.msra.mxu0 %v7599
    %7787 = vmatprep.subr.bf16.mxu0 0
    %7788 = vmatpush1.bf16.msra.mxu0 %v7600
    %7789 = vmatprep.subr.bf16.mxu0 0
    %7790 = vmatpush1.bf16.msra.mxu0 %v7601
    %7791 = vmatprep.subr.bf16.mxu0 0
    %7792 = vmatpush1.bf16.msra.mxu0 %v7602
    %7793 = vmatprep.subr.bf16.mxu0 0
    %7794 = vmatpush1.bf16.msra.mxu0 %v7603
    %7795 = vmatprep.subr.bf16.mxu0 0
    %7796 = vmatpush1.bf16.msra.mxu0 %v7604
    %7797 = vmatprep.mubr.bf16.mxu0 %v7290
    %7798 = vmatmul.mubr.bf16.gmra.mrb[0].mxu0 %v7289
    %v7799 = vpop.f32.mrb[0].mxu0
    %v7800 = vadd.f32 %v7760, %v7799
    %v7801 = vpop.f32.mrb[0].mxu0
    %v7802 = vpop.f32.mrb[0].mxu0
    %v7803 = vpop.f32.mrb[0].mxu0
    %7804 = vdwg.mxu0
    %7805 = vmatprep.subr.bf16.mxu0 0
    %7806 = vmatpush1.bf16.msra.mxu0 %v7605
    %7807 = vmatprep.subr.bf16.mxu0 0
    %7808 = vmatpush1.bf16.msra.mxu0 %v7606
    %7809 = vmatprep.subr.bf16.mxu0 0
    %7810 = vmatpush1.bf16.msra.mxu0 %v7607
    %7811 = vmatprep.subr.bf16.mxu0 0
    %7812 = vmatpush1.bf16.msra.mxu0 %v7608
    %7813 = vmatprep.subr.bf16.mxu0 0
    %7814 = vmatpush1.bf16.msra.mxu0 %v7609
    %7815 = vmatprep.subr.bf16.mxu0 0
    %7816 = vmatpush1.bf16.msra.mxu0 %v7610
    %7817 = vmatprep.subr.bf16.mxu0 0
    %7818 = vmatpush1.bf16.msra.mxu0 %v7611
    %7819 = vmatprep.subr.bf16.mxu0 0
    %7820 = vmatpush1.bf16.msra.mxu0 %v7612
    %7821 = vmatprep.subr.bf16.mxu0 0
    %7822 = vmatpush1.bf16.msra.mxu0 %v7613
    %7823 = vmatprep.subr.bf16.mxu0 0
    %7824 = vmatpush1.bf16.msra.mxu0 %v7614
    %7825 = vmatprep.subr.bf16.mxu0 0
    %7826 = vmatpush1.bf16.msra.mxu0 %v7615
    %7827 = vmatprep.subr.bf16.mxu0 0
    %7828 = vmatpush1.bf16.msra.mxu0 %v7616
    %7829 = vmatprep.subr.bf16.mxu0 0
    %7830 = vmatpush1.bf16.msra.mxu0 %v7617
    %7831 = vmatprep.subr.bf16.mxu0 0
    %7832 = vmatpush1.bf16.msra.mxu0 %v7618
    %7833 = vmatprep.subr.bf16.mxu0 0
    %7834 = vmatpush1.bf16.msra.mxu0 %v7619
    %7835 = vmatprep.subr.bf16.mxu0 0
    %7836 = vmatpush1.bf16.msra.mxu0 %v7620
    %7837 = vmatprep.mubr.bf16.mxu0 %v7292
    %7838 = vmatmul.mubr.bf16.gmra.mrb[0].mxu0 %v7291
    %v7839 = vpop.f32.mrb[0].mxu0
    %v7840 = vadd.f32 %v7800, %v7839
    %v7841 = vpop.f32.mrb[0].mxu0
    %v7842 = vpop.f32.mrb[0].mxu0
    %v7843 = vpop.f32.mrb[0].mxu0
    %7844 = vdwg.mxu0
    %v7845 = vpack.c.bf16 %v3743, %v3743
    %v7846 = vld [vmem:[#allocation25] sm:$0xf]
    %v7847 = vld [vmem:[#allocation25 + $0x4] sm:$0xf]
    %v7848 = vld [vmem:[#allocation25 + $0x8] sm:$0xf]
    %v7849 = vld [vmem:[#allocation25 + $0xc] sm:$0xf]
    %v7850 = vld [vmem:[#allocation25 + $0x10] sm:$0xf]
    %v7851 = vld [vmem:[#allocation25 + $0x14] sm:$0xf]
    %v7852 = vld [vmem:[#allocation25 + $0x18] sm:$0xf]
    %v7853 = vld [vmem:[#allocation25 + $0x1c] sm:$0xf]
    %v7854 = vpack.c.bf16 %v7129, %v7129
    %v7855 = vld [vmem:[#allocation26] sm:$0xf]
    %v7856 = vld [vmem:[#allocation26 + $0x4] sm:$0xf]
    %v7857 = vld [vmem:[#allocation26 + $0x8] sm:$0xf]
    %v7858 = vld [vmem:[#allocation26 + $0xc] sm:$0xf]
    %v7859 = vld [vmem:[#allocation26 + $0x10] sm:$0xf]
    %v7860 = vld [vmem:[#allocation26 + $0x14] sm:$0xf]
    %v7861 = vld [vmem:[#allocation26 + $0x18] sm:$0xf]
    %v7862 = vld [vmem:[#allocation26 + $0x1c] sm:$0xf]
    %v7871 = vunpack.c.l.b16 %v7855
    %v7872 = vunpack.c.l.b16 %v7856
    %v7873 = vunpack.c.l.b16 %v7857
    %v7874 = vunpack.c.l.b16 %v7858
    %v7875 = vunpack.c.l.b16 %v7859
    %v7876 = vunpack.c.l.b16 %v7860
    %v7877 = vunpack.c.l.b16 %v7861
    %v7878 = vunpack.c.l.b16 %v7862
    %v7879 = vpack.c.b16 %v7872, %v7871
    %v7880 = vpack.c.b16 %v7874, %v7873
    %v7881 = vpack.c.b16 %v7876, %v7875
    %v7882 = vpack.c.b16 %v7878, %v7877
    %vm7887 = vcmask 523264
    %v7889 = vsel %vm7887, %v7854, 0
    %7891 = vmatprep.subr.bf16.mxu0 0
    %7892 = vmatpush1.bf16.msra.mxu0 %v7879
    %7893 = vmatprep.subr.bf16.mxu0 0
    %7894 = vmatpush1.bf16.msra.mxu0 %v7880
    %7895 = vmatprep.subr.bf16.mxu0 0
    %7896 = vmatpush1.bf16.msra.mxu0 %v7881
    %7897 = vmatprep.subr.bf16.mxu0 0
    %7898 = vmatpush1.bf16.msra.mxu0 %v7882
    %7899 = vmatprep.subr.bf16.mxu0 0
    %7900 = vmatpush1.bf16.msra.mxu0 0
    %7901 = vmatprep.subr.bf16.mxu0 0
    %7902 = vmatpush1.bf16.msra.mxu0 0
    %7903 = vmatprep.subr.bf16.mxu0 0
    %7904 = vmatpush1.bf16.msra.mxu0 0
    %7905 = vmatprep.subr.bf16.mxu0 0
    %7906 = vmatpush1.bf16.msra.mxu0 0
    %7907 = vmatprep.subr.bf16.mxu0 0
    %7908 = vmatpush1.bf16.msra.mxu0 0
    %7909 = vmatprep.subr.bf16.mxu0 0
    %7910 = vmatpush1.bf16.msra.mxu0 0
    %7911 = vmatprep.subr.bf16.mxu0 0
    %7912 = vmatpush1.bf16.msra.mxu0 0
    %7913 = vmatprep.subr.bf16.mxu0 0
    %7914 = vmatpush1.bf16.msra.mxu0 0
    %7915 = vmatprep.subr.bf16.mxu0 0
    %7916 = vmatpush1.bf16.msra.mxu0 0
    %7917 = vmatprep.subr.bf16.mxu0 0
    %7918 = vmatpush1.bf16.msra.mxu0 0
    %7919 = vmatprep.subr.bf16.mxu0 0
    %7920 = vmatpush1.bf16.msra.mxu0 0
    %7921 = vmatprep.subr.bf16.mxu0 0
    %7922 = vmatpush1.bf16.msra.mxu0 0
    %7923 = vmatprep.mubr.bf16.mxu0 0
    %7924 = vmatmul.mubr.bf16.gmra.mrb[0].mxu0 %v7889
    %v7925 = vpop.f32.mrb[0].mxu0
    %v7926 = vadd.f32 0.0, %v7925
    %v7927 = vpop.f32.mrb[0].mxu0
    %v7928 = vpop.f32.mrb[0].mxu0
    %v7929 = vpop.f32.mrb[0].mxu0
    %7930 = vdwg.mxu0
    %v7939 = vunpack.c.l.b16 %v7846
    %v7940 = vunpack.c.l.b16 %v7847
    %v7941 = vunpack.c.l.b16 %v7848
    %v7942 = vunpack.c.l.b16 %v7849
    %v7943 = vunpack.c.l.b16 %v7850
    %v7944 = vunpack.c.l.b16 %v7851
    %v7945 = vunpack.c.l.b16 %v7852
    %v7946 = vunpack.c.l.b16 %v7853
    %v7947 = vpack.c.b16 %v7940, %v7939
    %v7948 = vpack.c.b16 %v7942, %v7941
    %v7949 = vpack.c.b16 %v7944, %v7943
    %v7950 = vpack.c.b16 %v7946, %v7945
    %v7956 = vsel %vm7887, %v7845, 0
    %7958 = vmatprep.subr.bf16.mxu0 0
    %7959 = vmatpush1.bf16.msra.mxu0 %v7947
    %7960 = vmatprep.subr.bf16.mxu0 0
    %7961 = vmatpush1.bf16.msra.mxu0 %v7948
    %7962 = vmatprep.subr.bf16.mxu0 0
    %7963 = vmatpush1.bf16.msra.mxu0 %v7949
    %7964 = vmatprep.subr.bf16.mxu0 0
    %7965 = vmatpush1.bf16.msra.mxu0 %v7950
    %7966 = vmatprep.subr.bf16.mxu0 0
    %7967 = vmatpush1.bf16.msra.mxu0 0
    %7968 = vmatprep.subr.bf16.mxu0 0
    %7969 = vmatpush1.bf16.msra.mxu0 0
    %7970 = vmatprep.subr.bf16.mxu0 0
    %7971 = vmatpush1.bf16.msra.mxu0 0
    %7972 = vmatprep.subr.bf16.mxu0 0
    %7973 = vmatpush1.bf16.msra.mxu0 0
    %7974 = vmatprep.subr.bf16.mxu0 0
    %7975 = vmatpush1.bf16.msra.mxu0 0
    %7976 = vmatprep.subr.bf16.mxu0 0
    %7977 = vmatpush1.bf16.msra.mxu0 0
    %7978 = vmatprep.subr.bf16.mxu0 0
    %7979 = vmatpush1.bf16.msra.mxu0 0
    %7980 = vmatprep.subr.bf16.mxu0 0
    %7981 = vmatpush1.bf16.msra.mxu0 0
    %7982 = vmatprep.subr.bf16.mxu0 0
    %7983 = vmatpush1.bf16.msra.mxu0 0
    %7984 = vmatprep.subr.bf16.mxu0 0
    %7985 = vmatpush1.bf16.msra.mxu0 0
    %7986 = vmatprep.subr.bf16.mxu0 0
    %7987 = vmatpush1.bf16.msra.mxu0 0
    %7988 = vmatprep.subr.bf16.mxu0 0
    %7989 = vmatpush1.bf16.msra.mxu0 0
    %7990 = vmatprep.mubr.bf16.mxu0 0
    %7991 = vmatmul.mubr.bf16.gmra.mrb[0].mxu0 %v7956
    %v7992 = vpop.f32.mrb[0].mxu0
    %v7993 = vadd.f32 %v7926, %v7992
    %v7994 = vpop.f32.mrb[0].mxu0
    %v7995 = vpop.f32.mrb[0].mxu0
    %v7996 = vpop.f32.mrb[0].mxu0
    %7997 = vdwg.mxu0
    %v7998 = vpack.c.bf16 %v7840, %v7840
    %v7999 = vld [vmem:[#allocation28] sm:$0xf]
    %v8000 = vld [vmem:[#allocation28 + $0x4] sm:$0xf]
    %v8001 = vld [vmem:[#allocation28 + $0x8] sm:$0xf]
    %v8002 = vld [vmem:[#allocation28 + $0xc] sm:$0xf]
    %v8003 = vld [vmem:[#allocation28 + $0x10] sm:$0xf]
    %v8004 = vld [vmem:[#allocation28 + $0x14] sm:$0xf]
    %v8005 = vld [vmem:[#allocation28 + $0x18] sm:$0xf]
    %v8006 = vld [vmem:[#allocation28 + $0x1c] sm:$0xf]
    %v8007 = vld [vmem:[#allocation28 + $0x20] sm:$0xf]
    %v8008 = vld [vmem:[#allocation28 + $0x24] sm:$0xf]
    %v8009 = vld [vmem:[#allocation28 + $0x28] sm:$0xf]
    %v8010 = vld [vmem:[#allocation28 + $0x2c] sm:$0xf]
    %v8011 = vld [vmem:[#allocation28 + $0x30] sm:$0xf]
    %v8012 = vld [vmem:[#allocation28 + $0x34] sm:$0xf]
    %v8013 = vld [vmem:[#allocation28 + $0x38] sm:$0xf]
    %v8014 = vld [vmem:[#allocation28 + $0x3c] sm:$0xf]
    %v8031 = vunpack.c.l.b16 %v7999
    %v8032 = vunpack.c.l.b16 %v8000
    %v8033 = vunpack.c.l.b16 %v8001
    %v8034 = vunpack.c.l.b16 %v8002
    %v8035 = vunpack.c.l.b16 %v8003
    %v8036 = vunpack.c.l.b16 %v8004
    %v8037 = vunpack.c.l.b16 %v8005
    %v8038 = vunpack.c.l.b16 %v8006
    %v8039 = vunpack.c.l.b16 %v8007
    %v8040 = vunpack.c.l.b16 %v8008
    %v8041 = vunpack.c.l.b16 %v8009
    %v8042 = vunpack.c.l.b16 %v8010
    %v8043 = vunpack.c.l.b16 %v8011
    %v8044 = vunpack.c.l.b16 %v8012
    %v8045 = vunpack.c.l.b16 %v8013
    %v8046 = vunpack.c.l.b16 %v8014
    %v8047 = vpack.c.b16 %v8032, %v8031
    %v8048 = vpack.c.b16 %v8034, %v8033
    %v8049 = vpack.c.b16 %v8036, %v8035
    %v8050 = vpack.c.b16 %v8038, %v8037
    %v8051 = vpack.c.b16 %v8040, %v8039
    %v8052 = vpack.c.b16 %v8042, %v8041
    %v8053 = vpack.c.b16 %v8044, %v8043
    %v8054 = vpack.c.b16 %v8046, %v8045
    %8063 = vmatprep.subr.bf16.mxu0 0
    %8064 = vmatpush1.bf16.msra.mxu0 %v8047
    %8065 = vmatprep.subr.bf16.mxu0 0
    %8066 = vmatpush1.bf16.msra.mxu0 %v8048
    %8067 = vmatprep.subr.bf16.mxu0 0
    %8068 = vmatpush1.bf16.msra.mxu0 %v8049
    %8069 = vmatprep.subr.bf16.mxu0 0
    %8070 = vmatpush1.bf16.msra.mxu0 %v8050
    %8071 = vmatprep.subr.bf16.mxu0 0
    %8072 = vmatpush1.bf16.msra.mxu0 %v8051
    %8073 = vmatprep.subr.bf16.mxu0 0
    %8074 = vmatpush1.bf16.msra.mxu0 %v8052
    %8075 = vmatprep.subr.bf16.mxu0 0
    %8076 = vmatpush1.bf16.msra.mxu0 %v8053
    %8077 = vmatprep.subr.bf16.mxu0 0
    %8078 = vmatpush1.bf16.msra.mxu0 %v8054
    %8079 = vmatprep.subr.bf16.mxu0 0
    %8080 = vmatpush1.bf16.msra.mxu0 0
    %8081 = vmatprep.subr.bf16.mxu0 0
    %8082 = vmatpush1.bf16.msra.mxu0 0
    %8083 = vmatprep.subr.bf16.mxu0 0
    %8084 = vmatpush1.bf16.msra.mxu0 0
    %8085 = vmatprep.subr.bf16.mxu0 0
    %8086 = vmatpush1.bf16.msra.mxu0 0
    %8087 = vmatprep.subr.bf16.mxu0 0
    %8088 = vmatpush1.bf16.msra.mxu0 0
    %8089 = vmatprep.subr.bf16.mxu0 0
    %8090 = vmatpush1.bf16.msra.mxu0 0
    %8091 = vmatprep.subr.bf16.mxu0 0
    %8092 = vmatpush1.bf16.msra.mxu0 0
    %8093 = vmatprep.subr.bf16.mxu0 0
    %8094 = vmatpush1.bf16.msra.mxu0 0
    %8095 = vmatprep.mubr.bf16.mxu0 0
    %8096 = vmatmul.mubr.bf16.gmra.mrb[0].mxu0 %v7998
    %v8097 = vpop.f32.mrb[0].mxu0
    %v8098 = vadd.f32 0.0, %v8097
    %v8099 = vpop.f32.mrb[0].mxu0
    %v8100 = vpop.f32.mrb[0].mxu0
    %v8101 = vpop.f32.mrb[0].mxu0
    %8102 = vdwg.mxu0
    %v8103 = vadd.f32 %v7993, %v8098
    %v8104 = vld [vmem:[#allocation29] sm:$0x1]
    %v8106 = vlaneseq
    %v8107 = vshrl.u32 %v8106, 7
    %v8108 = vsub.s32 0, %v8107
    %v8109 = vrot.slane %v8104, %v8108
    %v8111 = vadd.f32 %v8103, %v8109
    %v8112 = vmax.f32 %v8111, 0.0
    %v8113 = vpack.c.bf16 %v8112, %v8112
    %v8114 = vld [vmem:[#allocation31] sm:$0xf]
    %v8115 = vld [vmem:[#allocation31 + $0x4] sm:$0xf]
    %v8116 = vld [vmem:[#allocation31 + $0x8] sm:$0xf]
    %v8117 = vld [vmem:[#allocation31 + $0xc] sm:$0xf]
    %v8118 = vld [vmem:[#allocation31 + $0x10] sm:$0xf]
    %v8119 = vld [vmem:[#allocation31 + $0x14] sm:$0xf]
    %v8120 = vld [vmem:[#allocation31 + $0x18] sm:$0xf]
    %v8121 = vld [vmem:[#allocation31 + $0x1c] sm:$0xf]
    %v8122 = vld [vmem:[#allocation31 + $0x20] sm:$0xf]
    %v8123 = vld [vmem:[#allocation31 + $0x24] sm:$0xf]
    %v8124 = vld [vmem:[#allocation31 + $0x28] sm:$0xf]
    %v8125 = vld [vmem:[#allocation31 + $0x2c] sm:$0xf]
    %v8126 = vld [vmem:[#allocation31 + $0x30] sm:$0xf]
    %v8127 = vld [vmem:[#allocation31 + $0x34] sm:$0xf]
    %v8128 = vld [vmem:[#allocation31 + $0x38] sm:$0xf]
    %v8129 = vld [vmem:[#allocation31 + $0x3c] sm:$0xf]
    %v8130 = vld [vmem:[#allocation32] sm:$0x1]
    %v8132 = vlaneseq
    %v8133 = vshrl.u32 %v8132, 7
    %v8134 = vsub.s32 0, %v8133
    %v8135 = vrot.slane %v8130, %v8134
    %v8153 = vunpack.c.l.b16 %v8114
    %v8154 = vunpack.c.l.b16 %v8115
    %v8155 = vunpack.c.l.b16 %v8116
    %v8156 = vunpack.c.l.b16 %v8117
    %v8157 = vunpack.c.l.b16 %v8118
    %v8158 = vunpack.c.l.b16 %v8119
    %v8159 = vunpack.c.l.b16 %v8120
    %v8160 = vunpack.c.l.b16 %v8121
    %v8161 = vunpack.c.l.b16 %v8122
    %v8162 = vunpack.c.l.b16 %v8123
    %v8163 = vunpack.c.l.b16 %v8124
    %v8164 = vunpack.c.l.b16 %v8125
    %v8165 = vunpack.c.l.b16 %v8126
    %v8166 = vunpack.c.l.b16 %v8127
    %v8167 = vunpack.c.l.b16 %v8128
    %v8168 = vunpack.c.l.b16 %v8129
    %v8169 = vpack.c.b16 %v8154, %v8153
    %v8170 = vpack.c.b16 %v8156, %v8155
    %v8171 = vpack.c.b16 %v8158, %v8157
    %v8172 = vpack.c.b16 %v8160, %v8159
    %v8173 = vpack.c.b16 %v8162, %v8161
    %v8174 = vpack.c.b16 %v8164, %v8163
    %v8175 = vpack.c.b16 %v8166, %v8165
    %v8176 = vpack.c.b16 %v8168, %v8167
    %8185 = vmatprep.subr.bf16.mxu0 0
    %8186 = vmatpush1.bf16.msra.mxu0 %v8169
    %8187 = vmatprep.subr.bf16.mxu0 0
    %8188 = vmatpush1.bf16.msra.mxu0 %v8170
    %8189 = vmatprep.subr.bf16.mxu0 0
    %8190 = vmatpush1.bf16.msra.mxu0 %v8171
    %8191 = vmatprep.subr.bf16.mxu0 0
    %8192 = vmatpush1.bf16.msra.mxu0 %v8172
    %8193 = vmatprep.subr.bf16.mxu0 0
    %8194 = vmatpush1.bf16.msra.mxu0 %v8173
    %8195 = vmatprep.subr.bf16.mxu0 0
    %8196 = vmatpush1.bf16.msra.mxu0 %v8174
    %8197 = vmatprep.subr.bf16.mxu0 0
    %8198 = vmatpush1.bf16.msra.mxu0 %v8175
    %8199 = vmatprep.subr.bf16.mxu0 0
    %8200 = vmatpush1.bf16.msra.mxu0 %v8176
    %8201 = vmatprep.subr.bf16.mxu0 0
    %8202 = vmatpush1.bf16.msra.mxu0 0
    %8203 = vmatprep.subr.bf16.mxu0 0
    %8204 = vmatpush1.bf16.msra.mxu0 0
    %8205 = vmatprep.subr.bf16.mxu0 0
    %8206 = vmatpush1.bf16.msra.mxu0 0
    %8207 = vmatprep.subr.bf16.mxu0 0
    %8208 = vmatpush1.bf16.msra.mxu0 0
    %8209 = vmatprep.subr.bf16.mxu0 0
    %8210 = vmatpush1.bf16.msra.mxu0 0
    %8211 = vmatprep.subr.bf16.mxu0 0
    %8212 = vmatpush1.bf16.msra.mxu0 0
    %8213 = vmatprep.subr.bf16.mxu0 0
    %8214 = vmatpush1.bf16.msra.mxu0 0
    %8215 = vmatprep.subr.bf16.mxu0 0
    %8216 = vmatpush1.bf16.msra.mxu0 0
    %8217 = vmatprep.mubr.bf16.mxu0 0
    %8218 = vmatmul.mubr.bf16.gmra.mrb[0].mxu0 %v8113
    %v8219 = vpop.f32.mrb[0].mxu0
    %v8220 = vadd.f32 %v8135, %v8219
    %v8221 = vpop.f32.mrb[0].mxu0
    %v8222 = vpop.f32.mrb[0].mxu0
    %v8223 = vpop.f32.mrb[0].mxu0
    %8224 = vdwg.mxu0
    %v8225 = vmax.f32 %v8220, 0.0
    %v8226 = vpack.c.bf16 %v8225, %v8225
    %v8227 = vld [vmem:[#allocation34] sm:$0xf]
    %v8228 = vld [vmem:[#allocation34 + $0x4] sm:$0xf]
    %v8229 = vld [vmem:[#allocation34 + $0x8] sm:$0xf]
    %v8230 = vld [vmem:[#allocation34 + $0xc] sm:$0xf]
    %v8231 = vld [vmem:[#allocation34 + $0x10] sm:$0xf]
    %v8232 = vld [vmem:[#allocation34 + $0x14] sm:$0xf]
    %v8233 = vld [vmem:[#allocation34 + $0x18] sm:$0xf]
    %v8234 = vld [vmem:[#allocation34 + $0x1c] sm:$0xf]
    %v8235 = vld [vmem:[#allocation34 + $0x20] sm:$0xf]
    %v8236 = vld [vmem:[#allocation34 + $0x24] sm:$0xf]
    %v8237 = vld [vmem:[#allocation34 + $0x28] sm:$0xf]
    %v8238 = vld [vmem:[#allocation34 + $0x2c] sm:$0xf]
    %v8239 = vld [vmem:[#allocation34 + $0x30] sm:$0xf]
    %v8240 = vld [vmem:[#allocation34 + $0x34] sm:$0xf]
    %v8241 = vld [vmem:[#allocation34 + $0x38] sm:$0xf]
    %v8242 = vld [vmem:[#allocation34 + $0x3c] sm:$0xf]
    %v8243 = vld [vmem:[#allocation35] sm:$0x1]
    %v8245 = vlaneseq
    %v8246 = vshrl.u32 %v8245, 7
    %v8247 = vsub.s32 0, %v8246
    %v8248 = vrot.slane %v8243, %v8247
    %v8266 = vunpack.c.l.b16 %v8227
    %v8267 = vunpack.c.l.b16 %v8228
    %v8268 = vunpack.c.l.b16 %v8229
    %v8269 = vunpack.c.l.b16 %v8230
    %v8270 = vunpack.c.l.b16 %v8231
    %v8271 = vunpack.c.l.b16 %v8232
    %v8272 = vunpack.c.l.b16 %v8233
    %v8273 = vunpack.c.l.b16 %v8234
    %v8274 = vunpack.c.l.b16 %v8235
    %v8275 = vunpack.c.l.b16 %v8236
    %v8276 = vunpack.c.l.b16 %v8237
    %v8277 = vunpack.c.l.b16 %v8238
    %v8278 = vunpack.c.l.b16 %v8239
    %v8279 = vunpack.c.l.b16 %v8240
    %v8280 = vunpack.c.l.b16 %v8241
    %v8281 = vunpack.c.l.b16 %v8242
    %v8282 = vpack.c.b16 %v8267, %v8266
    %v8283 = vpack.c.b16 %v8269, %v8268
    %v8284 = vpack.c.b16 %v8271, %v8270
    %v8285 = vpack.c.b16 %v8273, %v8272
    %v8286 = vpack.c.b16 %v8275, %v8274
    %v8287 = vpack.c.b16 %v8277, %v8276
    %v8288 = vpack.c.b16 %v8279, %v8278
    %v8289 = vpack.c.b16 %v8281, %v8280
    %8298 = vmatprep.subr.bf16.mxu0 0
    %8299 = vmatpush1.bf16.msra.mxu0 %v8282
    %8300 = vmatprep.subr.bf16.mxu0 0
    %8301 = vmatpush1.bf16.msra.mxu0 %v8283
    %8302 = vmatprep.subr.bf16.mxu0 0
    %8303 = vmatpush1.bf16.msra.mxu0 %v8284
    %8304 = vmatprep.subr.bf16.mxu0 0
    %8305 = vmatpush1.bf16.msra.mxu0 %v8285
    %8306 = vmatprep.subr.bf16.mxu0 0
    %8307 = vmatpush1.bf16.msra.mxu0 %v8286
    %8308 = vmatprep.subr.bf16.mxu0 0
    %8309 = vmatpush1.bf16.msra.mxu0 %v8287
    %8310 = vmatprep.subr.bf16.mxu0 0
    %8311 = vmatpush1.bf16.msra.mxu0 %v8288
    %8312 = vmatprep.subr.bf16.mxu0 0
    %8313 = vmatpush1.bf16.msra.mxu0 %v8289
    %8314 = vmatprep.subr.bf16.mxu0 0
    %8315 = vmatpush1.bf16.msra.mxu0 0
    %8316 = vmatprep.subr.bf16.mxu0 0
    %8317 = vmatpush1.bf16.msra.mxu0 0
    %8318 = vmatprep.subr.bf16.mxu0 0
    %8319 = vmatpush1.bf16.msra.mxu0 0
    %8320 = vmatprep.subr.bf16.mxu0 0
    %8321 = vmatpush1.bf16.msra.mxu0 0
    %8322 = vmatprep.subr.bf16.mxu0 0
    %8323 = vmatpush1.bf16.msra.mxu0 0
    %8324 = vmatprep.subr.bf16.mxu0 0
    %8325 = vmatpush1.bf16.msra.mxu0 0
    %8326 = vmatprep.subr.bf16.mxu0 0
    %8327 = vmatpush1.bf16.msra.mxu0 0
    %8328 = vmatprep.subr.bf16.mxu0 0
    %8329 = vmatpush1.bf16.msra.mxu0 0
    %8330 = vmatprep.mubr.bf16.mxu0 0
    %8331 = vmatmul.mubr.bf16.gmra.mrb[0].mxu0 %v8226
    %v8332 = vpop.f32.mrb[0].mxu0
    %v8333 = vadd.f32 %v8248, %v8332
    %v8334 = vpop.f32.mrb[0].mxu0
    %v8335 = vpop.f32.mrb[0].mxu0
    %v8336 = vpop.f32.mrb[0].mxu0
    %8337 = vdwg.mxu0
    %8338 = vst [vmem:[#allocation37] sm:$0xff] %v8333
    // Predicated region
    $region186: #{gcnnet_forward_padded.1} parent=1 // pred_check
      _
    $region187: #{gcnnet_forward_padded.1} parent=1 // pred_check_branch
      %8340 = sbr.rel (0) target = $region189
    $region188: #{gcnnet_forward_padded.1} parent=1 // pred_region
      %s8342 = ssub.s32 128, 128
      %8343 = vsyncadd [#allocation4], %s8342
      %s8345 = sshll.u32 [#allocation37], 4
      %s8346 = int_to_ptr.vmem [resolvable:$true] %s8345
      %8348 = dma.vmem_to_hbm [thread:$0]  %s8346, 128, %s24, [#allocation4]
    $region189: #{gcnnet_forward_padded.1} parent=1 // pred_fallthru
      _
    // Predicated region
    $region190: #{gcnnet_forward_padded.1} parent=1 // pred_check
      _
    $region191: #{gcnnet_forward_padded.1} parent=1 // pred_check_branch
      %8350 = sbr.rel (0) target = $region193
    $region192: #{gcnnet_forward_padded.1} parent=1 // pred_region
      %8351 = dma.done [#allocation4], 128
    $region193: #{gcnnet_forward_padded.1} parent=1 // pred_fallthru
      _
    %8352 = vsyncpa [#allocation3], 1
    %8353 = vsyncpa [#allocation6], 1
    %8354 = vsyncpa [#allocation9], 1
    %8355 = vsyncpa [#allocation12], 1
    %8356 = vsyncpa [#allocation15], 1
    %8357 = vsyncpa [#allocation18], 1
    %8358 = vsyncpa [#allocation21], 1
    %8359 = vsyncpa [#allocation24], 1
    %8360 = vsyncpa [#allocation27], 1
    %8361 = vsyncpa [#allocation30], 1
    %8362 = vsyncpa [#allocation33], 1
    %8363 = vsyncpa [#allocation36], 1
    %8364 = vsyncpa [#allocation4], 1

</llo_original>
